<compile_context>
chip_gen: v7x
topology: tpu7x:2x2x1
jax: 0.10.0
libtpu: 0.0.40
codegen_flags: <defaults>
</compile_context>

<pallas_src>
import jax
import jax.numpy as jnp
from jax.experimental import pallas as pl
from jax.experimental.pallas import tpu as pltpu


# ----------------------------- configuration -------------------------------
B = 2            # batch
C = 3            # input_dim (channels)
T = 8            # sequence length
H = W = 16       # spatial (scaled-down stand-in for the module's 64)
D = C * H * W    # LSTM input size        (module: 64*64*input_dim)
HID = 128        # hidden_size            (module default 512, scaled down;
                 #  multiple of 128 so gate slices stay lane-aligned)
NUM_LAYERS = 3
OUT = H * W      # fc output size         (module: 64*64)
G = 4 * HID      # packed gate width


# ------------------------------- kernel ------------------------------------
def _gates_to_hc(gates, c):
    """gates: (B, 4*HID) f32 pre-activation; PyTorch gate order i, f, g, o."""
    i_g = jax.nn.sigmoid(gates[:, 0 * HID:1 * HID])
    f_g = jax.nn.sigmoid(gates[:, 1 * HID:2 * HID])
    g_g = jnp.tanh(gates[:, 2 * HID:3 * HID])
    o_g = jax.nn.sigmoid(gates[:, 3 * HID:4 * HID])
    c_new = f_g * c + i_g * g_g
    h_new = o_g * jnp.tanh(c_new)
    return h_new, c_new


def deepar_lstm_kernel(x_ref,
                       wih0_ref, whh0_ref, b0_ref,
                       wih1_ref, whh1_ref, b1_ref,
                       wih2_ref, whh2_ref, b2_ref,
                       wfc_ref, bfc_ref,
                       out_ref,
                       xw0_ref):
    """3-layer LSTM (wavefront over time/layers) + final Linear on last step.

    x    : (B*T, D)      bf16  batch-major flattening of (B, T, D)
    wihL : (in_L, 4*HID) bf16  (transposed torch weight_ih_lL)
    whhL : (HID, 4*HID)  bf16  (transposed torch weight_hh_lL)
    bL   : (1, 4*HID)    f32   (bias_ih_lL + bias_hh_lL)
    wfc  : (HID, OUT) bf16, bfc : (1, OUT) f32
    out  : (B, OUT) f32
    xw0  : (B, T, 4*HID) f32   VMEM scratch for the layer-0 input projection
    """
    bf = jnp.bfloat16
    f32 = jnp.float32
    zeros = jnp.zeros((B, HID), f32)

    # Layer-0 input projection hoisted out of the recurrence: one batched MXU
    # matmul (M = B*T rows), bias folded once, parked in VMEM scratch so only
    # the six small (B, HID) state values stay live across the unrolled loop.
    xw0_ref[...] = (jnp.dot(x_ref[...], wih0_ref[...],
                            preferred_element_type=f32)
                    + b0_ref[...]).reshape(B, T, G)

    # ---- t = 0: every h/c starts at zero -> skip all recurrent matmuls ----
    h0, c0 = _gates_to_hc(xw0_ref[:, 0, :], zeros)
    h1, c1 = _gates_to_hc(
        jnp.dot(h0.astype(bf), wih1_ref[...], preferred_element_type=f32)
        + b1_ref[...], zeros)
    h2, c2 = _gates_to_hc(
        jnp.dot(h1.astype(bf), wih2_ref[...], preferred_element_type=f32)
        + b2_ref[...], zeros)

    # ---- t = 1..T-1: wavefront — layer L+1 step t fires as soon as layer L
    # produces h_t, so the critical path is ~T+2 cells instead of 3*T.  The
    # loop is statically unrolled (T fixed) so the scheduler can overlap
    # neighbouring cells; weights/biases are re-indexed from VMEM each use to
    # keep vreg live ranges short.
    for t in range(1, T):
        g0 = xw0_ref[:, t, :] + jnp.dot(h0.astype(bf), whh0_ref[...],
                                        preferred_element_type=f32)
        h0, c0 = _gates_to_hc(g0, c0)

        g1 = (jnp.dot(h0.astype(bf), wih1_ref[...], preferred_element_type=f32)
              + jnp.dot(h1.astype(bf), whh1_ref[...],
                        preferred_element_type=f32)
              + b1_ref[...])
        h1, c1 = _gates_to_hc(g1, c1)

        g2 = (jnp.dot(h1.astype(bf), wih2_ref[...], preferred_element_type=f32)
              + jnp.dot(h2.astype(bf), whh2_ref[...],
                        preferred_element_type=f32)
              + b2_ref[...])
        h2, c2 = _gates_to_hc(g2, c2)

    # ---- final Linear on the last timestep of the top layer ----
    out_ref[...] = (jnp.dot(h2.astype(bf), wfc_ref[...],
                            preferred_element_type=f32)
                    + bfc_ref[...])


# ------------------------------- wrapper ------------------------------------
@jax.jit
def deepar_lstm_forward(x, params):
    """x: (B, C, T, H, W) float32 -> (B, 1, H, W) float32."""
    b, c, t, h, w = x.shape
    d = c * h * w
    # torch semantics: .view(B, T, C*H*W) is a raw row-major reshape; flatten
    # one step further to (B*T, D) (free) so the layer-0 input projection is a
    # single batched MXU matmul.  No time-major transpose needed.
    x_flat = jnp.reshape(x, (b * t, d)).astype(jnp.bfloat16)

    inputs = (x_flat,) + tuple(params)

    # Single invocation, no grid: whole arrays live in VMEM once (no pointless
    # double-buffering of the weights).
    out = pl.pallas_call(
        deepar_lstm_kernel,
        out_shape=jax.ShapeDtypeStruct((b, OUT), jnp.float32),
        scratch_shapes=[pltpu.VMEM((B, T, G), jnp.float32)],
    )(*inputs)

    return out.reshape(b, 1, H, W)


# -------------------------- parameter construction --------------------------
def init_params(key):
    """Weights stored bf16 (MXU operands), biases f32 — cast once, not per call."""
    k = 1.0 / jnp.sqrt(jnp.float32(HID))
    bf = jnp.bfloat16
    keys = jax.random.split(key, 4 * NUM_LAYERS + 2)
    params = []
    in_sizes = [D, HID, HID]
    for layer in range(NUM_LAYERS):
        k0, k1, k2, k3 = keys[4 * layer:4 * layer + 4]
        w_ih = jax.random.uniform(k0, (4 * HID, in_sizes[layer]),
                                  jnp.float32, -k, k)
        w_hh = jax.random.uniform(k1, (4 * HID, HID), jnp.float32, -k, k)
        b_ih = jax.random.uniform(k2, (4 * HID,), jnp.float32, -k, k)
        b_hh = jax.random.uniform(k3, (4 * HID,), jnp.float32, -k, k)
        params += [w_ih.T.astype(bf), w_hh.T.astype(bf),
                   (b_ih + b_hh)[None, :]]
    kf0, kf1 = keys[-2:]
    w_fc = jax.random.uniform(kf0, (OUT, HID), jnp.float32, -k, k)
    b_fc = jax.random.uniform(kf1, (OUT,), jnp.float32, -k, k)
    params += [w_fc.T.astype(bf), b_fc[None, :]]
    return tuple(params)


# --------------------------- pure-JAX reference ------------------------------
def reference_forward(x, params):
    """Same math as the kernel (bf16 matmul operands, f32 accumulation/gates)."""
    b, c, t, h, w = x.shape
    d = c * h * w
    xs = jnp.reshape(x, (b, t, d))
    (wih0, whh0, b0, wih1, whh1, b1, wih2, whh2, b2, wfc, bfc) = params
    bf = jnp.bfloat16

    def run_layer(seq, wih, whh, bias):
        bb, tt, _ = seq.shape
        xw = (jnp.dot(seq.reshape(bb * tt, -1).astype(bf), wih,
                      preferred_element_type=jnp.float32)
              .reshape(bb, tt, 4 * HID) + bias)
        hs = jnp.zeros((bb, HID), jnp.float32)
        cs = jnp.zeros((bb, HID), jnp.float32)
        outs = []
        for ti in range(tt):
            g = xw[:, ti, :] + jnp.dot(hs.astype(bf), whh,
                                       preferred_element_type=jnp.float32)
            i_g = jax.nn.sigmoid(g[:, 0 * HID:1 * HID])
            f_g = jax.nn.sigmoid(g[:, 1 * HID:2 * HID])
            g_g = jnp.tanh(g[:, 2 * HID:3 * HID])
            o_g = jax.nn.sigmoid(g[:, 3 * HID:4 * HID])
            cs = f_g * cs + i_g * g_g
            hs = o_g * jnp.tanh(cs)
            outs.append(hs)
        return jnp.stack(outs, axis=1)

    o0 = run_layer(xs, wih0, whh0, b0)
    o1 = run_layer(o0, wih1, whh1, b1)
    o2 = run_layer(o1, wih2, whh2, b2)
    out = jnp.dot(o2[:, -1, :].astype(bf), wfc,
                  preferred_element_type=jnp.float32) + bfc
    return out.reshape(b, 1, H, W)


if __name__ == "__main__":
    key = jax.random.PRNGKey(0)
    kx, kp = jax.random.split(key)
    x = jax.random.normal(kx, (B, C, T, H, W), jnp.float32)
    params = init_params(kp)

    out = jax.block_until_ready(deepar_lstm_forward(x, params))
    assert out.shape == (B, 1, H, W), out.shape

    ref = jax.block_until_ready(reference_forward(x, params))
    assert jnp.allclose(out, ref, rtol=2e-3, atol=2e-3), (
        float(jnp.max(jnp.abs(out - ref))))

    print("KERNEL_OK")
</pallas_src>

<mosaic_0001>
module attributes {stable_mosaic.version = 11 : i64} {
  func.func @deepar_lstm_kernel(%arg0: memref<16x768xbf16, #tpu.memory_space<vmem>>, %arg1: memref<768x512xbf16, #tpu.memory_space<vmem>>, %arg2: memref<128x512xbf16, #tpu.memory_space<vmem>>, %arg3: memref<1x512xf32, #tpu.memory_space<vmem>>, %arg4: memref<128x512xbf16, #tpu.memory_space<vmem>>, %arg5: memref<128x512xbf16, #tpu.memory_space<vmem>>, %arg6: memref<1x512xf32, #tpu.memory_space<vmem>>, %arg7: memref<128x512xbf16, #tpu.memory_space<vmem>>, %arg8: memref<128x512xbf16, #tpu.memory_space<vmem>>, %arg9: memref<1x512xf32, #tpu.memory_space<vmem>>, %arg10: memref<128x256xbf16, #tpu.memory_space<vmem>>, %arg11: memref<1x256xf32, #tpu.memory_space<vmem>>, %arg12: memref<2x256xf32, #tpu.memory_space<vmem>>, %arg13: memref<2x8x512xf32, #tpu.memory_space<vmem>>) attributes {dimension_semantics = [], scalar_prefetch = 0 : i64, scratch_operands = 1 : i64, tpu.core_type = #tpu.core_type<tc>} {
    %cst = arith.constant 0.000000e+00 : f32
    %0 = vector.broadcast %cst : f32 to vector<2x128xf32>
    %c0 = arith.constant 0 : index
    %c0_0 = arith.constant 0 : index
    %1 = vector.load %arg0[%c0, %c0_0] : memref<16x768xbf16, #tpu.memory_space<vmem>>, vector<16x768xbf16>
    %c0_1 = arith.constant 0 : index
    %c0_2 = arith.constant 0 : index
    %2 = vector.load %arg1[%c0_1, %c0_2] : memref<768x512xbf16, #tpu.memory_space<vmem>>, vector<768x512xbf16>
    %cst_3 = arith.constant dense<0.000000e+00> : vector<16x512xf32>
    %3 = tpu.matmul %1, %2, %cst_3 {dimension_numbers = #tpu.dot_dimension_numbers<[1], [0], [0], [1], [0, 0, 1, 1], [], []>} : vector<16x768xbf16>, vector<768x512xbf16>, vector<16x512xf32> -> vector<16x512xf32>
    %c0_4 = arith.constant 0 : index
    %c0_5 = arith.constant 0 : index
    %4 = vector.load %arg3[%c0_4, %c0_5] : memref<1x512xf32, #tpu.memory_space<vmem>>, vector<1x512xf32>
    %5 = vector.broadcast %4 : vector<1x512xf32> to vector<16x512xf32>
    %6 = arith.addf %3, %5 : vector<16x512xf32>
    %7 = vector.shape_cast %6 : vector<16x512xf32> to vector<2x8x512xf32>
    %c0_6 = arith.constant 0 : index
    %c0_7 = arith.constant 0 : index
    %c0_8 = arith.constant 0 : index
    %8 = vector.load %arg13[%c0_6, %c0_7, %c0_8] : memref<2x8x512xf32, #tpu.memory_space<vmem>>, vector<2x8x512xf32>
    tpu.vector_store %arg13[%c0_6, %c0_7, %c0_8], %7 {strides = array<i32>} : memref<2x8x512xf32, #tpu.memory_space<vmem>>, vector<2x8x512xf32>,
    %c0_9 = arith.constant 0 : index
    %c0_10 = arith.constant 0 : index
    %c0_11 = arith.constant 0 : index
    %9 = vector.load %arg13[%c0_9, %c0_10, %c0_11] : memref<2x8x512xf32, #tpu.memory_space<vmem>>, vector<2x1x512xf32>
    %10 = vector.shape_cast %9 : vector<2x1x512xf32> to vector<2x512xf32>
    %11 = vector.extract_strided_slice %10 {offsets = [0, 0], sizes = [2, 128], strides = [1, 1]} : vector<2x512xf32> to vector<2x128xf32>
    %12 = arith.negf %11 : vector<2x128xf32>
    %13 = math.exp %12 : vector<2x128xf32>
    %cst_12 = arith.constant 1.000000e+00 : f32
    %14 = vector.broadcast %cst_12 : f32 to vector<2x128xf32>
    %15 = arith.addf %14, %13 : vector<2x128xf32>
    %16 = arith.divf %14, %15 : vector<2x128xf32>
    %17 = vector.extract_strided_slice %10 {offsets = [0, 128], sizes = [2, 128], strides = [1, 1]} : vector<2x512xf32> to vector<2x128xf32>
    %18 = arith.negf %17 : vector<2x128xf32>
    %19 = math.exp %18 : vector<2x128xf32>
    %cst_13 = arith.constant 1.000000e+00 : f32
    %20 = vector.broadcast %cst_13 : f32 to vector<2x128xf32>
    %21 = arith.addf %20, %19 : vector<2x128xf32>
    %22 = arith.divf %20, %21 : vector<2x128xf32>
    %23 = vector.extract_strided_slice %10 {offsets = [0, 256], sizes = [2, 128], strides = [1, 1]} : vector<2x512xf32> to vector<2x128xf32>
    %24 = math.tanh %23 : vector<2x128xf32>
    %25 = vector.extract_strided_slice %10 {offsets = [0, 384], sizes = [2, 128], strides = [1, 1]} : vector<2x512xf32> to vector<2x128xf32>
    %26 = arith.negf %25 : vector<2x128xf32>
    %27 = math.exp %26 : vector<2x128xf32>
    %cst_14 = arith.constant 1.000000e+00 : f32
    %28 = vector.broadcast %cst_14 : f32 to vector<2x128xf32>
    %29 = arith.addf %28, %27 : vector<2x128xf32>
    %30 = arith.divf %28, %29 : vector<2x128xf32>
    %31 = arith.mulf %22, %0 : vector<2x128xf32>
    %32 = arith.mulf %16, %24 : vector<2x128xf32>
    %33 = arith.addf %31, %32 : vector<2x128xf32>
    %34 = math.tanh %33 : vector<2x128xf32>
    %35 = arith.mulf %30, %34 : vector<2x128xf32>
    %36 = arith.truncf %35 : vector<2x128xf32> to vector<2x128xbf16>
    %c0_15 = arith.constant 0 : index
    %c0_16 = arith.constant 0 : index
    %37 = vector.load %arg4[%c0_15, %c0_16] : memref<128x512xbf16, #tpu.memory_space<vmem>>, vector<128x512xbf16>
    %cst_17 = arith.constant dense<0.000000e+00> : vector<2x512xf32>
    %38 = tpu.matmul %36, %37, %cst_17 {dimension_numbers = #tpu.dot_dimension_numbers<[1], [0], [0], [1], [0, 0, 1, 1], [], []>} : vector<2x128xbf16>, vector<128x512xbf16>, vector<2x512xf32> -> vector<2x512xf32>
    %c0_18 = arith.constant 0 : index
    %c0_19 = arith.constant 0 : index
    %39 = vector.load %arg6[%c0_18, %c0_19] : memref<1x512xf32, #tpu.memory_space<vmem>>, vector<1x512xf32>
    %40 = vector.broadcast %39 : vector<1x512xf32> to vector<2x512xf32>
    %41 = arith.addf %38, %40 : vector<2x512xf32>
    %42 = vector.extract_strided_slice %41 {offsets = [0, 0], sizes = [2, 128], strides = [1, 1]} : vector<2x512xf32> to vector<2x128xf32>
    %43 = arith.negf %42 : vector<2x128xf32>
    %44 = math.exp %43 : vector<2x128xf32>
    %cst_20 = arith.constant 1.000000e+00 : f32
    %45 = vector.broadcast %cst_20 : f32 to vector<2x128xf32>
    %46 = arith.addf %45, %44 : vector<2x128xf32>
    %47 = arith.divf %45, %46 : vector<2x128xf32>
    %48 = vector.extract_strided_slice %41 {offsets = [0, 128], sizes = [2, 128], strides = [1, 1]} : vector<2x512xf32> to vector<2x128xf32>
    %49 = arith.negf %48 : vector<2x128xf32>
    %50 = math.exp %49 : vector<2x128xf32>
    %cst_21 = arith.constant 1.000000e+00 : f32
    %51 = vector.broadcast %cst_21 : f32 to vector<2x128xf32>
    %52 = arith.addf %51, %50 : vector<2x128xf32>
    %53 = arith.divf %51, %52 : vector<2x128xf32>
    %54 = vector.extract_strided_slice %41 {offsets = [0, 256], sizes = [2, 128], strides = [1, 1]} : vector<2x512xf32> to vector<2x128xf32>
    %55 = math.tanh %54 : vector<2x128xf32>
    %56 = vector.extract_strided_slice %41 {offsets = [0, 384], sizes = [2, 128], strides = [1, 1]} : vector<2x512xf32> to vector<2x128xf32>
    %57 = arith.negf %56 : vector<2x128xf32>
    %58 = math.exp %57 : vector<2x128xf32>
    %cst_22 = arith.constant 1.000000e+00 : f32
    %59 = vector.broadcast %cst_22 : f32 to vector<2x128xf32>
    %60 = arith.addf %59, %58 : vector<2x128xf32>
    %61 = arith.divf %59, %60 : vector<2x128xf32>
    %62 = arith.mulf %53, %0 : vector<2x128xf32>
    %63 = arith.mulf %47, %55 : vector<2x128xf32>
    %64 = arith.addf %62, %63 : vector<2x128xf32>
    %65 = math.tanh %64 : vector<2x128xf32>
    %66 = arith.mulf %61, %65 : vector<2x128xf32>
    %67 = arith.truncf %66 : vector<2x128xf32> to vector<2x128xbf16>
    %c0_23 = arith.constant 0 : index
    %c0_24 = arith.constant 0 : index
    %68 = vector.load %arg7[%c0_23, %c0_24] : memref<128x512xbf16, #tpu.memory_space<vmem>>, vector<128x512xbf16>
    %cst_25 = arith.constant dense<0.000000e+00> : vector<2x512xf32>
    %69 = tpu.matmul %67, %68, %cst_25 {dimension_numbers = #tpu.dot_dimension_numbers<[1], [0], [0], [1], [0, 0, 1, 1], [], []>} : vector<2x128xbf16>, vector<128x512xbf16>, vector<2x512xf32> -> vector<2x512xf32>
    %c0_26 = arith.constant 0 : index
    %c0_27 = arith.constant 0 : index
    %70 = vector.load %arg9[%c0_26, %c0_27] : memref<1x512xf32, #tpu.memory_space<vmem>>, vector<1x512xf32>
    %71 = vector.broadcast %70 : vector<1x512xf32> to vector<2x512xf32>
    %72 = arith.addf %69, %71 : vector<2x512xf32>
    %73 = vector.extract_strided_slice %72 {offsets = [0, 0], sizes = [2, 128], strides = [1, 1]} : vector<2x512xf32> to vector<2x128xf32>
    %74 = arith.negf %73 : vector<2x128xf32>
    %75 = math.exp %74 : vector<2x128xf32>
    %cst_28 = arith.constant 1.000000e+00 : f32
    %76 = vector.broadcast %cst_28 : f32 to vector<2x128xf32>
    %77 = arith.addf %76, %75 : vector<2x128xf32>
    %78 = arith.divf %76, %77 : vector<2x128xf32>
    %79 = vector.extract_strided_slice %72 {offsets = [0, 128], sizes = [2, 128], strides = [1, 1]} : vector<2x512xf32> to vector<2x128xf32>
    %80 = arith.negf %79 : vector<2x128xf32>
    %81 = math.exp %80 : vector<2x128xf32>
    %cst_29 = arith.constant 1.000000e+00 : f32
    %82 = vector.broadcast %cst_29 : f32 to vector<2x128xf32>
    %83 = arith.addf %82, %81 : vector<2x128xf32>
    %84 = arith.divf %82, %83 : vector<2x128xf32>
    %85 = vector.extract_strided_slice %72 {offsets = [0, 256], sizes = [2, 128], strides = [1, 1]} : vector<2x512xf32> to vector<2x128xf32>
    %86 = math.tanh %85 : vector<2x128xf32>
    %87 = vector.extract_strided_slice %72 {offsets = [0, 384], sizes = [2, 128], strides = [1, 1]} : vector<2x512xf32> to vector<2x128xf32>
    %88 = arith.negf %87 : vector<2x128xf32>
    %89 = math.exp %88 : vector<2x128xf32>
    %cst_30 = arith.constant 1.000000e+00 : f32
    %90 = vector.broadcast %cst_30 : f32 to vector<2x128xf32>
    %91 = arith.addf %90, %89 : vector<2x128xf32>
    %92 = arith.divf %90, %91 : vector<2x128xf32>
    %93 = arith.mulf %84, %0 : vector<2x128xf32>
    %94 = arith.mulf %78, %86 : vector<2x128xf32>
    %95 = arith.addf %93, %94 : vector<2x128xf32>
    %96 = math.tanh %95 : vector<2x128xf32>
    %97 = arith.mulf %92, %96 : vector<2x128xf32>
    %c0_31 = arith.constant 0 : index
    %c1 = arith.constant 1 : index
    %c0_32 = arith.constant 0 : index
    %98 = vector.load %arg13[%c0_31, %c1, %c0_32] : memref<2x8x512xf32, #tpu.memory_space<vmem>>, vector<2x1x512xf32>
    %99 = vector.shape_cast %98 : vector<2x1x512xf32> to vector<2x512xf32>
    %100 = arith.truncf %35 : vector<2x128xf32> to vector<2x128xbf16>
    %c0_33 = arith.constant 0 : index
    %c0_34 = arith.constant 0 : index
    %101 = vector.load %arg2[%c0_33, %c0_34] : memref<128x512xbf16, #tpu.memory_space<vmem>>, vector<128x512xbf16>
    %cst_35 = arith.constant dense<0.000000e+00> : vector<2x512xf32>
    %102 = tpu.matmul %100, %101, %cst_35 {dimension_numbers = #tpu.dot_dimension_numbers<[1], [0], [0], [1], [0, 0, 1, 1], [], []>} : vector<2x128xbf16>, vector<128x512xbf16>, vector<2x512xf32> -> vector<2x512xf32>
    %103 = arith.addf %99, %102 : vector<2x512xf32>
    %104 = vector.extract_strided_slice %103 {offsets = [0, 0], sizes = [2, 128], strides = [1, 1]} : vector<2x512xf32> to vector<2x128xf32>
    %105 = arith.negf %104 : vector<2x128xf32>
    %106 = math.exp %105 : vector<2x128xf32>
    %cst_36 = arith.constant 1.000000e+00 : f32
    %107 = vector.broadcast %cst_36 : f32 to vector<2x128xf32>
    %108 = arith.addf %107, %106 : vector<2x128xf32>
    %109 = arith.divf %107, %108 : vector<2x128xf32>
    %110 = vector.extract_strided_slice %103 {offsets = [0, 128], sizes = [2, 128], strides = [1, 1]} : vector<2x512xf32> to vector<2x128xf32>
    %111 = arith.negf %110 : vector<2x128xf32>
    %112 = math.exp %111 : vector<2x128xf32>
    %cst_37 = arith.constant 1.000000e+00 : f32
    %113 = vector.broadcast %cst_37 : f32 to vector<2x128xf32>
    %114 = arith.addf %113, %112 : vector<2x128xf32>
    %115 = arith.divf %113, %114 : vector<2x128xf32>
    %116 = vector.extract_strided_slice %103 {offsets = [0, 256], sizes = [2, 128], strides = [1, 1]} : vector<2x512xf32> to vector<2x128xf32>
    %117 = math.tanh %116 : vector<2x128xf32>
    %118 = vector.extract_strided_slice %103 {offsets = [0, 384], sizes = [2, 128], strides = [1, 1]} : vector<2x512xf32> to vector<2x128xf32>
    %119 = arith.negf %118 : vector<2x128xf32>
    %120 = math.exp %119 : vector<2x128xf32>
    %cst_38 = arith.constant 1.000000e+00 : f32
    %121 = vector.broadcast %cst_38 : f32 to vector<2x128xf32>
    %122 = arith.addf %121, %120 : vector<2x128xf32>
    %123 = arith.divf %121, %122 : vector<2x128xf32>
    %124 = arith.mulf %115, %33 : vector<2x128xf32>
    %125 = arith.mulf %109, %117 : vector<2x128xf32>
    %126 = arith.addf %124, %125 : vector<2x128xf32>
    %127 = math.tanh %126 : vector<2x128xf32>
    %128 = arith.mulf %123, %127 : vector<2x128xf32>
    %129 = arith.truncf %128 : vector<2x128xf32> to vector<2x128xbf16>
    %c0_39 = arith.constant 0 : index
    %c0_40 = arith.constant 0 : index
    %130 = vector.load %arg4[%c0_39, %c0_40] : memref<128x512xbf16, #tpu.memory_space<vmem>>, vector<128x512xbf16>
    %cst_41 = arith.constant dense<0.000000e+00> : vector<2x512xf32>
    %131 = tpu.matmul %129, %130, %cst_41 {dimension_numbers = #tpu.dot_dimension_numbers<[1], [0], [0], [1], [0, 0, 1, 1], [], []>} : vector<2x128xbf16>, vector<128x512xbf16>, vector<2x512xf32> -> vector<2x512xf32>
    %132 = arith.truncf %66 : vector<2x128xf32> to vector<2x128xbf16>
    %c0_42 = arith.constant 0 : index
    %c0_43 = arith.constant 0 : index
    %133 = vector.load %arg5[%c0_42, %c0_43] : memref<128x512xbf16, #tpu.memory_space<vmem>>, vector<128x512xbf16>
    %cst_44 = arith.constant dense<0.000000e+00> : vector<2x512xf32>
    %134 = tpu.matmul %132, %133, %cst_44 {dimension_numbers = #tpu.dot_dimension_numbers<[1], [0], [0], [1], [0, 0, 1, 1], [], []>} : vector<2x128xbf16>, vector<128x512xbf16>, vector<2x512xf32> -> vector<2x512xf32>
    %135 = arith.addf %131, %134 : vector<2x512xf32>
    %c0_45 = arith.constant 0 : index
    %c0_46 = arith.constant 0 : index
    %136 = vector.load %arg6[%c0_45, %c0_46] : memref<1x512xf32, #tpu.memory_space<vmem>>, vector<1x512xf32>
    %137 = vector.broadcast %136 : vector<1x512xf32> to vector<2x512xf32>
    %138 = arith.addf %135, %137 : vector<2x512xf32>
    %139 = vector.extract_strided_slice %138 {offsets = [0, 0], sizes = [2, 128], strides = [1, 1]} : vector<2x512xf32> to vector<2x128xf32>
    %140 = arith.negf %139 : vector<2x128xf32>
    %141 = math.exp %140 : vector<2x128xf32>
    %cst_47 = arith.constant 1.000000e+00 : f32
    %142 = vector.broadcast %cst_47 : f32 to vector<2x128xf32>
    %143 = arith.addf %142, %141 : vector<2x128xf32>
    %144 = arith.divf %142, %143 : vector<2x128xf32>
    %145 = vector.extract_strided_slice %138 {offsets = [0, 128], sizes = [2, 128], strides = [1, 1]} : vector<2x512xf32> to vector<2x128xf32>
    %146 = arith.negf %145 : vector<2x128xf32>
    %147 = math.exp %146 : vector<2x128xf32>
    %cst_48 = arith.constant 1.000000e+00 : f32
    %148 = vector.broadcast %cst_48 : f32 to vector<2x128xf32>
    %149 = arith.addf %148, %147 : vector<2x128xf32>
    %150 = arith.divf %148, %149 : vector<2x128xf32>
    %151 = vector.extract_strided_slice %138 {offsets = [0, 256], sizes = [2, 128], strides = [1, 1]} : vector<2x512xf32> to vector<2x128xf32>
    %152 = math.tanh %151 : vector<2x128xf32>
    %153 = vector.extract_strided_slice %138 {offsets = [0, 384], sizes = [2, 128], strides = [1, 1]} : vector<2x512xf32> to vector<2x128xf32>
    %154 = arith.negf %153 : vector<2x128xf32>
    %155 = math.exp %154 : vector<2x128xf32>
    %cst_49 = arith.constant 1.000000e+00 : f32
    %156 = vector.broadcast %cst_49 : f32 to vector<2x128xf32>
    %157 = arith.addf %156, %155 : vector<2x128xf32>
    %158 = arith.divf %156, %157 : vector<2x128xf32>
    %159 = arith.mulf %150, %64 : vector<2x128xf32>
    %160 = arith.mulf %144, %152 : vector<2x128xf32>
    %161 = arith.addf %159, %160 : vector<2x128xf32>
    %162 = math.tanh %161 : vector<2x128xf32>
    %163 = arith.mulf %158, %162 : vector<2x128xf32>
    %164 = arith.truncf %163 : vector<2x128xf32> to vector<2x128xbf16>
    %c0_50 = arith.constant 0 : index
    %c0_51 = arith.constant 0 : index
    %165 = vector.load %arg7[%c0_50, %c0_51] : memref<128x512xbf16, #tpu.memory_space<vmem>>, vector<128x512xbf16>
    %cst_52 = arith.constant dense<0.000000e+00> : vector<2x512xf32>
    %166 = tpu.matmul %164, %165, %cst_52 {dimension_numbers = #tpu.dot_dimension_numbers<[1], [0], [0], [1], [0, 0, 1, 1], [], []>} : vector<2x128xbf16>, vector<128x512xbf16>, vector<2x512xf32> -> vector<2x512xf32>
    %167 = arith.truncf %97 : vector<2x128xf32> to vector<2x128xbf16>
    %c0_53 = arith.constant 0 : index
    %c0_54 = arith.constant 0 : index
    %168 = vector.load %arg8[%c0_53, %c0_54] : memref<128x512xbf16, #tpu.memory_space<vmem>>, vector<128x512xbf16>
    %cst_55 = arith.constant dense<0.000000e+00> : vector<2x512xf32>
    %169 = tpu.matmul %167, %168, %cst_55 {dimension_numbers = #tpu.dot_dimension_numbers<[1], [0], [0], [1], [0, 0, 1, 1], [], []>} : vector<2x128xbf16>, vector<128x512xbf16>, vector<2x512xf32> -> vector<2x512xf32>
    %170 = arith.addf %166, %169 : vector<2x512xf32>
    %c0_56 = arith.constant 0 : index
    %c0_57 = arith.constant 0 : index
    %171 = vector.load %arg9[%c0_56, %c0_57] : memref<1x512xf32, #tpu.memory_space<vmem>>, vector<1x512xf32>
    %172 = vector.broadcast %171 : vector<1x512xf32> to vector<2x512xf32>
    %173 = arith.addf %170, %172 : vector<2x512xf32>
    %174 = vector.extract_strided_slice %173 {offsets = [0, 0], sizes = [2, 128], strides = [1, 1]} : vector<2x512xf32> to vector<2x128xf32>
    %175 = arith.negf %174 : vector<2x128xf32>
    %176 = math.exp %175 : vector<2x128xf32>
    %cst_58 = arith.constant 1.000000e+00 : f32
    %177 = vector.broadcast %cst_58 : f32 to vector<2x128xf32>
    %178 = arith.addf %177, %176 : vector<2x128xf32>
    %179 = arith.divf %177, %178 : vector<2x128xf32>
    %180 = vector.extract_strided_slice %173 {offsets = [0, 128], sizes = [2, 128], strides = [1, 1]} : vector<2x512xf32> to vector<2x128xf32>
    %181 = arith.negf %180 : vector<2x128xf32>
    %182 = math.exp %181 : vector<2x128xf32>
    %cst_59 = arith.constant 1.000000e+00 : f32
    %183 = vector.broadcast %cst_59 : f32 to vector<2x128xf32>
    %184 = arith.addf %183, %182 : vector<2x128xf32>
    %185 = arith.divf %183, %184 : vector<2x128xf32>
    %186 = vector.extract_strided_slice %173 {offsets = [0, 256], sizes = [2, 128], strides = [1, 1]} : vector<2x512xf32> to vector<2x128xf32>
    %187 = math.tanh %186 : vector<2x128xf32>
    %188 = vector.extract_strided_slice %173 {offsets = [0, 384], sizes = [2, 128], strides = [1, 1]} : vector<2x512xf32> to vector<2x128xf32>
    %189 = arith.negf %188 : vector<2x128xf32>
    %190 = math.exp %189 : vector<2x128xf32>
    %cst_60 = arith.constant 1.000000e+00 : f32
    %191 = vector.broadcast %cst_60 : f32 to vector<2x128xf32>
    %192 = arith.addf %191, %190 : vector<2x128xf32>
    %193 = arith.divf %191, %192 : vector<2x128xf32>
    %194 = arith.mulf %185, %95 : vector<2x128xf32>
    %195 = arith.mulf %179, %187 : vector<2x128xf32>
    %196 = arith.addf %194, %195 : vector<2x128xf32>
    %197 = math.tanh %196 : vector<2x128xf32>
    %198 = arith.mulf %193, %197 : vector<2x128xf32>
    %c0_61 = arith.constant 0 : index
    %c2 = arith.constant 2 : index
    %c0_62 = arith.constant 0 : index
    %199 = vector.load %arg13[%c0_61, %c2, %c0_62] : memref<2x8x512xf32, #tpu.memory_space<vmem>>, vector<2x1x512xf32>
    %200 = vector.shape_cast %199 : vector<2x1x512xf32> to vector<2x512xf32>
    %201 = arith.truncf %128 : vector<2x128xf32> to vector<2x128xbf16>
    %c0_63 = arith.constant 0 : index
    %c0_64 = arith.constant 0 : index
    %202 = vector.load %arg2[%c0_63, %c0_64] : memref<128x512xbf16, #tpu.memory_space<vmem>>, vector<128x512xbf16>
    %cst_65 = arith.constant dense<0.000000e+00> : vector<2x512xf32>
    %203 = tpu.matmul %201, %202, %cst_65 {dimension_numbers = #tpu.dot_dimension_numbers<[1], [0], [0], [1], [0, 0, 1, 1], [], []>} : vector<2x128xbf16>, vector<128x512xbf16>, vector<2x512xf32> -> vector<2x512xf32>
    %204 = arith.addf %200, %203 : vector<2x512xf32>
    %205 = vector.extract_strided_slice %204 {offsets = [0, 0], sizes = [2, 128], strides = [1, 1]} : vector<2x512xf32> to vector<2x128xf32>
    %206 = arith.negf %205 : vector<2x128xf32>
    %207 = math.exp %206 : vector<2x128xf32>
    %cst_66 = arith.constant 1.000000e+00 : f32
    %208 = vector.broadcast %cst_66 : f32 to vector<2x128xf32>
    %209 = arith.addf %208, %207 : vector<2x128xf32>
    %210 = arith.divf %208, %209 : vector<2x128xf32>
    %211 = vector.extract_strided_slice %204 {offsets = [0, 128], sizes = [2, 128], strides = [1, 1]} : vector<2x512xf32> to vector<2x128xf32>
    %212 = arith.negf %211 : vector<2x128xf32>
    %213 = math.exp %212 : vector<2x128xf32>
    %cst_67 = arith.constant 1.000000e+00 : f32
    %214 = vector.broadcast %cst_67 : f32 to vector<2x128xf32>
    %215 = arith.addf %214, %213 : vector<2x128xf32>
    %216 = arith.divf %214, %215 : vector<2x128xf32>
    %217 = vector.extract_strided_slice %204 {offsets = [0, 256], sizes = [2, 128], strides = [1, 1]} : vector<2x512xf32> to vector<2x128xf32>
    %218 = math.tanh %217 : vector<2x128xf32>
    %219 = vector.extract_strided_slice %204 {offsets = [0, 384], sizes = [2, 128], strides = [1, 1]} : vector<2x512xf32> to vector<2x128xf32>
    %220 = arith.negf %219 : vector<2x128xf32>
    %221 = math.exp %220 : vector<2x128xf32>
    %cst_68 = arith.constant 1.000000e+00 : f32
    %222 = vector.broadcast %cst_68 : f32 to vector<2x128xf32>
    %223 = arith.addf %222, %221 : vector<2x128xf32>
    %224 = arith.divf %222, %223 : vector<2x128xf32>
    %225 = arith.mulf %216, %126 : vector<2x128xf32>
    %226 = arith.mulf %210, %218 : vector<2x128xf32>
    %227 = arith.addf %225, %226 : vector<2x128xf32>
    %228 = math.tanh %227 : vector<2x128xf32>
    %229 = arith.mulf %224, %228 : vector<2x128xf32>
    %230 = arith.truncf %229 : vector<2x128xf32> to vector<2x128xbf16>
    %c0_69 = arith.constant 0 : index
    %c0_70 = arith.constant 0 : index
    %231 = vector.load %arg4[%c0_69, %c0_70] : memref<128x512xbf16, #tpu.memory_space<vmem>>, vector<128x512xbf16>
    %cst_71 = arith.constant dense<0.000000e+00> : vector<2x512xf32>
    %232 = tpu.matmul %230, %231, %cst_71 {dimension_numbers = #tpu.dot_dimension_numbers<[1], [0], [0], [1], [0, 0, 1, 1], [], []>} : vector<2x128xbf16>, vector<128x512xbf16>, vector<2x512xf32> -> vector<2x512xf32>
    %233 = arith.truncf %163 : vector<2x128xf32> to vector<2x128xbf16>
    %c0_72 = arith.constant 0 : index
    %c0_73 = arith.constant 0 : index
    %234 = vector.load %arg5[%c0_72, %c0_73] : memref<128x512xbf16, #tpu.memory_space<vmem>>, vector<128x512xbf16>
    %cst_74 = arith.constant dense<0.000000e+00> : vector<2x512xf32>
    %235 = tpu.matmul %233, %234, %cst_74 {dimension_numbers = #tpu.dot_dimension_numbers<[1], [0], [0], [1], [0, 0, 1, 1], [], []>} : vector<2x128xbf16>, vector<128x512xbf16>, vector<2x512xf32> -> vector<2x512xf32>
    %236 = arith.addf %232, %235 : vector<2x512xf32>
    %c0_75 = arith.constant 0 : index
    %c0_76 = arith.constant 0 : index
    %237 = vector.load %arg6[%c0_75, %c0_76] : memref<1x512xf32, #tpu.memory_space<vmem>>, vector<1x512xf32>
    %238 = vector.broadcast %237 : vector<1x512xf32> to vector<2x512xf32>
    %239 = arith.addf %236, %238 : vector<2x512xf32>
    %240 = vector.extract_strided_slice %239 {offsets = [0, 0], sizes = [2, 128], strides = [1, 1]} : vector<2x512xf32> to vector<2x128xf32>
    %241 = arith.negf %240 : vector<2x128xf32>
    %242 = math.exp %241 : vector<2x128xf32>
    %cst_77 = arith.constant 1.000000e+00 : f32
    %243 = vector.broadcast %cst_77 : f32 to vector<2x128xf32>
    %244 = arith.addf %243, %242 : vector<2x128xf32>
    %245 = arith.divf %243, %244 : vector<2x128xf32>
    %246 = vector.extract_strided_slice %239 {offsets = [0, 128], sizes = [2, 128], strides = [1, 1]} : vector<2x512xf32> to vector<2x128xf32>
    %247 = arith.negf %246 : vector<2x128xf32>
    %248 = math.exp %247 : vector<2x128xf32>
    %cst_78 = arith.constant 1.000000e+00 : f32
    %249 = vector.broadcast %cst_78 : f32 to vector<2x128xf32>
    %250 = arith.addf %249, %248 : vector<2x128xf32>
    %251 = arith.divf %249, %250 : vector<2x128xf32>
    %252 = vector.extract_strided_slice %239 {offsets = [0, 256], sizes = [2, 128], strides = [1, 1]} : vector<2x512xf32> to vector<2x128xf32>
    %253 = math.tanh %252 : vector<2x128xf32>
    %254 = vector.extract_strided_slice %239 {offsets = [0, 384], sizes = [2, 128], strides = [1, 1]} : vector<2x512xf32> to vector<2x128xf32>
    %255 = arith.negf %254 : vector<2x128xf32>
    %256 = math.exp %255 : vector<2x128xf32>
    %cst_79 = arith.constant 1.000000e+00 : f32
    %257 = vector.broadcast %cst_79 : f32 to vector<2x128xf32>
    %258 = arith.addf %257, %256 : vector<2x128xf32>
    %259 = arith.divf %257, %258 : vector<2x128xf32>
    %260 = arith.mulf %251, %161 : vector<2x128xf32>
    %261 = arith.mulf %245, %253 : vector<2x128xf32>
    %262 = arith.addf %260, %261 : vector<2x128xf32>
    %263 = math.tanh %262 : vector<2x128xf32>
    %264 = arith.mulf %259, %263 : vector<2x128xf32>
    %265 = arith.truncf %264 : vector<2x128xf32> to vector<2x128xbf16>
    %c0_80 = arith.constant 0 : index
    %c0_81 = arith.constant 0 : index
    %266 = vector.load %arg7[%c0_80, %c0_81] : memref<128x512xbf16, #tpu.memory_space<vmem>>, vector<128x512xbf16>
    %cst_82 = arith.constant dense<0.000000e+00> : vector<2x512xf32>
    %267 = tpu.matmul %265, %266, %cst_82 {dimension_numbers = #tpu.dot_dimension_numbers<[1], [0], [0], [1], [0, 0, 1, 1], [], []>} : vector<2x128xbf16>, vector<128x512xbf16>, vector<2x512xf32> -> vector<2x512xf32>
    %268 = arith.truncf %198 : vector<2x128xf32> to vector<2x128xbf16>
    %c0_83 = arith.constant 0 : index
    %c0_84 = arith.constant 0 : index
    %269 = vector.load %arg8[%c0_83, %c0_84] : memref<128x512xbf16, #tpu.memory_space<vmem>>, vector<128x512xbf16>
    %cst_85 = arith.constant dense<0.000000e+00> : vector<2x512xf32>
    %270 = tpu.matmul %268, %269, %cst_85 {dimension_numbers = #tpu.dot_dimension_numbers<[1], [0], [0], [1], [0, 0, 1, 1], [], []>} : vector<2x128xbf16>, vector<128x512xbf16>, vector<2x512xf32> -> vector<2x512xf32>
    %271 = arith.addf %267, %270 : vector<2x512xf32>
    %c0_86 = arith.constant 0 : index
    %c0_87 = arith.constant 0 : index
    %272 = vector.load %arg9[%c0_86, %c0_87] : memref<1x512xf32, #tpu.memory_space<vmem>>, vector<1x512xf32>
    %273 = vector.broadcast %272 : vector<1x512xf32> to vector<2x512xf32>
    %274 = arith.addf %271, %273 : vector<2x512xf32>
    %275 = vector.extract_strided_slice %274 {offsets = [0, 0], sizes = [2, 128], strides = [1, 1]} : vector<2x512xf32> to vector<2x128xf32>
    %276 = arith.negf %275 : vector<2x128xf32>
    %277 = math.exp %276 : vector<2x128xf32>
    %cst_88 = arith.constant 1.000000e+00 : f32
    %278 = vector.broadcast %cst_88 : f32 to vector<2x128xf32>
    %279 = arith.addf %278, %277 : vector<2x128xf32>
    %280 = arith.divf %278, %279 : vector<2x128xf32>
    %281 = vector.extract_strided_slice %274 {offsets = [0, 128], sizes = [2, 128], strides = [1, 1]} : vector<2x512xf32> to vector<2x128xf32>
    %282 = arith.negf %281 : vector<2x128xf32>
    %283 = math.exp %282 : vector<2x128xf32>
    %cst_89 = arith.constant 1.000000e+00 : f32
    %284 = vector.broadcast %cst_89 : f32 to vector<2x128xf32>
    %285 = arith.addf %284, %283 : vector<2x128xf32>
    %286 = arith.divf %284, %285 : vector<2x128xf32>
    %287 = vector.extract_strided_slice %274 {offsets = [0, 256], sizes = [2, 128], strides = [1, 1]} : vector<2x512xf32> to vector<2x128xf32>
    %288 = math.tanh %287 : vector<2x128xf32>
    %289 = vector.extract_strided_slice %274 {offsets = [0, 384], sizes = [2, 128], strides = [1, 1]} : vector<2x512xf32> to vector<2x128xf32>
    %290 = arith.negf %289 : vector<2x128xf32>
    %291 = math.exp %290 : vector<2x128xf32>
    %cst_90 = arith.constant 1.000000e+00 : f32
    %292 = vector.broadcast %cst_90 : f32 to vector<2x128xf32>
    %293 = arith.addf %292, %291 : vector<2x128xf32>
    %294 = arith.divf %292, %293 : vector<2x128xf32>
    %295 = arith.mulf %286, %196 : vector<2x128xf32>
    %296 = arith.mulf %280, %288 : vector<2x128xf32>
    %297 = arith.addf %295, %296 : vector<2x128xf32>
    %298 = math.tanh %297 : vector<2x128xf32>
    %299 = arith.mulf %294, %298 : vector<2x128xf32>
    %c0_91 = arith.constant 0 : index
    %c3 = arith.constant 3 : index
    %c0_92 = arith.constant 0 : index
    %300 = vector.load %arg13[%c0_91, %c3, %c0_92] : memref<2x8x512xf32, #tpu.memory_space<vmem>>, vector<2x1x512xf32>
    %301 = vector.shape_cast %300 : vector<2x1x512xf32> to vector<2x512xf32>
    %302 = arith.truncf %229 : vector<2x128xf32> to vector<2x128xbf16>
    %c0_93 = arith.constant 0 : index
    %c0_94 = arith.constant 0 : index
    %303 = vector.load %arg2[%c0_93, %c0_94] : memref<128x512xbf16, #tpu.memory_space<vmem>>, vector<128x512xbf16>
    %cst_95 = arith.constant dense<0.000000e+00> : vector<2x512xf32>
    %304 = tpu.matmul %302, %303, %cst_95 {dimension_numbers = #tpu.dot_dimension_numbers<[1], [0], [0], [1], [0, 0, 1, 1], [], []>} : vector<2x128xbf16>, vector<128x512xbf16>, vector<2x512xf32> -> vector<2x512xf32>
    %305 = arith.addf %301, %304 : vector<2x512xf32>
    %306 = vector.extract_strided_slice %305 {offsets = [0, 0], sizes = [2, 128], strides = [1, 1]} : vector<2x512xf32> to vector<2x128xf32>
    %307 = arith.negf %306 : vector<2x128xf32>
    %308 = math.exp %307 : vector<2x128xf32>
    %cst_96 = arith.constant 1.000000e+00 : f32
    %309 = vector.broadcast %cst_96 : f32 to vector<2x128xf32>
    %310 = arith.addf %309, %308 : vector<2x128xf32>
    %311 = arith.divf %309, %310 : vector<2x128xf32>
    %312 = vector.extract_strided_slice %305 {offsets = [0, 128], sizes = [2, 128], strides = [1, 1]} : vector<2x512xf32> to vector<2x128xf32>
    %313 = arith.negf %312 : vector<2x128xf32>
    %314 = math.exp %313 : vector<2x128xf32>
    %cst_97 = arith.constant 1.000000e+00 : f32
    %315 = vector.broadcast %cst_97 : f32 to vector<2x128xf32>
    %316 = arith.addf %315, %314 : vector<2x128xf32>
    %317 = arith.divf %315, %316 : vector<2x128xf32>
    %318 = vector.extract_strided_slice %305 {offsets = [0, 256], sizes = [2, 128], strides = [1, 1]} : vector<2x512xf32> to vector<2x128xf32>
    %319 = math.tanh %318 : vector<2x128xf32>
    %320 = vector.extract_strided_slice %305 {offsets = [0, 384], sizes = [2, 128], strides = [1, 1]} : vector<2x512xf32> to vector<2x128xf32>
    %321 = arith.negf %320 : vector<2x128xf32>
    %322 = math.exp %321 : vector<2x128xf32>
    %cst_98 = arith.constant 1.000000e+00 : f32
    %323 = vector.broadcast %cst_98 : f32 to vector<2x128xf32>
    %324 = arith.addf %323, %322 : vector<2x128xf32>
    %325 = arith.divf %323, %324 : vector<2x128xf32>
    %326 = arith.mulf %317, %227 : vector<2x128xf32>
    %327 = arith.mulf %311, %319 : vector<2x128xf32>
    %328 = arith.addf %326, %327 : vector<2x128xf32>
    %329 = math.tanh %328 : vector<2x128xf32>
    %330 = arith.mulf %325, %329 : vector<2x128xf32>
    %331 = arith.truncf %330 : vector<2x128xf32> to vector<2x128xbf16>
    %c0_99 = arith.constant 0 : index
    %c0_100 = arith.constant 0 : index
    %332 = vector.load %arg4[%c0_99, %c0_100] : memref<128x512xbf16, #tpu.memory_space<vmem>>, vector<128x512xbf16>
    %cst_101 = arith.constant dense<0.000000e+00> : vector<2x512xf32>
    %333 = tpu.matmul %331, %332, %cst_101 {dimension_numbers = #tpu.dot_dimension_numbers<[1], [0], [0], [1], [0, 0, 1, 1], [], []>} : vector<2x128xbf16>, vector<128x512xbf16>, vector<2x512xf32> -> vector<2x512xf32>
    %334 = arith.truncf %264 : vector<2x128xf32> to vector<2x128xbf16>
    %c0_102 = arith.constant 0 : index
    %c0_103 = arith.constant 0 : index
    %335 = vector.load %arg5[%c0_102, %c0_103] : memref<128x512xbf16, #tpu.memory_space<vmem>>, vector<128x512xbf16>
    %cst_104 = arith.constant dense<0.000000e+00> : vector<2x512xf32>
    %336 = tpu.matmul %334, %335, %cst_104 {dimension_numbers = #tpu.dot_dimension_numbers<[1], [0], [0], [1], [0, 0, 1, 1], [], []>} : vector<2x128xbf16>, vector<128x512xbf16>, vector<2x512xf32> -> vector<2x512xf32>
    %337 = arith.addf %333, %336 : vector<2x512xf32>
    %c0_105 = arith.constant 0 : index
    %c0_106 = arith.constant 0 : index
    %338 = vector.load %arg6[%c0_105, %c0_106] : memref<1x512xf32, #tpu.memory_space<vmem>>, vector<1x512xf32>
    %339 = vector.broadcast %338 : vector<1x512xf32> to vector<2x512xf32>
    %340 = arith.addf %337, %339 : vector<2x512xf32>
    %341 = vector.extract_strided_slice %340 {offsets = [0, 0], sizes = [2, 128], strides = [1, 1]} : vector<2x512xf32> to vector<2x128xf32>
    %342 = arith.negf %341 : vector<2x128xf32>
    %343 = math.exp %342 : vector<2x128xf32>
    %cst_107 = arith.constant 1.000000e+00 : f32
    %344 = vector.broadcast %cst_107 : f32 to vector<2x128xf32>
    %345 = arith.addf %344, %343 : vector<2x128xf32>
    %346 = arith.divf %344, %345 : vector<2x128xf32>
    %347 = vector.extract_strided_slice %340 {offsets = [0, 128], sizes = [2, 128], strides = [1, 1]} : vector<2x512xf32> to vector<2x128xf32>
    %348 = arith.negf %347 : vector<2x128xf32>
    %349 = math.exp %348 : vector<2x128xf32>
    %cst_108 = arith.constant 1.000000e+00 : f32
    %350 = vector.broadcast %cst_108 : f32 to vector<2x128xf32>
    %351 = arith.addf %350, %349 : vector<2x128xf32>
    %352 = arith.divf %350, %351 : vector<2x128xf32>
    %353 = vector.extract_strided_slice %340 {offsets = [0, 256], sizes = [2, 128], strides = [1, 1]} : vector<2x512xf32> to vector<2x128xf32>
    %354 = math.tanh %353 : vector<2x128xf32>
    %355 = vector.extract_strided_slice %340 {offsets = [0, 384], sizes = [2, 128], strides = [1, 1]} : vector<2x512xf32> to vector<2x128xf32>
    %356 = arith.negf %355 : vector<2x128xf32>
    %357 = math.exp %356 : vector<2x128xf32>
    %cst_109 = arith.constant 1.000000e+00 : f32
    %358 = vector.broadcast %cst_109 : f32 to vector<2x128xf32>
    %359 = arith.addf %358, %357 : vector<2x128xf32>
    %360 = arith.divf %358, %359 : vector<2x128xf32>
    %361 = arith.mulf %352, %262 : vector<2x128xf32>
    %362 = arith.mulf %346, %354 : vector<2x128xf32>
    %363 = arith.addf %361, %362 : vector<2x128xf32>
    %364 = math.tanh %363 : vector<2x128xf32>
    %365 = arith.mulf %360, %364 : vector<2x128xf32>
    %366 = arith.truncf %365 : vector<2x128xf32> to vector<2x128xbf16>
    %c0_110 = arith.constant 0 : index
    %c0_111 = arith.constant 0 : index
    %367 = vector.load %arg7[%c0_110, %c0_111] : memref<128x512xbf16, #tpu.memory_space<vmem>>, vector<128x512xbf16>
    %cst_112 = arith.constant dense<0.000000e+00> : vector<2x512xf32>
    %368 = tpu.matmul %366, %367, %cst_112 {dimension_numbers = #tpu.dot_dimension_numbers<[1], [0], [0], [1], [0, 0, 1, 1], [], []>} : vector<2x128xbf16>, vector<128x512xbf16>, vector<2x512xf32> -> vector<2x512xf32>
    %369 = arith.truncf %299 : vector<2x128xf32> to vector<2x128xbf16>
    %c0_113 = arith.constant 0 : index
    %c0_114 = arith.constant 0 : index
    %370 = vector.load %arg8[%c0_113, %c0_114] : memref<128x512xbf16, #tpu.memory_space<vmem>>, vector<128x512xbf16>
    %cst_115 = arith.constant dense<0.000000e+00> : vector<2x512xf32>
    %371 = tpu.matmul %369, %370, %cst_115 {dimension_numbers = #tpu.dot_dimension_numbers<[1], [0], [0], [1], [0, 0, 1, 1], [], []>} : vector<2x128xbf16>, vector<128x512xbf16>, vector<2x512xf32> -> vector<2x512xf32>
    %372 = arith.addf %368, %371 : vector<2x512xf32>
    %c0_116 = arith.constant 0 : index
    %c0_117 = arith.constant 0 : index
    %373 = vector.load %arg9[%c0_116, %c0_117] : memref<1x512xf32, #tpu.memory_space<vmem>>, vector<1x512xf32>
    %374 = vector.broadcast %373 : vector<1x512xf32> to vector<2x512xf32>
    %375 = arith.addf %372, %374 : vector<2x512xf32>
    %376 = vector.extract_strided_slice %375 {offsets = [0, 0], sizes = [2, 128], strides = [1, 1]} : vector<2x512xf32> to vector<2x128xf32>
    %377 = arith.negf %376 : vector<2x128xf32>
    %378 = math.exp %377 : vector<2x128xf32>
    %cst_118 = arith.constant 1.000000e+00 : f32
    %379 = vector.broadcast %cst_118 : f32 to vector<2x128xf32>
    %380 = arith.addf %379, %378 : vector<2x128xf32>
    %381 = arith.divf %379, %380 : vector<2x128xf32>
    %382 = vector.extract_strided_slice %375 {offsets = [0, 128], sizes = [2, 128], strides = [1, 1]} : vector<2x512xf32> to vector<2x128xf32>
    %383 = arith.negf %382 : vector<2x128xf32>
    %384 = math.exp %383 : vector<2x128xf32>
    %cst_119 = arith.constant 1.000000e+00 : f32
    %385 = vector.broadcast %cst_119 : f32 to vector<2x128xf32>
    %386 = arith.addf %385, %384 : vector<2x128xf32>
    %387 = arith.divf %385, %386 : vector<2x128xf32>
    %388 = vector.extract_strided_slice %375 {offsets = [0, 256], sizes = [2, 128], strides = [1, 1]} : vector<2x512xf32> to vector<2x128xf32>
    %389 = math.tanh %388 : vector<2x128xf32>
    %390 = vector.extract_strided_slice %375 {offsets = [0, 384], sizes = [2, 128], strides = [1, 1]} : vector<2x512xf32> to vector<2x128xf32>
    %391 = arith.negf %390 : vector<2x128xf32>
    %392 = math.exp %391 : vector<2x128xf32>
    %cst_120 = arith.constant 1.000000e+00 : f32
    %393 = vector.broadcast %cst_120 : f32 to vector<2x128xf32>
    %394 = arith.addf %393, %392 : vector<2x128xf32>
    %395 = arith.divf %393, %394 : vector<2x128xf32>
    %396 = arith.mulf %387, %297 : vector<2x128xf32>
    %397 = arith.mulf %381, %389 : vector<2x128xf32>
    %398 = arith.addf %396, %397 : vector<2x128xf32>
    %399 = math.tanh %398 : vector<2x128xf32>
    %400 = arith.mulf %395, %399 : vector<2x128xf32>
    %c0_121 = arith.constant 0 : index
    %c4 = arith.constant 4 : index
    %c0_122 = arith.constant 0 : index
    %401 = vector.load %arg13[%c0_121, %c4, %c0_122] : memref<2x8x512xf32, #tpu.memory_space<vmem>>, vector<2x1x512xf32>
    %402 = vector.shape_cast %401 : vector<2x1x512xf32> to vector<2x512xf32>
    %403 = arith.truncf %330 : vector<2x128xf32> to vector<2x128xbf16>
    %c0_123 = arith.constant 0 : index
    %c0_124 = arith.constant 0 : index
    %404 = vector.load %arg2[%c0_123, %c0_124] : memref<128x512xbf16, #tpu.memory_space<vmem>>, vector<128x512xbf16>
    %cst_125 = arith.constant dense<0.000000e+00> : vector<2x512xf32>
    %405 = tpu.matmul %403, %404, %cst_125 {dimension_numbers = #tpu.dot_dimension_numbers<[1], [0], [0], [1], [0, 0, 1, 1], [], []>} : vector<2x128xbf16>, vector<128x512xbf16>, vector<2x512xf32> -> vector<2x512xf32>
    %406 = arith.addf %402, %405 : vector<2x512xf32>
    %407 = vector.extract_strided_slice %406 {offsets = [0, 0], sizes = [2, 128], strides = [1, 1]} : vector<2x512xf32> to vector<2x128xf32>
    %408 = arith.negf %407 : vector<2x128xf32>
    %409 = math.exp %408 : vector<2x128xf32>
    %cst_126 = arith.constant 1.000000e+00 : f32
    %410 = vector.broadcast %cst_126 : f32 to vector<2x128xf32>
    %411 = arith.addf %410, %409 : vector<2x128xf32>
    %412 = arith.divf %410, %411 : vector<2x128xf32>
    %413 = vector.extract_strided_slice %406 {offsets = [0, 128], sizes = [2, 128], strides = [1, 1]} : vector<2x512xf32> to vector<2x128xf32>
    %414 = arith.negf %413 : vector<2x128xf32>
    %415 = math.exp %414 : vector<2x128xf32>
    %cst_127 = arith.constant 1.000000e+00 : f32
    %416 = vector.broadcast %cst_127 : f32 to vector<2x128xf32>
    %417 = arith.addf %416, %415 : vector<2x128xf32>
    %418 = arith.divf %416, %417 : vector<2x128xf32>
    %419 = vector.extract_strided_slice %406 {offsets = [0, 256], sizes = [2, 128], strides = [1, 1]} : vector<2x512xf32> to vector<2x128xf32>
    %420 = math.tanh %419 : vector<2x128xf32>
    %421 = vector.extract_strided_slice %406 {offsets = [0, 384], sizes = [2, 128], strides = [1, 1]} : vector<2x512xf32> to vector<2x128xf32>
    %422 = arith.negf %421 : vector<2x128xf32>
    %423 = math.exp %422 : vector<2x128xf32>
    %cst_128 = arith.constant 1.000000e+00 : f32
    %424 = vector.broadcast %cst_128 : f32 to vector<2x128xf32>
    %425 = arith.addf %424, %423 : vector<2x128xf32>
    %426 = arith.divf %424, %425 : vector<2x128xf32>
    %427 = arith.mulf %418, %328 : vector<2x128xf32>
    %428 = arith.mulf %412, %420 : vector<2x128xf32>
    %429 = arith.addf %427, %428 : vector<2x128xf32>
    %430 = math.tanh %429 : vector<2x128xf32>
    %431 = arith.mulf %426, %430 : vector<2x128xf32>
    %432 = arith.truncf %431 : vector<2x128xf32> to vector<2x128xbf16>
    %c0_129 = arith.constant 0 : index
    %c0_130 = arith.constant 0 : index
    %433 = vector.load %arg4[%c0_129, %c0_130] : memref<128x512xbf16, #tpu.memory_space<vmem>>, vector<128x512xbf16>
    %cst_131 = arith.constant dense<0.000000e+00> : vector<2x512xf32>
    %434 = tpu.matmul %432, %433, %cst_131 {dimension_numbers = #tpu.dot_dimension_numbers<[1], [0], [0], [1], [0, 0, 1, 1], [], []>} : vector<2x128xbf16>, vector<128x512xbf16>, vector<2x512xf32> -> vector<2x512xf32>
    %435 = arith.truncf %365 : vector<2x128xf32> to vector<2x128xbf16>
    %c0_132 = arith.constant 0 : index
    %c0_133 = arith.constant 0 : index
    %436 = vector.load %arg5[%c0_132, %c0_133] : memref<128x512xbf16, #tpu.memory_space<vmem>>, vector<128x512xbf16>
    %cst_134 = arith.constant dense<0.000000e+00> : vector<2x512xf32>
    %437 = tpu.matmul %435, %436, %cst_134 {dimension_numbers = #tpu.dot_dimension_numbers<[1], [0], [0], [1], [0, 0, 1, 1], [], []>} : vector<2x128xbf16>, vector<128x512xbf16>, vector<2x512xf32> -> vector<2x512xf32>
    %438 = arith.addf %434, %437 : vector<2x512xf32>
    %c0_135 = arith.constant 0 : index
    %c0_136 = arith.constant 0 : index
    %439 = vector.load %arg6[%c0_135, %c0_136] : memref<1x512xf32, #tpu.memory_space<vmem>>, vector<1x512xf32>
    %440 = vector.broadcast %439 : vector<1x512xf32> to vector<2x512xf32>
    %441 = arith.addf %438, %440 : vector<2x512xf32>
    %442 = vector.extract_strided_slice %441 {offsets = [0, 0], sizes = [2, 128], strides = [1, 1]} : vector<2x512xf32> to vector<2x128xf32>
    %443 = arith.negf %442 : vector<2x128xf32>
    %444 = math.exp %443 : vector<2x128xf32>
    %cst_137 = arith.constant 1.000000e+00 : f32
    %445 = vector.broadcast %cst_137 : f32 to vector<2x128xf32>
    %446 = arith.addf %445, %444 : vector<2x128xf32>
    %447 = arith.divf %445, %446 : vector<2x128xf32>
    %448 = vector.extract_strided_slice %441 {offsets = [0, 128], sizes = [2, 128], strides = [1, 1]} : vector<2x512xf32> to vector<2x128xf32>
    %449 = arith.negf %448 : vector<2x128xf32>
    %450 = math.exp %449 : vector<2x128xf32>
    %cst_138 = arith.constant 1.000000e+00 : f32
    %451 = vector.broadcast %cst_138 : f32 to vector<2x128xf32>
    %452 = arith.addf %451, %450 : vector<2x128xf32>
    %453 = arith.divf %451, %452 : vector<2x128xf32>
    %454 = vector.extract_strided_slice %441 {offsets = [0, 256], sizes = [2, 128], strides = [1, 1]} : vector<2x512xf32> to vector<2x128xf32>
    %455 = math.tanh %454 : vector<2x128xf32>
    %456 = vector.extract_strided_slice %441 {offsets = [0, 384], sizes = [2, 128], strides = [1, 1]} : vector<2x512xf32> to vector<2x128xf32>
    %457 = arith.negf %456 : vector<2x128xf32>
    %458 = math.exp %457 : vector<2x128xf32>
    %cst_139 = arith.constant 1.000000e+00 : f32
    %459 = vector.broadcast %cst_139 : f32 to vector<2x128xf32>
    %460 = arith.addf %459, %458 : vector<2x128xf32>
    %461 = arith.divf %459, %460 : vector<2x128xf32>
    %462 = arith.mulf %453, %363 : vector<2x128xf32>
    %463 = arith.mulf %447, %455 : vector<2x128xf32>
    %464 = arith.addf %462, %463 : vector<2x128xf32>
    %465 = math.tanh %464 : vector<2x128xf32>
    %466 = arith.mulf %461, %465 : vector<2x128xf32>
    %467 = arith.truncf %466 : vector<2x128xf32> to vector<2x128xbf16>
    %c0_140 = arith.constant 0 : index
    %c0_141 = arith.constant 0 : index
    %468 = vector.load %arg7[%c0_140, %c0_141] : memref<128x512xbf16, #tpu.memory_space<vmem>>, vector<128x512xbf16>
    %cst_142 = arith.constant dense<0.000000e+00> : vector<2x512xf32>
    %469 = tpu.matmul %467, %468, %cst_142 {dimension_numbers = #tpu.dot_dimension_numbers<[1], [0], [0], [1], [0, 0, 1, 1], [], []>} : vector<2x128xbf16>, vector<128x512xbf16>, vector<2x512xf32> -> vector<2x512xf32>
    %470 = arith.truncf %400 : vector<2x128xf32> to vector<2x128xbf16>
    %c0_143 = arith.constant 0 : index
    %c0_144 = arith.constant 0 : index
    %471 = vector.load %arg8[%c0_143, %c0_144] : memref<128x512xbf16, #tpu.memory_space<vmem>>, vector<128x512xbf16>
    %cst_145 = arith.constant dense<0.000000e+00> : vector<2x512xf32>
    %472 = tpu.matmul %470, %471, %cst_145 {dimension_numbers = #tpu.dot_dimension_numbers<[1], [0], [0], [1], [0, 0, 1, 1], [], []>} : vector<2x128xbf16>, vector<128x512xbf16>, vector<2x512xf32> -> vector<2x512xf32>
    %473 = arith.addf %469, %472 : vector<2x512xf32>
    %c0_146 = arith.constant 0 : index
    %c0_147 = arith.constant 0 : index
    %474 = vector.load %arg9[%c0_146, %c0_147] : memref<1x512xf32, #tpu.memory_space<vmem>>, vector<1x512xf32>
    %475 = vector.broadcast %474 : vector<1x512xf32> to vector<2x512xf32>
    %476 = arith.addf %473, %475 : vector<2x512xf32>
    %477 = vector.extract_strided_slice %476 {offsets = [0, 0], sizes = [2, 128], strides = [1, 1]} : vector<2x512xf32> to vector<2x128xf32>
    %478 = arith.negf %477 : vector<2x128xf32>
    %479 = math.exp %478 : vector<2x128xf32>
    %cst_148 = arith.constant 1.000000e+00 : f32
    %480 = vector.broadcast %cst_148 : f32 to vector<2x128xf32>
    %481 = arith.addf %480, %479 : vector<2x128xf32>
    %482 = arith.divf %480, %481 : vector<2x128xf32>
    %483 = vector.extract_strided_slice %476 {offsets = [0, 128], sizes = [2, 128], strides = [1, 1]} : vector<2x512xf32> to vector<2x128xf32>
    %484 = arith.negf %483 : vector<2x128xf32>
    %485 = math.exp %484 : vector<2x128xf32>
    %cst_149 = arith.constant 1.000000e+00 : f32
    %486 = vector.broadcast %cst_149 : f32 to vector<2x128xf32>
    %487 = arith.addf %486, %485 : vector<2x128xf32>
    %488 = arith.divf %486, %487 : vector<2x128xf32>
    %489 = vector.extract_strided_slice %476 {offsets = [0, 256], sizes = [2, 128], strides = [1, 1]} : vector<2x512xf32> to vector<2x128xf32>
    %490 = math.tanh %489 : vector<2x128xf32>
    %491 = vector.extract_strided_slice %476 {offsets = [0, 384], sizes = [2, 128], strides = [1, 1]} : vector<2x512xf32> to vector<2x128xf32>
    %492 = arith.negf %491 : vector<2x128xf32>
    %493 = math.exp %492 : vector<2x128xf32>
    %cst_150 = arith.constant 1.000000e+00 : f32
    %494 = vector.broadcast %cst_150 : f32 to vector<2x128xf32>
    %495 = arith.addf %494, %493 : vector<2x128xf32>
    %496 = arith.divf %494, %495 : vector<2x128xf32>
    %497 = arith.mulf %488, %398 : vector<2x128xf32>
    %498 = arith.mulf %482, %490 : vector<2x128xf32>
    %499 = arith.addf %497, %498 : vector<2x128xf32>
    %500 = math.tanh %499 : vector<2x128xf32>
    %501 = arith.mulf %496, %500 : vector<2x128xf32>
    %c0_151 = arith.constant 0 : index
    %c5 = arith.constant 5 : index
    %c0_152 = arith.constant 0 : index
    %502 = vector.load %arg13[%c0_151, %c5, %c0_152] : memref<2x8x512xf32, #tpu.memory_space<vmem>>, vector<2x1x512xf32>
    %503 = vector.shape_cast %502 : vector<2x1x512xf32> to vector<2x512xf32>
    %504 = arith.truncf %431 : vector<2x128xf32> to vector<2x128xbf16>
    %c0_153 = arith.constant 0 : index
    %c0_154 = arith.constant 0 : index
    %505 = vector.load %arg2[%c0_153, %c0_154] : memref<128x512xbf16, #tpu.memory_space<vmem>>, vector<128x512xbf16>
    %cst_155 = arith.constant dense<0.000000e+00> : vector<2x512xf32>
    %506 = tpu.matmul %504, %505, %cst_155 {dimension_numbers = #tpu.dot_dimension_numbers<[1], [0], [0], [1], [0, 0, 1, 1], [], []>} : vector<2x128xbf16>, vector<128x512xbf16>, vector<2x512xf32> -> vector<2x512xf32>
    %507 = arith.addf %503, %506 : vector<2x512xf32>
    %508 = vector.extract_strided_slice %507 {offsets = [0, 0], sizes = [2, 128], strides = [1, 1]} : vector<2x512xf32> to vector<2x128xf32>
    %509 = arith.negf %508 : vector<2x128xf32>
    %510 = math.exp %509 : vector<2x128xf32>
    %cst_156 = arith.constant 1.000000e+00 : f32
    %511 = vector.broadcast %cst_156 : f32 to vector<2x128xf32>
    %512 = arith.addf %511, %510 : vector<2x128xf32>
    %513 = arith.divf %511, %512 : vector<2x128xf32>
    %514 = vector.extract_strided_slice %507 {offsets = [0, 128], sizes = [2, 128], strides = [1, 1]} : vector<2x512xf32> to vector<2x128xf32>
    %515 = arith.negf %514 : vector<2x128xf32>
    %516 = math.exp %515 : vector<2x128xf32>
    %cst_157 = arith.constant 1.000000e+00 : f32
    %517 = vector.broadcast %cst_157 : f32 to vector<2x128xf32>
    %518 = arith.addf %517, %516 : vector<2x128xf32>
    %519 = arith.divf %517, %518 : vector<2x128xf32>
    %520 = vector.extract_strided_slice %507 {offsets = [0, 256], sizes = [2, 128], strides = [1, 1]} : vector<2x512xf32> to vector<2x128xf32>
    %521 = math.tanh %520 : vector<2x128xf32>
    %522 = vector.extract_strided_slice %507 {offsets = [0, 384], sizes = [2, 128], strides = [1, 1]} : vector<2x512xf32> to vector<2x128xf32>
    %523 = arith.negf %522 : vector<2x128xf32>
    %524 = math.exp %523 : vector<2x128xf32>
    %cst_158 = arith.constant 1.000000e+00 : f32
    %525 = vector.broadcast %cst_158 : f32 to vector<2x128xf32>
    %526 = arith.addf %525, %524 : vector<2x128xf32>
    %527 = arith.divf %525, %526 : vector<2x128xf32>
    %528 = arith.mulf %519, %429 : vector<2x128xf32>
    %529 = arith.mulf %513, %521 : vector<2x128xf32>
    %530 = arith.addf %528, %529 : vector<2x128xf32>
    %531 = math.tanh %530 : vector<2x128xf32>
    %532 = arith.mulf %527, %531 : vector<2x128xf32>
    %533 = arith.truncf %532 : vector<2x128xf32> to vector<2x128xbf16>
    %c0_159 = arith.constant 0 : index
    %c0_160 = arith.constant 0 : index
    %534 = vector.load %arg4[%c0_159, %c0_160] : memref<128x512xbf16, #tpu.memory_space<vmem>>, vector<128x512xbf16>
    %cst_161 = arith.constant dense<0.000000e+00> : vector<2x512xf32>
    %535 = tpu.matmul %533, %534, %cst_161 {dimension_numbers = #tpu.dot_dimension_numbers<[1], [0], [0], [1], [0, 0, 1, 1], [], []>} : vector<2x128xbf16>, vector<128x512xbf16>, vector<2x512xf32> -> vector<2x512xf32>
    %536 = arith.truncf %466 : vector<2x128xf32> to vector<2x128xbf16>
    %c0_162 = arith.constant 0 : index
    %c0_163 = arith.constant 0 : index
    %537 = vector.load %arg5[%c0_162, %c0_163] : memref<128x512xbf16, #tpu.memory_space<vmem>>, vector<128x512xbf16>
    %cst_164 = arith.constant dense<0.000000e+00> : vector<2x512xf32>
    %538 = tpu.matmul %536, %537, %cst_164 {dimension_numbers = #tpu.dot_dimension_numbers<[1], [0], [0], [1], [0, 0, 1, 1], [], []>} : vector<2x128xbf16>, vector<128x512xbf16>, vector<2x512xf32> -> vector<2x512xf32>
    %539 = arith.addf %535, %538 : vector<2x512xf32>
    %c0_165 = arith.constant 0 : index
    %c0_166 = arith.constant 0 : index
    %540 = vector.load %arg6[%c0_165, %c0_166] : memref<1x512xf32, #tpu.memory_space<vmem>>, vector<1x512xf32>
    %541 = vector.broadcast %540 : vector<1x512xf32> to vector<2x512xf32>
    %542 = arith.addf %539, %541 : vector<2x512xf32>
    %543 = vector.extract_strided_slice %542 {offsets = [0, 0], sizes = [2, 128], strides = [1, 1]} : vector<2x512xf32> to vector<2x128xf32>
    %544 = arith.negf %543 : vector<2x128xf32>
    %545 = math.exp %544 : vector<2x128xf32>
    %cst_167 = arith.constant 1.000000e+00 : f32
    %546 = vector.broadcast %cst_167 : f32 to vector<2x128xf32>
    %547 = arith.addf %546, %545 : vector<2x128xf32>
    %548 = arith.divf %546, %547 : vector<2x128xf32>
    %549 = vector.extract_strided_slice %542 {offsets = [0, 128], sizes = [2, 128], strides = [1, 1]} : vector<2x512xf32> to vector<2x128xf32>
    %550 = arith.negf %549 : vector<2x128xf32>
    %551 = math.exp %550 : vector<2x128xf32>
    %cst_168 = arith.constant 1.000000e+00 : f32
    %552 = vector.broadcast %cst_168 : f32 to vector<2x128xf32>
    %553 = arith.addf %552, %551 : vector<2x128xf32>
    %554 = arith.divf %552, %553 : vector<2x128xf32>
    %555 = vector.extract_strided_slice %542 {offsets = [0, 256], sizes = [2, 128], strides = [1, 1]} : vector<2x512xf32> to vector<2x128xf32>
    %556 = math.tanh %555 : vector<2x128xf32>
    %557 = vector.extract_strided_slice %542 {offsets = [0, 384], sizes = [2, 128], strides = [1, 1]} : vector<2x512xf32> to vector<2x128xf32>
    %558 = arith.negf %557 : vector<2x128xf32>
    %559 = math.exp %558 : vector<2x128xf32>
    %cst_169 = arith.constant 1.000000e+00 : f32
    %560 = vector.broadcast %cst_169 : f32 to vector<2x128xf32>
    %561 = arith.addf %560, %559 : vector<2x128xf32>
    %562 = arith.divf %560, %561 : vector<2x128xf32>
    %563 = arith.mulf %554, %464 : vector<2x128xf32>
    %564 = arith.mulf %548, %556 : vector<2x128xf32>
    %565 = arith.addf %563, %564 : vector<2x128xf32>
    %566 = math.tanh %565 : vector<2x128xf32>
    %567 = arith.mulf %562, %566 : vector<2x128xf32>
    %568 = arith.truncf %567 : vector<2x128xf32> to vector<2x128xbf16>
    %c0_170 = arith.constant 0 : index
    %c0_171 = arith.constant 0 : index
    %569 = vector.load %arg7[%c0_170, %c0_171] : memref<128x512xbf16, #tpu.memory_space<vmem>>, vector<128x512xbf16>
    %cst_172 = arith.constant dense<0.000000e+00> : vector<2x512xf32>
    %570 = tpu.matmul %568, %569, %cst_172 {dimension_numbers = #tpu.dot_dimension_numbers<[1], [0], [0], [1], [0, 0, 1, 1], [], []>} : vector<2x128xbf16>, vector<128x512xbf16>, vector<2x512xf32> -> vector<2x512xf32>
    %571 = arith.truncf %501 : vector<2x128xf32> to vector<2x128xbf16>
    %c0_173 = arith.constant 0 : index
    %c0_174 = arith.constant 0 : index
    %572 = vector.load %arg8[%c0_173, %c0_174] : memref<128x512xbf16, #tpu.memory_space<vmem>>, vector<128x512xbf16>
    %cst_175 = arith.constant dense<0.000000e+00> : vector<2x512xf32>
    %573 = tpu.matmul %571, %572, %cst_175 {dimension_numbers = #tpu.dot_dimension_numbers<[1], [0], [0], [1], [0, 0, 1, 1], [], []>} : vector<2x128xbf16>, vector<128x512xbf16>, vector<2x512xf32> -> vector<2x512xf32>
    %574 = arith.addf %570, %573 : vector<2x512xf32>
    %c0_176 = arith.constant 0 : index
    %c0_177 = arith.constant 0 : index
    %575 = vector.load %arg9[%c0_176, %c0_177] : memref<1x512xf32, #tpu.memory_space<vmem>>, vector<1x512xf32>
    %576 = vector.broadcast %575 : vector<1x512xf32> to vector<2x512xf32>
    %577 = arith.addf %574, %576 : vector<2x512xf32>
    %578 = vector.extract_strided_slice %577 {offsets = [0, 0], sizes = [2, 128], strides = [1, 1]} : vector<2x512xf32> to vector<2x128xf32>
    %579 = arith.negf %578 : vector<2x128xf32>
    %580 = math.exp %579 : vector<2x128xf32>
    %cst_178 = arith.constant 1.000000e+00 : f32
    %581 = vector.broadcast %cst_178 : f32 to vector<2x128xf32>
    %582 = arith.addf %581, %580 : vector<2x128xf32>
    %583 = arith.divf %581, %582 : vector<2x128xf32>
    %584 = vector.extract_strided_slice %577 {offsets = [0, 128], sizes = [2, 128], strides = [1, 1]} : vector<2x512xf32> to vector<2x128xf32>
    %585 = arith.negf %584 : vector<2x128xf32>
    %586 = math.exp %585 : vector<2x128xf32>
    %cst_179 = arith.constant 1.000000e+00 : f32
    %587 = vector.broadcast %cst_179 : f32 to vector<2x128xf32>
    %588 = arith.addf %587, %586 : vector<2x128xf32>
    %589 = arith.divf %587, %588 : vector<2x128xf32>
    %590 = vector.extract_strided_slice %577 {offsets = [0, 256], sizes = [2, 128], strides = [1, 1]} : vector<2x512xf32> to vector<2x128xf32>
    %591 = math.tanh %590 : vector<2x128xf32>
    %592 = vector.extract_strided_slice %577 {offsets = [0, 384], sizes = [2, 128], strides = [1, 1]} : vector<2x512xf32> to vector<2x128xf32>
    %593 = arith.negf %592 : vector<2x128xf32>
    %594 = math.exp %593 : vector<2x128xf32>
    %cst_180 = arith.constant 1.000000e+00 : f32
    %595 = vector.broadcast %cst_180 : f32 to vector<2x128xf32>
    %596 = arith.addf %595, %594 : vector<2x128xf32>
    %597 = arith.divf %595, %596 : vector<2x128xf32>
    %598 = arith.mulf %589, %499 : vector<2x128xf32>
    %599 = arith.mulf %583, %591 : vector<2x128xf32>
    %600 = arith.addf %598, %599 : vector<2x128xf32>
    %601 = math.tanh %600 : vector<2x128xf32>
    %602 = arith.mulf %597, %601 : vector<2x128xf32>
    %c0_181 = arith.constant 0 : index
    %c6 = arith.constant 6 : index
    %c0_182 = arith.constant 0 : index
    %603 = vector.load %arg13[%c0_181, %c6, %c0_182] : memref<2x8x512xf32, #tpu.memory_space<vmem>>, vector<2x1x512xf32>
    %604 = vector.shape_cast %603 : vector<2x1x512xf32> to vector<2x512xf32>
    %605 = arith.truncf %532 : vector<2x128xf32> to vector<2x128xbf16>
    %c0_183 = arith.constant 0 : index
    %c0_184 = arith.constant 0 : index
    %606 = vector.load %arg2[%c0_183, %c0_184] : memref<128x512xbf16, #tpu.memory_space<vmem>>, vector<128x512xbf16>
    %cst_185 = arith.constant dense<0.000000e+00> : vector<2x512xf32>
    %607 = tpu.matmul %605, %606, %cst_185 {dimension_numbers = #tpu.dot_dimension_numbers<[1], [0], [0], [1], [0, 0, 1, 1], [], []>} : vector<2x128xbf16>, vector<128x512xbf16>, vector<2x512xf32> -> vector<2x512xf32>
    %608 = arith.addf %604, %607 : vector<2x512xf32>
    %609 = vector.extract_strided_slice %608 {offsets = [0, 0], sizes = [2, 128], strides = [1, 1]} : vector<2x512xf32> to vector<2x128xf32>
    %610 = arith.negf %609 : vector<2x128xf32>
    %611 = math.exp %610 : vector<2x128xf32>
    %cst_186 = arith.constant 1.000000e+00 : f32
    %612 = vector.broadcast %cst_186 : f32 to vector<2x128xf32>
    %613 = arith.addf %612, %611 : vector<2x128xf32>
    %614 = arith.divf %612, %613 : vector<2x128xf32>
    %615 = vector.extract_strided_slice %608 {offsets = [0, 128], sizes = [2, 128], strides = [1, 1]} : vector<2x512xf32> to vector<2x128xf32>
    %616 = arith.negf %615 : vector<2x128xf32>
    %617 = math.exp %616 : vector<2x128xf32>
    %cst_187 = arith.constant 1.000000e+00 : f32
    %618 = vector.broadcast %cst_187 : f32 to vector<2x128xf32>
    %619 = arith.addf %618, %617 : vector<2x128xf32>
    %620 = arith.divf %618, %619 : vector<2x128xf32>
    %621 = vector.extract_strided_slice %608 {offsets = [0, 256], sizes = [2, 128], strides = [1, 1]} : vector<2x512xf32> to vector<2x128xf32>
    %622 = math.tanh %621 : vector<2x128xf32>
    %623 = vector.extract_strided_slice %608 {offsets = [0, 384], sizes = [2, 128], strides = [1, 1]} : vector<2x512xf32> to vector<2x128xf32>
    %624 = arith.negf %623 : vector<2x128xf32>
    %625 = math.exp %624 : vector<2x128xf32>
    %cst_188 = arith.constant 1.000000e+00 : f32
    %626 = vector.broadcast %cst_188 : f32 to vector<2x128xf32>
    %627 = arith.addf %626, %625 : vector<2x128xf32>
    %628 = arith.divf %626, %627 : vector<2x128xf32>
    %629 = arith.mulf %620, %530 : vector<2x128xf32>
    %630 = arith.mulf %614, %622 : vector<2x128xf32>
    %631 = arith.addf %629, %630 : vector<2x128xf32>
    %632 = math.tanh %631 : vector<2x128xf32>
    %633 = arith.mulf %628, %632 : vector<2x128xf32>
    %634 = arith.truncf %633 : vector<2x128xf32> to vector<2x128xbf16>
    %c0_189 = arith.constant 0 : index
    %c0_190 = arith.constant 0 : index
    %635 = vector.load %arg4[%c0_189, %c0_190] : memref<128x512xbf16, #tpu.memory_space<vmem>>, vector<128x512xbf16>
    %cst_191 = arith.constant dense<0.000000e+00> : vector<2x512xf32>
    %636 = tpu.matmul %634, %635, %cst_191 {dimension_numbers = #tpu.dot_dimension_numbers<[1], [0], [0], [1], [0, 0, 1, 1], [], []>} : vector<2x128xbf16>, vector<128x512xbf16>, vector<2x512xf32> -> vector<2x512xf32>
    %637 = arith.truncf %567 : vector<2x128xf32> to vector<2x128xbf16>
    %c0_192 = arith.constant 0 : index
    %c0_193 = arith.constant 0 : index
    %638 = vector.load %arg5[%c0_192, %c0_193] : memref<128x512xbf16, #tpu.memory_space<vmem>>, vector<128x512xbf16>
    %cst_194 = arith.constant dense<0.000000e+00> : vector<2x512xf32>
    %639 = tpu.matmul %637, %638, %cst_194 {dimension_numbers = #tpu.dot_dimension_numbers<[1], [0], [0], [1], [0, 0, 1, 1], [], []>} : vector<2x128xbf16>, vector<128x512xbf16>, vector<2x512xf32> -> vector<2x512xf32>
    %640 = arith.addf %636, %639 : vector<2x512xf32>
    %c0_195 = arith.constant 0 : index
    %c0_196 = arith.constant 0 : index
    %641 = vector.load %arg6[%c0_195, %c0_196] : memref<1x512xf32, #tpu.memory_space<vmem>>, vector<1x512xf32>
    %642 = vector.broadcast %641 : vector<1x512xf32> to vector<2x512xf32>
    %643 = arith.addf %640, %642 : vector<2x512xf32>
    %644 = vector.extract_strided_slice %643 {offsets = [0, 0], sizes = [2, 128], strides = [1, 1]} : vector<2x512xf32> to vector<2x128xf32>
    %645 = arith.negf %644 : vector<2x128xf32>
    %646 = math.exp %645 : vector<2x128xf32>
    %cst_197 = arith.constant 1.000000e+00 : f32
    %647 = vector.broadcast %cst_197 : f32 to vector<2x128xf32>
    %648 = arith.addf %647, %646 : vector<2x128xf32>
    %649 = arith.divf %647, %648 : vector<2x128xf32>
    %650 = vector.extract_strided_slice %643 {offsets = [0, 128], sizes = [2, 128], strides = [1, 1]} : vector<2x512xf32> to vector<2x128xf32>
    %651 = arith.negf %650 : vector<2x128xf32>
    %652 = math.exp %651 : vector<2x128xf32>
    %cst_198 = arith.constant 1.000000e+00 : f32
    %653 = vector.broadcast %cst_198 : f32 to vector<2x128xf32>
    %654 = arith.addf %653, %652 : vector<2x128xf32>
    %655 = arith.divf %653, %654 : vector<2x128xf32>
    %656 = vector.extract_strided_slice %643 {offsets = [0, 256], sizes = [2, 128], strides = [1, 1]} : vector<2x512xf32> to vector<2x128xf32>
    %657 = math.tanh %656 : vector<2x128xf32>
    %658 = vector.extract_strided_slice %643 {offsets = [0, 384], sizes = [2, 128], strides = [1, 1]} : vector<2x512xf32> to vector<2x128xf32>
    %659 = arith.negf %658 : vector<2x128xf32>
    %660 = math.exp %659 : vector<2x128xf32>
    %cst_199 = arith.constant 1.000000e+00 : f32
    %661 = vector.broadcast %cst_199 : f32 to vector<2x128xf32>
    %662 = arith.addf %661, %660 : vector<2x128xf32>
    %663 = arith.divf %661, %662 : vector<2x128xf32>
    %664 = arith.mulf %655, %565 : vector<2x128xf32>
    %665 = arith.mulf %649, %657 : vector<2x128xf32>
    %666 = arith.addf %664, %665 : vector<2x128xf32>
    %667 = math.tanh %666 : vector<2x128xf32>
    %668 = arith.mulf %663, %667 : vector<2x128xf32>
    %669 = arith.truncf %668 : vector<2x128xf32> to vector<2x128xbf16>
    %c0_200 = arith.constant 0 : index
    %c0_201 = arith.constant 0 : index
    %670 = vector.load %arg7[%c0_200, %c0_201] : memref<128x512xbf16, #tpu.memory_space<vmem>>, vector<128x512xbf16>
    %cst_202 = arith.constant dense<0.000000e+00> : vector<2x512xf32>
    %671 = tpu.matmul %669, %670, %cst_202 {dimension_numbers = #tpu.dot_dimension_numbers<[1], [0], [0], [1], [0, 0, 1, 1], [], []>} : vector<2x128xbf16>, vector<128x512xbf16>, vector<2x512xf32> -> vector<2x512xf32>
    %672 = arith.truncf %602 : vector<2x128xf32> to vector<2x128xbf16>
    %c0_203 = arith.constant 0 : index
    %c0_204 = arith.constant 0 : index
    %673 = vector.load %arg8[%c0_203, %c0_204] : memref<128x512xbf16, #tpu.memory_space<vmem>>, vector<128x512xbf16>
    %cst_205 = arith.constant dense<0.000000e+00> : vector<2x512xf32>
    %674 = tpu.matmul %672, %673, %cst_205 {dimension_numbers = #tpu.dot_dimension_numbers<[1], [0], [0], [1], [0, 0, 1, 1], [], []>} : vector<2x128xbf16>, vector<128x512xbf16>, vector<2x512xf32> -> vector<2x512xf32>
    %675 = arith.addf %671, %674 : vector<2x512xf32>
    %c0_206 = arith.constant 0 : index
    %c0_207 = arith.constant 0 : index
    %676 = vector.load %arg9[%c0_206, %c0_207] : memref<1x512xf32, #tpu.memory_space<vmem>>, vector<1x512xf32>
    %677 = vector.broadcast %676 : vector<1x512xf32> to vector<2x512xf32>
    %678 = arith.addf %675, %677 : vector<2x512xf32>
    %679 = vector.extract_strided_slice %678 {offsets = [0, 0], sizes = [2, 128], strides = [1, 1]} : vector<2x512xf32> to vector<2x128xf32>
    %680 = arith.negf %679 : vector<2x128xf32>
    %681 = math.exp %680 : vector<2x128xf32>
    %cst_208 = arith.constant 1.000000e+00 : f32
    %682 = vector.broadcast %cst_208 : f32 to vector<2x128xf32>
    %683 = arith.addf %682, %681 : vector<2x128xf32>
    %684 = arith.divf %682, %683 : vector<2x128xf32>
    %685 = vector.extract_strided_slice %678 {offsets = [0, 128], sizes = [2, 128], strides = [1, 1]} : vector<2x512xf32> to vector<2x128xf32>
    %686 = arith.negf %685 : vector<2x128xf32>
    %687 = math.exp %686 : vector<2x128xf32>
    %cst_209 = arith.constant 1.000000e+00 : f32
    %688 = vector.broadcast %cst_209 : f32 to vector<2x128xf32>
    %689 = arith.addf %688, %687 : vector<2x128xf32>
    %690 = arith.divf %688, %689 : vector<2x128xf32>
    %691 = vector.extract_strided_slice %678 {offsets = [0, 256], sizes = [2, 128], strides = [1, 1]} : vector<2x512xf32> to vector<2x128xf32>
    %692 = math.tanh %691 : vector<2x128xf32>
    %693 = vector.extract_strided_slice %678 {offsets = [0, 384], sizes = [2, 128], strides = [1, 1]} : vector<2x512xf32> to vector<2x128xf32>
    %694 = arith.negf %693 : vector<2x128xf32>
    %695 = math.exp %694 : vector<2x128xf32>
    %cst_210 = arith.constant 1.000000e+00 : f32
    %696 = vector.broadcast %cst_210 : f32 to vector<2x128xf32>
    %697 = arith.addf %696, %695 : vector<2x128xf32>
    %698 = arith.divf %696, %697 : vector<2x128xf32>
    %699 = arith.mulf %690, %600 : vector<2x128xf32>
    %700 = arith.mulf %684, %692 : vector<2x128xf32>
    %701 = arith.addf %699, %700 : vector<2x128xf32>
    %702 = math.tanh %701 : vector<2x128xf32>
    %703 = arith.mulf %698, %702 : vector<2x128xf32>
    %c0_211 = arith.constant 0 : index
    %c7 = arith.constant 7 : index
    %c0_212 = arith.constant 0 : index
    %704 = vector.load %arg13[%c0_211, %c7, %c0_212] : memref<2x8x512xf32, #tpu.memory_space<vmem>>, vector<2x1x512xf32>
    %705 = vector.shape_cast %704 : vector<2x1x512xf32> to vector<2x512xf32>
    %706 = arith.truncf %633 : vector<2x128xf32> to vector<2x128xbf16>
    %c0_213 = arith.constant 0 : index
    %c0_214 = arith.constant 0 : index
    %707 = vector.load %arg2[%c0_213, %c0_214] : memref<128x512xbf16, #tpu.memory_space<vmem>>, vector<128x512xbf16>
    %cst_215 = arith.constant dense<0.000000e+00> : vector<2x512xf32>
    %708 = tpu.matmul %706, %707, %cst_215 {dimension_numbers = #tpu.dot_dimension_numbers<[1], [0], [0], [1], [0, 0, 1, 1], [], []>} : vector<2x128xbf16>, vector<128x512xbf16>, vector<2x512xf32> -> vector<2x512xf32>
    %709 = arith.addf %705, %708 : vector<2x512xf32>
    %710 = vector.extract_strided_slice %709 {offsets = [0, 0], sizes = [2, 128], strides = [1, 1]} : vector<2x512xf32> to vector<2x128xf32>
    %711 = arith.negf %710 : vector<2x128xf32>
    %712 = math.exp %711 : vector<2x128xf32>
    %cst_216 = arith.constant 1.000000e+00 : f32
    %713 = vector.broadcast %cst_216 : f32 to vector<2x128xf32>
    %714 = arith.addf %713, %712 : vector<2x128xf32>
    %715 = arith.divf %713, %714 : vector<2x128xf32>
    %716 = vector.extract_strided_slice %709 {offsets = [0, 128], sizes = [2, 128], strides = [1, 1]} : vector<2x512xf32> to vector<2x128xf32>
    %717 = arith.negf %716 : vector<2x128xf32>
    %718 = math.exp %717 : vector<2x128xf32>
    %cst_217 = arith.constant 1.000000e+00 : f32
    %719 = vector.broadcast %cst_217 : f32 to vector<2x128xf32>
    %720 = arith.addf %719, %718 : vector<2x128xf32>
    %721 = arith.divf %719, %720 : vector<2x128xf32>
    %722 = vector.extract_strided_slice %709 {offsets = [0, 256], sizes = [2, 128], strides = [1, 1]} : vector<2x512xf32> to vector<2x128xf32>
    %723 = math.tanh %722 : vector<2x128xf32>
    %724 = vector.extract_strided_slice %709 {offsets = [0, 384], sizes = [2, 128], strides = [1, 1]} : vector<2x512xf32> to vector<2x128xf32>
    %725 = arith.negf %724 : vector<2x128xf32>
    %726 = math.exp %725 : vector<2x128xf32>
    %cst_218 = arith.constant 1.000000e+00 : f32
    %727 = vector.broadcast %cst_218 : f32 to vector<2x128xf32>
    %728 = arith.addf %727, %726 : vector<2x128xf32>
    %729 = arith.divf %727, %728 : vector<2x128xf32>
    %730 = arith.mulf %721, %631 : vector<2x128xf32>
    %731 = arith.mulf %715, %723 : vector<2x128xf32>
    %732 = arith.addf %730, %731 : vector<2x128xf32>
    %733 = math.tanh %732 : vector<2x128xf32>
    %734 = arith.mulf %729, %733 : vector<2x128xf32>
    %735 = arith.truncf %734 : vector<2x128xf32> to vector<2x128xbf16>
    %c0_219 = arith.constant 0 : index
    %c0_220 = arith.constant 0 : index
    %736 = vector.load %arg4[%c0_219, %c0_220] : memref<128x512xbf16, #tpu.memory_space<vmem>>, vector<128x512xbf16>
    %cst_221 = arith.constant dense<0.000000e+00> : vector<2x512xf32>
    %737 = tpu.matmul %735, %736, %cst_221 {dimension_numbers = #tpu.dot_dimension_numbers<[1], [0], [0], [1], [0, 0, 1, 1], [], []>} : vector<2x128xbf16>, vector<128x512xbf16>, vector<2x512xf32> -> vector<2x512xf32>
    %738 = arith.truncf %668 : vector<2x128xf32> to vector<2x128xbf16>
    %c0_222 = arith.constant 0 : index
    %c0_223 = arith.constant 0 : index
    %739 = vector.load %arg5[%c0_222, %c0_223] : memref<128x512xbf16, #tpu.memory_space<vmem>>, vector<128x512xbf16>
    %cst_224 = arith.constant dense<0.000000e+00> : vector<2x512xf32>
    %740 = tpu.matmul %738, %739, %cst_224 {dimension_numbers = #tpu.dot_dimension_numbers<[1], [0], [0], [1], [0, 0, 1, 1], [], []>} : vector<2x128xbf16>, vector<128x512xbf16>, vector<2x512xf32> -> vector<2x512xf32>
    %741 = arith.addf %737, %740 : vector<2x512xf32>
    %c0_225 = arith.constant 0 : index
    %c0_226 = arith.constant 0 : index
    %742 = vector.load %arg6[%c0_225, %c0_226] : memref<1x512xf32, #tpu.memory_space<vmem>>, vector<1x512xf32>
    %743 = vector.broadcast %742 : vector<1x512xf32> to vector<2x512xf32>
    %744 = arith.addf %741, %743 : vector<2x512xf32>
    %745 = vector.extract_strided_slice %744 {offsets = [0, 0], sizes = [2, 128], strides = [1, 1]} : vector<2x512xf32> to vector<2x128xf32>
    %746 = arith.negf %745 : vector<2x128xf32>
    %747 = math.exp %746 : vector<2x128xf32>
    %cst_227 = arith.constant 1.000000e+00 : f32
    %748 = vector.broadcast %cst_227 : f32 to vector<2x128xf32>
    %749 = arith.addf %748, %747 : vector<2x128xf32>
    %750 = arith.divf %748, %749 : vector<2x128xf32>
    %751 = vector.extract_strided_slice %744 {offsets = [0, 128], sizes = [2, 128], strides = [1, 1]} : vector<2x512xf32> to vector<2x128xf32>
    %752 = arith.negf %751 : vector<2x128xf32>
    %753 = math.exp %752 : vector<2x128xf32>
    %cst_228 = arith.constant 1.000000e+00 : f32
    %754 = vector.broadcast %cst_228 : f32 to vector<2x128xf32>
    %755 = arith.addf %754, %753 : vector<2x128xf32>
    %756 = arith.divf %754, %755 : vector<2x128xf32>
    %757 = vector.extract_strided_slice %744 {offsets = [0, 256], sizes = [2, 128], strides = [1, 1]} : vector<2x512xf32> to vector<2x128xf32>
    %758 = math.tanh %757 : vector<2x128xf32>
    %759 = vector.extract_strided_slice %744 {offsets = [0, 384], sizes = [2, 128], strides = [1, 1]} : vector<2x512xf32> to vector<2x128xf32>
    %760 = arith.negf %759 : vector<2x128xf32>
    %761 = math.exp %760 : vector<2x128xf32>
    %cst_229 = arith.constant 1.000000e+00 : f32
    %762 = vector.broadcast %cst_229 : f32 to vector<2x128xf32>
    %763 = arith.addf %762, %761 : vector<2x128xf32>
    %764 = arith.divf %762, %763 : vector<2x128xf32>
    %765 = arith.mulf %756, %666 : vector<2x128xf32>
    %766 = arith.mulf %750, %758 : vector<2x128xf32>
    %767 = arith.addf %765, %766 : vector<2x128xf32>
    %768 = math.tanh %767 : vector<2x128xf32>
    %769 = arith.mulf %764, %768 : vector<2x128xf32>
    %770 = arith.truncf %769 : vector<2x128xf32> to vector<2x128xbf16>
    %c0_230 = arith.constant 0 : index
    %c0_231 = arith.constant 0 : index
    %771 = vector.load %arg7[%c0_230, %c0_231] : memref<128x512xbf16, #tpu.memory_space<vmem>>, vector<128x512xbf16>
    %cst_232 = arith.constant dense<0.000000e+00> : vector<2x512xf32>
    %772 = tpu.matmul %770, %771, %cst_232 {dimension_numbers = #tpu.dot_dimension_numbers<[1], [0], [0], [1], [0, 0, 1, 1], [], []>} : vector<2x128xbf16>, vector<128x512xbf16>, vector<2x512xf32> -> vector<2x512xf32>
    %773 = arith.truncf %703 : vector<2x128xf32> to vector<2x128xbf16>
    %c0_233 = arith.constant 0 : index
    %c0_234 = arith.constant 0 : index
    %774 = vector.load %arg8[%c0_233, %c0_234] : memref<128x512xbf16, #tpu.memory_space<vmem>>, vector<128x512xbf16>
    %cst_235 = arith.constant dense<0.000000e+00> : vector<2x512xf32>
    %775 = tpu.matmul %773, %774, %cst_235 {dimension_numbers = #tpu.dot_dimension_numbers<[1], [0], [0], [1], [0, 0, 1, 1], [], []>} : vector<2x128xbf16>, vector<128x512xbf16>, vector<2x512xf32> -> vector<2x512xf32>
    %776 = arith.addf %772, %775 : vector<2x512xf32>
    %c0_236 = arith.constant 0 : index
    %c0_237 = arith.constant 0 : index
    %777 = vector.load %arg9[%c0_236, %c0_237] : memref<1x512xf32, #tpu.memory_space<vmem>>, vector<1x512xf32>
    %778 = vector.broadcast %777 : vector<1x512xf32> to vector<2x512xf32>
    %779 = arith.addf %776, %778 : vector<2x512xf32>
    %780 = vector.extract_strided_slice %779 {offsets = [0, 0], sizes = [2, 128], strides = [1, 1]} : vector<2x512xf32> to vector<2x128xf32>
    %781 = arith.negf %780 : vector<2x128xf32>
    %782 = math.exp %781 : vector<2x128xf32>
    %cst_238 = arith.constant 1.000000e+00 : f32
    %783 = vector.broadcast %cst_238 : f32 to vector<2x128xf32>
    %784 = arith.addf %783, %782 : vector<2x128xf32>
    %785 = arith.divf %783, %784 : vector<2x128xf32>
    %786 = vector.extract_strided_slice %779 {offsets = [0, 128], sizes = [2, 128], strides = [1, 1]} : vector<2x512xf32> to vector<2x128xf32>
    %787 = arith.negf %786 : vector<2x128xf32>
    %788 = math.exp %787 : vector<2x128xf32>
    %cst_239 = arith.constant 1.000000e+00 : f32
    %789 = vector.broadcast %cst_239 : f32 to vector<2x128xf32>
    %790 = arith.addf %789, %788 : vector<2x128xf32>
    %791 = arith.divf %789, %790 : vector<2x128xf32>
    %792 = vector.extract_strided_slice %779 {offsets = [0, 256], sizes = [2, 128], strides = [1, 1]} : vector<2x512xf32> to vector<2x128xf32>
    %793 = math.tanh %792 : vector<2x128xf32>
    %794 = vector.extract_strided_slice %779 {offsets = [0, 384], sizes = [2, 128], strides = [1, 1]} : vector<2x512xf32> to vector<2x128xf32>
    %795 = arith.negf %794 : vector<2x128xf32>
    %796 = math.exp %795 : vector<2x128xf32>
    %cst_240 = arith.constant 1.000000e+00 : f32
    %797 = vector.broadcast %cst_240 : f32 to vector<2x128xf32>
    %798 = arith.addf %797, %796 : vector<2x128xf32>
    %799 = arith.divf %797, %798 : vector<2x128xf32>
    %800 = arith.mulf %791, %701 : vector<2x128xf32>
    %801 = arith.mulf %785, %793 : vector<2x128xf32>
    %802 = arith.addf %800, %801 : vector<2x128xf32>
    %803 = math.tanh %802 : vector<2x128xf32>
    %804 = arith.mulf %799, %803 : vector<2x128xf32>
    %805 = arith.truncf %804 : vector<2x128xf32> to vector<2x128xbf16>
    %c0_241 = arith.constant 0 : index
    %c0_242 = arith.constant 0 : index
    %806 = vector.load %arg10[%c0_241, %c0_242] : memref<128x256xbf16, #tpu.memory_space<vmem>>, vector<128x256xbf16>
    %cst_243 = arith.constant dense<0.000000e+00> : vector<2x256xf32>
    %807 = tpu.matmul %805, %806, %cst_243 {dimension_numbers = #tpu.dot_dimension_numbers<[1], [0], [0], [1], [0, 0, 1, 1], [], []>} : vector<2x128xbf16>, vector<128x256xbf16>, vector<2x256xf32> -> vector<2x256xf32>
    %c0_244 = arith.constant 0 : index
    %c0_245 = arith.constant 0 : index
    %808 = vector.load %arg11[%c0_244, %c0_245] : memref<1x256xf32, #tpu.memory_space<vmem>>, vector<1x256xf32>
    %809 = vector.broadcast %808 : vector<1x256xf32> to vector<2x256xf32>
    %810 = arith.addf %807, %809 : vector<2x256xf32>
    %c0_246 = arith.constant 0 : index
    %c0_247 = arith.constant 0 : index
    %811 = vector.load %arg12[%c0_246, %c0_247] : memref<2x256xf32, #tpu.memory_space<vmem>>, vector<2x256xf32>
    tpu.vector_store %arg12[%c0_246, %c0_247], %810 {strides = array<i32>} : memref<2x256xf32, #tpu.memory_space<vmem>>, vector<2x256xf32>,
    return
  }
}

</mosaic_0001>

<llo_original>
// kernel: deepar_lstm_forward.1
$region0: #{deepar_lstm_forward.1}
  #allocation0 [shape = 'u32[]', space=smem, size = 0x4, offset = 0x4, fixed_abs, tag = 'smem constant byte address 0x4 - core index']
  #allocation1 [shape = 'u32[144,128]{1,0:T(1,128)}', space=vmem, size = 0x12000, scoped, tag = 'internal scratch']
  #allocation2 [shape = 'f32[2,8,512]{2,1,0:T(8,128)}', space=vmem, size = 0x8000, scoped, tag = 'scratch operand']
  %s0 = inlined_call_operand.vmem [shape: bf16[16,768], index: 0, kind: input, shape index: {}]
  %s1 = inlined_call_operand.vmem [shape: bf16[768,512], index: 1, kind: input, shape index: {}]
  %s2 = inlined_call_operand.hbm [shape: bf16[128,512], index: 2, kind: input, shape index: {}]
  %s3 = inlined_call_operand.vmem [shape: f32[1,512], index: 3, kind: input, shape index: {}]
  %s4 = inlined_call_operand.hbm [shape: bf16[128,512], index: 4, kind: input, shape index: {}]
  %s5 = inlined_call_operand.hbm [shape: bf16[128,512], index: 5, kind: input, shape index: {}]
  %s6 = inlined_call_operand.vmem [shape: f32[1,512], index: 6, kind: input, shape index: {}]
  %s7 = inlined_call_operand.hbm [shape: bf16[128,512], index: 7, kind: input, shape index: {}]
  %s8 = inlined_call_operand.hbm [shape: bf16[128,512], index: 8, kind: input, shape index: {}]
  %s9 = inlined_call_operand.vmem [shape: f32[1,512], index: 9, kind: input, shape index: {}]
  %s10 = inlined_call_operand.hbm [shape: bf16[128,256], index: 10, kind: input, shape index: {}]
  %s11 = inlined_call_operand.vmem [shape: f32[1,256], index: 11, kind: input, shape index: {}]
  %s12 = inlined_call_operand.vmem [shape: f32[2,256], index: 12, kind: output, shape index: {}]
  %s13 = sld [smem:[#allocation0]]
  $region82: #{deepar_lstm_forward.1} parent=0
    _
  %s15 = ssub.s32 1, %s13
  %s16 = scalar_select 0, %s15, %s13
  $region1: #{deepar_lstm_forward.1} parent=0
    #allocation3 [shape = 'u8[131072]{0}', space=vmem, size = 0x20000, scoped, tag = 'input window, operand 2, single buffered']
    #allocation4 [shape = 's32[1]{0}', space=sflag, size = 0x4, scoped, tag = 'scoped memory for deepar_lstm_forward.1']
    #allocation5 [shape = 'u8[131072]{0}', space=vmem, size = 0x20000, scoped, tag = 'input window, operand 4, single buffered']
    #allocation6 [shape = 's32[1]{0}', space=sflag, size = 0x4, scoped, tag = 'scoped memory for deepar_lstm_forward.1']
    #allocation7 [shape = 'u8[131072]{0}', space=vmem, size = 0x20000, scoped, tag = 'input window, operand 5, single buffered']
    #allocation8 [shape = 'u8[131072]{0}', space=vmem, size = 0x20000, scoped, tag = 'input window, operand 7, single buffered']
    #allocation9 [shape = 's32[1]{0}', space=sflag, size = 0x4, scoped, tag = 'scoped memory for deepar_lstm_forward.1']
    #allocation10 [shape = 'u8[131072]{0}', space=vmem, size = 0x20000, scoped, tag = 'input window, operand 8, single buffered']
    #allocation11 [shape = 'u8[65536]{0}', space=vmem, size = 0x10000, scoped, tag = 'input window, operand 10, single buffered']
    #allocation12 [shape = 's32[1]{0}', space=sflag, size = 0x4, scoped, tag = 'scoped memory for deepar_lstm_forward.1']
    %17 = vsyncpa [#allocation4], 0
    %18 = vsyncpa [#allocation6], 0
    %19 = vsyncpa [#allocation9], 0
    %20 = vsyncpa [#allocation12], 0
    // Predicated region
    $region2: #{deepar_lstm_forward.1} parent=1 // pred_check
      _
    $region3: #{deepar_lstm_forward.1} parent=1 // pred_check_branch
      %22 = sbr.rel (0) target = $region5
    $region4: #{deepar_lstm_forward.1} parent=1 // pred_region
      _
    $region5: #{deepar_lstm_forward.1} parent=1 // pred_fallthru
      _
    // Predicated region
    $region6: #{deepar_lstm_forward.1} parent=1 // pred_check
      _
    $region7: #{deepar_lstm_forward.1} parent=1 // pred_check_branch
      %24 = sbr.rel (0) target = $region9
    $region8: #{deepar_lstm_forward.1} parent=1 // pred_region
      _
    $region9: #{deepar_lstm_forward.1} parent=1 // pred_fallthru
      _
    // Predicated region
    $region10: #{deepar_lstm_forward.1} parent=1 // pred_check
      _
    $region11: #{deepar_lstm_forward.1} parent=1 // pred_check_branch
      %26 = sbr.rel (0) target = $region13
    $region12: #{deepar_lstm_forward.1} parent=1 // pred_region
      %s28 = ssub.s32 4096, 4096
      %29 = vsyncadd [#allocation4], %s28
      %s30 = sshll.u32 [#allocation3], 4
      %s31 = int_to_ptr.vmem [resolvable:$true] %s30
      %36 = dma.hbm_to_vmem [thread:$0]  %s2, 4096, %s31, [#allocation4], 256, 256, 16
    $region13: #{deepar_lstm_forward.1} parent=1 // pred_fallthru
      _
    // Predicated region
    $region14: #{deepar_lstm_forward.1} parent=1 // pred_check
      _
    $region15: #{deepar_lstm_forward.1} parent=1 // pred_check_branch
      %38 = sbr.rel (0) target = $region17
    $region16: #{deepar_lstm_forward.1} parent=1 // pred_region
      _
    $region17: #{deepar_lstm_forward.1} parent=1 // pred_fallthru
      _
    // Predicated region
    $region18: #{deepar_lstm_forward.1} parent=1 // pred_check
      _
    $region19: #{deepar_lstm_forward.1} parent=1 // pred_check_branch
      %40 = sbr.rel (0) target = $region21
    $region20: #{deepar_lstm_forward.1} parent=1 // pred_region
      %s42 = ssub.s32 4096, 4096
      %43 = vsyncadd [#allocation6], %s42
      %s44 = sshll.u32 [#allocation5], 4
      %s45 = int_to_ptr.vmem [resolvable:$true] %s44
      %50 = dma.hbm_to_vmem [thread:$0]  %s4, 4096, %s45, [#allocation6], 256, 256, 16
    $region21: #{deepar_lstm_forward.1} parent=1 // pred_fallthru
      _
    // Predicated region
    $region22: #{deepar_lstm_forward.1} parent=1 // pred_check
      _
    $region23: #{deepar_lstm_forward.1} parent=1 // pred_check_branch
      %52 = sbr.rel (0) target = $region25
    $region24: #{deepar_lstm_forward.1} parent=1 // pred_region
      %s54 = ssub.s32 4096, 4096
      %55 = vsyncadd [#allocation6], %s54
      %s56 = sshll.u32 [#allocation7], 4
      %s57 = int_to_ptr.vmem [resolvable:$true] %s56
      %62 = dma.hbm_to_vmem [thread:$0]  %s5, 4096, %s57, [#allocation6], 256, 256, 16
    $region25: #{deepar_lstm_forward.1} parent=1 // pred_fallthru
      _
    // Predicated region
    $region26: #{deepar_lstm_forward.1} parent=1 // pred_check
      _
    $region27: #{deepar_lstm_forward.1} parent=1 // pred_check_branch
      %64 = sbr.rel (0) target = $region29
    $region28: #{deepar_lstm_forward.1} parent=1 // pred_region
      _
    $region29: #{deepar_lstm_forward.1} parent=1 // pred_fallthru
      _
    // Predicated region
    $region30: #{deepar_lstm_forward.1} parent=1 // pred_check
      _
    $region31: #{deepar_lstm_forward.1} parent=1 // pred_check_branch
      %66 = sbr.rel (0) target = $region33
    $region32: #{deepar_lstm_forward.1} parent=1 // pred_region
      %s68 = ssub.s32 4096, 4096
      %69 = vsyncadd [#allocation9], %s68
      %s70 = sshll.u32 [#allocation8], 4
      %s71 = int_to_ptr.vmem [resolvable:$true] %s70
      %76 = dma.hbm_to_vmem [thread:$0]  %s7, 4096, %s71, [#allocation9], 256, 256, 16
    $region33: #{deepar_lstm_forward.1} parent=1 // pred_fallthru
      _
    // Predicated region
    $region34: #{deepar_lstm_forward.1} parent=1 // pred_check
      _
    $region35: #{deepar_lstm_forward.1} parent=1 // pred_check_branch
      %78 = sbr.rel (0) target = $region37
    $region36: #{deepar_lstm_forward.1} parent=1 // pred_region
      %s80 = ssub.s32 4096, 4096
      %81 = vsyncadd [#allocation9], %s80
      %s82 = sshll.u32 [#allocation10], 4
      %s83 = int_to_ptr.vmem [resolvable:$true] %s82
      %88 = dma.hbm_to_vmem [thread:$0]  %s8, 4096, %s83, [#allocation9], 256, 256, 16
    $region37: #{deepar_lstm_forward.1} parent=1 // pred_fallthru
      _
    // Predicated region
    $region38: #{deepar_lstm_forward.1} parent=1 // pred_check
      _
    $region39: #{deepar_lstm_forward.1} parent=1 // pred_check_branch
      %90 = sbr.rel (0) target = $region41
    $region40: #{deepar_lstm_forward.1} parent=1 // pred_region
      _
    $region41: #{deepar_lstm_forward.1} parent=1 // pred_fallthru
      _
    // Predicated region
    $region42: #{deepar_lstm_forward.1} parent=1 // pred_check
      _
    $region43: #{deepar_lstm_forward.1} parent=1 // pred_check_branch
      %92 = sbr.rel (0) target = $region45
    $region44: #{deepar_lstm_forward.1} parent=1 // pred_region
      %s94 = ssub.s32 2048, 2048
      %95 = vsyncadd [#allocation12], %s94
      %s96 = sshll.u32 [#allocation11], 4
      %s97 = int_to_ptr.vmem [resolvable:$true] %s96
      %102 = dma.hbm_to_vmem [thread:$0]  %s10, 2048, %s97, [#allocation12], 128, 128, 8
    $region45: #{deepar_lstm_forward.1} parent=1 // pred_fallthru
      _
    // Predicated region
    $region46: #{deepar_lstm_forward.1} parent=1 // pred_check
      _
    $region47: #{deepar_lstm_forward.1} parent=1 // pred_check_branch
      %104 = sbr.rel (0) target = $region49
    $region48: #{deepar_lstm_forward.1} parent=1 // pred_region
      _
    $region49: #{deepar_lstm_forward.1} parent=1 // pred_fallthru
      _
    // Predicated region
    $region50: #{deepar_lstm_forward.1} parent=1 // pred_check
      _
    $region51: #{deepar_lstm_forward.1} parent=1 // pred_check_branch
      %106 = sbr.rel (0) target = $region53
    $region52: #{deepar_lstm_forward.1} parent=1 // pred_region
      %107 = dma.done [#allocation4], 4096
    $region53: #{deepar_lstm_forward.1} parent=1 // pred_fallthru
      _
    // Predicated region
    $region54: #{deepar_lstm_forward.1} parent=1 // pred_check
      _
    $region55: #{deepar_lstm_forward.1} parent=1 // pred_check_branch
      %109 = sbr.rel (0) target = $region57
    $region56: #{deepar_lstm_forward.1} parent=1 // pred_region
      %110 = dma.done [#allocation6], 4096
    $region57: #{deepar_lstm_forward.1} parent=1 // pred_fallthru
      _
    // Predicated region
    $region58: #{deepar_lstm_forward.1} parent=1 // pred_check
      _
    $region59: #{deepar_lstm_forward.1} parent=1 // pred_check_branch
      %112 = sbr.rel (0) target = $region61
    $region60: #{deepar_lstm_forward.1} parent=1 // pred_region
      %113 = dma.done [#allocation6], 4096
    $region61: #{deepar_lstm_forward.1} parent=1 // pred_fallthru
      _
    // Predicated region
    $region62: #{deepar_lstm_forward.1} parent=1 // pred_check
      _
    $region63: #{deepar_lstm_forward.1} parent=1 // pred_check_branch
      %115 = sbr.rel (0) target = $region65
    $region64: #{deepar_lstm_forward.1} parent=1 // pred_region
      %116 = dma.done [#allocation9], 4096
    $region65: #{deepar_lstm_forward.1} parent=1 // pred_fallthru
      _
    // Predicated region
    $region66: #{deepar_lstm_forward.1} parent=1 // pred_check
      _
    $region67: #{deepar_lstm_forward.1} parent=1 // pred_check_branch
      %118 = sbr.rel (0) target = $region69
    $region68: #{deepar_lstm_forward.1} parent=1 // pred_region
      %119 = dma.done [#allocation9], 4096
    $region69: #{deepar_lstm_forward.1} parent=1 // pred_fallthru
      _
    // Predicated region
    $region70: #{deepar_lstm_forward.1} parent=1 // pred_check
      _
    $region71: #{deepar_lstm_forward.1} parent=1 // pred_check_branch
      %121 = sbr.rel (0) target = $region73
    $region72: #{deepar_lstm_forward.1} parent=1 // pred_region
      %122 = dma.done [#allocation12], 2048
    $region73: #{deepar_lstm_forward.1} parent=1 // pred_fallthru
      _
    %v124 = vld [vmem:[%s0] sm:$0xff]
    %v125 = vld [vmem:[%s0 + $0x8] sm:$0xff]
    %v126 = vld [vmem:[%s0 + $0x10] sm:$0xff]
    %v127 = vld [vmem:[%s0 + $0x18] sm:$0xff]
    %v128 = vld [vmem:[%s0 + $0x20] sm:$0xff]
    %v129 = vld [vmem:[%s0 + $0x28] sm:$0xff]
    %v130 = vld [vmem:[%s1] sm:$0xff]
    %v131 = vld [vmem:[%s1 + $0x8] sm:$0xff]
    %v132 = vld [vmem:[%s1 + $0x10] sm:$0xff]
    %v133 = vld [vmem:[%s1 + $0x18] sm:$0xff]
    %v134 = vld [vmem:[%s1 + $0x20] sm:$0xff]
    %v135 = vld [vmem:[%s1 + $0x28] sm:$0xff]
    %v136 = vld [vmem:[%s1 + $0x30] sm:$0xff]
    %v137 = vld [vmem:[%s1 + $0x38] sm:$0xff]
    %v138 = vld [vmem:[%s1 + $0x40] sm:$0xff]
    %v139 = vld [vmem:[%s1 + $0x48] sm:$0xff]
    %v140 = vld [vmem:[%s1 + $0x50] sm:$0xff]
    %v141 = vld [vmem:[%s1 + $0x58] sm:$0xff]
    %v142 = vld [vmem:[%s1 + $0x60] sm:$0xff]
    %v143 = vld [vmem:[%s1 + $0x68] sm:$0xff]
    %v144 = vld [vmem:[%s1 + $0x70] sm:$0xff]
    %v145 = vld [vmem:[%s1 + $0x78] sm:$0xff]
    %v146 = vld [vmem:[%s1 + $0x80] sm:$0xff]
    %v147 = vld [vmem:[%s1 + $0x88] sm:$0xff]
    %v148 = vld [vmem:[%s1 + $0x90] sm:$0xff]
    %v149 = vld [vmem:[%s1 + $0x98] sm:$0xff]
    %v150 = vld [vmem:[%s1 + $0xa0] sm:$0xff]
    %v151 = vld [vmem:[%s1 + $0xa8] sm:$0xff]
    %v152 = vld [vmem:[%s1 + $0xb0] sm:$0xff]
    %v153 = vld [vmem:[%s1 + $0xb8] sm:$0xff]
    %v154 = vld [vmem:[%s1 + $0xc0] sm:$0xff]
    %v155 = vld [vmem:[%s1 + $0xc8] sm:$0xff]
    %v156 = vld [vmem:[%s1 + $0xd0] sm:$0xff]
    %v157 = vld [vmem:[%s1 + $0xd8] sm:$0xff]
    %v158 = vld [vmem:[%s1 + $0xe0] sm:$0xff]
    %v159 = vld [vmem:[%s1 + $0xe8] sm:$0xff]
    %v160 = vld [vmem:[%s1 + $0xf0] sm:$0xff]
    %v161 = vld [vmem:[%s1 + $0xf8] sm:$0xff]
    %v162 = vld [vmem:[%s1 + $0x100] sm:$0xff]
    %v163 = vld [vmem:[%s1 + $0x108] sm:$0xff]
    %v164 = vld [vmem:[%s1 + $0x110] sm:$0xff]
    %v165 = vld [vmem:[%s1 + $0x118] sm:$0xff]
    %v166 = vld [vmem:[%s1 + $0x120] sm:$0xff]
    %v167 = vld [vmem:[%s1 + $0x128] sm:$0xff]
    %v168 = vld [vmem:[%s1 + $0x130] sm:$0xff]
    %v169 = vld [vmem:[%s1 + $0x138] sm:$0xff]
    %v170 = vld [vmem:[%s1 + $0x140] sm:$0xff]
    %v171 = vld [vmem:[%s1 + $0x148] sm:$0xff]
    %v172 = vld [vmem:[%s1 + $0x150] sm:$0xff]
    %v173 = vld [vmem:[%s1 + $0x158] sm:$0xff]
    %v174 = vld [vmem:[%s1 + $0x160] sm:$0xff]
    %v175 = vld [vmem:[%s1 + $0x168] sm:$0xff]
    %v176 = vld [vmem:[%s1 + $0x170] sm:$0xff]
    %v177 = vld [vmem:[%s1 + $0x178] sm:$0xff]
    %v178 = vld [vmem:[%s1 + $0x180] sm:$0xff]
    %v179 = vld [vmem:[%s1 + $0x188] sm:$0xff]
    %v180 = vld [vmem:[%s1 + $0x190] sm:$0xff]
    %v181 = vld [vmem:[%s1 + $0x198] sm:$0xff]
    %v182 = vld [vmem:[%s1 + $0x1a0] sm:$0xff]
    %v183 = vld [vmem:[%s1 + $0x1a8] sm:$0xff]
    %v184 = vld [vmem:[%s1 + $0x1b0] sm:$0xff]
    %v185 = vld [vmem:[%s1 + $0x1b8] sm:$0xff]
    %v186 = vld [vmem:[%s1 + $0x1c0] sm:$0xff]
    %v187 = vld [vmem:[%s1 + $0x1c8] sm:$0xff]
    %v188 = vld [vmem:[%s1 + $0x1d0] sm:$0xff]
    %v189 = vld [vmem:[%s1 + $0x1d8] sm:$0xff]
    %v190 = vld [vmem:[%s1 + $0x1e0] sm:$0xff]
    %v191 = vld [vmem:[%s1 + $0x1e8] sm:$0xff]
    %v192 = vld [vmem:[%s1 + $0x1f0] sm:$0xff]
    %v193 = vld [vmem:[%s1 + $0x1f8] sm:$0xff]
    %v194 = vld [vmem:[%s1 + $0x200] sm:$0xff]
    %v195 = vld [vmem:[%s1 + $0x208] sm:$0xff]
    %v196 = vld [vmem:[%s1 + $0x210] sm:$0xff]
    %v197 = vld [vmem:[%s1 + $0x218] sm:$0xff]
    %v198 = vld [vmem:[%s1 + $0x220] sm:$0xff]
    %v199 = vld [vmem:[%s1 + $0x228] sm:$0xff]
    %v200 = vld [vmem:[%s1 + $0x230] sm:$0xff]
    %v201 = vld [vmem:[%s1 + $0x238] sm:$0xff]
    %v202 = vld [vmem:[%s1 + $0x240] sm:$0xff]
    %v203 = vld [vmem:[%s1 + $0x248] sm:$0xff]
    %v204 = vld [vmem:[%s1 + $0x250] sm:$0xff]
    %v205 = vld [vmem:[%s1 + $0x258] sm:$0xff]
    %v206 = vld [vmem:[%s1 + $0x260] sm:$0xff]
    %v207 = vld [vmem:[%s1 + $0x268] sm:$0xff]
    %v208 = vld [vmem:[%s1 + $0x270] sm:$0xff]
    %v209 = vld [vmem:[%s1 + $0x278] sm:$0xff]
    %v210 = vld [vmem:[%s1 + $0x280] sm:$0xff]
    %v211 = vld [vmem:[%s1 + $0x288] sm:$0xff]
    %v212 = vld [vmem:[%s1 + $0x290] sm:$0xff]
    %v213 = vld [vmem:[%s1 + $0x298] sm:$0xff]
    %v214 = vld [vmem:[%s1 + $0x2a0] sm:$0xff]
    %v215 = vld [vmem:[%s1 + $0x2a8] sm:$0xff]
    %v216 = vld [vmem:[%s1 + $0x2b0] sm:$0xff]
    %v217 = vld [vmem:[%s1 + $0x2b8] sm:$0xff]
    %v218 = vld [vmem:[%s1 + $0x2c0] sm:$0xff]
    %v219 = vld [vmem:[%s1 + $0x2c8] sm:$0xff]
    %v220 = vld [vmem:[%s1 + $0x2d0] sm:$0xff]
    %v221 = vld [vmem:[%s1 + $0x2d8] sm:$0xff]
    %v222 = vld [vmem:[%s1 + $0x2e0] sm:$0xff]
    %v223 = vld [vmem:[%s1 + $0x2e8] sm:$0xff]
    %v224 = vld [vmem:[%s1 + $0x2f0] sm:$0xff]
    %v225 = vld [vmem:[%s1 + $0x2f8] sm:$0xff]
    %v226 = vld [vmem:[%s1 + $0x300] sm:$0xff]
    %v227 = vld [vmem:[%s1 + $0x308] sm:$0xff]
    %v228 = vld [vmem:[%s1 + $0x310] sm:$0xff]
    %v229 = vld [vmem:[%s1 + $0x318] sm:$0xff]
    %v230 = vld [vmem:[%s1 + $0x320] sm:$0xff]
    %v231 = vld [vmem:[%s1 + $0x328] sm:$0xff]
    %v232 = vld [vmem:[%s1 + $0x330] sm:$0xff]
    %v233 = vld [vmem:[%s1 + $0x338] sm:$0xff]
    %v234 = vld [vmem:[%s1 + $0x340] sm:$0xff]
    %v235 = vld [vmem:[%s1 + $0x348] sm:$0xff]
    %v236 = vld [vmem:[%s1 + $0x350] sm:$0xff]
    %v237 = vld [vmem:[%s1 + $0x358] sm:$0xff]
    %v238 = vld [vmem:[%s1 + $0x360] sm:$0xff]
    %v239 = vld [vmem:[%s1 + $0x368] sm:$0xff]
    %v240 = vld [vmem:[%s1 + $0x370] sm:$0xff]
    %v241 = vld [vmem:[%s1 + $0x378] sm:$0xff]
    %v242 = vld [vmem:[%s1 + $0x380] sm:$0xff]
    %v243 = vld [vmem:[%s1 + $0x388] sm:$0xff]
    %v244 = vld [vmem:[%s1 + $0x390] sm:$0xff]
    %v245 = vld [vmem:[%s1 + $0x398] sm:$0xff]
    %v246 = vld [vmem:[%s1 + $0x3a0] sm:$0xff]
    %v247 = vld [vmem:[%s1 + $0x3a8] sm:$0xff]
    %v248 = vld [vmem:[%s1 + $0x3b0] sm:$0xff]
    %v249 = vld [vmem:[%s1 + $0x3b8] sm:$0xff]
    %v250 = vld [vmem:[%s1 + $0x3c0] sm:$0xff]
    %v251 = vld [vmem:[%s1 + $0x3c8] sm:$0xff]
    %v252 = vld [vmem:[%s1 + $0x3d0] sm:$0xff]
    %v253 = vld [vmem:[%s1 + $0x3d8] sm:$0xff]
    %v254 = vld [vmem:[%s1 + $0x3e0] sm:$0xff]
    %v255 = vld [vmem:[%s1 + $0x3e8] sm:$0xff]
    %v256 = vld [vmem:[%s1 + $0x3f0] sm:$0xff]
    %v257 = vld [vmem:[%s1 + $0x3f8] sm:$0xff]
    %v258 = vld [vmem:[%s1 + $0x400] sm:$0xff]
    %v259 = vld [vmem:[%s1 + $0x408] sm:$0xff]
    %v260 = vld [vmem:[%s1 + $0x410] sm:$0xff]
    %v261 = vld [vmem:[%s1 + $0x418] sm:$0xff]
    %v262 = vld [vmem:[%s1 + $0x420] sm:$0xff]
    %v263 = vld [vmem:[%s1 + $0x428] sm:$0xff]
    %v264 = vld [vmem:[%s1 + $0x430] sm:$0xff]
    %v265 = vld [vmem:[%s1 + $0x438] sm:$0xff]
    %v266 = vld [vmem:[%s1 + $0x440] sm:$0xff]
    %v267 = vld [vmem:[%s1 + $0x448] sm:$0xff]
    %v268 = vld [vmem:[%s1 + $0x450] sm:$0xff]
    %v269 = vld [vmem:[%s1 + $0x458] sm:$0xff]
    %v270 = vld [vmem:[%s1 + $0x460] sm:$0xff]
    %v271 = vld [vmem:[%s1 + $0x468] sm:$0xff]
    %v272 = vld [vmem:[%s1 + $0x470] sm:$0xff]
    %v273 = vld [vmem:[%s1 + $0x478] sm:$0xff]
    %v274 = vld [vmem:[%s1 + $0x480] sm:$0xff]
    %v275 = vld [vmem:[%s1 + $0x488] sm:$0xff]
    %v276 = vld [vmem:[%s1 + $0x490] sm:$0xff]
    %v277 = vld [vmem:[%s1 + $0x498] sm:$0xff]
    %v278 = vld [vmem:[%s1 + $0x4a0] sm:$0xff]
    %v279 = vld [vmem:[%s1 + $0x4a8] sm:$0xff]
    %v280 = vld [vmem:[%s1 + $0x4b0] sm:$0xff]
    %v281 = vld [vmem:[%s1 + $0x4b8] sm:$0xff]
    %v282 = vld [vmem:[%s1 + $0x4c0] sm:$0xff]
    %v283 = vld [vmem:[%s1 + $0x4c8] sm:$0xff]
    %v284 = vld [vmem:[%s1 + $0x4d0] sm:$0xff]
    %v285 = vld [vmem:[%s1 + $0x4d8] sm:$0xff]
    %v286 = vld [vmem:[%s1 + $0x4e0] sm:$0xff]
    %v287 = vld [vmem:[%s1 + $0x4e8] sm:$0xff]
    %v288 = vld [vmem:[%s1 + $0x4f0] sm:$0xff]
    %v289 = vld [vmem:[%s1 + $0x4f8] sm:$0xff]
    %v290 = vld [vmem:[%s1 + $0x500] sm:$0xff]
    %v291 = vld [vmem:[%s1 + $0x508] sm:$0xff]
    %v292 = vld [vmem:[%s1 + $0x510] sm:$0xff]
    %v293 = vld [vmem:[%s1 + $0x518] sm:$0xff]
    %v294 = vld [vmem:[%s1 + $0x520] sm:$0xff]
    %v295 = vld [vmem:[%s1 + $0x528] sm:$0xff]
    %v296 = vld [vmem:[%s1 + $0x530] sm:$0xff]
    %v297 = vld [vmem:[%s1 + $0x538] sm:$0xff]
    %v298 = vld [vmem:[%s1 + $0x540] sm:$0xff]
    %v299 = vld [vmem:[%s1 + $0x548] sm:$0xff]
    %v300 = vld [vmem:[%s1 + $0x550] sm:$0xff]
    %v301 = vld [vmem:[%s1 + $0x558] sm:$0xff]
    %v302 = vld [vmem:[%s1 + $0x560] sm:$0xff]
    %v303 = vld [vmem:[%s1 + $0x568] sm:$0xff]
    %v304 = vld [vmem:[%s1 + $0x570] sm:$0xff]
    %v305 = vld [vmem:[%s1 + $0x578] sm:$0xff]
    %v306 = vld [vmem:[%s1 + $0x580] sm:$0xff]
    %v307 = vld [vmem:[%s1 + $0x588] sm:$0xff]
    %v308 = vld [vmem:[%s1 + $0x590] sm:$0xff]
    %v309 = vld [vmem:[%s1 + $0x598] sm:$0xff]
    %v310 = vld [vmem:[%s1 + $0x5a0] sm:$0xff]
    %v311 = vld [vmem:[%s1 + $0x5a8] sm:$0xff]
    %v312 = vld [vmem:[%s1 + $0x5b0] sm:$0xff]
    %v313 = vld [vmem:[%s1 + $0x5b8] sm:$0xff]
    %v314 = vld [vmem:[%s1 + $0x5c0] sm:$0xff]
    %v315 = vld [vmem:[%s1 + $0x5c8] sm:$0xff]
    %v316 = vld [vmem:[%s1 + $0x5d0] sm:$0xff]
    %v317 = vld [vmem:[%s1 + $0x5d8] sm:$0xff]
    %v318 = vld [vmem:[%s1 + $0x5e0] sm:$0xff]
    %v319 = vld [vmem:[%s1 + $0x5e8] sm:$0xff]
    %v320 = vld [vmem:[%s1 + $0x5f0] sm:$0xff]
    %v321 = vld [vmem:[%s1 + $0x5f8] sm:$0xff]
    %v322 = vld [vmem:[%s3] sm:$0xf]
    %v324 = vlaneseq
    %v325 = vshrl.u32 %v324, 7
    %v326 = vsub.s32 0, %v325
    %v327 = vrot.slane %v322, %v326
    %v328 = vlaneseq
    %v329 = vshrl.u32 %v328, 7
    %v330 = vsub.s32 1, %v329
    %v331 = vrot.slane %v322, %v330
    %v332 = vlaneseq
    %v333 = vshrl.u32 %v332, 7
    %v334 = vsub.s32 2, %v333
    %v335 = vrot.slane %v322, %v334
    %v336 = vlaneseq
    %v337 = vshrl.u32 %v336, 7
    %v338 = vsub.s32 3, %v337
    %v339 = vrot.slane %v322, %v338
    %v350 = vunpack.c.l.b16 %v124
    %v351 = vunpack.c.h.b16 %v124
    %v352 = vunpack.c.l.b16 %v125
    %v353 = vunpack.c.h.b16 %v125
    %v354 = vunpack.c.l.b16 %v126
    %v355 = vunpack.c.h.b16 %v126
    %v356 = vunpack.c.l.b16 %v127
    %v357 = vunpack.c.h.b16 %v127
    %v358 = vunpack.c.l.b16 %v128
    %v359 = vunpack.c.h.b16 %v128
    %v360 = vunpack.c.l.b16 %v129
    %v361 = vunpack.c.h.b16 %v129
    %v362 = vpack.c.b16 %v356, %v350
    %v363 = vpack.c.b16 %v357, %v351
    %v364 = vpack.c.b16 %v358, %v352
    %v365 = vpack.c.b16 %v359, %v353
    %v366 = vpack.c.b16 %v360, %v354
    %v367 = vpack.c.b16 %v361, %v355
    %v566 = vunpack.c.l.b16 %v130
    %v567 = vunpack.c.h.b16 %v130
    %v568 = vunpack.c.l.b16 %v131
    %v569 = vunpack.c.h.b16 %v131
    %v570 = vunpack.c.l.b16 %v132
    %v571 = vunpack.c.h.b16 %v132
    %v572 = vunpack.c.l.b16 %v133
    %v573 = vunpack.c.h.b16 %v133
    %v574 = vunpack.c.l.b16 %v134
    %v575 = vunpack.c.h.b16 %v134
    %v576 = vunpack.c.l.b16 %v135
    %v577 = vunpack.c.h.b16 %v135
    %v578 = vunpack.c.l.b16 %v136
    %v579 = vunpack.c.h.b16 %v136
    %v580 = vunpack.c.l.b16 %v137
    %v581 = vunpack.c.h.b16 %v137
    %v582 = vunpack.c.l.b16 %v138
    %v583 = vunpack.c.h.b16 %v138
    %v584 = vunpack.c.l.b16 %v139
    %v585 = vunpack.c.h.b16 %v139
    %v586 = vunpack.c.l.b16 %v140
    %v587 = vunpack.c.h.b16 %v140
    %v588 = vunpack.c.l.b16 %v141
    %v589 = vunpack.c.h.b16 %v141
    %v590 = vunpack.c.l.b16 %v142
    %v591 = vunpack.c.h.b16 %v142
    %v592 = vunpack.c.l.b16 %v143
    %v593 = vunpack.c.h.b16 %v143
    %v594 = vunpack.c.l.b16 %v144
    %v595 = vunpack.c.h.b16 %v144
    %v596 = vunpack.c.l.b16 %v145
    %v597 = vunpack.c.h.b16 %v145
    %v598 = vunpack.c.l.b16 %v146
    %v599 = vunpack.c.h.b16 %v146
    %v600 = vunpack.c.l.b16 %v147
    %v601 = vunpack.c.h.b16 %v147
    %v602 = vunpack.c.l.b16 %v148
    %v603 = vunpack.c.h.b16 %v148
    %v604 = vunpack.c.l.b16 %v149
    %v605 = vunpack.c.h.b16 %v149
    %v606 = vunpack.c.l.b16 %v150
    %v607 = vunpack.c.h.b16 %v150
    %v608 = vunpack.c.l.b16 %v151
    %v609 = vunpack.c.h.b16 %v151
    %v610 = vunpack.c.l.b16 %v152
    %v611 = vunpack.c.h.b16 %v152
    %v612 = vunpack.c.l.b16 %v153
    %v613 = vunpack.c.h.b16 %v153
    %v614 = vunpack.c.l.b16 %v154
    %v615 = vunpack.c.h.b16 %v154
    %v616 = vunpack.c.l.b16 %v155
    %v617 = vunpack.c.h.b16 %v155
    %v618 = vunpack.c.l.b16 %v156
    %v619 = vunpack.c.h.b16 %v156
    %v620 = vunpack.c.l.b16 %v157
    %v621 = vunpack.c.h.b16 %v157
    %v622 = vunpack.c.l.b16 %v158
    %v623 = vunpack.c.h.b16 %v158
    %v624 = vunpack.c.l.b16 %v159
    %v625 = vunpack.c.h.b16 %v159
    %v626 = vunpack.c.l.b16 %v160
    %v627 = vunpack.c.h.b16 %v160
    %v628 = vunpack.c.l.b16 %v161
    %v629 = vunpack.c.h.b16 %v161
    %v630 = vunpack.c.l.b16 %v162
    %v631 = vunpack.c.h.b16 %v162
    %v632 = vunpack.c.l.b16 %v163
    %v633 = vunpack.c.h.b16 %v163
    %v634 = vunpack.c.l.b16 %v164
    %v635 = vunpack.c.h.b16 %v164
    %v636 = vunpack.c.l.b16 %v165
    %v637 = vunpack.c.h.b16 %v165
    %v638 = vunpack.c.l.b16 %v166
    %v639 = vunpack.c.h.b16 %v166
    %v640 = vunpack.c.l.b16 %v167
    %v641 = vunpack.c.h.b16 %v167
    %v642 = vunpack.c.l.b16 %v168
    %v643 = vunpack.c.h.b16 %v168
    %v644 = vunpack.c.l.b16 %v169
    %v645 = vunpack.c.h.b16 %v169
    %v646 = vunpack.c.l.b16 %v170
    %v647 = vunpack.c.h.b16 %v170
    %v648 = vunpack.c.l.b16 %v171
    %v649 = vunpack.c.h.b16 %v171
    %v650 = vunpack.c.l.b16 %v172
    %v651 = vunpack.c.h.b16 %v172
    %v652 = vunpack.c.l.b16 %v173
    %v653 = vunpack.c.h.b16 %v173
    %v654 = vunpack.c.l.b16 %v174
    %v655 = vunpack.c.h.b16 %v174
    %v656 = vunpack.c.l.b16 %v175
    %v657 = vunpack.c.h.b16 %v175
    %v658 = vunpack.c.l.b16 %v176
    %v659 = vunpack.c.h.b16 %v176
    %v660 = vunpack.c.l.b16 %v177
    %v661 = vunpack.c.h.b16 %v177
    %v662 = vunpack.c.l.b16 %v178
    %v663 = vunpack.c.h.b16 %v178
    %v664 = vunpack.c.l.b16 %v179
    %v665 = vunpack.c.h.b16 %v179
    %v666 = vunpack.c.l.b16 %v180
    %v667 = vunpack.c.h.b16 %v180
    %v668 = vunpack.c.l.b16 %v181
    %v669 = vunpack.c.h.b16 %v181
    %v670 = vunpack.c.l.b16 %v182
    %v671 = vunpack.c.h.b16 %v182
    %v672 = vunpack.c.l.b16 %v183
    %v673 = vunpack.c.h.b16 %v183
    %v674 = vunpack.c.l.b16 %v184
    %v675 = vunpack.c.h.b16 %v184
    %v676 = vunpack.c.l.b16 %v185
    %v677 = vunpack.c.h.b16 %v185
    %v678 = vunpack.c.l.b16 %v186
    %v679 = vunpack.c.h.b16 %v186
    %v680 = vunpack.c.l.b16 %v187
    %v681 = vunpack.c.h.b16 %v187
    %v682 = vunpack.c.l.b16 %v188
    %v683 = vunpack.c.h.b16 %v188
    %v684 = vunpack.c.l.b16 %v189
    %v685 = vunpack.c.h.b16 %v189
    %v686 = vunpack.c.l.b16 %v190
    %v687 = vunpack.c.h.b16 %v190
    %v688 = vunpack.c.l.b16 %v191
    %v689 = vunpack.c.h.b16 %v191
    %v690 = vunpack.c.l.b16 %v192
    %v691 = vunpack.c.h.b16 %v192
    %v692 = vunpack.c.l.b16 %v193
    %v693 = vunpack.c.h.b16 %v193
    %v694 = vunpack.c.l.b16 %v194
    %v695 = vunpack.c.h.b16 %v194
    %v696 = vunpack.c.l.b16 %v195
    %v697 = vunpack.c.h.b16 %v195
    %v698 = vunpack.c.l.b16 %v196
    %v699 = vunpack.c.h.b16 %v196
    %v700 = vunpack.c.l.b16 %v197
    %v701 = vunpack.c.h.b16 %v197
    %v702 = vunpack.c.l.b16 %v198
    %v703 = vunpack.c.h.b16 %v198
    %v704 = vunpack.c.l.b16 %v199
    %v705 = vunpack.c.h.b16 %v199
    %v706 = vunpack.c.l.b16 %v200
    %v707 = vunpack.c.h.b16 %v200
    %v708 = vunpack.c.l.b16 %v201
    %v709 = vunpack.c.h.b16 %v201
    %v710 = vunpack.c.l.b16 %v202
    %v711 = vunpack.c.h.b16 %v202
    %v712 = vunpack.c.l.b16 %v203
    %v713 = vunpack.c.h.b16 %v203
    %v714 = vunpack.c.l.b16 %v204
    %v715 = vunpack.c.h.b16 %v204
    %v716 = vunpack.c.l.b16 %v205
    %v717 = vunpack.c.h.b16 %v205
    %v718 = vunpack.c.l.b16 %v206
    %v719 = vunpack.c.h.b16 %v206
    %v720 = vunpack.c.l.b16 %v207
    %v721 = vunpack.c.h.b16 %v207
    %v722 = vunpack.c.l.b16 %v208
    %v723 = vunpack.c.h.b16 %v208
    %v724 = vunpack.c.l.b16 %v209
    %v725 = vunpack.c.h.b16 %v209
    %v726 = vunpack.c.l.b16 %v210
    %v727 = vunpack.c.h.b16 %v210
    %v728 = vunpack.c.l.b16 %v211
    %v729 = vunpack.c.h.b16 %v211
    %v730 = vunpack.c.l.b16 %v212
    %v731 = vunpack.c.h.b16 %v212
    %v732 = vunpack.c.l.b16 %v213
    %v733 = vunpack.c.h.b16 %v213
    %v734 = vunpack.c.l.b16 %v214
    %v735 = vunpack.c.h.b16 %v214
    %v736 = vunpack.c.l.b16 %v215
    %v737 = vunpack.c.h.b16 %v215
    %v738 = vunpack.c.l.b16 %v216
    %v739 = vunpack.c.h.b16 %v216
    %v740 = vunpack.c.l.b16 %v217
    %v741 = vunpack.c.h.b16 %v217
    %v742 = vunpack.c.l.b16 %v218
    %v743 = vunpack.c.h.b16 %v218
    %v744 = vunpack.c.l.b16 %v219
    %v745 = vunpack.c.h.b16 %v219
    %v746 = vunpack.c.l.b16 %v220
    %v747 = vunpack.c.h.b16 %v220
    %v748 = vunpack.c.l.b16 %v221
    %v749 = vunpack.c.h.b16 %v221
    %v750 = vunpack.c.l.b16 %v222
    %v751 = vunpack.c.h.b16 %v222
    %v752 = vunpack.c.l.b16 %v223
    %v753 = vunpack.c.h.b16 %v223
    %v754 = vunpack.c.l.b16 %v224
    %v755 = vunpack.c.h.b16 %v224
    %v756 = vunpack.c.l.b16 %v225
    %v757 = vunpack.c.h.b16 %v225
    %v758 = vunpack.c.l.b16 %v226
    %v759 = vunpack.c.h.b16 %v226
    %v760 = vunpack.c.l.b16 %v227
    %v761 = vunpack.c.h.b16 %v227
    %v762 = vunpack.c.l.b16 %v228
    %v763 = vunpack.c.h.b16 %v228
    %v764 = vunpack.c.l.b16 %v229
    %v765 = vunpack.c.h.b16 %v229
    %v766 = vunpack.c.l.b16 %v230
    %v767 = vunpack.c.h.b16 %v230
    %v768 = vunpack.c.l.b16 %v231
    %v769 = vunpack.c.h.b16 %v231
    %v770 = vunpack.c.l.b16 %v232
    %v771 = vunpack.c.h.b16 %v232
    %v772 = vunpack.c.l.b16 %v233
    %v773 = vunpack.c.h.b16 %v233
    %v774 = vunpack.c.l.b16 %v234
    %v775 = vunpack.c.h.b16 %v234
    %v776 = vunpack.c.l.b16 %v235
    %v777 = vunpack.c.h.b16 %v235
    %v778 = vunpack.c.l.b16 %v236
    %v779 = vunpack.c.h.b16 %v236
    %v780 = vunpack.c.l.b16 %v237
    %v781 = vunpack.c.h.b16 %v237
    %v782 = vunpack.c.l.b16 %v238
    %v783 = vunpack.c.h.b16 %v238
    %v784 = vunpack.c.l.b16 %v239
    %v785 = vunpack.c.h.b16 %v239
    %v786 = vunpack.c.l.b16 %v240
    %v787 = vunpack.c.h.b16 %v240
    %v788 = vunpack.c.l.b16 %v241
    %v789 = vunpack.c.h.b16 %v241
    %v790 = vunpack.c.l.b16 %v242
    %v791 = vunpack.c.h.b16 %v242
    %v792 = vunpack.c.l.b16 %v243
    %v793 = vunpack.c.h.b16 %v243
    %v794 = vunpack.c.l.b16 %v244
    %v795 = vunpack.c.h.b16 %v244
    %v796 = vunpack.c.l.b16 %v245
    %v797 = vunpack.c.h.b16 %v245
    %v798 = vunpack.c.l.b16 %v246
    %v799 = vunpack.c.h.b16 %v246
    %v800 = vunpack.c.l.b16 %v247
    %v801 = vunpack.c.h.b16 %v247
    %v802 = vunpack.c.l.b16 %v248
    %v803 = vunpack.c.h.b16 %v248
    %v804 = vunpack.c.l.b16 %v249
    %v805 = vunpack.c.h.b16 %v249
    %v806 = vunpack.c.l.b16 %v250
    %v807 = vunpack.c.h.b16 %v250
    %v808 = vunpack.c.l.b16 %v251
    %v809 = vunpack.c.h.b16 %v251
    %v810 = vunpack.c.l.b16 %v252
    %v811 = vunpack.c.h.b16 %v252
    %v812 = vunpack.c.l.b16 %v253
    %v813 = vunpack.c.h.b16 %v253
    %v814 = vunpack.c.l.b16 %v254
    %v815 = vunpack.c.h.b16 %v254
    %v816 = vunpack.c.l.b16 %v255
    %v817 = vunpack.c.h.b16 %v255
    %v818 = vunpack.c.l.b16 %v256
    %v819 = vunpack.c.h.b16 %v256
    %v820 = vunpack.c.l.b16 %v257
    %v821 = vunpack.c.h.b16 %v257
    %v822 = vunpack.c.l.b16 %v258
    %v823 = vunpack.c.h.b16 %v258
    %v824 = vunpack.c.l.b16 %v259
    %v825 = vunpack.c.h.b16 %v259
    %v826 = vunpack.c.l.b16 %v260
    %v827 = vunpack.c.h.b16 %v260
    %v828 = vunpack.c.l.b16 %v261
    %v829 = vunpack.c.h.b16 %v261
    %v830 = vunpack.c.l.b16 %v262
    %v831 = vunpack.c.h.b16 %v262
    %v832 = vunpack.c.l.b16 %v263
    %v833 = vunpack.c.h.b16 %v263
    %v834 = vunpack.c.l.b16 %v264
    %v835 = vunpack.c.h.b16 %v264
    %v836 = vunpack.c.l.b16 %v265
    %v837 = vunpack.c.h.b16 %v265
    %v838 = vunpack.c.l.b16 %v266
    %v839 = vunpack.c.h.b16 %v266
    %v840 = vunpack.c.l.b16 %v267
    %v841 = vunpack.c.h.b16 %v267
    %v842 = vunpack.c.l.b16 %v268
    %v843 = vunpack.c.h.b16 %v268
    %v844 = vunpack.c.l.b16 %v269
    %v845 = vunpack.c.h.b16 %v269
    %v846 = vunpack.c.l.b16 %v270
    %v847 = vunpack.c.h.b16 %v270
    %v848 = vunpack.c.l.b16 %v271
    %v849 = vunpack.c.h.b16 %v271
    %v850 = vunpack.c.l.b16 %v272
    %v851 = vunpack.c.h.b16 %v272
    %v852 = vunpack.c.l.b16 %v273
    %v853 = vunpack.c.h.b16 %v273
    %v854 = vunpack.c.l.b16 %v274
    %v855 = vunpack.c.h.b16 %v274
    %v856 = vunpack.c.l.b16 %v275
    %v857 = vunpack.c.h.b16 %v275
    %v858 = vunpack.c.l.b16 %v276
    %v859 = vunpack.c.h.b16 %v276
    %v860 = vunpack.c.l.b16 %v277
    %v861 = vunpack.c.h.b16 %v277
    %v862 = vunpack.c.l.b16 %v278
    %v863 = vunpack.c.h.b16 %v278
    %v864 = vunpack.c.l.b16 %v279
    %v865 = vunpack.c.h.b16 %v279
    %v866 = vunpack.c.l.b16 %v280
    %v867 = vunpack.c.h.b16 %v280
    %v868 = vunpack.c.l.b16 %v281
    %v869 = vunpack.c.h.b16 %v281
    %v870 = vunpack.c.l.b16 %v282
    %v871 = vunpack.c.h.b16 %v282
    %v872 = vunpack.c.l.b16 %v283
    %v873 = vunpack.c.h.b16 %v283
    %v874 = vunpack.c.l.b16 %v284
    %v875 = vunpack.c.h.b16 %v284
    %v876 = vunpack.c.l.b16 %v285
    %v877 = vunpack.c.h.b16 %v285
    %v878 = vunpack.c.l.b16 %v286
    %v879 = vunpack.c.h.b16 %v286
    %v880 = vunpack.c.l.b16 %v287
    %v881 = vunpack.c.h.b16 %v287
    %v882 = vunpack.c.l.b16 %v288
    %v883 = vunpack.c.h.b16 %v288
    %v884 = vunpack.c.l.b16 %v289
    %v885 = vunpack.c.h.b16 %v289
    %v886 = vunpack.c.l.b16 %v290
    %v887 = vunpack.c.h.b16 %v290
    %v888 = vunpack.c.l.b16 %v291
    %v889 = vunpack.c.h.b16 %v291
    %v890 = vunpack.c.l.b16 %v292
    %v891 = vunpack.c.h.b16 %v292
    %v892 = vunpack.c.l.b16 %v293
    %v893 = vunpack.c.h.b16 %v293
    %v894 = vunpack.c.l.b16 %v294
    %v895 = vunpack.c.h.b16 %v294
    %v896 = vunpack.c.l.b16 %v295
    %v897 = vunpack.c.h.b16 %v295
    %v898 = vunpack.c.l.b16 %v296
    %v899 = vunpack.c.h.b16 %v296
    %v900 = vunpack.c.l.b16 %v297
    %v901 = vunpack.c.h.b16 %v297
    %v902 = vunpack.c.l.b16 %v298
    %v903 = vunpack.c.h.b16 %v298
    %v904 = vunpack.c.l.b16 %v299
    %v905 = vunpack.c.h.b16 %v299
    %v906 = vunpack.c.l.b16 %v300
    %v907 = vunpack.c.h.b16 %v300
    %v908 = vunpack.c.l.b16 %v301
    %v909 = vunpack.c.h.b16 %v301
    %v910 = vunpack.c.l.b16 %v302
    %v911 = vunpack.c.h.b16 %v302
    %v912 = vunpack.c.l.b16 %v303
    %v913 = vunpack.c.h.b16 %v303
    %v914 = vunpack.c.l.b16 %v304
    %v915 = vunpack.c.h.b16 %v304
    %v916 = vunpack.c.l.b16 %v305
    %v917 = vunpack.c.h.b16 %v305
    %v918 = vunpack.c.l.b16 %v306
    %v919 = vunpack.c.h.b16 %v306
    %v920 = vunpack.c.l.b16 %v307
    %v921 = vunpack.c.h.b16 %v307
    %v922 = vunpack.c.l.b16 %v308
    %v923 = vunpack.c.h.b16 %v308
    %v924 = vunpack.c.l.b16 %v309
    %v925 = vunpack.c.h.b16 %v309
    %v926 = vunpack.c.l.b16 %v310
    %v927 = vunpack.c.h.b16 %v310
    %v928 = vunpack.c.l.b16 %v311
    %v929 = vunpack.c.h.b16 %v311
    %v930 = vunpack.c.l.b16 %v312
    %v931 = vunpack.c.h.b16 %v312
    %v932 = vunpack.c.l.b16 %v313
    %v933 = vunpack.c.h.b16 %v313
    %v934 = vunpack.c.l.b16 %v314
    %v935 = vunpack.c.h.b16 %v314
    %v936 = vunpack.c.l.b16 %v315
    %v937 = vunpack.c.h.b16 %v315
    %v938 = vunpack.c.l.b16 %v316
    %v939 = vunpack.c.h.b16 %v316
    %v940 = vunpack.c.l.b16 %v317
    %v941 = vunpack.c.h.b16 %v317
    %v942 = vunpack.c.l.b16 %v318
    %v943 = vunpack.c.h.b16 %v318
    %v944 = vunpack.c.l.b16 %v319
    %v945 = vunpack.c.h.b16 %v319
    %v946 = vunpack.c.l.b16 %v320
    %v947 = vunpack.c.h.b16 %v320
    %v948 = vunpack.c.l.b16 %v321
    %v949 = vunpack.c.h.b16 %v321
    %v950 = vpack.c.b16 %v570, %v566
    %v951 = vpack.c.b16 %v571, %v567
    %v952 = vpack.c.b16 %v572, %v568
    %v953 = vpack.c.b16 %v573, %v569
    %v954 = vpack.c.b16 %v578, %v574
    %v955 = vpack.c.b16 %v579, %v575
    %v956 = vpack.c.b16 %v580, %v576
    %v957 = vpack.c.b16 %v581, %v577
    %v958 = vpack.c.b16 %v586, %v582
    %v959 = vpack.c.b16 %v587, %v583
    %v960 = vpack.c.b16 %v588, %v584
    %v961 = vpack.c.b16 %v589, %v585
    %v962 = vpack.c.b16 %v594, %v590
    %v963 = vpack.c.b16 %v595, %v591
    %v964 = vpack.c.b16 %v596, %v592
    %v965 = vpack.c.b16 %v597, %v593
    %v966 = vpack.c.b16 %v602, %v598
    %v967 = vpack.c.b16 %v603, %v599
    %v968 = vpack.c.b16 %v604, %v600
    %v969 = vpack.c.b16 %v605, %v601
    %v970 = vpack.c.b16 %v610, %v606
    %v971 = vpack.c.b16 %v611, %v607
    %v972 = vpack.c.b16 %v612, %v608
    %v973 = vpack.c.b16 %v613, %v609
    %v974 = vpack.c.b16 %v618, %v614
    %v975 = vpack.c.b16 %v619, %v615
    %v976 = vpack.c.b16 %v620, %v616
    %v977 = vpack.c.b16 %v621, %v617
    %v978 = vpack.c.b16 %v626, %v622
    %v979 = vpack.c.b16 %v627, %v623
    %v980 = vpack.c.b16 %v628, %v624
    %v981 = vpack.c.b16 %v629, %v625
    %v982 = vpack.c.b16 %v634, %v630
    %v983 = vpack.c.b16 %v635, %v631
    %v984 = vpack.c.b16 %v636, %v632
    %v985 = vpack.c.b16 %v637, %v633
    %v986 = vpack.c.b16 %v642, %v638
    %v987 = vpack.c.b16 %v643, %v639
    %v988 = vpack.c.b16 %v644, %v640
    %v989 = vpack.c.b16 %v645, %v641
    %v990 = vpack.c.b16 %v650, %v646
    %v991 = vpack.c.b16 %v651, %v647
    %v992 = vpack.c.b16 %v652, %v648
    %v993 = vpack.c.b16 %v653, %v649
    %v994 = vpack.c.b16 %v658, %v654
    %v995 = vpack.c.b16 %v659, %v655
    %v996 = vpack.c.b16 %v660, %v656
    %v997 = vpack.c.b16 %v661, %v657
    %v998 = vpack.c.b16 %v666, %v662
    %v999 = vpack.c.b16 %v667, %v663
    %v1000 = vpack.c.b16 %v668, %v664
    %v1001 = vpack.c.b16 %v669, %v665
    %v1002 = vpack.c.b16 %v674, %v670
    %v1003 = vpack.c.b16 %v675, %v671
    %v1004 = vpack.c.b16 %v676, %v672
    %v1005 = vpack.c.b16 %v677, %v673
    %v1006 = vpack.c.b16 %v682, %v678
    %v1007 = vpack.c.b16 %v683, %v679
    %v1008 = vpack.c.b16 %v684, %v680
    %v1009 = vpack.c.b16 %v685, %v681
    %v1010 = vpack.c.b16 %v690, %v686
    %v1011 = vpack.c.b16 %v691, %v687
    %v1012 = vpack.c.b16 %v692, %v688
    %v1013 = vpack.c.b16 %v693, %v689
    %v1014 = vpack.c.b16 %v698, %v694
    %v1015 = vpack.c.b16 %v699, %v695
    %v1016 = vpack.c.b16 %v700, %v696
    %v1017 = vpack.c.b16 %v701, %v697
    %v1018 = vpack.c.b16 %v706, %v702
    %v1019 = vpack.c.b16 %v707, %v703
    %v1020 = vpack.c.b16 %v708, %v704
    %v1021 = vpack.c.b16 %v709, %v705
    %v1022 = vpack.c.b16 %v714, %v710
    %v1023 = vpack.c.b16 %v715, %v711
    %v1024 = vpack.c.b16 %v716, %v712
    %v1025 = vpack.c.b16 %v717, %v713
    %v1026 = vpack.c.b16 %v722, %v718
    %v1027 = vpack.c.b16 %v723, %v719
    %v1028 = vpack.c.b16 %v724, %v720
    %v1029 = vpack.c.b16 %v725, %v721
    %v1030 = vpack.c.b16 %v730, %v726
    %v1031 = vpack.c.b16 %v731, %v727
    %v1032 = vpack.c.b16 %v732, %v728
    %v1033 = vpack.c.b16 %v733, %v729
    %v1034 = vpack.c.b16 %v738, %v734
    %v1035 = vpack.c.b16 %v739, %v735
    %v1036 = vpack.c.b16 %v740, %v736
    %v1037 = vpack.c.b16 %v741, %v737
    %v1038 = vpack.c.b16 %v746, %v742
    %v1039 = vpack.c.b16 %v747, %v743
    %v1040 = vpack.c.b16 %v748, %v744
    %v1041 = vpack.c.b16 %v749, %v745
    %v1042 = vpack.c.b16 %v754, %v750
    %v1043 = vpack.c.b16 %v755, %v751
    %v1044 = vpack.c.b16 %v756, %v752
    %v1045 = vpack.c.b16 %v757, %v753
    %v1046 = vpack.c.b16 %v762, %v758
    %v1047 = vpack.c.b16 %v763, %v759
    %v1048 = vpack.c.b16 %v764, %v760
    %v1049 = vpack.c.b16 %v765, %v761
    %v1050 = vpack.c.b16 %v770, %v766
    %v1051 = vpack.c.b16 %v771, %v767
    %v1052 = vpack.c.b16 %v772, %v768
    %v1053 = vpack.c.b16 %v773, %v769
    %v1054 = vpack.c.b16 %v778, %v774
    %v1055 = vpack.c.b16 %v779, %v775
    %v1056 = vpack.c.b16 %v780, %v776
    %v1057 = vpack.c.b16 %v781, %v777
    %v1058 = vpack.c.b16 %v786, %v782
    %v1059 = vpack.c.b16 %v787, %v783
    %v1060 = vpack.c.b16 %v788, %v784
    %v1061 = vpack.c.b16 %v789, %v785
    %v1062 = vpack.c.b16 %v794, %v790
    %v1063 = vpack.c.b16 %v795, %v791
    %v1064 = vpack.c.b16 %v796, %v792
    %v1065 = vpack.c.b16 %v797, %v793
    %v1066 = vpack.c.b16 %v802, %v798
    %v1067 = vpack.c.b16 %v803, %v799
    %v1068 = vpack.c.b16 %v804, %v800
    %v1069 = vpack.c.b16 %v805, %v801
    %v1070 = vpack.c.b16 %v810, %v806
    %v1071 = vpack.c.b16 %v811, %v807
    %v1072 = vpack.c.b16 %v812, %v808
    %v1073 = vpack.c.b16 %v813, %v809
    %v1074 = vpack.c.b16 %v818, %v814
    %v1075 = vpack.c.b16 %v819, %v815
    %v1076 = vpack.c.b16 %v820, %v816
    %v1077 = vpack.c.b16 %v821, %v817
    %v1078 = vpack.c.b16 %v826, %v822
    %v1079 = vpack.c.b16 %v827, %v823
    %v1080 = vpack.c.b16 %v828, %v824
    %v1081 = vpack.c.b16 %v829, %v825
    %v1082 = vpack.c.b16 %v834, %v830
    %v1083 = vpack.c.b16 %v835, %v831
    %v1084 = vpack.c.b16 %v836, %v832
    %v1085 = vpack.c.b16 %v837, %v833
    %v1086 = vpack.c.b16 %v842, %v838
    %v1087 = vpack.c.b16 %v843, %v839
    %v1088 = vpack.c.b16 %v844, %v840
    %v1089 = vpack.c.b16 %v845, %v841
    %v1090 = vpack.c.b16 %v850, %v846
    %v1091 = vpack.c.b16 %v851, %v847
    %v1092 = vpack.c.b16 %v852, %v848
    %v1093 = vpack.c.b16 %v853, %v849
    %v1094 = vpack.c.b16 %v858, %v854
    %v1095 = vpack.c.b16 %v859, %v855
    %v1096 = vpack.c.b16 %v860, %v856
    %v1097 = vpack.c.b16 %v861, %v857
    %v1098 = vpack.c.b16 %v866, %v862
    %v1099 = vpack.c.b16 %v867, %v863
    %v1100 = vpack.c.b16 %v868, %v864
    %v1101 = vpack.c.b16 %v869, %v865
    %v1102 = vpack.c.b16 %v874, %v870
    %v1103 = vpack.c.b16 %v875, %v871
    %v1104 = vpack.c.b16 %v876, %v872
    %v1105 = vpack.c.b16 %v877, %v873
    %v1106 = vpack.c.b16 %v882, %v878
    %v1107 = vpack.c.b16 %v883, %v879
    %v1108 = vpack.c.b16 %v884, %v880
    %v1109 = vpack.c.b16 %v885, %v881
    %v1110 = vpack.c.b16 %v890, %v886
    %v1111 = vpack.c.b16 %v891, %v887
    %v1112 = vpack.c.b16 %v892, %v888
    %v1113 = vpack.c.b16 %v893, %v889
    %v1114 = vpack.c.b16 %v898, %v894
    %v1115 = vpack.c.b16 %v899, %v895
    %v1116 = vpack.c.b16 %v900, %v896
    %v1117 = vpack.c.b16 %v901, %v897
    %v1118 = vpack.c.b16 %v906, %v902
    %v1119 = vpack.c.b16 %v907, %v903
    %v1120 = vpack.c.b16 %v908, %v904
    %v1121 = vpack.c.b16 %v909, %v905
    %v1122 = vpack.c.b16 %v914, %v910
    %v1123 = vpack.c.b16 %v915, %v911
    %v1124 = vpack.c.b16 %v916, %v912
    %v1125 = vpack.c.b16 %v917, %v913
    %v1126 = vpack.c.b16 %v922, %v918
    %v1127 = vpack.c.b16 %v923, %v919
    %v1128 = vpack.c.b16 %v924, %v920
    %v1129 = vpack.c.b16 %v925, %v921
    %v1130 = vpack.c.b16 %v930, %v926
    %v1131 = vpack.c.b16 %v931, %v927
    %v1132 = vpack.c.b16 %v932, %v928
    %v1133 = vpack.c.b16 %v933, %v929
    %v1134 = vpack.c.b16 %v938, %v934
    %v1135 = vpack.c.b16 %v939, %v935
    %v1136 = vpack.c.b16 %v940, %v936
    %v1137 = vpack.c.b16 %v941, %v937
    %v1138 = vpack.c.b16 %v946, %v942
    %v1139 = vpack.c.b16 %v947, %v943
    %v1140 = vpack.c.b16 %v948, %v944
    %v1141 = vpack.c.b16 %v949, %v945
    %1334 = vmatprep.subr.bf16.mxu0 %v951
    %1335 = vmatpush1.bf16.msra.mxu0 %v950
    %1336 = vmatprep.subr.bf16.mxu0 %v955
    %1337 = vmatpush1.bf16.msra.mxu0 %v954
    %1338 = vmatprep.subr.bf16.mxu0 %v959
    %1339 = vmatpush1.bf16.msra.mxu0 %v958
    %1340 = vmatprep.subr.bf16.mxu0 %v963
    %1341 = vmatpush1.bf16.msra.mxu0 %v962
    %1342 = vmatprep.subr.bf16.mxu0 %v967
    %1343 = vmatpush1.bf16.msra.mxu0 %v966
    %1344 = vmatprep.subr.bf16.mxu0 %v971
    %1345 = vmatpush1.bf16.msra.mxu0 %v970
    %1346 = vmatprep.subr.bf16.mxu0 %v975
    %1347 = vmatpush1.bf16.msra.mxu0 %v974
    %1348 = vmatprep.subr.bf16.mxu0 %v979
    %1349 = vmatpush1.bf16.msra.mxu0 %v978
    %1350 = vmatprep.subr.bf16.mxu0 %v983
    %1351 = vmatpush1.bf16.msra.mxu0 %v982
    %1352 = vmatprep.subr.bf16.mxu0 %v987
    %1353 = vmatpush1.bf16.msra.mxu0 %v986
    %1354 = vmatprep.subr.bf16.mxu0 %v991
    %1355 = vmatpush1.bf16.msra.mxu0 %v990
    %1356 = vmatprep.subr.bf16.mxu0 %v995
    %1357 = vmatpush1.bf16.msra.mxu0 %v994
    %1358 = vmatprep.subr.bf16.mxu0 %v999
    %1359 = vmatpush1.bf16.msra.mxu0 %v998
    %1360 = vmatprep.subr.bf16.mxu0 %v1003
    %1361 = vmatpush1.bf16.msra.mxu0 %v1002
    %1362 = vmatprep.subr.bf16.mxu0 %v1007
    %1363 = vmatpush1.bf16.msra.mxu0 %v1006
    %1364 = vmatprep.subr.bf16.mxu0 %v1011
    %1365 = vmatpush1.bf16.msra.mxu0 %v1010
    %1366 = vmatprep.mubr.bf16.mxu0 %v363
    %1367 = vmatmul.mubr.bf16.gmra.mrb[0].mxu0 %v362
    %v1368 = vpop.f32.mrb[0].mxu0
    %v1369 = vadd.f32 %v327, %v1368
    %v1370 = vpop.f32.mrb[0].mxu0
    %v1371 = vadd.f32 %v331, %v1370
    %v1372 = vpop.f32.mrb[0].mxu0
    %v1373 = vadd.f32 %v327, %v1372
    %v1374 = vpop.f32.mrb[0].mxu0
    %v1375 = vadd.f32 %v331, %v1374
    %1376 = vdwg.mxu0
    %1377 = vmatprep.subr.bf16.mxu0 %v1015
    %1378 = vmatpush1.bf16.msra.mxu0 %v1014
    %1379 = vmatprep.subr.bf16.mxu0 %v1019
    %1380 = vmatpush1.bf16.msra.mxu0 %v1018
    %1381 = vmatprep.subr.bf16.mxu0 %v1023
    %1382 = vmatpush1.bf16.msra.mxu0 %v1022
    %1383 = vmatprep.subr.bf16.mxu0 %v1027
    %1384 = vmatpush1.bf16.msra.mxu0 %v1026
    %1385 = vmatprep.subr.bf16.mxu0 %v1031
    %1386 = vmatpush1.bf16.msra.mxu0 %v1030
    %1387 = vmatprep.subr.bf16.mxu0 %v1035
    %1388 = vmatpush1.bf16.msra.mxu0 %v1034
    %1389 = vmatprep.subr.bf16.mxu0 %v1039
    %1390 = vmatpush1.bf16.msra.mxu0 %v1038
    %1391 = vmatprep.subr.bf16.mxu0 %v1043
    %1392 = vmatpush1.bf16.msra.mxu0 %v1042
    %1393 = vmatprep.subr.bf16.mxu0 %v1047
    %1394 = vmatpush1.bf16.msra.mxu0 %v1046
    %1395 = vmatprep.subr.bf16.mxu0 %v1051
    %1396 = vmatpush1.bf16.msra.mxu0 %v1050
    %1397 = vmatprep.subr.bf16.mxu0 %v1055
    %1398 = vmatpush1.bf16.msra.mxu0 %v1054
    %1399 = vmatprep.subr.bf16.mxu0 %v1059
    %1400 = vmatpush1.bf16.msra.mxu0 %v1058
    %1401 = vmatprep.subr.bf16.mxu0 %v1063
    %1402 = vmatpush1.bf16.msra.mxu0 %v1062
    %1403 = vmatprep.subr.bf16.mxu0 %v1067
    %1404 = vmatpush1.bf16.msra.mxu0 %v1066
    %1405 = vmatprep.subr.bf16.mxu0 %v1071
    %1406 = vmatpush1.bf16.msra.mxu0 %v1070
    %1407 = vmatprep.subr.bf16.mxu0 %v1075
    %1408 = vmatpush1.bf16.msra.mxu0 %v1074
    %1409 = vmatprep.mubr.bf16.mxu0 %v365
    %1410 = vmatmul.mubr.bf16.gmra.mrb[0].mxu0 %v364
    %v1411 = vpop.f32.mrb[0].mxu0
    %v1412 = vadd.f32 %v1369, %v1411
    %v1413 = vpop.f32.mrb[0].mxu0
    %v1414 = vadd.f32 %v1371, %v1413
    %v1415 = vpop.f32.mrb[0].mxu0
    %v1416 = vadd.f32 %v1373, %v1415
    %v1417 = vpop.f32.mrb[0].mxu0
    %v1418 = vadd.f32 %v1375, %v1417
    %1419 = vdwg.mxu0
    %1420 = vmatprep.subr.bf16.mxu0 %v1079
    %1421 = vmatpush1.bf16.msra.mxu0 %v1078
    %1422 = vmatprep.subr.bf16.mxu0 %v1083
    %1423 = vmatpush1.bf16.msra.mxu0 %v1082
    %1424 = vmatprep.subr.bf16.mxu0 %v1087
    %1425 = vmatpush1.bf16.msra.mxu0 %v1086
    %1426 = vmatprep.subr.bf16.mxu0 %v1091
    %1427 = vmatpush1.bf16.msra.mxu0 %v1090
    %1428 = vmatprep.subr.bf16.mxu0 %v1095
    %1429 = vmatpush1.bf16.msra.mxu0 %v1094
    %1430 = vmatprep.subr.bf16.mxu0 %v1099
    %1431 = vmatpush1.bf16.msra.mxu0 %v1098
    %1432 = vmatprep.subr.bf16.mxu0 %v1103
    %1433 = vmatpush1.bf16.msra.mxu0 %v1102
    %1434 = vmatprep.subr.bf16.mxu0 %v1107
    %1435 = vmatpush1.bf16.msra.mxu0 %v1106
    %1436 = vmatprep.subr.bf16.mxu0 %v1111
    %1437 = vmatpush1.bf16.msra.mxu0 %v1110
    %1438 = vmatprep.subr.bf16.mxu0 %v1115
    %1439 = vmatpush1.bf16.msra.mxu0 %v1114
    %1440 = vmatprep.subr.bf16.mxu0 %v1119
    %1441 = vmatpush1.bf16.msra.mxu0 %v1118
    %1442 = vmatprep.subr.bf16.mxu0 %v1123
    %1443 = vmatpush1.bf16.msra.mxu0 %v1122
    %1444 = vmatprep.subr.bf16.mxu0 %v1127
    %1445 = vmatpush1.bf16.msra.mxu0 %v1126
    %1446 = vmatprep.subr.bf16.mxu0 %v1131
    %1447 = vmatpush1.bf16.msra.mxu0 %v1130
    %1448 = vmatprep.subr.bf16.mxu0 %v1135
    %1449 = vmatpush1.bf16.msra.mxu0 %v1134
    %1450 = vmatprep.subr.bf16.mxu0 %v1139
    %1451 = vmatpush1.bf16.msra.mxu0 %v1138
    %1452 = vmatprep.mubr.bf16.mxu0 %v367
    %1453 = vmatmul.mubr.bf16.gmra.mrb[0].mxu0 %v366
    %v1454 = vpop.f32.mrb[0].mxu0
    %v1455 = vadd.f32 %v1412, %v1454
    %v1456 = vpop.f32.mrb[0].mxu0
    %v1457 = vadd.f32 %v1414, %v1456
    %v1458 = vpop.f32.mrb[0].mxu0
    %v1459 = vadd.f32 %v1416, %v1458
    %v1460 = vpop.f32.mrb[0].mxu0
    %v1461 = vadd.f32 %v1418, %v1460
    %1462 = vdwg.mxu0
    %1463 = vmatprep.subr.bf16.mxu0 %v953
    %1464 = vmatpush1.bf16.msra.mxu0 %v952
    %1465 = vmatprep.subr.bf16.mxu0 %v957
    %1466 = vmatpush1.bf16.msra.mxu0 %v956
    %1467 = vmatprep.subr.bf16.mxu0 %v961
    %1468 = vmatpush1.bf16.msra.mxu0 %v960
    %1469 = vmatprep.subr.bf16.mxu0 %v965
    %1470 = vmatpush1.bf16.msra.mxu0 %v964
    %1471 = vmatprep.subr.bf16.mxu0 %v969
    %1472 = vmatpush1.bf16.msra.mxu0 %v968
    %1473 = vmatprep.subr.bf16.mxu0 %v973
    %1474 = vmatpush1.bf16.msra.mxu0 %v972
    %1475 = vmatprep.subr.bf16.mxu0 %v977
    %1476 = vmatpush1.bf16.msra.mxu0 %v976
    %1477 = vmatprep.subr.bf16.mxu0 %v981
    %1478 = vmatpush1.bf16.msra.mxu0 %v980
    %1479 = vmatprep.subr.bf16.mxu0 %v985
    %1480 = vmatpush1.bf16.msra.mxu0 %v984
    %1481 = vmatprep.subr.bf16.mxu0 %v989
    %1482 = vmatpush1.bf16.msra.mxu0 %v988
    %1483 = vmatprep.subr.bf16.mxu0 %v993
    %1484 = vmatpush1.bf16.msra.mxu0 %v992
    %1485 = vmatprep.subr.bf16.mxu0 %v997
    %1486 = vmatpush1.bf16.msra.mxu0 %v996
    %1487 = vmatprep.subr.bf16.mxu0 %v1001
    %1488 = vmatpush1.bf16.msra.mxu0 %v1000
    %1489 = vmatprep.subr.bf16.mxu0 %v1005
    %1490 = vmatpush1.bf16.msra.mxu0 %v1004
    %1491 = vmatprep.subr.bf16.mxu0 %v1009
    %1492 = vmatpush1.bf16.msra.mxu0 %v1008
    %1493 = vmatprep.subr.bf16.mxu0 %v1013
    %1494 = vmatpush1.bf16.msra.mxu0 %v1012
    %1495 = vmatprep.mubr.bf16.mxu0 %v363
    %1496 = vmatmul.mubr.bf16.gmra.mrb[0].mxu0 %v362
    %v1497 = vpop.f32.mrb[0].mxu0
    %v1498 = vadd.f32 %v335, %v1497
    %v1499 = vpop.f32.mrb[0].mxu0
    %v1500 = vadd.f32 %v339, %v1499
    %v1501 = vpop.f32.mrb[0].mxu0
    %v1502 = vadd.f32 %v335, %v1501
    %v1503 = vpop.f32.mrb[0].mxu0
    %v1504 = vadd.f32 %v339, %v1503
    %1505 = vdwg.mxu0
    %1506 = vmatprep.subr.bf16.mxu0 %v1017
    %1507 = vmatpush1.bf16.msra.mxu0 %v1016
    %1508 = vmatprep.subr.bf16.mxu0 %v1021
    %1509 = vmatpush1.bf16.msra.mxu0 %v1020
    %1510 = vmatprep.subr.bf16.mxu0 %v1025
    %1511 = vmatpush1.bf16.msra.mxu0 %v1024
    %1512 = vmatprep.subr.bf16.mxu0 %v1029
    %1513 = vmatpush1.bf16.msra.mxu0 %v1028
    %1514 = vmatprep.subr.bf16.mxu0 %v1033
    %1515 = vmatpush1.bf16.msra.mxu0 %v1032
    %1516 = vmatprep.subr.bf16.mxu0 %v1037
    %1517 = vmatpush1.bf16.msra.mxu0 %v1036
    %1518 = vmatprep.subr.bf16.mxu0 %v1041
    %1519 = vmatpush1.bf16.msra.mxu0 %v1040
    %1520 = vmatprep.subr.bf16.mxu0 %v1045
    %1521 = vmatpush1.bf16.msra.mxu0 %v1044
    %1522 = vmatprep.subr.bf16.mxu0 %v1049
    %1523 = vmatpush1.bf16.msra.mxu0 %v1048
    %1524 = vmatprep.subr.bf16.mxu0 %v1053
    %1525 = vmatpush1.bf16.msra.mxu0 %v1052
    %1526 = vmatprep.subr.bf16.mxu0 %v1057
    %1527 = vmatpush1.bf16.msra.mxu0 %v1056
    %1528 = vmatprep.subr.bf16.mxu0 %v1061
    %1529 = vmatpush1.bf16.msra.mxu0 %v1060
    %1530 = vmatprep.subr.bf16.mxu0 %v1065
    %1531 = vmatpush1.bf16.msra.mxu0 %v1064
    %1532 = vmatprep.subr.bf16.mxu0 %v1069
    %1533 = vmatpush1.bf16.msra.mxu0 %v1068
    %1534 = vmatprep.subr.bf16.mxu0 %v1073
    %1535 = vmatpush1.bf16.msra.mxu0 %v1072
    %1536 = vmatprep.subr.bf16.mxu0 %v1077
    %1537 = vmatpush1.bf16.msra.mxu0 %v1076
    %1538 = vmatprep.mubr.bf16.mxu0 %v365
    %1539 = vmatmul.mubr.bf16.gmra.mrb[0].mxu0 %v364
    %v1540 = vpop.f32.mrb[0].mxu0
    %v1541 = vadd.f32 %v1498, %v1540
    %v1542 = vpop.f32.mrb[0].mxu0
    %v1543 = vadd.f32 %v1500, %v1542
    %v1544 = vpop.f32.mrb[0].mxu0
    %v1545 = vadd.f32 %v1502, %v1544
    %v1546 = vpop.f32.mrb[0].mxu0
    %v1547 = vadd.f32 %v1504, %v1546
    %1548 = vdwg.mxu0
    %1549 = vmatprep.subr.bf16.mxu0 %v1081
    %1550 = vmatpush1.bf16.msra.mxu0 %v1080
    %1551 = vmatprep.subr.bf16.mxu0 %v1085
    %1552 = vmatpush1.bf16.msra.mxu0 %v1084
    %1553 = vmatprep.subr.bf16.mxu0 %v1089
    %1554 = vmatpush1.bf16.msra.mxu0 %v1088
    %1555 = vmatprep.subr.bf16.mxu0 %v1093
    %1556 = vmatpush1.bf16.msra.mxu0 %v1092
    %1557 = vmatprep.subr.bf16.mxu0 %v1097
    %1558 = vmatpush1.bf16.msra.mxu0 %v1096
    %1559 = vmatprep.subr.bf16.mxu0 %v1101
    %1560 = vmatpush1.bf16.msra.mxu0 %v1100
    %1561 = vmatprep.subr.bf16.mxu0 %v1105
    %1562 = vmatpush1.bf16.msra.mxu0 %v1104
    %1563 = vmatprep.subr.bf16.mxu0 %v1109
    %1564 = vmatpush1.bf16.msra.mxu0 %v1108
    %1565 = vmatprep.subr.bf16.mxu0 %v1113
    %1566 = vmatpush1.bf16.msra.mxu0 %v1112
    %1567 = vmatprep.subr.bf16.mxu0 %v1117
    %1568 = vmatpush1.bf16.msra.mxu0 %v1116
    %1569 = vmatprep.subr.bf16.mxu0 %v1121
    %1570 = vmatpush1.bf16.msra.mxu0 %v1120
    %1571 = vmatprep.subr.bf16.mxu0 %v1125
    %1572 = vmatpush1.bf16.msra.mxu0 %v1124
    %1573 = vmatprep.subr.bf16.mxu0 %v1129
    %1574 = vmatpush1.bf16.msra.mxu0 %v1128
    %1575 = vmatprep.subr.bf16.mxu0 %v1133
    %1576 = vmatpush1.bf16.msra.mxu0 %v1132
    %1577 = vmatprep.subr.bf16.mxu0 %v1137
    %1578 = vmatpush1.bf16.msra.mxu0 %v1136
    %1579 = vmatprep.subr.bf16.mxu0 %v1141
    %1580 = vmatpush1.bf16.msra.mxu0 %v1140
    %1581 = vmatprep.mubr.bf16.mxu0 %v367
    %1582 = vmatmul.mubr.bf16.gmra.mrb[0].mxu0 %v366
    %v1583 = vpop.f32.mrb[0].mxu0
    %v1584 = vadd.f32 %v1541, %v1583
    %v1585 = vpop.f32.mrb[0].mxu0
    %v1586 = vadd.f32 %v1543, %v1585
    %v1587 = vpop.f32.mrb[0].mxu0
    %v1588 = vadd.f32 %v1545, %v1587
    %v1589 = vpop.f32.mrb[0].mxu0
    %v1590 = vadd.f32 %v1547, %v1589
    %1591 = vdwg.mxu0
    %1592 = vst [vmem:[#allocation2] sm:$0xff] %v1455
    %1593 = vst [vmem:[#allocation2 + $0x8] sm:$0xff] %v1457
    %1594 = vst [vmem:[#allocation2 + $0x10] sm:$0xff] %v1584
    %1595 = vst [vmem:[#allocation2 + $0x18] sm:$0xff] %v1586
    %1596 = vst [vmem:[#allocation2 + $0x20] sm:$0xff] %v1459
    %1597 = vst [vmem:[#allocation2 + $0x28] sm:$0xff] %v1461
    %1598 = vst [vmem:[#allocation2 + $0x30] sm:$0xff] %v1588
    %1599 = vst [vmem:[#allocation2 + $0x38] sm:$0xff] %v1590
    %v1600 = vld [vmem:[#allocation2] ss:$8 sm:$0xf]
    %s1601 = scalar_lea.vmem [#allocation2], 32
    %v1602 = vld [vmem:[%s1601] ss:$8 sm:$0xf]
    %v1603 = vxor.u32 %v1600, 2147483648
    %v1604 = vxor.u32 %v1602, 2147483648
    %v1605 = vmul.f32 %v1603, 1.442695
    %v1606 = vpow.pop %v1605
    %v1607 = vmul.f32 %v1604, 1.442695
    %v1608 = vpow.pop %v1607
    %v1609 = vadd.f32 %v1606, 1.0
    %v1610 = vadd.f32 %v1608, 1.0
    %v1611 = vrcp.pop %v1609
    %v1612 = vmul.f32 1.0, %v1611
    %v1613 = vrcp.pop %v1610
    %v1614 = vmul.f32 1.0, %v1613
    %v1617 = vrot.slane %v1600, 1
    %v1618 = vrot.slane %v1602, 1
    %v1621 = vxor.u32 %v1617, 2147483648
    %v1622 = vxor.u32 %v1618, 2147483648
    %v1623 = vmul.f32 %v1621, 1.442695
    %v1624 = vpow.pop %v1623
    %v1625 = vmul.f32 %v1622, 1.442695
    %v1626 = vpow.pop %v1625
    %v1627 = vadd.f32 %v1624, 1.0
    %v1628 = vadd.f32 %v1626, 1.0
    %v1629 = vrcp.pop %v1627
    %v1630 = vmul.f32 1.0, %v1629
    %v1631 = vrcp.pop %v1628
    %v1632 = vmul.f32 1.0, %v1631
    %v1633 = vrot.slane %v1600, 2
    %v1634 = vrot.slane %v1602, 2
    %v1637 = vtanh.pop %v1633
    %v1638 = vtanh.pop %v1634
    %v1639 = vrot.slane %v1600, 3
    %v1640 = vrot.slane %v1602, 3
    %v1643 = vxor.u32 %v1639, 2147483648
    %v1644 = vxor.u32 %v1640, 2147483648
    %v1645 = vmul.f32 %v1643, 1.442695
    %v1646 = vpow.pop %v1645
    %v1647 = vmul.f32 %v1644, 1.442695
    %v1648 = vpow.pop %v1647
    %v1649 = vadd.f32 %v1646, 1.0
    %v1650 = vadd.f32 %v1648, 1.0
    %v1651 = vrcp.pop %v1649
    %v1652 = vmul.f32 1.0, %v1651
    %v1653 = vrcp.pop %v1650
    %v1654 = vmul.f32 1.0, %v1653
    %v1655 = vmul.f32 %v1630, 0.0
    %v1656 = vmul.f32 %v1632, 0.0
    %v1657 = vmul.f32 %v1612, %v1637
    %v1658 = vmul.f32 %v1614, %v1638
    %v1659 = vadd.f32 %v1655, %v1657
    %v1660 = vadd.f32 %v1656, %v1658
    %v1661 = vtanh.pop %v1659
    %v1662 = vtanh.pop %v1660
    %v1663 = vmul.f32 %v1652, %v1661
    %v1664 = vmul.f32 %v1654, %v1662
    %v1665 = vpack.c.bf16 %v1663, %v1663
    %v1666 = vpack.c.bf16 %v1664, %v1664
    %v1667 = vld [vmem:[#allocation5] sm:$0xff]
    %v1668 = vld [vmem:[#allocation5 + $0x8] sm:$0xff]
    %v1669 = vld [vmem:[#allocation5 + $0x10] sm:$0xff]
    %v1670 = vld [vmem:[#allocation5 + $0x18] sm:$0xff]
    %v1671 = vld [vmem:[#allocation5 + $0x20] sm:$0xff]
    %v1672 = vld [vmem:[#allocation5 + $0x28] sm:$0xff]
    %v1673 = vld [vmem:[#allocation5 + $0x30] sm:$0xff]
    %v1674 = vld [vmem:[#allocation5 + $0x38] sm:$0xff]
    %v1675 = vld [vmem:[#allocation5 + $0x40] sm:$0xff]
    %v1676 = vld [vmem:[#allocation5 + $0x48] sm:$0xff]
    %v1677 = vld [vmem:[#allocation5 + $0x50] sm:$0xff]
    %v1678 = vld [vmem:[#allocation5 + $0x58] sm:$0xff]
    %v1679 = vld [vmem:[#allocation5 + $0x60] sm:$0xff]
    %v1680 = vld [vmem:[#allocation5 + $0x68] sm:$0xff]
    %v1681 = vld [vmem:[#allocation5 + $0x70] sm:$0xff]
    %v1682 = vld [vmem:[#allocation5 + $0x78] sm:$0xff]
    %v1683 = vld [vmem:[#allocation5 + $0x80] sm:$0xff]
    %v1684 = vld [vmem:[#allocation5 + $0x88] sm:$0xff]
    %v1685 = vld [vmem:[#allocation5 + $0x90] sm:$0xff]
    %v1686 = vld [vmem:[#allocation5 + $0x98] sm:$0xff]
    %v1687 = vld [vmem:[#allocation5 + $0xa0] sm:$0xff]
    %v1688 = vld [vmem:[#allocation5 + $0xa8] sm:$0xff]
    %v1689 = vld [vmem:[#allocation5 + $0xb0] sm:$0xff]
    %v1690 = vld [vmem:[#allocation5 + $0xb8] sm:$0xff]
    %v1691 = vld [vmem:[#allocation5 + $0xc0] sm:$0xff]
    %v1692 = vld [vmem:[#allocation5 + $0xc8] sm:$0xff]
    %v1693 = vld [vmem:[#allocation5 + $0xd0] sm:$0xff]
    %v1694 = vld [vmem:[#allocation5 + $0xd8] sm:$0xff]
    %v1695 = vld [vmem:[#allocation5 + $0xe0] sm:$0xff]
    %v1696 = vld [vmem:[#allocation5 + $0xe8] sm:$0xff]
    %v1697 = vld [vmem:[#allocation5 + $0xf0] sm:$0xff]
    %v1698 = vld [vmem:[#allocation5 + $0xf8] sm:$0xff]
    %v1699 = vld [vmem:[%s6] sm:$0xf]
    %v1701 = vlaneseq
    %v1702 = vshrl.u32 %v1701, 7
    %v1703 = vsub.s32 0, %v1702
    %v1704 = vrot.slane %v1699, %v1703
    %v1705 = vlaneseq
    %v1706 = vshrl.u32 %v1705, 7
    %v1707 = vsub.s32 1, %v1706
    %v1708 = vrot.slane %v1699, %v1707
    %v1709 = vlaneseq
    %v1710 = vshrl.u32 %v1709, 7
    %v1711 = vsub.s32 2, %v1710
    %v1712 = vrot.slane %v1699, %v1711
    %v1713 = vlaneseq
    %v1714 = vshrl.u32 %v1713, 7
    %v1715 = vsub.s32 3, %v1714
    %v1716 = vrot.slane %v1699, %v1715
    %v1723 = vunpack.c.l.b16 %v1665
    %v1724 = vunpack.c.l.b16 %v1666
    %v1725 = vrot.slane %v1724, 7
    %vm1726 = vcmask 1041409
    %v1727 = vsel %vm1726, %v1725, %v1723
    %v1728 = vpack.c.b16 %v1727, %v1727
    %v1762 = vunpack.c.l.b16 %v1667
    %v1763 = vunpack.c.h.b16 %v1667
    %v1764 = vunpack.c.l.b16 %v1668
    %v1765 = vunpack.c.h.b16 %v1668
    %v1766 = vunpack.c.l.b16 %v1669
    %v1767 = vunpack.c.h.b16 %v1669
    %v1768 = vunpack.c.l.b16 %v1670
    %v1769 = vunpack.c.h.b16 %v1670
    %v1770 = vunpack.c.l.b16 %v1671
    %v1771 = vunpack.c.h.b16 %v1671
    %v1772 = vunpack.c.l.b16 %v1672
    %v1773 = vunpack.c.h.b16 %v1672
    %v1774 = vunpack.c.l.b16 %v1673
    %v1775 = vunpack.c.h.b16 %v1673
    %v1776 = vunpack.c.l.b16 %v1674
    %v1777 = vunpack.c.h.b16 %v1674
    %v1778 = vunpack.c.l.b16 %v1675
    %v1779 = vunpack.c.h.b16 %v1675
    %v1780 = vunpack.c.l.b16 %v1676
    %v1781 = vunpack.c.h.b16 %v1676
    %v1782 = vunpack.c.l.b16 %v1677
    %v1783 = vunpack.c.h.b16 %v1677
    %v1784 = vunpack.c.l.b16 %v1678
    %v1785 = vunpack.c.h.b16 %v1678
    %v1786 = vunpack.c.l.b16 %v1679
    %v1787 = vunpack.c.h.b16 %v1679
    %v1788 = vunpack.c.l.b16 %v1680
    %v1789 = vunpack.c.h.b16 %v1680
    %v1790 = vunpack.c.l.b16 %v1681
    %v1791 = vunpack.c.h.b16 %v1681
    %v1792 = vunpack.c.l.b16 %v1682
    %v1793 = vunpack.c.h.b16 %v1682
    %v1794 = vunpack.c.l.b16 %v1683
    %v1795 = vunpack.c.h.b16 %v1683
    %v1796 = vunpack.c.l.b16 %v1684
    %v1797 = vunpack.c.h.b16 %v1684
    %v1798 = vunpack.c.l.b16 %v1685
    %v1799 = vunpack.c.h.b16 %v1685
    %v1800 = vunpack.c.l.b16 %v1686
    %v1801 = vunpack.c.h.b16 %v1686
    %v1802 = vunpack.c.l.b16 %v1687
    %v1803 = vunpack.c.h.b16 %v1687
    %v1804 = vunpack.c.l.b16 %v1688
    %v1805 = vunpack.c.h.b16 %v1688
    %v1806 = vunpack.c.l.b16 %v1689
    %v1807 = vunpack.c.h.b16 %v1689
    %v1808 = vunpack.c.l.b16 %v1690
    %v1809 = vunpack.c.h.b16 %v1690
    %v1810 = vunpack.c.l.b16 %v1691
    %v1811 = vunpack.c.h.b16 %v1691
    %v1812 = vunpack.c.l.b16 %v1692
    %v1813 = vunpack.c.h.b16 %v1692
    %v1814 = vunpack.c.l.b16 %v1693
    %v1815 = vunpack.c.h.b16 %v1693
    %v1816 = vunpack.c.l.b16 %v1694
    %v1817 = vunpack.c.h.b16 %v1694
    %v1818 = vunpack.c.l.b16 %v1695
    %v1819 = vunpack.c.h.b16 %v1695
    %v1820 = vunpack.c.l.b16 %v1696
    %v1821 = vunpack.c.h.b16 %v1696
    %v1822 = vunpack.c.l.b16 %v1697
    %v1823 = vunpack.c.h.b16 %v1697
    %v1824 = vunpack.c.l.b16 %v1698
    %v1825 = vunpack.c.h.b16 %v1698
    %v1826 = vpack.c.b16 %v1766, %v1762
    %v1827 = vpack.c.b16 %v1767, %v1763
    %v1828 = vpack.c.b16 %v1768, %v1764
    %v1829 = vpack.c.b16 %v1769, %v1765
    %v1830 = vpack.c.b16 %v1774, %v1770
    %v1831 = vpack.c.b16 %v1775, %v1771
    %v1832 = vpack.c.b16 %v1776, %v1772
    %v1833 = vpack.c.b16 %v1777, %v1773
    %v1834 = vpack.c.b16 %v1782, %v1778
    %v1835 = vpack.c.b16 %v1783, %v1779
    %v1836 = vpack.c.b16 %v1784, %v1780
    %v1837 = vpack.c.b16 %v1785, %v1781
    %v1838 = vpack.c.b16 %v1790, %v1786
    %v1839 = vpack.c.b16 %v1791, %v1787
    %v1840 = vpack.c.b16 %v1792, %v1788
    %v1841 = vpack.c.b16 %v1793, %v1789
    %v1842 = vpack.c.b16 %v1798, %v1794
    %v1843 = vpack.c.b16 %v1799, %v1795
    %v1844 = vpack.c.b16 %v1800, %v1796
    %v1845 = vpack.c.b16 %v1801, %v1797
    %v1846 = vpack.c.b16 %v1806, %v1802
    %v1847 = vpack.c.b16 %v1807, %v1803
    %v1848 = vpack.c.b16 %v1808, %v1804
    %v1849 = vpack.c.b16 %v1809, %v1805
    %v1850 = vpack.c.b16 %v1814, %v1810
    %v1851 = vpack.c.b16 %v1815, %v1811
    %v1852 = vpack.c.b16 %v1816, %v1812
    %v1853 = vpack.c.b16 %v1817, %v1813
    %v1854 = vpack.c.b16 %v1822, %v1818
    %v1855 = vpack.c.b16 %v1823, %v1819
    %v1856 = vpack.c.b16 %v1824, %v1820
    %v1857 = vpack.c.b16 %v1825, %v1821
    %1890 = vmatprep.subr.bf16.mxu0 %v1827
    %1891 = vmatpush1.bf16.msra.mxu0 %v1826
    %1892 = vmatprep.subr.bf16.mxu0 %v1831
    %1893 = vmatpush1.bf16.msra.mxu0 %v1830
    %1894 = vmatprep.subr.bf16.mxu0 %v1835
    %1895 = vmatpush1.bf16.msra.mxu0 %v1834
    %1896 = vmatprep.subr.bf16.mxu0 %v1839
    %1897 = vmatpush1.bf16.msra.mxu0 %v1838
    %1898 = vmatprep.subr.bf16.mxu0 %v1843
    %1899 = vmatpush1.bf16.msra.mxu0 %v1842
    %1900 = vmatprep.subr.bf16.mxu0 %v1847
    %1901 = vmatpush1.bf16.msra.mxu0 %v1846
    %1902 = vmatprep.subr.bf16.mxu0 %v1851
    %1903 = vmatpush1.bf16.msra.mxu0 %v1850
    %1904 = vmatprep.subr.bf16.mxu0 %v1855
    %1905 = vmatpush1.bf16.msra.mxu0 %v1854
    %1906 = vmatprep.subr.bf16.mxu0 0
    %1907 = vmatpush1.bf16.msra.mxu0 0
    %1908 = vmatprep.subr.bf16.mxu0 0
    %1909 = vmatpush1.bf16.msra.mxu0 0
    %1910 = vmatprep.subr.bf16.mxu0 0
    %1911 = vmatpush1.bf16.msra.mxu0 0
    %1912 = vmatprep.subr.bf16.mxu0 0
    %1913 = vmatpush1.bf16.msra.mxu0 0
    %1914 = vmatprep.subr.bf16.mxu0 0
    %1915 = vmatpush1.bf16.msra.mxu0 0
    %1916 = vmatprep.subr.bf16.mxu0 0
    %1917 = vmatpush1.bf16.msra.mxu0 0
    %1918 = vmatprep.subr.bf16.mxu0 0
    %1919 = vmatpush1.bf16.msra.mxu0 0
    %1920 = vmatprep.subr.bf16.mxu0 0
    %1921 = vmatpush1.bf16.msra.mxu0 0
    %1922 = vmatprep.mubr.bf16.mxu0 0
    %1923 = vmatmul.mubr.bf16.gmra.mrb[0].mxu0 %v1728
    %v1924 = vpop.f32.mrb[0].mxu0
    %v1925 = vadd.f32 %v1704, %v1924
    %v1926 = vpop.f32.mrb[0].mxu0
    %v1927 = vadd.f32 %v1708, %v1926
    %v1928 = vpop.f32.mrb[0].mxu0
    %v1929 = vpop.f32.mrb[0].mxu0
    %1930 = vdwg.mxu0
    %1931 = vmatprep.subr.bf16.mxu0 %v1829
    %1932 = vmatpush1.bf16.msra.mxu0 %v1828
    %1933 = vmatprep.subr.bf16.mxu0 %v1833
    %1934 = vmatpush1.bf16.msra.mxu0 %v1832
    %1935 = vmatprep.subr.bf16.mxu0 %v1837
    %1936 = vmatpush1.bf16.msra.mxu0 %v1836
    %1937 = vmatprep.subr.bf16.mxu0 %v1841
    %1938 = vmatpush1.bf16.msra.mxu0 %v1840
    %1939 = vmatprep.subr.bf16.mxu0 %v1845
    %1940 = vmatpush1.bf16.msra.mxu0 %v1844
    %1941 = vmatprep.subr.bf16.mxu0 %v1849
    %1942 = vmatpush1.bf16.msra.mxu0 %v1848
    %1943 = vmatprep.subr.bf16.mxu0 %v1853
    %1944 = vmatpush1.bf16.msra.mxu0 %v1852
    %1945 = vmatprep.subr.bf16.mxu0 %v1857
    %1946 = vmatpush1.bf16.msra.mxu0 %v1856
    %1947 = vmatprep.subr.bf16.mxu0 0
    %1948 = vmatpush1.bf16.msra.mxu0 0
    %1949 = vmatprep.subr.bf16.mxu0 0
    %1950 = vmatpush1.bf16.msra.mxu0 0
    %1951 = vmatprep.subr.bf16.mxu0 0
    %1952 = vmatpush1.bf16.msra.mxu0 0
    %1953 = vmatprep.subr.bf16.mxu0 0
    %1954 = vmatpush1.bf16.msra.mxu0 0
    %1955 = vmatprep.subr.bf16.mxu0 0
    %1956 = vmatpush1.bf16.msra.mxu0 0
    %1957 = vmatprep.subr.bf16.mxu0 0
    %1958 = vmatpush1.bf16.msra.mxu0 0
    %1959 = vmatprep.subr.bf16.mxu0 0
    %1960 = vmatpush1.bf16.msra.mxu0 0
    %1961 = vmatprep.subr.bf16.mxu0 0
    %1962 = vmatpush1.bf16.msra.mxu0 0
    %1963 = vmatprep.mubr.bf16.mxu0 0
    %1964 = vmatmul.mubr.bf16.gmra.mrb[0].mxu0 %v1728
    %v1965 = vpop.f32.mrb[0].mxu0
    %v1966 = vadd.f32 %v1712, %v1965
    %v1967 = vpop.f32.mrb[0].mxu0
    %v1968 = vadd.f32 %v1716, %v1967
    %v1969 = vpop.f32.mrb[0].mxu0
    %v1970 = vpop.f32.mrb[0].mxu0
    %1971 = vdwg.mxu0
    %v1972 = vxor.u32 %v1925, 2147483648
    %v1973 = vmul.f32 %v1972, 1.442695
    %v1974 = vpow.pop %v1973
    %v1975 = vadd.f32 %v1974, 1.0
    %v1976 = vrcp.pop %v1975
    %v1977 = vmul.f32 1.0, %v1976
    %v1978 = vxor.u32 %v1927, 2147483648
    %v1979 = vmul.f32 %v1978, 1.442695
    %v1980 = vpow.pop %v1979
    %v1981 = vadd.f32 %v1980, 1.0
    %v1982 = vrcp.pop %v1981
    %v1983 = vmul.f32 1.0, %v1982
    %v1984 = vtanh.pop %v1966
    %v1985 = vxor.u32 %v1968, 2147483648
    %v1986 = vmul.f32 %v1985, 1.442695
    %v1987 = vpow.pop %v1986
    %v1988 = vadd.f32 %v1987, 1.0
    %v1989 = vrcp.pop %v1988
    %v1990 = vmul.f32 1.0, %v1989
    %v1991 = vmul.f32 %v1983, 0.0
    %v1992 = vmul.f32 %v1977, %v1984
    %v1993 = vadd.f32 %v1991, %v1992
    %v1994 = vtanh.pop %v1993
    %v1995 = vmul.f32 %v1990, %v1994
    %v1996 = vpack.c.bf16 %v1995, %v1995
    %v1997 = vld [vmem:[#allocation8] sm:$0xff]
    %v1998 = vld [vmem:[#allocation8 + $0x8] sm:$0xff]
    %v1999 = vld [vmem:[#allocation8 + $0x10] sm:$0xff]
    %v2000 = vld [vmem:[#allocation8 + $0x18] sm:$0xff]
    %v2001 = vld [vmem:[#allocation8 + $0x20] sm:$0xff]
    %v2002 = vld [vmem:[#allocation8 + $0x28] sm:$0xff]
    %v2003 = vld [vmem:[#allocation8 + $0x30] sm:$0xff]
    %v2004 = vld [vmem:[#allocation8 + $0x38] sm:$0xff]
    %v2005 = vld [vmem:[#allocation8 + $0x40] sm:$0xff]
    %v2006 = vld [vmem:[#allocation8 + $0x48] sm:$0xff]
    %v2007 = vld [vmem:[#allocation8 + $0x50] sm:$0xff]
    %v2008 = vld [vmem:[#allocation8 + $0x58] sm:$0xff]
    %v2009 = vld [vmem:[#allocation8 + $0x60] sm:$0xff]
    %v2010 = vld [vmem:[#allocation8 + $0x68] sm:$0xff]
    %v2011 = vld [vmem:[#allocation8 + $0x70] sm:$0xff]
    %v2012 = vld [vmem:[#allocation8 + $0x78] sm:$0xff]
    %v2013 = vld [vmem:[#allocation8 + $0x80] sm:$0xff]
    %v2014 = vld [vmem:[#allocation8 + $0x88] sm:$0xff]
    %v2015 = vld [vmem:[#allocation8 + $0x90] sm:$0xff]
    %v2016 = vld [vmem:[#allocation8 + $0x98] sm:$0xff]
    %v2017 = vld [vmem:[#allocation8 + $0xa0] sm:$0xff]
    %v2018 = vld [vmem:[#allocation8 + $0xa8] sm:$0xff]
    %v2019 = vld [vmem:[#allocation8 + $0xb0] sm:$0xff]
    %v2020 = vld [vmem:[#allocation8 + $0xb8] sm:$0xff]
    %v2021 = vld [vmem:[#allocation8 + $0xc0] sm:$0xff]
    %v2022 = vld [vmem:[#allocation8 + $0xc8] sm:$0xff]
    %v2023 = vld [vmem:[#allocation8 + $0xd0] sm:$0xff]
    %v2024 = vld [vmem:[#allocation8 + $0xd8] sm:$0xff]
    %v2025 = vld [vmem:[#allocation8 + $0xe0] sm:$0xff]
    %v2026 = vld [vmem:[#allocation8 + $0xe8] sm:$0xff]
    %v2027 = vld [vmem:[#allocation8 + $0xf0] sm:$0xff]
    %v2028 = vld [vmem:[#allocation8 + $0xf8] sm:$0xff]
    %v2029 = vld [vmem:[%s9] sm:$0xf]
    %v2031 = vlaneseq
    %v2032 = vshrl.u32 %v2031, 7
    %v2033 = vsub.s32 0, %v2032
    %v2034 = vrot.slane %v2029, %v2033
    %v2035 = vlaneseq
    %v2036 = vshrl.u32 %v2035, 7
    %v2037 = vsub.s32 1, %v2036
    %v2038 = vrot.slane %v2029, %v2037
    %v2039 = vlaneseq
    %v2040 = vshrl.u32 %v2039, 7
    %v2041 = vsub.s32 2, %v2040
    %v2042 = vrot.slane %v2029, %v2041
    %v2043 = vlaneseq
    %v2044 = vshrl.u32 %v2043, 7
    %v2045 = vsub.s32 3, %v2044
    %v2046 = vrot.slane %v2029, %v2045
    %v2083 = vunpack.c.l.b16 %v1997
    %v2084 = vunpack.c.h.b16 %v1997
    %v2085 = vunpack.c.l.b16 %v1998
    %v2086 = vunpack.c.h.b16 %v1998
    %v2087 = vunpack.c.l.b16 %v1999
    %v2088 = vunpack.c.h.b16 %v1999
    %v2089 = vunpack.c.l.b16 %v2000
    %v2090 = vunpack.c.h.b16 %v2000
    %v2091 = vunpack.c.l.b16 %v2001
    %v2092 = vunpack.c.h.b16 %v2001
    %v2093 = vunpack.c.l.b16 %v2002
    %v2094 = vunpack.c.h.b16 %v2002
    %v2095 = vunpack.c.l.b16 %v2003
    %v2096 = vunpack.c.h.b16 %v2003
    %v2097 = vunpack.c.l.b16 %v2004
    %v2098 = vunpack.c.h.b16 %v2004
    %v2099 = vunpack.c.l.b16 %v2005
    %v2100 = vunpack.c.h.b16 %v2005
    %v2101 = vunpack.c.l.b16 %v2006
    %v2102 = vunpack.c.h.b16 %v2006
    %v2103 = vunpack.c.l.b16 %v2007
    %v2104 = vunpack.c.h.b16 %v2007
    %v2105 = vunpack.c.l.b16 %v2008
    %v2106 = vunpack.c.h.b16 %v2008
    %v2107 = vunpack.c.l.b16 %v2009
    %v2108 = vunpack.c.h.b16 %v2009
    %v2109 = vunpack.c.l.b16 %v2010
    %v2110 = vunpack.c.h.b16 %v2010
    %v2111 = vunpack.c.l.b16 %v2011
    %v2112 = vunpack.c.h.b16 %v2011
    %v2113 = vunpack.c.l.b16 %v2012
    %v2114 = vunpack.c.h.b16 %v2012
    %v2115 = vunpack.c.l.b16 %v2013
    %v2116 = vunpack.c.h.b16 %v2013
    %v2117 = vunpack.c.l.b16 %v2014
    %v2118 = vunpack.c.h.b16 %v2014
    %v2119 = vunpack.c.l.b16 %v2015
    %v2120 = vunpack.c.h.b16 %v2015
    %v2121 = vunpack.c.l.b16 %v2016
    %v2122 = vunpack.c.h.b16 %v2016
    %v2123 = vunpack.c.l.b16 %v2017
    %v2124 = vunpack.c.h.b16 %v2017
    %v2125 = vunpack.c.l.b16 %v2018
    %v2126 = vunpack.c.h.b16 %v2018
    %v2127 = vunpack.c.l.b16 %v2019
    %v2128 = vunpack.c.h.b16 %v2019
    %v2129 = vunpack.c.l.b16 %v2020
    %v2130 = vunpack.c.h.b16 %v2020
    %v2131 = vunpack.c.l.b16 %v2021
    %v2132 = vunpack.c.h.b16 %v2021
    %v2133 = vunpack.c.l.b16 %v2022
    %v2134 = vunpack.c.h.b16 %v2022
    %v2135 = vunpack.c.l.b16 %v2023
    %v2136 = vunpack.c.h.b16 %v2023
    %v2137 = vunpack.c.l.b16 %v2024
    %v2138 = vunpack.c.h.b16 %v2024
    %v2139 = vunpack.c.l.b16 %v2025
    %v2140 = vunpack.c.h.b16 %v2025
    %v2141 = vunpack.c.l.b16 %v2026
    %v2142 = vunpack.c.h.b16 %v2026
    %v2143 = vunpack.c.l.b16 %v2027
    %v2144 = vunpack.c.h.b16 %v2027
    %v2145 = vunpack.c.l.b16 %v2028
    %v2146 = vunpack.c.h.b16 %v2028
    %v2147 = vpack.c.b16 %v2087, %v2083
    %v2148 = vpack.c.b16 %v2088, %v2084
    %v2149 = vpack.c.b16 %v2089, %v2085
    %v2150 = vpack.c.b16 %v2090, %v2086
    %v2151 = vpack.c.b16 %v2095, %v2091
    %v2152 = vpack.c.b16 %v2096, %v2092
    %v2153 = vpack.c.b16 %v2097, %v2093
    %v2154 = vpack.c.b16 %v2098, %v2094
    %v2155 = vpack.c.b16 %v2103, %v2099
    %v2156 = vpack.c.b16 %v2104, %v2100
    %v2157 = vpack.c.b16 %v2105, %v2101
    %v2158 = vpack.c.b16 %v2106, %v2102
    %v2159 = vpack.c.b16 %v2111, %v2107
    %v2160 = vpack.c.b16 %v2112, %v2108
    %v2161 = vpack.c.b16 %v2113, %v2109
    %v2162 = vpack.c.b16 %v2114, %v2110
    %v2163 = vpack.c.b16 %v2119, %v2115
    %v2164 = vpack.c.b16 %v2120, %v2116
    %v2165 = vpack.c.b16 %v2121, %v2117
    %v2166 = vpack.c.b16 %v2122, %v2118
    %v2167 = vpack.c.b16 %v2127, %v2123
    %v2168 = vpack.c.b16 %v2128, %v2124
    %v2169 = vpack.c.b16 %v2129, %v2125
    %v2170 = vpack.c.b16 %v2130, %v2126
    %v2171 = vpack.c.b16 %v2135, %v2131
    %v2172 = vpack.c.b16 %v2136, %v2132
    %v2173 = vpack.c.b16 %v2137, %v2133
    %v2174 = vpack.c.b16 %v2138, %v2134
    %v2175 = vpack.c.b16 %v2143, %v2139
    %v2176 = vpack.c.b16 %v2144, %v2140
    %v2177 = vpack.c.b16 %v2145, %v2141
    %v2178 = vpack.c.b16 %v2146, %v2142
    %2211 = vmatprep.subr.bf16.mxu0 %v2148
    %2212 = vmatpush1.bf16.msra.mxu0 %v2147
    %2213 = vmatprep.subr.bf16.mxu0 %v2152
    %2214 = vmatpush1.bf16.msra.mxu0 %v2151
    %2215 = vmatprep.subr.bf16.mxu0 %v2156
    %2216 = vmatpush1.bf16.msra.mxu0 %v2155
    %2217 = vmatprep.subr.bf16.mxu0 %v2160
    %2218 = vmatpush1.bf16.msra.mxu0 %v2159
    %2219 = vmatprep.subr.bf16.mxu0 %v2164
    %2220 = vmatpush1.bf16.msra.mxu0 %v2163
    %2221 = vmatprep.subr.bf16.mxu0 %v2168
    %2222 = vmatpush1.bf16.msra.mxu0 %v2167
    %2223 = vmatprep.subr.bf16.mxu0 %v2172
    %2224 = vmatpush1.bf16.msra.mxu0 %v2171
    %2225 = vmatprep.subr.bf16.mxu0 %v2176
    %2226 = vmatpush1.bf16.msra.mxu0 %v2175
    %2227 = vmatprep.subr.bf16.mxu0 0
    %2228 = vmatpush1.bf16.msra.mxu0 0
    %2229 = vmatprep.subr.bf16.mxu0 0
    %2230 = vmatpush1.bf16.msra.mxu0 0
    %2231 = vmatprep.subr.bf16.mxu0 0
    %2232 = vmatpush1.bf16.msra.mxu0 0
    %2233 = vmatprep.subr.bf16.mxu0 0
    %2234 = vmatpush1.bf16.msra.mxu0 0
    %2235 = vmatprep.subr.bf16.mxu0 0
    %2236 = vmatpush1.bf16.msra.mxu0 0
    %2237 = vmatprep.subr.bf16.mxu0 0
    %2238 = vmatpush1.bf16.msra.mxu0 0
    %2239 = vmatprep.subr.bf16.mxu0 0
    %2240 = vmatpush1.bf16.msra.mxu0 0
    %2241 = vmatprep.subr.bf16.mxu0 0
    %2242 = vmatpush1.bf16.msra.mxu0 0
    %2243 = vmatprep.mubr.bf16.mxu0 0
    %2244 = vmatmul.mubr.bf16.gmra.mrb[0].mxu0 %v1996
    %v2245 = vpop.f32.mrb[0].mxu0
    %v2246 = vadd.f32 %v2034, %v2245
    %v2247 = vpop.f32.mrb[0].mxu0
    %v2248 = vadd.f32 %v2038, %v2247
    %v2249 = vpop.f32.mrb[0].mxu0
    %v2250 = vpop.f32.mrb[0].mxu0
    %2251 = vdwg.mxu0
    %2252 = vmatprep.subr.bf16.mxu0 %v2150
    %2253 = vmatpush1.bf16.msra.mxu0 %v2149
    %2254 = vmatprep.subr.bf16.mxu0 %v2154
    %2255 = vmatpush1.bf16.msra.mxu0 %v2153
    %2256 = vmatprep.subr.bf16.mxu0 %v2158
    %2257 = vmatpush1.bf16.msra.mxu0 %v2157
    %2258 = vmatprep.subr.bf16.mxu0 %v2162
    %2259 = vmatpush1.bf16.msra.mxu0 %v2161
    %2260 = vmatprep.subr.bf16.mxu0 %v2166
    %2261 = vmatpush1.bf16.msra.mxu0 %v2165
    %2262 = vmatprep.subr.bf16.mxu0 %v2170
    %2263 = vmatpush1.bf16.msra.mxu0 %v2169
    %2264 = vmatprep.subr.bf16.mxu0 %v2174
    %2265 = vmatpush1.bf16.msra.mxu0 %v2173
    %2266 = vmatprep.subr.bf16.mxu0 %v2178
    %2267 = vmatpush1.bf16.msra.mxu0 %v2177
    %2268 = vmatprep.subr.bf16.mxu0 0
    %2269 = vmatpush1.bf16.msra.mxu0 0
    %2270 = vmatprep.subr.bf16.mxu0 0
    %2271 = vmatpush1.bf16.msra.mxu0 0
    %2272 = vmatprep.subr.bf16.mxu0 0
    %2273 = vmatpush1.bf16.msra.mxu0 0
    %2274 = vmatprep.subr.bf16.mxu0 0
    %2275 = vmatpush1.bf16.msra.mxu0 0
    %2276 = vmatprep.subr.bf16.mxu0 0
    %2277 = vmatpush1.bf16.msra.mxu0 0
    %2278 = vmatprep.subr.bf16.mxu0 0
    %2279 = vmatpush1.bf16.msra.mxu0 0
    %2280 = vmatprep.subr.bf16.mxu0 0
    %2281 = vmatpush1.bf16.msra.mxu0 0
    %2282 = vmatprep.subr.bf16.mxu0 0
    %2283 = vmatpush1.bf16.msra.mxu0 0
    %2284 = vmatprep.mubr.bf16.mxu0 0
    %2285 = vmatmul.mubr.bf16.gmra.mrb[0].mxu0 %v1996
    %v2286 = vpop.f32.mrb[0].mxu0
    %v2287 = vadd.f32 %v2042, %v2286
    %v2288 = vpop.f32.mrb[0].mxu0
    %v2289 = vadd.f32 %v2046, %v2288
    %v2290 = vpop.f32.mrb[0].mxu0
    %v2291 = vpop.f32.mrb[0].mxu0
    %2292 = vdwg.mxu0
    %v2293 = vxor.u32 %v2246, 2147483648
    %v2294 = vmul.f32 %v2293, 1.442695
    %v2295 = vpow.pop %v2294
    %v2296 = vadd.f32 %v2295, 1.0
    %v2297 = vrcp.pop %v2296
    %v2298 = vmul.f32 1.0, %v2297
    %v2299 = vxor.u32 %v2248, 2147483648
    %v2300 = vmul.f32 %v2299, 1.442695
    %v2301 = vpow.pop %v2300
    %v2302 = vadd.f32 %v2301, 1.0
    %v2303 = vrcp.pop %v2302
    %v2304 = vmul.f32 1.0, %v2303
    %v2305 = vtanh.pop %v2287
    %v2306 = vxor.u32 %v2289, 2147483648
    %v2307 = vmul.f32 %v2306, 1.442695
    %v2308 = vpow.pop %v2307
    %v2309 = vadd.f32 %v2308, 1.0
    %v2310 = vrcp.pop %v2309
    %v2311 = vmul.f32 1.0, %v2310
    %v2312 = vmul.f32 %v2304, 0.0
    %v2313 = vmul.f32 %v2298, %v2305
    %v2314 = vadd.f32 %v2312, %v2313
    %v2315 = vtanh.pop %v2314
    %v2316 = vmul.f32 %v2311, %v2315
    %s2317 = scalar_lea.vmem [#allocation2], 1
    %v2318 = vld [vmem:[%s2317] ss:$8 sm:$0xf]
    %s2319 = scalar_lea.vmem [#allocation2], 33
    %v2320 = vld [vmem:[%s2319] ss:$8 sm:$0xf]
    %v2321 = vld [vmem:[#allocation3] sm:$0xff]
    %v2322 = vld [vmem:[#allocation3 + $0x8] sm:$0xff]
    %v2323 = vld [vmem:[#allocation3 + $0x10] sm:$0xff]
    %v2324 = vld [vmem:[#allocation3 + $0x18] sm:$0xff]
    %v2325 = vld [vmem:[#allocation3 + $0x20] sm:$0xff]
    %v2326 = vld [vmem:[#allocation3 + $0x28] sm:$0xff]
    %v2327 = vld [vmem:[#allocation3 + $0x30] sm:$0xff]
    %v2328 = vld [vmem:[#allocation3 + $0x38] sm:$0xff]
    %v2329 = vld [vmem:[#allocation3 + $0x40] sm:$0xff]
    %v2330 = vld [vmem:[#allocation3 + $0x48] sm:$0xff]
    %v2331 = vld [vmem:[#allocation3 + $0x50] sm:$0xff]
    %v2332 = vld [vmem:[#allocation3 + $0x58] sm:$0xff]
    %v2333 = vld [vmem:[#allocation3 + $0x60] sm:$0xff]
    %v2334 = vld [vmem:[#allocation3 + $0x68] sm:$0xff]
    %v2335 = vld [vmem:[#allocation3 + $0x70] sm:$0xff]
    %v2336 = vld [vmem:[#allocation3 + $0x78] sm:$0xff]
    %v2337 = vld [vmem:[#allocation3 + $0x80] sm:$0xff]
    %v2338 = vld [vmem:[#allocation3 + $0x88] sm:$0xff]
    %v2339 = vld [vmem:[#allocation3 + $0x90] sm:$0xff]
    %v2340 = vld [vmem:[#allocation3 + $0x98] sm:$0xff]
    %v2341 = vld [vmem:[#allocation3 + $0xa0] sm:$0xff]
    %v2342 = vld [vmem:[#allocation3 + $0xa8] sm:$0xff]
    %v2343 = vld [vmem:[#allocation3 + $0xb0] sm:$0xff]
    %v2344 = vld [vmem:[#allocation3 + $0xb8] sm:$0xff]
    %v2345 = vld [vmem:[#allocation3 + $0xc0] sm:$0xff]
    %v2346 = vld [vmem:[#allocation3 + $0xc8] sm:$0xff]
    %v2347 = vld [vmem:[#allocation3 + $0xd0] sm:$0xff]
    %v2348 = vld [vmem:[#allocation3 + $0xd8] sm:$0xff]
    %v2349 = vld [vmem:[#allocation3 + $0xe0] sm:$0xff]
    %v2350 = vld [vmem:[#allocation3 + $0xe8] sm:$0xff]
    %v2351 = vld [vmem:[#allocation3 + $0xf0] sm:$0xff]
    %v2352 = vld [vmem:[#allocation3 + $0xf8] sm:$0xff]
    %v2385 = vunpack.c.l.b16 %v2321
    %v2386 = vunpack.c.h.b16 %v2321
    %v2387 = vunpack.c.l.b16 %v2322
    %v2388 = vunpack.c.h.b16 %v2322
    %v2389 = vunpack.c.l.b16 %v2323
    %v2390 = vunpack.c.h.b16 %v2323
    %v2391 = vunpack.c.l.b16 %v2324
    %v2392 = vunpack.c.h.b16 %v2324
    %v2393 = vunpack.c.l.b16 %v2325
    %v2394 = vunpack.c.h.b16 %v2325
    %v2395 = vunpack.c.l.b16 %v2326
    %v2396 = vunpack.c.h.b16 %v2326
    %v2397 = vunpack.c.l.b16 %v2327
    %v2398 = vunpack.c.h.b16 %v2327
    %v2399 = vunpack.c.l.b16 %v2328
    %v2400 = vunpack.c.h.b16 %v2328
    %v2401 = vunpack.c.l.b16 %v2329
    %v2402 = vunpack.c.h.b16 %v2329
    %v2403 = vunpack.c.l.b16 %v2330
    %v2404 = vunpack.c.h.b16 %v2330
    %v2405 = vunpack.c.l.b16 %v2331
    %v2406 = vunpack.c.h.b16 %v2331
    %v2407 = vunpack.c.l.b16 %v2332
    %v2408 = vunpack.c.h.b16 %v2332
    %v2409 = vunpack.c.l.b16 %v2333
    %v2410 = vunpack.c.h.b16 %v2333
    %v2411 = vunpack.c.l.b16 %v2334
    %v2412 = vunpack.c.h.b16 %v2334
    %v2413 = vunpack.c.l.b16 %v2335
    %v2414 = vunpack.c.h.b16 %v2335
    %v2415 = vunpack.c.l.b16 %v2336
    %v2416 = vunpack.c.h.b16 %v2336
    %v2417 = vunpack.c.l.b16 %v2337
    %v2418 = vunpack.c.h.b16 %v2337
    %v2419 = vunpack.c.l.b16 %v2338
    %v2420 = vunpack.c.h.b16 %v2338
    %v2421 = vunpack.c.l.b16 %v2339
    %v2422 = vunpack.c.h.b16 %v2339
    %v2423 = vunpack.c.l.b16 %v2340
    %v2424 = vunpack.c.h.b16 %v2340
    %v2425 = vunpack.c.l.b16 %v2341
    %v2426 = vunpack.c.h.b16 %v2341
    %v2427 = vunpack.c.l.b16 %v2342
    %v2428 = vunpack.c.h.b16 %v2342
    %v2429 = vunpack.c.l.b16 %v2343
    %v2430 = vunpack.c.h.b16 %v2343
    %v2431 = vunpack.c.l.b16 %v2344
    %v2432 = vunpack.c.h.b16 %v2344
    %v2433 = vunpack.c.l.b16 %v2345
    %v2434 = vunpack.c.h.b16 %v2345
    %v2435 = vunpack.c.l.b16 %v2346
    %v2436 = vunpack.c.h.b16 %v2346
    %v2437 = vunpack.c.l.b16 %v2347
    %v2438 = vunpack.c.h.b16 %v2347
    %v2439 = vunpack.c.l.b16 %v2348
    %v2440 = vunpack.c.h.b16 %v2348
    %v2441 = vunpack.c.l.b16 %v2349
    %v2442 = vunpack.c.h.b16 %v2349
    %v2443 = vunpack.c.l.b16 %v2350
    %v2444 = vunpack.c.h.b16 %v2350
    %v2445 = vunpack.c.l.b16 %v2351
    %v2446 = vunpack.c.h.b16 %v2351
    %v2447 = vunpack.c.l.b16 %v2352
    %v2448 = vunpack.c.h.b16 %v2352
    %v2449 = vpack.c.b16 %v2389, %v2385
    %v2450 = vpack.c.b16 %v2390, %v2386
    %v2451 = vpack.c.b16 %v2391, %v2387
    %v2452 = vpack.c.b16 %v2392, %v2388
    %v2453 = vpack.c.b16 %v2397, %v2393
    %v2454 = vpack.c.b16 %v2398, %v2394
    %v2455 = vpack.c.b16 %v2399, %v2395
    %v2456 = vpack.c.b16 %v2400, %v2396
    %v2457 = vpack.c.b16 %v2405, %v2401
    %v2458 = vpack.c.b16 %v2406, %v2402
    %v2459 = vpack.c.b16 %v2407, %v2403
    %v2460 = vpack.c.b16 %v2408, %v2404
    %v2461 = vpack.c.b16 %v2413, %v2409
    %v2462 = vpack.c.b16 %v2414, %v2410
    %v2463 = vpack.c.b16 %v2415, %v2411
    %v2464 = vpack.c.b16 %v2416, %v2412
    %v2465 = vpack.c.b16 %v2421, %v2417
    %v2466 = vpack.c.b16 %v2422, %v2418
    %v2467 = vpack.c.b16 %v2423, %v2419
    %v2468 = vpack.c.b16 %v2424, %v2420
    %v2469 = vpack.c.b16 %v2429, %v2425
    %v2470 = vpack.c.b16 %v2430, %v2426
    %v2471 = vpack.c.b16 %v2431, %v2427
    %v2472 = vpack.c.b16 %v2432, %v2428
    %v2473 = vpack.c.b16 %v2437, %v2433
    %v2474 = vpack.c.b16 %v2438, %v2434
    %v2475 = vpack.c.b16 %v2439, %v2435
    %v2476 = vpack.c.b16 %v2440, %v2436
    %v2477 = vpack.c.b16 %v2445, %v2441
    %v2478 = vpack.c.b16 %v2446, %v2442
    %v2479 = vpack.c.b16 %v2447, %v2443
    %v2480 = vpack.c.b16 %v2448, %v2444
    %2513 = vmatprep.subr.bf16.mxu0 %v2450
    %2514 = vmatpush1.bf16.msra.mxu0 %v2449
    %2515 = vmatprep.subr.bf16.mxu0 %v2454
    %2516 = vmatpush1.bf16.msra.mxu0 %v2453
    %2517 = vmatprep.subr.bf16.mxu0 %v2458
    %2518 = vmatpush1.bf16.msra.mxu0 %v2457
    %2519 = vmatprep.subr.bf16.mxu0 %v2462
    %2520 = vmatpush1.bf16.msra.mxu0 %v2461
    %2521 = vmatprep.subr.bf16.mxu0 %v2466
    %2522 = vmatpush1.bf16.msra.mxu0 %v2465
    %2523 = vmatprep.subr.bf16.mxu0 %v2470
    %2524 = vmatpush1.bf16.msra.mxu0 %v2469
    %2525 = vmatprep.subr.bf16.mxu0 %v2474
    %2526 = vmatpush1.bf16.msra.mxu0 %v2473
    %2527 = vmatprep.subr.bf16.mxu0 %v2478
    %2528 = vmatpush1.bf16.msra.mxu0 %v2477
    %2529 = vmatprep.subr.bf16.mxu0 0
    %2530 = vmatpush1.bf16.msra.mxu0 0
    %2531 = vmatprep.subr.bf16.mxu0 0
    %2532 = vmatpush1.bf16.msra.mxu0 0
    %2533 = vmatprep.subr.bf16.mxu0 0
    %2534 = vmatpush1.bf16.msra.mxu0 0
    %2535 = vmatprep.subr.bf16.mxu0 0
    %2536 = vmatpush1.bf16.msra.mxu0 0
    %2537 = vmatprep.subr.bf16.mxu0 0
    %2538 = vmatpush1.bf16.msra.mxu0 0
    %2539 = vmatprep.subr.bf16.mxu0 0
    %2540 = vmatpush1.bf16.msra.mxu0 0
    %2541 = vmatprep.subr.bf16.mxu0 0
    %2542 = vmatpush1.bf16.msra.mxu0 0
    %2543 = vmatprep.subr.bf16.mxu0 0
    %2544 = vmatpush1.bf16.msra.mxu0 0
    %2545 = vmatprep.mubr.bf16.mxu0 0
    %2546 = vmatmul.mubr.bf16.gmra.mrb[0].mxu0 %v1728
    %v2547 = vpop.f32.mrb[0].mxu0
    %v2548 = vadd.f32 0.0, %v2547
    %v2549 = vpop.f32.mrb[0].mxu0
    %v2550 = vadd.f32 0.0, %v2549
    %v2551 = vpop.f32.mrb[0].mxu0
    %v2552 = vpop.f32.mrb[0].mxu0
    %2553 = vdwg.mxu0
    %2554 = vmatprep.subr.bf16.mxu0 %v2452
    %2555 = vmatpush1.bf16.msra.mxu0 %v2451
    %2556 = vmatprep.subr.bf16.mxu0 %v2456
    %2557 = vmatpush1.bf16.msra.mxu0 %v2455
    %2558 = vmatprep.subr.bf16.mxu0 %v2460
    %2559 = vmatpush1.bf16.msra.mxu0 %v2459
    %2560 = vmatprep.subr.bf16.mxu0 %v2464
    %2561 = vmatpush1.bf16.msra.mxu0 %v2463
    %2562 = vmatprep.subr.bf16.mxu0 %v2468
    %2563 = vmatpush1.bf16.msra.mxu0 %v2467
    %2564 = vmatprep.subr.bf16.mxu0 %v2472
    %2565 = vmatpush1.bf16.msra.mxu0 %v2471
    %2566 = vmatprep.subr.bf16.mxu0 %v2476
    %2567 = vmatpush1.bf16.msra.mxu0 %v2475
    %2568 = vmatprep.subr.bf16.mxu0 %v2480
    %2569 = vmatpush1.bf16.msra.mxu0 %v2479
    %2570 = vmatprep.subr.bf16.mxu0 0
    %2571 = vmatpush1.bf16.msra.mxu0 0
    %2572 = vmatprep.subr.bf16.mxu0 0
    %2573 = vmatpush1.bf16.msra.mxu0 0
    %2574 = vmatprep.subr.bf16.mxu0 0
    %2575 = vmatpush1.bf16.msra.mxu0 0
    %2576 = vmatprep.subr.bf16.mxu0 0
    %2577 = vmatpush1.bf16.msra.mxu0 0
    %2578 = vmatprep.subr.bf16.mxu0 0
    %2579 = vmatpush1.bf16.msra.mxu0 0
    %2580 = vmatprep.subr.bf16.mxu0 0
    %2581 = vmatpush1.bf16.msra.mxu0 0
    %2582 = vmatprep.subr.bf16.mxu0 0
    %2583 = vmatpush1.bf16.msra.mxu0 0
    %2584 = vmatprep.subr.bf16.mxu0 0
    %2585 = vmatpush1.bf16.msra.mxu0 0
    %2586 = vmatprep.mubr.bf16.mxu0 0
    %2587 = vmatmul.mubr.bf16.gmra.mrb[0].mxu0 %v1728
    %v2588 = vpop.f32.mrb[0].mxu0
    %v2589 = vadd.f32 0.0, %v2588
    %v2590 = vpop.f32.mrb[0].mxu0
    %v2591 = vadd.f32 0.0, %v2590
    %v2592 = vpop.f32.mrb[0].mxu0
    %v2593 = vpop.f32.mrb[0].mxu0
    %2594 = vdwg.mxu0
    %v2599 = vcombine.low %v2548, %v2550
    %v2600 = vcombine.low %v2589, %v2591
    %v2602 = vunpack.c.l.s4 1966171168
    %v2603 = vunpack.c.0.s8 %v2602
    %v2604 = vlaneseq
    %v2605 = vshrl.u32 %v2604, 7
    %v2606 = vsub.s32 %v2603, %v2605
    %v2607 = vrot.slane %v2599, %v2606
    %v2609 = vunpack.c.l.s4 1966171168
    %v2610 = vunpack.c.0.s8 %v2609
    %v2611 = vlaneseq
    %v2612 = vshrl.u32 %v2611, 7
    %v2613 = vsub.s32 %v2610, %v2612
    %v2614 = vrot.slane %v2600, %v2613
    %v2615 = vcombine.low %v2607, %v2614
    %v2616 = vcombine.high %v2607, %v2614
    %v2618 = vunpack.c.l.s4 1966171168
    %v2619 = vunpack.c.0.s8 %v2618
    %v2620 = vlaneseq
    %v2621 = vshrl.u32 %v2620, 7
    %v2622 = vsub.s32 %v2619, %v2621
    %v2623 = vrot.slane %v2615, %v2622
    %v2625 = vunpack.c.l.s4 1966171168
    %v2626 = vunpack.c.0.s8 %v2625
    %v2627 = vlaneseq
    %v2628 = vshrl.u32 %v2627, 7
    %v2629 = vsub.s32 %v2626, %v2628
    %v2630 = vrot.slane %v2616, %v2629
    %v2633 = vadd.f32 %v2318, %v2623
    %v2634 = vadd.f32 %v2320, %v2630
    %v2635 = vxor.u32 %v2633, 2147483648
    %v2636 = vxor.u32 %v2634, 2147483648
    %v2637 = vmul.f32 %v2635, 1.442695
    %v2638 = vpow.pop %v2637
    %v2639 = vmul.f32 %v2636, 1.442695
    %v2640 = vpow.pop %v2639
    %v2641 = vadd.f32 %v2638, 1.0
    %v2642 = vadd.f32 %v2640, 1.0
    %v2643 = vrcp.pop %v2641
    %v2644 = vmul.f32 1.0, %v2643
    %v2645 = vrcp.pop %v2642
    %v2646 = vmul.f32 1.0, %v2645
    %v2649 = vrot.slane %v2633, 1
    %v2650 = vrot.slane %v2634, 1
    %v2653 = vxor.u32 %v2649, 2147483648
    %v2654 = vxor.u32 %v2650, 2147483648
    %v2655 = vmul.f32 %v2653, 1.442695
    %v2656 = vpow.pop %v2655
    %v2657 = vmul.f32 %v2654, 1.442695
    %v2658 = vpow.pop %v2657
    %v2659 = vadd.f32 %v2656, 1.0
    %v2660 = vadd.f32 %v2658, 1.0
    %v2661 = vrcp.pop %v2659
    %v2662 = vmul.f32 1.0, %v2661
    %v2663 = vrcp.pop %v2660
    %v2664 = vmul.f32 1.0, %v2663
    %v2665 = vrot.slane %v2633, 2
    %v2666 = vrot.slane %v2634, 2
    %v2669 = vtanh.pop %v2665
    %v2670 = vtanh.pop %v2666
    %v2671 = vrot.slane %v2633, 3
    %v2672 = vrot.slane %v2634, 3
    %v2675 = vxor.u32 %v2671, 2147483648
    %v2676 = vxor.u32 %v2672, 2147483648
    %v2677 = vmul.f32 %v2675, 1.442695
    %v2678 = vpow.pop %v2677
    %v2679 = vmul.f32 %v2676, 1.442695
    %v2680 = vpow.pop %v2679
    %v2681 = vadd.f32 %v2678, 1.0
    %v2682 = vadd.f32 %v2680, 1.0
    %v2683 = vrcp.pop %v2681
    %v2684 = vmul.f32 1.0, %v2683
    %v2685 = vrcp.pop %v2682
    %v2686 = vmul.f32 1.0, %v2685
    %v2687 = vmul.f32 %v2662, %v1659
    %v2688 = vmul.f32 %v2664, %v1660
    %v2689 = vmul.f32 %v2644, %v2669
    %v2690 = vmul.f32 %v2646, %v2670
    %v2691 = vadd.f32 %v2687, %v2689
    %v2692 = vadd.f32 %v2688, %v2690
    %v2693 = vtanh.pop %v2691
    %v2694 = vtanh.pop %v2692
    %v2695 = vmul.f32 %v2684, %v2693
    %v2696 = vmul.f32 %v2686, %v2694
    %v2697 = vpack.c.bf16 %v2695, %v2695
    %v2698 = vpack.c.bf16 %v2696, %v2696
    %v2699 = vld [vmem:[#allocation7] sm:$0xff]
    %v2700 = vld [vmem:[#allocation7 + $0x8] sm:$0xff]
    %v2701 = vld [vmem:[#allocation7 + $0x10] sm:$0xff]
    %v2702 = vld [vmem:[#allocation7 + $0x18] sm:$0xff]
    %v2703 = vld [vmem:[#allocation7 + $0x20] sm:$0xff]
    %v2704 = vld [vmem:[#allocation7 + $0x28] sm:$0xff]
    %v2705 = vld [vmem:[#allocation7 + $0x30] sm:$0xff]
    %v2706 = vld [vmem:[#allocation7 + $0x38] sm:$0xff]
    %v2707 = vld [vmem:[#allocation7 + $0x40] sm:$0xff]
    %v2708 = vld [vmem:[#allocation7 + $0x48] sm:$0xff]
    %v2709 = vld [vmem:[#allocation7 + $0x50] sm:$0xff]
    %v2710 = vld [vmem:[#allocation7 + $0x58] sm:$0xff]
    %v2711 = vld [vmem:[#allocation7 + $0x60] sm:$0xff]
    %v2712 = vld [vmem:[#allocation7 + $0x68] sm:$0xff]
    %v2713 = vld [vmem:[#allocation7 + $0x70] sm:$0xff]
    %v2714 = vld [vmem:[#allocation7 + $0x78] sm:$0xff]
    %v2715 = vld [vmem:[#allocation7 + $0x80] sm:$0xff]
    %v2716 = vld [vmem:[#allocation7 + $0x88] sm:$0xff]
    %v2717 = vld [vmem:[#allocation7 + $0x90] sm:$0xff]
    %v2718 = vld [vmem:[#allocation7 + $0x98] sm:$0xff]
    %v2719 = vld [vmem:[#allocation7 + $0xa0] sm:$0xff]
    %v2720 = vld [vmem:[#allocation7 + $0xa8] sm:$0xff]
    %v2721 = vld [vmem:[#allocation7 + $0xb0] sm:$0xff]
    %v2722 = vld [vmem:[#allocation7 + $0xb8] sm:$0xff]
    %v2723 = vld [vmem:[#allocation7 + $0xc0] sm:$0xff]
    %v2724 = vld [vmem:[#allocation7 + $0xc8] sm:$0xff]
    %v2725 = vld [vmem:[#allocation7 + $0xd0] sm:$0xff]
    %v2726 = vld [vmem:[#allocation7 + $0xd8] sm:$0xff]
    %v2727 = vld [vmem:[#allocation7 + $0xe0] sm:$0xff]
    %v2728 = vld [vmem:[#allocation7 + $0xe8] sm:$0xff]
    %v2729 = vld [vmem:[#allocation7 + $0xf0] sm:$0xff]
    %v2730 = vld [vmem:[#allocation7 + $0xf8] sm:$0xff]
    %v2763 = vunpack.c.l.b16 %v2699
    %v2764 = vunpack.c.h.b16 %v2699
    %v2765 = vunpack.c.l.b16 %v2700
    %v2766 = vunpack.c.h.b16 %v2700
    %v2767 = vunpack.c.l.b16 %v2701
    %v2768 = vunpack.c.h.b16 %v2701
    %v2769 = vunpack.c.l.b16 %v2702
    %v2770 = vunpack.c.h.b16 %v2702
    %v2771 = vunpack.c.l.b16 %v2703
    %v2772 = vunpack.c.h.b16 %v2703
    %v2773 = vunpack.c.l.b16 %v2704
    %v2774 = vunpack.c.h.b16 %v2704
    %v2775 = vunpack.c.l.b16 %v2705
    %v2776 = vunpack.c.h.b16 %v2705
    %v2777 = vunpack.c.l.b16 %v2706
    %v2778 = vunpack.c.h.b16 %v2706
    %v2779 = vunpack.c.l.b16 %v2707
    %v2780 = vunpack.c.h.b16 %v2707
    %v2781 = vunpack.c.l.b16 %v2708
    %v2782 = vunpack.c.h.b16 %v2708
    %v2783 = vunpack.c.l.b16 %v2709
    %v2784 = vunpack.c.h.b16 %v2709
    %v2785 = vunpack.c.l.b16 %v2710
    %v2786 = vunpack.c.h.b16 %v2710
    %v2787 = vunpack.c.l.b16 %v2711
    %v2788 = vunpack.c.h.b16 %v2711
    %v2789 = vunpack.c.l.b16 %v2712
    %v2790 = vunpack.c.h.b16 %v2712
    %v2791 = vunpack.c.l.b16 %v2713
    %v2792 = vunpack.c.h.b16 %v2713
    %v2793 = vunpack.c.l.b16 %v2714
    %v2794 = vunpack.c.h.b16 %v2714
    %v2795 = vunpack.c.l.b16 %v2715
    %v2796 = vunpack.c.h.b16 %v2715
    %v2797 = vunpack.c.l.b16 %v2716
    %v2798 = vunpack.c.h.b16 %v2716
    %v2799 = vunpack.c.l.b16 %v2717
    %v2800 = vunpack.c.h.b16 %v2717
    %v2801 = vunpack.c.l.b16 %v2718
    %v2802 = vunpack.c.h.b16 %v2718
    %v2803 = vunpack.c.l.b16 %v2719
    %v2804 = vunpack.c.h.b16 %v2719
    %v2805 = vunpack.c.l.b16 %v2720
    %v2806 = vunpack.c.h.b16 %v2720
    %v2807 = vunpack.c.l.b16 %v2721
    %v2808 = vunpack.c.h.b16 %v2721
    %v2809 = vunpack.c.l.b16 %v2722
    %v2810 = vunpack.c.h.b16 %v2722
    %v2811 = vunpack.c.l.b16 %v2723
    %v2812 = vunpack.c.h.b16 %v2723
    %v2813 = vunpack.c.l.b16 %v2724
    %v2814 = vunpack.c.h.b16 %v2724
    %v2815 = vunpack.c.l.b16 %v2725
    %v2816 = vunpack.c.h.b16 %v2725
    %v2817 = vunpack.c.l.b16 %v2726
    %v2818 = vunpack.c.h.b16 %v2726
    %v2819 = vunpack.c.l.b16 %v2727
    %v2820 = vunpack.c.h.b16 %v2727
    %v2821 = vunpack.c.l.b16 %v2728
    %v2822 = vunpack.c.h.b16 %v2728
    %v2823 = vunpack.c.l.b16 %v2729
    %v2824 = vunpack.c.h.b16 %v2729
    %v2825 = vunpack.c.l.b16 %v2730
    %v2826 = vunpack.c.h.b16 %v2730
    %v2827 = vpack.c.b16 %v2767, %v2763
    %v2828 = vpack.c.b16 %v2768, %v2764
    %v2829 = vpack.c.b16 %v2769, %v2765
    %v2830 = vpack.c.b16 %v2770, %v2766
    %v2831 = vpack.c.b16 %v2775, %v2771
    %v2832 = vpack.c.b16 %v2776, %v2772
    %v2833 = vpack.c.b16 %v2777, %v2773
    %v2834 = vpack.c.b16 %v2778, %v2774
    %v2835 = vpack.c.b16 %v2783, %v2779
    %v2836 = vpack.c.b16 %v2784, %v2780
    %v2837 = vpack.c.b16 %v2785, %v2781
    %v2838 = vpack.c.b16 %v2786, %v2782
    %v2839 = vpack.c.b16 %v2791, %v2787
    %v2840 = vpack.c.b16 %v2792, %v2788
    %v2841 = vpack.c.b16 %v2793, %v2789
    %v2842 = vpack.c.b16 %v2794, %v2790
    %v2843 = vpack.c.b16 %v2799, %v2795
    %v2844 = vpack.c.b16 %v2800, %v2796
    %v2845 = vpack.c.b16 %v2801, %v2797
    %v2846 = vpack.c.b16 %v2802, %v2798
    %v2847 = vpack.c.b16 %v2807, %v2803
    %v2848 = vpack.c.b16 %v2808, %v2804
    %v2849 = vpack.c.b16 %v2809, %v2805
    %v2850 = vpack.c.b16 %v2810, %v2806
    %v2851 = vpack.c.b16 %v2815, %v2811
    %v2852 = vpack.c.b16 %v2816, %v2812
    %v2853 = vpack.c.b16 %v2817, %v2813
    %v2854 = vpack.c.b16 %v2818, %v2814
    %v2855 = vpack.c.b16 %v2823, %v2819
    %v2856 = vpack.c.b16 %v2824, %v2820
    %v2857 = vpack.c.b16 %v2825, %v2821
    %v2858 = vpack.c.b16 %v2826, %v2822
    %2891 = vmatprep.subr.bf16.mxu0 %v2828
    %2892 = vmatpush1.bf16.msra.mxu0 %v2827
    %2893 = vmatprep.subr.bf16.mxu0 %v2832
    %2894 = vmatpush1.bf16.msra.mxu0 %v2831
    %2895 = vmatprep.subr.bf16.mxu0 %v2836
    %2896 = vmatpush1.bf16.msra.mxu0 %v2835
    %2897 = vmatprep.subr.bf16.mxu0 %v2840
    %2898 = vmatpush1.bf16.msra.mxu0 %v2839
    %2899 = vmatprep.subr.bf16.mxu0 %v2844
    %2900 = vmatpush1.bf16.msra.mxu0 %v2843
    %2901 = vmatprep.subr.bf16.mxu0 %v2848
    %2902 = vmatpush1.bf16.msra.mxu0 %v2847
    %2903 = vmatprep.subr.bf16.mxu0 %v2852
    %2904 = vmatpush1.bf16.msra.mxu0 %v2851
    %2905 = vmatprep.subr.bf16.mxu0 %v2856
    %2906 = vmatpush1.bf16.msra.mxu0 %v2855
    %2907 = vmatprep.subr.bf16.mxu0 0
    %2908 = vmatpush1.bf16.msra.mxu0 0
    %2909 = vmatprep.subr.bf16.mxu0 0
    %2910 = vmatpush1.bf16.msra.mxu0 0
    %2911 = vmatprep.subr.bf16.mxu0 0
    %2912 = vmatpush1.bf16.msra.mxu0 0
    %2913 = vmatprep.subr.bf16.mxu0 0
    %2914 = vmatpush1.bf16.msra.mxu0 0
    %2915 = vmatprep.subr.bf16.mxu0 0
    %2916 = vmatpush1.bf16.msra.mxu0 0
    %2917 = vmatprep.subr.bf16.mxu0 0
    %2918 = vmatpush1.bf16.msra.mxu0 0
    %2919 = vmatprep.subr.bf16.mxu0 0
    %2920 = vmatpush1.bf16.msra.mxu0 0
    %2921 = vmatprep.subr.bf16.mxu0 0
    %2922 = vmatpush1.bf16.msra.mxu0 0
    %2923 = vmatprep.mubr.bf16.mxu0 0
    %2924 = vmatmul.mubr.bf16.gmra.mrb[0].mxu0 %v1996
    %v2925 = vpop.f32.mrb[0].mxu0
    %v2926 = vadd.f32 0.0, %v2925
    %v2927 = vpop.f32.mrb[0].mxu0
    %v2928 = vadd.f32 0.0, %v2927
    %v2929 = vpop.f32.mrb[0].mxu0
    %v2930 = vpop.f32.mrb[0].mxu0
    %2931 = vdwg.mxu0
    %2932 = vmatprep.subr.bf16.mxu0 %v2830
    %2933 = vmatpush1.bf16.msra.mxu0 %v2829
    %2934 = vmatprep.subr.bf16.mxu0 %v2834
    %2935 = vmatpush1.bf16.msra.mxu0 %v2833
    %2936 = vmatprep.subr.bf16.mxu0 %v2838
    %2937 = vmatpush1.bf16.msra.mxu0 %v2837
    %2938 = vmatprep.subr.bf16.mxu0 %v2842
    %2939 = vmatpush1.bf16.msra.mxu0 %v2841
    %2940 = vmatprep.subr.bf16.mxu0 %v2846
    %2941 = vmatpush1.bf16.msra.mxu0 %v2845
    %2942 = vmatprep.subr.bf16.mxu0 %v2850
    %2943 = vmatpush1.bf16.msra.mxu0 %v2849
    %2944 = vmatprep.subr.bf16.mxu0 %v2854
    %2945 = vmatpush1.bf16.msra.mxu0 %v2853
    %2946 = vmatprep.subr.bf16.mxu0 %v2858
    %2947 = vmatpush1.bf16.msra.mxu0 %v2857
    %2948 = vmatprep.subr.bf16.mxu0 0
    %2949 = vmatpush1.bf16.msra.mxu0 0
    %2950 = vmatprep.subr.bf16.mxu0 0
    %2951 = vmatpush1.bf16.msra.mxu0 0
    %2952 = vmatprep.subr.bf16.mxu0 0
    %2953 = vmatpush1.bf16.msra.mxu0 0
    %2954 = vmatprep.subr.bf16.mxu0 0
    %2955 = vmatpush1.bf16.msra.mxu0 0
    %2956 = vmatprep.subr.bf16.mxu0 0
    %2957 = vmatpush1.bf16.msra.mxu0 0
    %2958 = vmatprep.subr.bf16.mxu0 0
    %2959 = vmatpush1.bf16.msra.mxu0 0
    %2960 = vmatprep.subr.bf16.mxu0 0
    %2961 = vmatpush1.bf16.msra.mxu0 0
    %2962 = vmatprep.subr.bf16.mxu0 0
    %2963 = vmatpush1.bf16.msra.mxu0 0
    %2964 = vmatprep.mubr.bf16.mxu0 0
    %2965 = vmatmul.mubr.bf16.gmra.mrb[0].mxu0 %v1996
    %v2966 = vpop.f32.mrb[0].mxu0
    %v2967 = vadd.f32 0.0, %v2966
    %v2968 = vpop.f32.mrb[0].mxu0
    %v2969 = vadd.f32 0.0, %v2968
    %v2970 = vpop.f32.mrb[0].mxu0
    %v2971 = vpop.f32.mrb[0].mxu0
    %2972 = vdwg.mxu0
    %v2975 = vunpack.c.l.b16 %v2697
    %v2976 = vunpack.c.l.b16 %v2698
    %v2977 = vrot.slane %v2976, 7
    %v2978 = vsel %vm1726, %v2977, %v2975
    %v2979 = vpack.c.b16 %v2978, %v2978
    %2981 = vmatprep.subr.bf16.mxu0 %v1827
    %2982 = vmatpush1.bf16.msra.mxu0 %v1826
    %2983 = vmatprep.subr.bf16.mxu0 %v1831
    %2984 = vmatpush1.bf16.msra.mxu0 %v1830
    %2985 = vmatprep.subr.bf16.mxu0 %v1835
    %2986 = vmatpush1.bf16.msra.mxu0 %v1834
    %2987 = vmatprep.subr.bf16.mxu0 %v1839
    %2988 = vmatpush1.bf16.msra.mxu0 %v1838
    %2989 = vmatprep.subr.bf16.mxu0 %v1843
    %2990 = vmatpush1.bf16.msra.mxu0 %v1842
    %2991 = vmatprep.subr.bf16.mxu0 %v1847
    %2992 = vmatpush1.bf16.msra.mxu0 %v1846
    %2993 = vmatprep.subr.bf16.mxu0 %v1851
    %2994 = vmatpush1.bf16.msra.mxu0 %v1850
    %2995 = vmatprep.subr.bf16.mxu0 %v1855
    %2996 = vmatpush1.bf16.msra.mxu0 %v1854
    %2997 = vmatprep.subr.bf16.mxu0 0
    %2998 = vmatpush1.bf16.msra.mxu0 0
    %2999 = vmatprep.subr.bf16.mxu0 0
    %3000 = vmatpush1.bf16.msra.mxu0 0
    %3001 = vmatprep.subr.bf16.mxu0 0
    %3002 = vmatpush1.bf16.msra.mxu0 0
    %3003 = vmatprep.subr.bf16.mxu0 0
    %3004 = vmatpush1.bf16.msra.mxu0 0
    %3005 = vmatprep.subr.bf16.mxu0 0
    %3006 = vmatpush1.bf16.msra.mxu0 0
    %3007 = vmatprep.subr.bf16.mxu0 0
    %3008 = vmatpush1.bf16.msra.mxu0 0
    %3009 = vmatprep.subr.bf16.mxu0 0
    %3010 = vmatpush1.bf16.msra.mxu0 0
    %3011 = vmatprep.subr.bf16.mxu0 0
    %3012 = vmatpush1.bf16.msra.mxu0 0
    %3013 = vmatprep.mubr.bf16.mxu0 0
    %3014 = vmatmul.mubr.bf16.gmra.mrb[0].mxu0 %v2979
    %v3015 = vpop.f32.mrb[0].mxu0
    %v3016 = vadd.f32 %v2926, %v3015
    %v3017 = vpop.f32.mrb[0].mxu0
    %v3018 = vadd.f32 %v2928, %v3017
    %v3019 = vpop.f32.mrb[0].mxu0
    %v3020 = vpop.f32.mrb[0].mxu0
    %3021 = vdwg.mxu0
    %3022 = vmatprep.subr.bf16.mxu0 %v1829
    %3023 = vmatpush1.bf16.msra.mxu0 %v1828
    %3024 = vmatprep.subr.bf16.mxu0 %v1833
    %3025 = vmatpush1.bf16.msra.mxu0 %v1832
    %3026 = vmatprep.subr.bf16.mxu0 %v1837
    %3027 = vmatpush1.bf16.msra.mxu0 %v1836
    %3028 = vmatprep.subr.bf16.mxu0 %v1841
    %3029 = vmatpush1.bf16.msra.mxu0 %v1840
    %3030 = vmatprep.subr.bf16.mxu0 %v1845
    %3031 = vmatpush1.bf16.msra.mxu0 %v1844
    %3032 = vmatprep.subr.bf16.mxu0 %v1849
    %3033 = vmatpush1.bf16.msra.mxu0 %v1848
    %3034 = vmatprep.subr.bf16.mxu0 %v1853
    %3035 = vmatpush1.bf16.msra.mxu0 %v1852
    %3036 = vmatprep.subr.bf16.mxu0 %v1857
    %3037 = vmatpush1.bf16.msra.mxu0 %v1856
    %3038 = vmatprep.subr.bf16.mxu0 0
    %3039 = vmatpush1.bf16.msra.mxu0 0
    %3040 = vmatprep.subr.bf16.mxu0 0
    %3041 = vmatpush1.bf16.msra.mxu0 0
    %3042 = vmatprep.subr.bf16.mxu0 0
    %3043 = vmatpush1.bf16.msra.mxu0 0
    %3044 = vmatprep.subr.bf16.mxu0 0
    %3045 = vmatpush1.bf16.msra.mxu0 0
    %3046 = vmatprep.subr.bf16.mxu0 0
    %3047 = vmatpush1.bf16.msra.mxu0 0
    %3048 = vmatprep.subr.bf16.mxu0 0
    %3049 = vmatpush1.bf16.msra.mxu0 0
    %3050 = vmatprep.subr.bf16.mxu0 0
    %3051 = vmatpush1.bf16.msra.mxu0 0
    %3052 = vmatprep.subr.bf16.mxu0 0
    %3053 = vmatpush1.bf16.msra.mxu0 0
    %3054 = vmatprep.mubr.bf16.mxu0 0
    %3055 = vmatmul.mubr.bf16.gmra.mrb[0].mxu0 %v2979
    %v3056 = vpop.f32.mrb[0].mxu0
    %v3057 = vadd.f32 %v2967, %v3056
    %v3058 = vpop.f32.mrb[0].mxu0
    %v3059 = vadd.f32 %v2969, %v3058
    %v3060 = vpop.f32.mrb[0].mxu0
    %v3061 = vpop.f32.mrb[0].mxu0
    %3062 = vdwg.mxu0
    %v3063 = vadd.f32 %v3016, %v1704
    %v3064 = vadd.f32 %v3018, %v1708
    %v3065 = vadd.f32 %v3057, %v1712
    %v3066 = vadd.f32 %v3059, %v1716
    %v3067 = vxor.u32 %v3063, 2147483648
    %v3068 = vmul.f32 %v3067, 1.442695
    %v3069 = vpow.pop %v3068
    %v3070 = vadd.f32 %v3069, 1.0
    %v3071 = vrcp.pop %v3070
    %v3072 = vmul.f32 1.0, %v3071
    %v3073 = vxor.u32 %v3064, 2147483648
    %v3074 = vmul.f32 %v3073, 1.442695
    %v3075 = vpow.pop %v3074
    %v3076 = vadd.f32 %v3075, 1.0
    %v3077 = vrcp.pop %v3076
    %v3078 = vmul.f32 1.0, %v3077
    %v3079 = vtanh.pop %v3065
    %v3080 = vxor.u32 %v3066, 2147483648
    %v3081 = vmul.f32 %v3080, 1.442695
    %v3082 = vpow.pop %v3081
    %v3083 = vadd.f32 %v3082, 1.0
    %v3084 = vrcp.pop %v3083
    %v3085 = vmul.f32 1.0, %v3084
    %v3086 = vmul.f32 %v3078, %v1993
    %v3087 = vmul.f32 %v3072, %v3079
    %v3088 = vadd.f32 %v3086, %v3087
    %v3089 = vtanh.pop %v3088
    %v3090 = vmul.f32 %v3085, %v3089
    %v3091 = vpack.c.bf16 %v3090, %v3090
    %v3092 = vpack.c.bf16 %v2316, %v2316
    %v3093 = vld [vmem:[#allocation10] sm:$0xff]
    %v3094 = vld [vmem:[#allocation10 + $0x8] sm:$0xff]
    %v3095 = vld [vmem:[#allocation10 + $0x10] sm:$0xff]
    %v3096 = vld [vmem:[#allocation10 + $0x18] sm:$0xff]
    %v3097 = vld [vmem:[#allocation10 + $0x20] sm:$0xff]
    %v3098 = vld [vmem:[#allocation10 + $0x28] sm:$0xff]
    %v3099 = vld [vmem:[#allocation10 + $0x30] sm:$0xff]
    %v3100 = vld [vmem:[#allocation10 + $0x38] sm:$0xff]
    %v3101 = vld [vmem:[#allocation10 + $0x40] sm:$0xff]
    %v3102 = vld [vmem:[#allocation10 + $0x48] sm:$0xff]
    %v3103 = vld [vmem:[#allocation10 + $0x50] sm:$0xff]
    %v3104 = vld [vmem:[#allocation10 + $0x58] sm:$0xff]
    %v3105 = vld [vmem:[#allocation10 + $0x60] sm:$0xff]
    %v3106 = vld [vmem:[#allocation10 + $0x68] sm:$0xff]
    %v3107 = vld [vmem:[#allocation10 + $0x70] sm:$0xff]
    %v3108 = vld [vmem:[#allocation10 + $0x78] sm:$0xff]
    %v3109 = vld [vmem:[#allocation10 + $0x80] sm:$0xff]
    %v3110 = vld [vmem:[#allocation10 + $0x88] sm:$0xff]
    %v3111 = vld [vmem:[#allocation10 + $0x90] sm:$0xff]
    %v3112 = vld [vmem:[#allocation10 + $0x98] sm:$0xff]
    %v3113 = vld [vmem:[#allocation10 + $0xa0] sm:$0xff]
    %v3114 = vld [vmem:[#allocation10 + $0xa8] sm:$0xff]
    %v3115 = vld [vmem:[#allocation10 + $0xb0] sm:$0xff]
    %v3116 = vld [vmem:[#allocation10 + $0xb8] sm:$0xff]
    %v3117 = vld [vmem:[#allocation10 + $0xc0] sm:$0xff]
    %v3118 = vld [vmem:[#allocation10 + $0xc8] sm:$0xff]
    %v3119 = vld [vmem:[#allocation10 + $0xd0] sm:$0xff]
    %v3120 = vld [vmem:[#allocation10 + $0xd8] sm:$0xff]
    %v3121 = vld [vmem:[#allocation10 + $0xe0] sm:$0xff]
    %v3122 = vld [vmem:[#allocation10 + $0xe8] sm:$0xff]
    %v3123 = vld [vmem:[#allocation10 + $0xf0] sm:$0xff]
    %v3124 = vld [vmem:[#allocation10 + $0xf8] sm:$0xff]
    %v3157 = vunpack.c.l.b16 %v3093
    %v3158 = vunpack.c.h.b16 %v3093
    %v3159 = vunpack.c.l.b16 %v3094
    %v3160 = vunpack.c.h.b16 %v3094
    %v3161 = vunpack.c.l.b16 %v3095
    %v3162 = vunpack.c.h.b16 %v3095
    %v3163 = vunpack.c.l.b16 %v3096
    %v3164 = vunpack.c.h.b16 %v3096
    %v3165 = vunpack.c.l.b16 %v3097
    %v3166 = vunpack.c.h.b16 %v3097
    %v3167 = vunpack.c.l.b16 %v3098
    %v3168 = vunpack.c.h.b16 %v3098
    %v3169 = vunpack.c.l.b16 %v3099
    %v3170 = vunpack.c.h.b16 %v3099
    %v3171 = vunpack.c.l.b16 %v3100
    %v3172 = vunpack.c.h.b16 %v3100
    %v3173 = vunpack.c.l.b16 %v3101
    %v3174 = vunpack.c.h.b16 %v3101
    %v3175 = vunpack.c.l.b16 %v3102
    %v3176 = vunpack.c.h.b16 %v3102
    %v3177 = vunpack.c.l.b16 %v3103
    %v3178 = vunpack.c.h.b16 %v3103
    %v3179 = vunpack.c.l.b16 %v3104
    %v3180 = vunpack.c.h.b16 %v3104
    %v3181 = vunpack.c.l.b16 %v3105
    %v3182 = vunpack.c.h.b16 %v3105
    %v3183 = vunpack.c.l.b16 %v3106
    %v3184 = vunpack.c.h.b16 %v3106
    %v3185 = vunpack.c.l.b16 %v3107
    %v3186 = vunpack.c.h.b16 %v3107
    %v3187 = vunpack.c.l.b16 %v3108
    %v3188 = vunpack.c.h.b16 %v3108
    %v3189 = vunpack.c.l.b16 %v3109
    %v3190 = vunpack.c.h.b16 %v3109
    %v3191 = vunpack.c.l.b16 %v3110
    %v3192 = vunpack.c.h.b16 %v3110
    %v3193 = vunpack.c.l.b16 %v3111
    %v3194 = vunpack.c.h.b16 %v3111
    %v3195 = vunpack.c.l.b16 %v3112
    %v3196 = vunpack.c.h.b16 %v3112
    %v3197 = vunpack.c.l.b16 %v3113
    %v3198 = vunpack.c.h.b16 %v3113
    %v3199 = vunpack.c.l.b16 %v3114
    %v3200 = vunpack.c.h.b16 %v3114
    %v3201 = vunpack.c.l.b16 %v3115
    %v3202 = vunpack.c.h.b16 %v3115
    %v3203 = vunpack.c.l.b16 %v3116
    %v3204 = vunpack.c.h.b16 %v3116
    %v3205 = vunpack.c.l.b16 %v3117
    %v3206 = vunpack.c.h.b16 %v3117
    %v3207 = vunpack.c.l.b16 %v3118
    %v3208 = vunpack.c.h.b16 %v3118
    %v3209 = vunpack.c.l.b16 %v3119
    %v3210 = vunpack.c.h.b16 %v3119
    %v3211 = vunpack.c.l.b16 %v3120
    %v3212 = vunpack.c.h.b16 %v3120
    %v3213 = vunpack.c.l.b16 %v3121
    %v3214 = vunpack.c.h.b16 %v3121
    %v3215 = vunpack.c.l.b16 %v3122
    %v3216 = vunpack.c.h.b16 %v3122
    %v3217 = vunpack.c.l.b16 %v3123
    %v3218 = vunpack.c.h.b16 %v3123
    %v3219 = vunpack.c.l.b16 %v3124
    %v3220 = vunpack.c.h.b16 %v3124
    %v3221 = vpack.c.b16 %v3161, %v3157
    %v3222 = vpack.c.b16 %v3162, %v3158
    %v3223 = vpack.c.b16 %v3163, %v3159
    %v3224 = vpack.c.b16 %v3164, %v3160
    %v3225 = vpack.c.b16 %v3169, %v3165
    %v3226 = vpack.c.b16 %v3170, %v3166
    %v3227 = vpack.c.b16 %v3171, %v3167
    %v3228 = vpack.c.b16 %v3172, %v3168
    %v3229 = vpack.c.b16 %v3177, %v3173
    %v3230 = vpack.c.b16 %v3178, %v3174
    %v3231 = vpack.c.b16 %v3179, %v3175
    %v3232 = vpack.c.b16 %v3180, %v3176
    %v3233 = vpack.c.b16 %v3185, %v3181
    %v3234 = vpack.c.b16 %v3186, %v3182
    %v3235 = vpack.c.b16 %v3187, %v3183
    %v3236 = vpack.c.b16 %v3188, %v3184
    %v3237 = vpack.c.b16 %v3193, %v3189
    %v3238 = vpack.c.b16 %v3194, %v3190
    %v3239 = vpack.c.b16 %v3195, %v3191
    %v3240 = vpack.c.b16 %v3196, %v3192
    %v3241 = vpack.c.b16 %v3201, %v3197
    %v3242 = vpack.c.b16 %v3202, %v3198
    %v3243 = vpack.c.b16 %v3203, %v3199
    %v3244 = vpack.c.b16 %v3204, %v3200
    %v3245 = vpack.c.b16 %v3209, %v3205
    %v3246 = vpack.c.b16 %v3210, %v3206
    %v3247 = vpack.c.b16 %v3211, %v3207
    %v3248 = vpack.c.b16 %v3212, %v3208
    %v3249 = vpack.c.b16 %v3217, %v3213
    %v3250 = vpack.c.b16 %v3218, %v3214
    %v3251 = vpack.c.b16 %v3219, %v3215
    %v3252 = vpack.c.b16 %v3220, %v3216
    %3285 = vmatprep.subr.bf16.mxu0 %v3222
    %3286 = vmatpush1.bf16.msra.mxu0 %v3221
    %3287 = vmatprep.subr.bf16.mxu0 %v3226
    %3288 = vmatpush1.bf16.msra.mxu0 %v3225
    %3289 = vmatprep.subr.bf16.mxu0 %v3230
    %3290 = vmatpush1.bf16.msra.mxu0 %v3229
    %3291 = vmatprep.subr.bf16.mxu0 %v3234
    %3292 = vmatpush1.bf16.msra.mxu0 %v3233
    %3293 = vmatprep.subr.bf16.mxu0 %v3238
    %3294 = vmatpush1.bf16.msra.mxu0 %v3237
    %3295 = vmatprep.subr.bf16.mxu0 %v3242
    %3296 = vmatpush1.bf16.msra.mxu0 %v3241
    %3297 = vmatprep.subr.bf16.mxu0 %v3246
    %3298 = vmatpush1.bf16.msra.mxu0 %v3245
    %3299 = vmatprep.subr.bf16.mxu0 %v3250
    %3300 = vmatpush1.bf16.msra.mxu0 %v3249
    %3301 = vmatprep.subr.bf16.mxu0 0
    %3302 = vmatpush1.bf16.msra.mxu0 0
    %3303 = vmatprep.subr.bf16.mxu0 0
    %3304 = vmatpush1.bf16.msra.mxu0 0
    %3305 = vmatprep.subr.bf16.mxu0 0
    %3306 = vmatpush1.bf16.msra.mxu0 0
    %3307 = vmatprep.subr.bf16.mxu0 0
    %3308 = vmatpush1.bf16.msra.mxu0 0
    %3309 = vmatprep.subr.bf16.mxu0 0
    %3310 = vmatpush1.bf16.msra.mxu0 0
    %3311 = vmatprep.subr.bf16.mxu0 0
    %3312 = vmatpush1.bf16.msra.mxu0 0
    %3313 = vmatprep.subr.bf16.mxu0 0
    %3314 = vmatpush1.bf16.msra.mxu0 0
    %3315 = vmatprep.subr.bf16.mxu0 0
    %3316 = vmatpush1.bf16.msra.mxu0 0
    %3317 = vmatprep.mubr.bf16.mxu0 0
    %3318 = vmatmul.mubr.bf16.gmra.mrb[0].mxu0 %v3092
    %v3319 = vpop.f32.mrb[0].mxu0
    %v3320 = vadd.f32 0.0, %v3319
    %v3321 = vpop.f32.mrb[0].mxu0
    %v3322 = vadd.f32 0.0, %v3321
    %v3323 = vpop.f32.mrb[0].mxu0
    %v3324 = vpop.f32.mrb[0].mxu0
    %3325 = vdwg.mxu0
    %3326 = vmatprep.subr.bf16.mxu0 %v3224
    %3327 = vmatpush1.bf16.msra.mxu0 %v3223
    %3328 = vmatprep.subr.bf16.mxu0 %v3228
    %3329 = vmatpush1.bf16.msra.mxu0 %v3227
    %3330 = vmatprep.subr.bf16.mxu0 %v3232
    %3331 = vmatpush1.bf16.msra.mxu0 %v3231
    %3332 = vmatprep.subr.bf16.mxu0 %v3236
    %3333 = vmatpush1.bf16.msra.mxu0 %v3235
    %3334 = vmatprep.subr.bf16.mxu0 %v3240
    %3335 = vmatpush1.bf16.msra.mxu0 %v3239
    %3336 = vmatprep.subr.bf16.mxu0 %v3244
    %3337 = vmatpush1.bf16.msra.mxu0 %v3243
    %3338 = vmatprep.subr.bf16.mxu0 %v3248
    %3339 = vmatpush1.bf16.msra.mxu0 %v3247
    %3340 = vmatprep.subr.bf16.mxu0 %v3252
    %3341 = vmatpush1.bf16.msra.mxu0 %v3251
    %3342 = vmatprep.subr.bf16.mxu0 0
    %3343 = vmatpush1.bf16.msra.mxu0 0
    %3344 = vmatprep.subr.bf16.mxu0 0
    %3345 = vmatpush1.bf16.msra.mxu0 0
    %3346 = vmatprep.subr.bf16.mxu0 0
    %3347 = vmatpush1.bf16.msra.mxu0 0
    %3348 = vmatprep.subr.bf16.mxu0 0
    %3349 = vmatpush1.bf16.msra.mxu0 0
    %3350 = vmatprep.subr.bf16.mxu0 0
    %3351 = vmatpush1.bf16.msra.mxu0 0
    %3352 = vmatprep.subr.bf16.mxu0 0
    %3353 = vmatpush1.bf16.msra.mxu0 0
    %3354 = vmatprep.subr.bf16.mxu0 0
    %3355 = vmatpush1.bf16.msra.mxu0 0
    %3356 = vmatprep.subr.bf16.mxu0 0
    %3357 = vmatpush1.bf16.msra.mxu0 0
    %3358 = vmatprep.mubr.bf16.mxu0 0
    %3359 = vmatmul.mubr.bf16.gmra.mrb[0].mxu0 %v3092
    %v3360 = vpop.f32.mrb[0].mxu0
    %v3361 = vadd.f32 0.0, %v3360
    %v3362 = vpop.f32.mrb[0].mxu0
    %v3363 = vadd.f32 0.0, %v3362
    %v3364 = vpop.f32.mrb[0].mxu0
    %v3365 = vpop.f32.mrb[0].mxu0
    %3366 = vdwg.mxu0
    %3367 = vmatprep.subr.bf16.mxu0 %v2148
    %3368 = vmatpush1.bf16.msra.mxu0 %v2147
    %3369 = vmatprep.subr.bf16.mxu0 %v2152
    %3370 = vmatpush1.bf16.msra.mxu0 %v2151
    %3371 = vmatprep.subr.bf16.mxu0 %v2156
    %3372 = vmatpush1.bf16.msra.mxu0 %v2155
    %3373 = vmatprep.subr.bf16.mxu0 %v2160
    %3374 = vmatpush1.bf16.msra.mxu0 %v2159
    %3375 = vmatprep.subr.bf16.mxu0 %v2164
    %3376 = vmatpush1.bf16.msra.mxu0 %v2163
    %3377 = vmatprep.subr.bf16.mxu0 %v2168
    %3378 = vmatpush1.bf16.msra.mxu0 %v2167
    %3379 = vmatprep.subr.bf16.mxu0 %v2172
    %3380 = vmatpush1.bf16.msra.mxu0 %v2171
    %3381 = vmatprep.subr.bf16.mxu0 %v2176
    %3382 = vmatpush1.bf16.msra.mxu0 %v2175
    %3383 = vmatprep.subr.bf16.mxu0 0
    %3384 = vmatpush1.bf16.msra.mxu0 0
    %3385 = vmatprep.subr.bf16.mxu0 0
    %3386 = vmatpush1.bf16.msra.mxu0 0
    %3387 = vmatprep.subr.bf16.mxu0 0
    %3388 = vmatpush1.bf16.msra.mxu0 0
    %3389 = vmatprep.subr.bf16.mxu0 0
    %3390 = vmatpush1.bf16.msra.mxu0 0
    %3391 = vmatprep.subr.bf16.mxu0 0
    %3392 = vmatpush1.bf16.msra.mxu0 0
    %3393 = vmatprep.subr.bf16.mxu0 0
    %3394 = vmatpush1.bf16.msra.mxu0 0
    %3395 = vmatprep.subr.bf16.mxu0 0
    %3396 = vmatpush1.bf16.msra.mxu0 0
    %3397 = vmatprep.subr.bf16.mxu0 0
    %3398 = vmatpush1.bf16.msra.mxu0 0
    %3399 = vmatprep.mubr.bf16.mxu0 0
    %3400 = vmatmul.mubr.bf16.gmra.mrb[0].mxu0 %v3091
    %v3401 = vpop.f32.mrb[0].mxu0
    %v3402 = vadd.f32 %v3320, %v3401
    %v3403 = vpop.f32.mrb[0].mxu0
    %v3404 = vadd.f32 %v3322, %v3403
    %v3405 = vpop.f32.mrb[0].mxu0
    %v3406 = vpop.f32.mrb[0].mxu0
    %3407 = vdwg.mxu0
    %3408 = vmatprep.subr.bf16.mxu0 %v2150
    %3409 = vmatpush1.bf16.msra.mxu0 %v2149
    %3410 = vmatprep.subr.bf16.mxu0 %v2154
    %3411 = vmatpush1.bf16.msra.mxu0 %v2153
    %3412 = vmatprep.subr.bf16.mxu0 %v2158
    %3413 = vmatpush1.bf16.msra.mxu0 %v2157
    %3414 = vmatprep.subr.bf16.mxu0 %v2162
    %3415 = vmatpush1.bf16.msra.mxu0 %v2161
    %3416 = vmatprep.subr.bf16.mxu0 %v2166
    %3417 = vmatpush1.bf16.msra.mxu0 %v2165
    %3418 = vmatprep.subr.bf16.mxu0 %v2170
    %3419 = vmatpush1.bf16.msra.mxu0 %v2169
    %3420 = vmatprep.subr.bf16.mxu0 %v2174
    %3421 = vmatpush1.bf16.msra.mxu0 %v2173
    %3422 = vmatprep.subr.bf16.mxu0 %v2178
    %3423 = vmatpush1.bf16.msra.mxu0 %v2177
    %3424 = vmatprep.subr.bf16.mxu0 0
    %3425 = vmatpush1.bf16.msra.mxu0 0
    %3426 = vmatprep.subr.bf16.mxu0 0
    %3427 = vmatpush1.bf16.msra.mxu0 0
    %3428 = vmatprep.subr.bf16.mxu0 0
    %3429 = vmatpush1.bf16.msra.mxu0 0
    %3430 = vmatprep.subr.bf16.mxu0 0
    %3431 = vmatpush1.bf16.msra.mxu0 0
    %3432 = vmatprep.subr.bf16.mxu0 0
    %3433 = vmatpush1.bf16.msra.mxu0 0
    %3434 = vmatprep.subr.bf16.mxu0 0
    %3435 = vmatpush1.bf16.msra.mxu0 0
    %3436 = vmatprep.subr.bf16.mxu0 0
    %3437 = vmatpush1.bf16.msra.mxu0 0
    %3438 = vmatprep.subr.bf16.mxu0 0
    %3439 = vmatpush1.bf16.msra.mxu0 0
    %3440 = vmatprep.mubr.bf16.mxu0 0
    %3441 = vmatmul.mubr.bf16.gmra.mrb[0].mxu0 %v3091
    %v3442 = vpop.f32.mrb[0].mxu0
    %v3443 = vadd.f32 %v3361, %v3442
    %v3444 = vpop.f32.mrb[0].mxu0
    %v3445 = vadd.f32 %v3363, %v3444
    %v3446 = vpop.f32.mrb[0].mxu0
    %v3447 = vpop.f32.mrb[0].mxu0
    %3448 = vdwg.mxu0
    %v3449 = vadd.f32 %v3402, %v2034
    %v3450 = vadd.f32 %v3404, %v2038
    %v3451 = vadd.f32 %v3443, %v2042
    %v3452 = vadd.f32 %v3445, %v2046
    %v3453 = vxor.u32 %v3449, 2147483648
    %v3454 = vmul.f32 %v3453, 1.442695
    %v3455 = vpow.pop %v3454
    %v3456 = vadd.f32 %v3455, 1.0
    %v3457 = vrcp.pop %v3456
    %v3458 = vmul.f32 1.0, %v3457
    %v3459 = vxor.u32 %v3450, 2147483648
    %v3460 = vmul.f32 %v3459, 1.442695
    %v3461 = vpow.pop %v3460
    %v3462 = vadd.f32 %v3461, 1.0
    %v3463 = vrcp.pop %v3462
    %v3464 = vmul.f32 1.0, %v3463
    %v3465 = vtanh.pop %v3451
    %v3466 = vxor.u32 %v3452, 2147483648
    %v3467 = vmul.f32 %v3466, 1.442695
    %v3468 = vpow.pop %v3467
    %v3469 = vadd.f32 %v3468, 1.0
    %v3470 = vrcp.pop %v3469
    %v3471 = vmul.f32 1.0, %v3470
    %v3472 = vmul.f32 %v3464, %v2314
    %v3473 = vmul.f32 %v3458, %v3465
    %v3474 = vadd.f32 %v3472, %v3473
    %v3475 = vtanh.pop %v3474
    %v3476 = vmul.f32 %v3471, %v3475
    %s3477 = scalar_lea.vmem [#allocation2], 2
    %v3478 = vld [vmem:[%s3477] ss:$8 sm:$0xf]
    %s3479 = scalar_lea.vmem [#allocation2], 34
    %v3480 = vld [vmem:[%s3479] ss:$8 sm:$0xf]
    %3481 = vmatprep.subr.bf16.mxu0 %v2450
    %3482 = vmatpush1.bf16.msra.mxu0 %v2449
    %3483 = vmatprep.subr.bf16.mxu0 %v2454
    %3484 = vmatpush1.bf16.msra.mxu0 %v2453
    %3485 = vmatprep.subr.bf16.mxu0 %v2458
    %3486 = vmatpush1.bf16.msra.mxu0 %v2457
    %3487 = vmatprep.subr.bf16.mxu0 %v2462
    %3488 = vmatpush1.bf16.msra.mxu0 %v2461
    %3489 = vmatprep.subr.bf16.mxu0 %v2466
    %3490 = vmatpush1.bf16.msra.mxu0 %v2465
    %3491 = vmatprep.subr.bf16.mxu0 %v2470
    %3492 = vmatpush1.bf16.msra.mxu0 %v2469
    %3493 = vmatprep.subr.bf16.mxu0 %v2474
    %3494 = vmatpush1.bf16.msra.mxu0 %v2473
    %3495 = vmatprep.subr.bf16.mxu0 %v2478
    %3496 = vmatpush1.bf16.msra.mxu0 %v2477
    %3497 = vmatprep.subr.bf16.mxu0 0
    %3498 = vmatpush1.bf16.msra.mxu0 0
    %3499 = vmatprep.subr.bf16.mxu0 0
    %3500 = vmatpush1.bf16.msra.mxu0 0
    %3501 = vmatprep.subr.bf16.mxu0 0
    %3502 = vmatpush1.bf16.msra.mxu0 0
    %3503 = vmatprep.subr.bf16.mxu0 0
    %3504 = vmatpush1.bf16.msra.mxu0 0
    %3505 = vmatprep.subr.bf16.mxu0 0
    %3506 = vmatpush1.bf16.msra.mxu0 0
    %3507 = vmatprep.subr.bf16.mxu0 0
    %3508 = vmatpush1.bf16.msra.mxu0 0
    %3509 = vmatprep.subr.bf16.mxu0 0
    %3510 = vmatpush1.bf16.msra.mxu0 0
    %3511 = vmatprep.subr.bf16.mxu0 0
    %3512 = vmatpush1.bf16.msra.mxu0 0
    %3513 = vmatprep.mubr.bf16.mxu0 0
    %3514 = vmatmul.mubr.bf16.gmra.mrb[0].mxu0 %v2979
    %v3515 = vpop.f32.mrb[0].mxu0
    %v3516 = vadd.f32 0.0, %v3515
    %v3517 = vpop.f32.mrb[0].mxu0
    %v3518 = vadd.f32 0.0, %v3517
    %v3519 = vpop.f32.mrb[0].mxu0
    %v3520 = vpop.f32.mrb[0].mxu0
    %3521 = vdwg.mxu0
    %3522 = vmatprep.subr.bf16.mxu0 %v2452
    %3523 = vmatpush1.bf16.msra.mxu0 %v2451
    %3524 = vmatprep.subr.bf16.mxu0 %v2456
    %3525 = vmatpush1.bf16.msra.mxu0 %v2455
    %3526 = vmatprep.subr.bf16.mxu0 %v2460
    %3527 = vmatpush1.bf16.msra.mxu0 %v2459
    %3528 = vmatprep.subr.bf16.mxu0 %v2464
    %3529 = vmatpush1.bf16.msra.mxu0 %v2463
    %3530 = vmatprep.subr.bf16.mxu0 %v2468
    %3531 = vmatpush1.bf16.msra.mxu0 %v2467
    %3532 = vmatprep.subr.bf16.mxu0 %v2472
    %3533 = vmatpush1.bf16.msra.mxu0 %v2471
    %3534 = vmatprep.subr.bf16.mxu0 %v2476
    %3535 = vmatpush1.bf16.msra.mxu0 %v2475
    %3536 = vmatprep.subr.bf16.mxu0 %v2480
    %3537 = vmatpush1.bf16.msra.mxu0 %v2479
    %3538 = vmatprep.subr.bf16.mxu0 0
    %3539 = vmatpush1.bf16.msra.mxu0 0
    %3540 = vmatprep.subr.bf16.mxu0 0
    %3541 = vmatpush1.bf16.msra.mxu0 0
    %3542 = vmatprep.subr.bf16.mxu0 0
    %3543 = vmatpush1.bf16.msra.mxu0 0
    %3544 = vmatprep.subr.bf16.mxu0 0
    %3545 = vmatpush1.bf16.msra.mxu0 0
    %3546 = vmatprep.subr.bf16.mxu0 0
    %3547 = vmatpush1.bf16.msra.mxu0 0
    %3548 = vmatprep.subr.bf16.mxu0 0
    %3549 = vmatpush1.bf16.msra.mxu0 0
    %3550 = vmatprep.subr.bf16.mxu0 0
    %3551 = vmatpush1.bf16.msra.mxu0 0
    %3552 = vmatprep.subr.bf16.mxu0 0
    %3553 = vmatpush1.bf16.msra.mxu0 0
    %3554 = vmatprep.mubr.bf16.mxu0 0
    %3555 = vmatmul.mubr.bf16.gmra.mrb[0].mxu0 %v2979
    %v3556 = vpop.f32.mrb[0].mxu0
    %v3557 = vadd.f32 0.0, %v3556
    %v3558 = vpop.f32.mrb[0].mxu0
    %v3559 = vadd.f32 0.0, %v3558
    %v3560 = vpop.f32.mrb[0].mxu0
    %v3561 = vpop.f32.mrb[0].mxu0
    %3562 = vdwg.mxu0
    %v3567 = vcombine.low %v3516, %v3518
    %v3568 = vcombine.low %v3557, %v3559
    %v3570 = vunpack.c.l.s4 1966171168
    %v3571 = vunpack.c.0.s8 %v3570
    %v3572 = vlaneseq
    %v3573 = vshrl.u32 %v3572, 7
    %v3574 = vsub.s32 %v3571, %v3573
    %v3575 = vrot.slane %v3567, %v3574
    %v3577 = vunpack.c.l.s4 1966171168
    %v3578 = vunpack.c.0.s8 %v3577
    %v3579 = vlaneseq
    %v3580 = vshrl.u32 %v3579, 7
    %v3581 = vsub.s32 %v3578, %v3580
    %v3582 = vrot.slane %v3568, %v3581
    %v3583 = vcombine.low %v3575, %v3582
    %v3584 = vcombine.high %v3575, %v3582
    %v3586 = vunpack.c.l.s4 1966171168
    %v3587 = vunpack.c.0.s8 %v3586
    %v3588 = vlaneseq
    %v3589 = vshrl.u32 %v3588, 7
    %v3590 = vsub.s32 %v3587, %v3589
    %v3591 = vrot.slane %v3583, %v3590
    %v3593 = vunpack.c.l.s4 1966171168
    %v3594 = vunpack.c.0.s8 %v3593
    %v3595 = vlaneseq
    %v3596 = vshrl.u32 %v3595, 7
    %v3597 = vsub.s32 %v3594, %v3596
    %v3598 = vrot.slane %v3584, %v3597
    %v3601 = vadd.f32 %v3478, %v3591
    %v3602 = vadd.f32 %v3480, %v3598
    %v3603 = vxor.u32 %v3601, 2147483648
    %v3604 = vxor.u32 %v3602, 2147483648
    %v3605 = vmul.f32 %v3603, 1.442695
    %v3606 = vpow.pop %v3605
    %v3607 = vmul.f32 %v3604, 1.442695
    %v3608 = vpow.pop %v3607
    %v3609 = vadd.f32 %v3606, 1.0
    %v3610 = vadd.f32 %v3608, 1.0
    %v3611 = vrcp.pop %v3609
    %v3612 = vmul.f32 1.0, %v3611
    %v3613 = vrcp.pop %v3610
    %v3614 = vmul.f32 1.0, %v3613
    %v3617 = vrot.slane %v3601, 1
    %v3618 = vrot.slane %v3602, 1
    %v3621 = vxor.u32 %v3617, 2147483648
    %v3622 = vxor.u32 %v3618, 2147483648
    %v3623 = vmul.f32 %v3621, 1.442695
    %v3624 = vpow.pop %v3623
    %v3625 = vmul.f32 %v3622, 1.442695
    %v3626 = vpow.pop %v3625
    %v3627 = vadd.f32 %v3624, 1.0
    %v3628 = vadd.f32 %v3626, 1.0
    %v3629 = vrcp.pop %v3627
    %v3630 = vmul.f32 1.0, %v3629
    %v3631 = vrcp.pop %v3628
    %v3632 = vmul.f32 1.0, %v3631
    %v3633 = vrot.slane %v3601, 2
    %v3634 = vrot.slane %v3602, 2
    %v3637 = vtanh.pop %v3633
    %v3638 = vtanh.pop %v3634
    %v3639 = vrot.slane %v3601, 3
    %v3640 = vrot.slane %v3602, 3
    %v3643 = vxor.u32 %v3639, 2147483648
    %v3644 = vxor.u32 %v3640, 2147483648
    %v3645 = vmul.f32 %v3643, 1.442695
    %v3646 = vpow.pop %v3645
    %v3647 = vmul.f32 %v3644, 1.442695
    %v3648 = vpow.pop %v3647
    %v3649 = vadd.f32 %v3646, 1.0
    %v3650 = vadd.f32 %v3648, 1.0
    %v3651 = vrcp.pop %v3649
    %v3652 = vmul.f32 1.0, %v3651
    %v3653 = vrcp.pop %v3650
    %v3654 = vmul.f32 1.0, %v3653
    %v3655 = vmul.f32 %v3630, %v2691
    %v3656 = vmul.f32 %v3632, %v2692
    %v3657 = vmul.f32 %v3612, %v3637
    %v3658 = vmul.f32 %v3614, %v3638
    %v3659 = vadd.f32 %v3655, %v3657
    %v3660 = vadd.f32 %v3656, %v3658
    %v3661 = vtanh.pop %v3659
    %v3662 = vtanh.pop %v3660
    %v3663 = vmul.f32 %v3652, %v3661
    %v3664 = vmul.f32 %v3654, %v3662
    %v3665 = vpack.c.bf16 %v3663, %v3663
    %v3666 = vpack.c.bf16 %v3664, %v3664
    %3667 = vmatprep.subr.bf16.mxu0 %v2828
    %3668 = vmatpush1.bf16.msra.mxu0 %v2827
    %3669 = vmatprep.subr.bf16.mxu0 %v2832
    %3670 = vmatpush1.bf16.msra.mxu0 %v2831
    %3671 = vmatprep.subr.bf16.mxu0 %v2836
    %3672 = vmatpush1.bf16.msra.mxu0 %v2835
    %3673 = vmatprep.subr.bf16.mxu0 %v2840
    %3674 = vmatpush1.bf16.msra.mxu0 %v2839
    %3675 = vmatprep.subr.bf16.mxu0 %v2844
    %3676 = vmatpush1.bf16.msra.mxu0 %v2843
    %3677 = vmatprep.subr.bf16.mxu0 %v2848
    %3678 = vmatpush1.bf16.msra.mxu0 %v2847
    %3679 = vmatprep.subr.bf16.mxu0 %v2852
    %3680 = vmatpush1.bf16.msra.mxu0 %v2851
    %3681 = vmatprep.subr.bf16.mxu0 %v2856
    %3682 = vmatpush1.bf16.msra.mxu0 %v2855
    %3683 = vmatprep.subr.bf16.mxu0 0
    %3684 = vmatpush1.bf16.msra.mxu0 0
    %3685 = vmatprep.subr.bf16.mxu0 0
    %3686 = vmatpush1.bf16.msra.mxu0 0
    %3687 = vmatprep.subr.bf16.mxu0 0
    %3688 = vmatpush1.bf16.msra.mxu0 0
    %3689 = vmatprep.subr.bf16.mxu0 0
    %3690 = vmatpush1.bf16.msra.mxu0 0
    %3691 = vmatprep.subr.bf16.mxu0 0
    %3692 = vmatpush1.bf16.msra.mxu0 0
    %3693 = vmatprep.subr.bf16.mxu0 0
    %3694 = vmatpush1.bf16.msra.mxu0 0
    %3695 = vmatprep.subr.bf16.mxu0 0
    %3696 = vmatpush1.bf16.msra.mxu0 0
    %3697 = vmatprep.subr.bf16.mxu0 0
    %3698 = vmatpush1.bf16.msra.mxu0 0
    %3699 = vmatprep.mubr.bf16.mxu0 0
    %3700 = vmatmul.mubr.bf16.gmra.mrb[0].mxu0 %v3091
    %v3701 = vpop.f32.mrb[0].mxu0
    %v3702 = vadd.f32 0.0, %v3701
    %v3703 = vpop.f32.mrb[0].mxu0
    %v3704 = vadd.f32 0.0, %v3703
    %v3705 = vpop.f32.mrb[0].mxu0
    %v3706 = vpop.f32.mrb[0].mxu0
    %3707 = vdwg.mxu0
    %3708 = vmatprep.subr.bf16.mxu0 %v2830
    %3709 = vmatpush1.bf16.msra.mxu0 %v2829
    %3710 = vmatprep.subr.bf16.mxu0 %v2834
    %3711 = vmatpush1.bf16.msra.mxu0 %v2833
    %3712 = vmatprep.subr.bf16.mxu0 %v2838
    %3713 = vmatpush1.bf16.msra.mxu0 %v2837
    %3714 = vmatprep.subr.bf16.mxu0 %v2842
    %3715 = vmatpush1.bf16.msra.mxu0 %v2841
    %3716 = vmatprep.subr.bf16.mxu0 %v2846
    %3717 = vmatpush1.bf16.msra.mxu0 %v2845
    %3718 = vmatprep.subr.bf16.mxu0 %v2850
    %3719 = vmatpush1.bf16.msra.mxu0 %v2849
    %3720 = vmatprep.subr.bf16.mxu0 %v2854
    %3721 = vmatpush1.bf16.msra.mxu0 %v2853
    %3722 = vmatprep.subr.bf16.mxu0 %v2858
    %3723 = vmatpush1.bf16.msra.mxu0 %v2857
    %3724 = vmatprep.subr.bf16.mxu0 0
    %3725 = vmatpush1.bf16.msra.mxu0 0
    %3726 = vmatprep.subr.bf16.mxu0 0
    %3727 = vmatpush1.bf16.msra.mxu0 0
    %3728 = vmatprep.subr.bf16.mxu0 0
    %3729 = vmatpush1.bf16.msra.mxu0 0
    %3730 = vmatprep.subr.bf16.mxu0 0
    %3731 = vmatpush1.bf16.msra.mxu0 0
    %3732 = vmatprep.subr.bf16.mxu0 0
    %3733 = vmatpush1.bf16.msra.mxu0 0
    %3734 = vmatprep.subr.bf16.mxu0 0
    %3735 = vmatpush1.bf16.msra.mxu0 0
    %3736 = vmatprep.subr.bf16.mxu0 0
    %3737 = vmatpush1.bf16.msra.mxu0 0
    %3738 = vmatprep.subr.bf16.mxu0 0
    %3739 = vmatpush1.bf16.msra.mxu0 0
    %3740 = vmatprep.mubr.bf16.mxu0 0
    %3741 = vmatmul.mubr.bf16.gmra.mrb[0].mxu0 %v3091
    %v3742 = vpop.f32.mrb[0].mxu0
    %v3743 = vadd.f32 0.0, %v3742
    %v3744 = vpop.f32.mrb[0].mxu0
    %v3745 = vadd.f32 0.0, %v3744
    %v3746 = vpop.f32.mrb[0].mxu0
    %v3747 = vpop.f32.mrb[0].mxu0
    %3748 = vdwg.mxu0
    %v3751 = vunpack.c.l.b16 %v3665
    %v3752 = vunpack.c.l.b16 %v3666
    %v3753 = vrot.slane %v3752, 7
    %v3754 = vsel %vm1726, %v3753, %v3751
    %v3755 = vpack.c.b16 %v3754, %v3754
    %3757 = vmatprep.subr.bf16.mxu0 %v1827
    %3758 = vmatpush1.bf16.msra.mxu0 %v1826
    %3759 = vmatprep.subr.bf16.mxu0 %v1831
    %3760 = vmatpush1.bf16.msra.mxu0 %v1830
    %3761 = vmatprep.subr.bf16.mxu0 %v1835
    %3762 = vmatpush1.bf16.msra.mxu0 %v1834
    %3763 = vmatprep.subr.bf16.mxu0 %v1839
    %3764 = vmatpush1.bf16.msra.mxu0 %v1838
    %3765 = vmatprep.subr.bf16.mxu0 %v1843
    %3766 = vmatpush1.bf16.msra.mxu0 %v1842
    %3767 = vmatprep.subr.bf16.mxu0 %v1847
    %3768 = vmatpush1.bf16.msra.mxu0 %v1846
    %3769 = vmatprep.subr.bf16.mxu0 %v1851
    %3770 = vmatpush1.bf16.msra.mxu0 %v1850
    %3771 = vmatprep.subr.bf16.mxu0 %v1855
    %3772 = vmatpush1.bf16.msra.mxu0 %v1854
    %3773 = vmatprep.subr.bf16.mxu0 0
    %3774 = vmatpush1.bf16.msra.mxu0 0
    %3775 = vmatprep.subr.bf16.mxu0 0
    %3776 = vmatpush1.bf16.msra.mxu0 0
    %3777 = vmatprep.subr.bf16.mxu0 0
    %3778 = vmatpush1.bf16.msra.mxu0 0
    %3779 = vmatprep.subr.bf16.mxu0 0
    %3780 = vmatpush1.bf16.msra.mxu0 0
    %3781 = vmatprep.subr.bf16.mxu0 0
    %3782 = vmatpush1.bf16.msra.mxu0 0
    %3783 = vmatprep.subr.bf16.mxu0 0
    %3784 = vmatpush1.bf16.msra.mxu0 0
    %3785 = vmatprep.subr.bf16.mxu0 0
    %3786 = vmatpush1.bf16.msra.mxu0 0
    %3787 = vmatprep.subr.bf16.mxu0 0
    %3788 = vmatpush1.bf16.msra.mxu0 0
    %3789 = vmatprep.mubr.bf16.mxu0 0
    %3790 = vmatmul.mubr.bf16.gmra.mrb[0].mxu0 %v3755
    %v3791 = vpop.f32.mrb[0].mxu0
    %v3792 = vadd.f32 %v3702, %v3791
    %v3793 = vpop.f32.mrb[0].mxu0
    %v3794 = vadd.f32 %v3704, %v3793
    %v3795 = vpop.f32.mrb[0].mxu0
    %v3796 = vpop.f32.mrb[0].mxu0
    %3797 = vdwg.mxu0
    %3798 = vmatprep.subr.bf16.mxu0 %v1829
    %3799 = vmatpush1.bf16.msra.mxu0 %v1828
    %3800 = vmatprep.subr.bf16.mxu0 %v1833
    %3801 = vmatpush1.bf16.msra.mxu0 %v1832
    %3802 = vmatprep.subr.bf16.mxu0 %v1837
    %3803 = vmatpush1.bf16.msra.mxu0 %v1836
    %3804 = vmatprep.subr.bf16.mxu0 %v1841
    %3805 = vmatpush1.bf16.msra.mxu0 %v1840
    %3806 = vmatprep.subr.bf16.mxu0 %v1845
    %3807 = vmatpush1.bf16.msra.mxu0 %v1844
    %3808 = vmatprep.subr.bf16.mxu0 %v1849
    %3809 = vmatpush1.bf16.msra.mxu0 %v1848
    %3810 = vmatprep.subr.bf16.mxu0 %v1853
    %3811 = vmatpush1.bf16.msra.mxu0 %v1852
    %3812 = vmatprep.subr.bf16.mxu0 %v1857
    %3813 = vmatpush1.bf16.msra.mxu0 %v1856
    %3814 = vmatprep.subr.bf16.mxu0 0
    %3815 = vmatpush1.bf16.msra.mxu0 0
    %3816 = vmatprep.subr.bf16.mxu0 0
    %3817 = vmatpush1.bf16.msra.mxu0 0
    %3818 = vmatprep.subr.bf16.mxu0 0
    %3819 = vmatpush1.bf16.msra.mxu0 0
    %3820 = vmatprep.subr.bf16.mxu0 0
    %3821 = vmatpush1.bf16.msra.mxu0 0
    %3822 = vmatprep.subr.bf16.mxu0 0
    %3823 = vmatpush1.bf16.msra.mxu0 0
    %3824 = vmatprep.subr.bf16.mxu0 0
    %3825 = vmatpush1.bf16.msra.mxu0 0
    %3826 = vmatprep.subr.bf16.mxu0 0
    %3827 = vmatpush1.bf16.msra.mxu0 0
    %3828 = vmatprep.subr.bf16.mxu0 0
    %3829 = vmatpush1.bf16.msra.mxu0 0
    %3830 = vmatprep.mubr.bf16.mxu0 0
    %3831 = vmatmul.mubr.bf16.gmra.mrb[0].mxu0 %v3755
    %v3832 = vpop.f32.mrb[0].mxu0
    %v3833 = vadd.f32 %v3743, %v3832
    %v3834 = vpop.f32.mrb[0].mxu0
    %v3835 = vadd.f32 %v3745, %v3834
    %v3836 = vpop.f32.mrb[0].mxu0
    %v3837 = vpop.f32.mrb[0].mxu0
    %3838 = vdwg.mxu0
    %v3839 = vadd.f32 %v3792, %v1704
    %v3840 = vadd.f32 %v3794, %v1708
    %v3841 = vadd.f32 %v3833, %v1712
    %v3842 = vadd.f32 %v3835, %v1716
    %v3843 = vxor.u32 %v3839, 2147483648
    %v3844 = vmul.f32 %v3843, 1.442695
    %v3845 = vpow.pop %v3844
    %v3846 = vadd.f32 %v3845, 1.0
    %v3847 = vrcp.pop %v3846
    %v3848 = vmul.f32 1.0, %v3847
    %v3849 = vxor.u32 %v3840, 2147483648
    %v3850 = vmul.f32 %v3849, 1.442695
    %v3851 = vpow.pop %v3850
    %v3852 = vadd.f32 %v3851, 1.0
    %v3853 = vrcp.pop %v3852
    %v3854 = vmul.f32 1.0, %v3853
    %v3855 = vtanh.pop %v3841
    %v3856 = vxor.u32 %v3842, 2147483648
    %v3857 = vmul.f32 %v3856, 1.442695
    %v3858 = vpow.pop %v3857
    %v3859 = vadd.f32 %v3858, 1.0
    %v3860 = vrcp.pop %v3859
    %v3861 = vmul.f32 1.0, %v3860
    %v3862 = vmul.f32 %v3854, %v3088
    %v3863 = vmul.f32 %v3848, %v3855
    %v3864 = vadd.f32 %v3862, %v3863
    %v3865 = vtanh.pop %v3864
    %v3866 = vmul.f32 %v3861, %v3865
    %v3867 = vpack.c.bf16 %v3866, %v3866
    %v3868 = vpack.c.bf16 %v3476, %v3476
    %3869 = vmatprep.subr.bf16.mxu0 %v3222
    %3870 = vmatpush1.bf16.msra.mxu0 %v3221
    %3871 = vmatprep.subr.bf16.mxu0 %v3226
    %3872 = vmatpush1.bf16.msra.mxu0 %v3225
    %3873 = vmatprep.subr.bf16.mxu0 %v3230
    %3874 = vmatpush1.bf16.msra.mxu0 %v3229
    %3875 = vmatprep.subr.bf16.mxu0 %v3234
    %3876 = vmatpush1.bf16.msra.mxu0 %v3233
    %3877 = vmatprep.subr.bf16.mxu0 %v3238
    %3878 = vmatpush1.bf16.msra.mxu0 %v3237
    %3879 = vmatprep.subr.bf16.mxu0 %v3242
    %3880 = vmatpush1.bf16.msra.mxu0 %v3241
    %3881 = vmatprep.subr.bf16.mxu0 %v3246
    %3882 = vmatpush1.bf16.msra.mxu0 %v3245
    %3883 = vmatprep.subr.bf16.mxu0 %v3250
    %3884 = vmatpush1.bf16.msra.mxu0 %v3249
    %3885 = vmatprep.subr.bf16.mxu0 0
    %3886 = vmatpush1.bf16.msra.mxu0 0
    %3887 = vmatprep.subr.bf16.mxu0 0
    %3888 = vmatpush1.bf16.msra.mxu0 0
    %3889 = vmatprep.subr.bf16.mxu0 0
    %3890 = vmatpush1.bf16.msra.mxu0 0
    %3891 = vmatprep.subr.bf16.mxu0 0
    %3892 = vmatpush1.bf16.msra.mxu0 0
    %3893 = vmatprep.subr.bf16.mxu0 0
    %3894 = vmatpush1.bf16.msra.mxu0 0
    %3895 = vmatprep.subr.bf16.mxu0 0
    %3896 = vmatpush1.bf16.msra.mxu0 0
    %3897 = vmatprep.subr.bf16.mxu0 0
    %3898 = vmatpush1.bf16.msra.mxu0 0
    %3899 = vmatprep.subr.bf16.mxu0 0
    %3900 = vmatpush1.bf16.msra.mxu0 0
    %3901 = vmatprep.mubr.bf16.mxu0 0
    %3902 = vmatmul.mubr.bf16.gmra.mrb[0].mxu0 %v3868
    %v3903 = vpop.f32.mrb[0].mxu0
    %v3904 = vadd.f32 0.0, %v3903
    %v3905 = vpop.f32.mrb[0].mxu0
    %v3906 = vadd.f32 0.0, %v3905
    %v3907 = vpop.f32.mrb[0].mxu0
    %v3908 = vpop.f32.mrb[0].mxu0
    %3909 = vdwg.mxu0
    %3910 = vmatprep.subr.bf16.mxu0 %v3224
    %3911 = vmatpush1.bf16.msra.mxu0 %v3223
    %3912 = vmatprep.subr.bf16.mxu0 %v3228
    %3913 = vmatpush1.bf16.msra.mxu0 %v3227
    %3914 = vmatprep.subr.bf16.mxu0 %v3232
    %3915 = vmatpush1.bf16.msra.mxu0 %v3231
    %3916 = vmatprep.subr.bf16.mxu0 %v3236
    %3917 = vmatpush1.bf16.msra.mxu0 %v3235
    %3918 = vmatprep.subr.bf16.mxu0 %v3240
    %3919 = vmatpush1.bf16.msra.mxu0 %v3239
    %3920 = vmatprep.subr.bf16.mxu0 %v3244
    %3921 = vmatpush1.bf16.msra.mxu0 %v3243
    %3922 = vmatprep.subr.bf16.mxu0 %v3248
    %3923 = vmatpush1.bf16.msra.mxu0 %v3247
    %3924 = vmatprep.subr.bf16.mxu0 %v3252
    %3925 = vmatpush1.bf16.msra.mxu0 %v3251
    %3926 = vmatprep.subr.bf16.mxu0 0
    %3927 = vmatpush1.bf16.msra.mxu0 0
    %3928 = vmatprep.subr.bf16.mxu0 0
    %3929 = vmatpush1.bf16.msra.mxu0 0
    %3930 = vmatprep.subr.bf16.mxu0 0
    %3931 = vmatpush1.bf16.msra.mxu0 0
    %3932 = vmatprep.subr.bf16.mxu0 0
    %3933 = vmatpush1.bf16.msra.mxu0 0
    %3934 = vmatprep.subr.bf16.mxu0 0
    %3935 = vmatpush1.bf16.msra.mxu0 0
    %3936 = vmatprep.subr.bf16.mxu0 0
    %3937 = vmatpush1.bf16.msra.mxu0 0
    %3938 = vmatprep.subr.bf16.mxu0 0
    %3939 = vmatpush1.bf16.msra.mxu0 0
    %3940 = vmatprep.subr.bf16.mxu0 0
    %3941 = vmatpush1.bf16.msra.mxu0 0
    %3942 = vmatprep.mubr.bf16.mxu0 0
    %3943 = vmatmul.mubr.bf16.gmra.mrb[0].mxu0 %v3868
    %v3944 = vpop.f32.mrb[0].mxu0
    %v3945 = vadd.f32 0.0, %v3944
    %v3946 = vpop.f32.mrb[0].mxu0
    %v3947 = vadd.f32 0.0, %v3946
    %v3948 = vpop.f32.mrb[0].mxu0
    %v3949 = vpop.f32.mrb[0].mxu0
    %3950 = vdwg.mxu0
    %3951 = vmatprep.subr.bf16.mxu0 %v2148
    %3952 = vmatpush1.bf16.msra.mxu0 %v2147
    %3953 = vmatprep.subr.bf16.mxu0 %v2152
    %3954 = vmatpush1.bf16.msra.mxu0 %v2151
    %3955 = vmatprep.subr.bf16.mxu0 %v2156
    %3956 = vmatpush1.bf16.msra.mxu0 %v2155
    %3957 = vmatprep.subr.bf16.mxu0 %v2160
    %3958 = vmatpush1.bf16.msra.mxu0 %v2159
    %3959 = vmatprep.subr.bf16.mxu0 %v2164
    %3960 = vmatpush1.bf16.msra.mxu0 %v2163
    %3961 = vmatprep.subr.bf16.mxu0 %v2168
    %3962 = vmatpush1.bf16.msra.mxu0 %v2167
    %3963 = vmatprep.subr.bf16.mxu0 %v2172
    %3964 = vmatpush1.bf16.msra.mxu0 %v2171
    %3965 = vmatprep.subr.bf16.mxu0 %v2176
    %3966 = vmatpush1.bf16.msra.mxu0 %v2175
    %3967 = vmatprep.subr.bf16.mxu0 0
    %3968 = vmatpush1.bf16.msra.mxu0 0
    %3969 = vmatprep.subr.bf16.mxu0 0
    %3970 = vmatpush1.bf16.msra.mxu0 0
    %3971 = vmatprep.subr.bf16.mxu0 0
    %3972 = vmatpush1.bf16.msra.mxu0 0
    %3973 = vmatprep.subr.bf16.mxu0 0
    %3974 = vmatpush1.bf16.msra.mxu0 0
    %3975 = vmatprep.subr.bf16.mxu0 0
    %3976 = vmatpush1.bf16.msra.mxu0 0
    %3977 = vmatprep.subr.bf16.mxu0 0
    %3978 = vmatpush1.bf16.msra.mxu0 0
    %3979 = vmatprep.subr.bf16.mxu0 0
    %3980 = vmatpush1.bf16.msra.mxu0 0
    %3981 = vmatprep.subr.bf16.mxu0 0
    %3982 = vmatpush1.bf16.msra.mxu0 0
    %3983 = vmatprep.mubr.bf16.mxu0 0
    %3984 = vmatmul.mubr.bf16.gmra.mrb[0].mxu0 %v3867
    %v3985 = vpop.f32.mrb[0].mxu0
    %v3986 = vadd.f32 %v3904, %v3985
    %v3987 = vpop.f32.mrb[0].mxu0
    %v3988 = vadd.f32 %v3906, %v3987
    %v3989 = vpop.f32.mrb[0].mxu0
    %v3990 = vpop.f32.mrb[0].mxu0
    %3991 = vdwg.mxu0
    %3992 = vmatprep.subr.bf16.mxu0 %v2150
    %3993 = vmatpush1.bf16.msra.mxu0 %v2149
    %3994 = vmatprep.subr.bf16.mxu0 %v2154
    %3995 = vmatpush1.bf16.msra.mxu0 %v2153
    %3996 = vmatprep.subr.bf16.mxu0 %v2158
    %3997 = vmatpush1.bf16.msra.mxu0 %v2157
    %3998 = vmatprep.subr.bf16.mxu0 %v2162
    %3999 = vmatpush1.bf16.msra.mxu0 %v2161
    %4000 = vmatprep.subr.bf16.mxu0 %v2166
    %4001 = vmatpush1.bf16.msra.mxu0 %v2165
    %4002 = vmatprep.subr.bf16.mxu0 %v2170
    %4003 = vmatpush1.bf16.msra.mxu0 %v2169
    %4004 = vmatprep.subr.bf16.mxu0 %v2174
    %4005 = vmatpush1.bf16.msra.mxu0 %v2173
    %4006 = vmatprep.subr.bf16.mxu0 %v2178
    %4007 = vmatpush1.bf16.msra.mxu0 %v2177
    %4008 = vmatprep.subr.bf16.mxu0 0
    %4009 = vmatpush1.bf16.msra.mxu0 0
    %4010 = vmatprep.subr.bf16.mxu0 0
    %4011 = vmatpush1.bf16.msra.mxu0 0
    %4012 = vmatprep.subr.bf16.mxu0 0
    %4013 = vmatpush1.bf16.msra.mxu0 0
    %4014 = vmatprep.subr.bf16.mxu0 0
    %4015 = vmatpush1.bf16.msra.mxu0 0
    %4016 = vmatprep.subr.bf16.mxu0 0
    %4017 = vmatpush1.bf16.msra.mxu0 0
    %4018 = vmatprep.subr.bf16.mxu0 0
    %4019 = vmatpush1.bf16.msra.mxu0 0
    %4020 = vmatprep.subr.bf16.mxu0 0
    %4021 = vmatpush1.bf16.msra.mxu0 0
    %4022 = vmatprep.subr.bf16.mxu0 0
    %4023 = vmatpush1.bf16.msra.mxu0 0
    %4024 = vmatprep.mubr.bf16.mxu0 0
    %4025 = vmatmul.mubr.bf16.gmra.mrb[0].mxu0 %v3867
    %v4026 = vpop.f32.mrb[0].mxu0
    %v4027 = vadd.f32 %v3945, %v4026
    %v4028 = vpop.f32.mrb[0].mxu0
    %v4029 = vadd.f32 %v3947, %v4028
    %v4030 = vpop.f32.mrb[0].mxu0
    %v4031 = vpop.f32.mrb[0].mxu0
    %4032 = vdwg.mxu0
    %v4033 = vadd.f32 %v3986, %v2034
    %v4034 = vadd.f32 %v3988, %v2038
    %v4035 = vadd.f32 %v4027, %v2042
    %v4036 = vadd.f32 %v4029, %v2046
    %v4037 = vxor.u32 %v4033, 2147483648
    %v4038 = vmul.f32 %v4037, 1.442695
    %v4039 = vpow.pop %v4038
    %v4040 = vadd.f32 %v4039, 1.0
    %v4041 = vrcp.pop %v4040
    %v4042 = vmul.f32 1.0, %v4041
    %v4043 = vxor.u32 %v4034, 2147483648
    %v4044 = vmul.f32 %v4043, 1.442695
    %v4045 = vpow.pop %v4044
    %v4046 = vadd.f32 %v4045, 1.0
    %v4047 = vrcp.pop %v4046
    %v4048 = vmul.f32 1.0, %v4047
    %v4049 = vtanh.pop %v4035
    %v4050 = vxor.u32 %v4036, 2147483648
    %v4051 = vmul.f32 %v4050, 1.442695
    %v4052 = vpow.pop %v4051
    %v4053 = vadd.f32 %v4052, 1.0
    %v4054 = vrcp.pop %v4053
    %v4055 = vmul.f32 1.0, %v4054
    %v4056 = vmul.f32 %v4048, %v3474
    %v4057 = vmul.f32 %v4042, %v4049
    %v4058 = vadd.f32 %v4056, %v4057
    %v4059 = vtanh.pop %v4058
    %v4060 = vmul.f32 %v4055, %v4059
    %s4061 = scalar_lea.vmem [#allocation2], 3
    %v4062 = vld [vmem:[%s4061] ss:$8 sm:$0xf]
    %s4063 = scalar_lea.vmem [#allocation2], 35
    %v4064 = vld [vmem:[%s4063] ss:$8 sm:$0xf]
    %4065 = vmatprep.subr.bf16.mxu0 %v2450
    %4066 = vmatpush1.bf16.msra.mxu0 %v2449
    %4067 = vmatprep.subr.bf16.mxu0 %v2454
    %4068 = vmatpush1.bf16.msra.mxu0 %v2453
    %4069 = vmatprep.subr.bf16.mxu0 %v2458
    %4070 = vmatpush1.bf16.msra.mxu0 %v2457
    %4071 = vmatprep.subr.bf16.mxu0 %v2462
    %4072 = vmatpush1.bf16.msra.mxu0 %v2461
    %4073 = vmatprep.subr.bf16.mxu0 %v2466
    %4074 = vmatpush1.bf16.msra.mxu0 %v2465
    %4075 = vmatprep.subr.bf16.mxu0 %v2470
    %4076 = vmatpush1.bf16.msra.mxu0 %v2469
    %4077 = vmatprep.subr.bf16.mxu0 %v2474
    %4078 = vmatpush1.bf16.msra.mxu0 %v2473
    %4079 = vmatprep.subr.bf16.mxu0 %v2478
    %4080 = vmatpush1.bf16.msra.mxu0 %v2477
    %4081 = vmatprep.subr.bf16.mxu0 0
    %4082 = vmatpush1.bf16.msra.mxu0 0
    %4083 = vmatprep.subr.bf16.mxu0 0
    %4084 = vmatpush1.bf16.msra.mxu0 0
    %4085 = vmatprep.subr.bf16.mxu0 0
    %4086 = vmatpush1.bf16.msra.mxu0 0
    %4087 = vmatprep.subr.bf16.mxu0 0
    %4088 = vmatpush1.bf16.msra.mxu0 0
    %4089 = vmatprep.subr.bf16.mxu0 0
    %4090 = vmatpush1.bf16.msra.mxu0 0
    %4091 = vmatprep.subr.bf16.mxu0 0
    %4092 = vmatpush1.bf16.msra.mxu0 0
    %4093 = vmatprep.subr.bf16.mxu0 0
    %4094 = vmatpush1.bf16.msra.mxu0 0
    %4095 = vmatprep.subr.bf16.mxu0 0
    %4096 = vmatpush1.bf16.msra.mxu0 0
    %4097 = vmatprep.mubr.bf16.mxu0 0
    %4098 = vmatmul.mubr.bf16.gmra.mrb[0].mxu0 %v3755
    %v4099 = vpop.f32.mrb[0].mxu0
    %v4100 = vadd.f32 0.0, %v4099
    %v4101 = vpop.f32.mrb[0].mxu0
    %v4102 = vadd.f32 0.0, %v4101
    %v4103 = vpop.f32.mrb[0].mxu0
    %v4104 = vpop.f32.mrb[0].mxu0
    %4105 = vdwg.mxu0
    %4106 = vmatprep.subr.bf16.mxu0 %v2452
    %4107 = vmatpush1.bf16.msra.mxu0 %v2451
    %4108 = vmatprep.subr.bf16.mxu0 %v2456
    %4109 = vmatpush1.bf16.msra.mxu0 %v2455
    %4110 = vmatprep.subr.bf16.mxu0 %v2460
    %4111 = vmatpush1.bf16.msra.mxu0 %v2459
    %4112 = vmatprep.subr.bf16.mxu0 %v2464
    %4113 = vmatpush1.bf16.msra.mxu0 %v2463
    %4114 = vmatprep.subr.bf16.mxu0 %v2468
    %4115 = vmatpush1.bf16.msra.mxu0 %v2467
    %4116 = vmatprep.subr.bf16.mxu0 %v2472
    %4117 = vmatpush1.bf16.msra.mxu0 %v2471
    %4118 = vmatprep.subr.bf16.mxu0 %v2476
    %4119 = vmatpush1.bf16.msra.mxu0 %v2475
    %4120 = vmatprep.subr.bf16.mxu0 %v2480
    %4121 = vmatpush1.bf16.msra.mxu0 %v2479
    %4122 = vmatprep.subr.bf16.mxu0 0
    %4123 = vmatpush1.bf16.msra.mxu0 0
    %4124 = vmatprep.subr.bf16.mxu0 0
    %4125 = vmatpush1.bf16.msra.mxu0 0
    %4126 = vmatprep.subr.bf16.mxu0 0
    %4127 = vmatpush1.bf16.msra.mxu0 0
    %4128 = vmatprep.subr.bf16.mxu0 0
    %4129 = vmatpush1.bf16.msra.mxu0 0
    %4130 = vmatprep.subr.bf16.mxu0 0
    %4131 = vmatpush1.bf16.msra.mxu0 0
    %4132 = vmatprep.subr.bf16.mxu0 0
    %4133 = vmatpush1.bf16.msra.mxu0 0
    %4134 = vmatprep.subr.bf16.mxu0 0
    %4135 = vmatpush1.bf16.msra.mxu0 0
    %4136 = vmatprep.subr.bf16.mxu0 0
    %4137 = vmatpush1.bf16.msra.mxu0 0
    %4138 = vmatprep.mubr.bf16.mxu0 0
    %4139 = vmatmul.mubr.bf16.gmra.mrb[0].mxu0 %v3755
    %v4140 = vpop.f32.mrb[0].mxu0
    %v4141 = vadd.f32 0.0, %v4140
    %v4142 = vpop.f32.mrb[0].mxu0
    %v4143 = vadd.f32 0.0, %v4142
    %v4144 = vpop.f32.mrb[0].mxu0
    %v4145 = vpop.f32.mrb[0].mxu0
    %4146 = vdwg.mxu0
    %v4151 = vcombine.low %v4100, %v4102
    %v4152 = vcombine.low %v4141, %v4143
    %v4154 = vunpack.c.l.s4 1966171168
    %v4155 = vunpack.c.0.s8 %v4154
    %v4156 = vlaneseq
    %v4157 = vshrl.u32 %v4156, 7
    %v4158 = vsub.s32 %v4155, %v4157
    %v4159 = vrot.slane %v4151, %v4158
    %v4161 = vunpack.c.l.s4 1966171168
    %v4162 = vunpack.c.0.s8 %v4161
    %v4163 = vlaneseq
    %v4164 = vshrl.u32 %v4163, 7
    %v4165 = vsub.s32 %v4162, %v4164
    %v4166 = vrot.slane %v4152, %v4165
    %v4167 = vcombine.low %v4159, %v4166
    %v4168 = vcombine.high %v4159, %v4166
    %v4170 = vunpack.c.l.s4 1966171168
    %v4171 = vunpack.c.0.s8 %v4170
    %v4172 = vlaneseq
    %v4173 = vshrl.u32 %v4172, 7
    %v4174 = vsub.s32 %v4171, %v4173
    %v4175 = vrot.slane %v4167, %v4174
    %v4177 = vunpack.c.l.s4 1966171168
    %v4178 = vunpack.c.0.s8 %v4177
    %v4179 = vlaneseq
    %v4180 = vshrl.u32 %v4179, 7
    %v4181 = vsub.s32 %v4178, %v4180
    %v4182 = vrot.slane %v4168, %v4181
    %v4185 = vadd.f32 %v4062, %v4175
    %v4186 = vadd.f32 %v4064, %v4182
    %v4187 = vxor.u32 %v4185, 2147483648
    %v4188 = vxor.u32 %v4186, 2147483648
    %v4189 = vmul.f32 %v4187, 1.442695
    %v4190 = vpow.pop %v4189
    %v4191 = vmul.f32 %v4188, 1.442695
    %v4192 = vpow.pop %v4191
    %v4193 = vadd.f32 %v4190, 1.0
    %v4194 = vadd.f32 %v4192, 1.0
    %v4195 = vrcp.pop %v4193
    %v4196 = vmul.f32 1.0, %v4195
    %v4197 = vrcp.pop %v4194
    %v4198 = vmul.f32 1.0, %v4197
    %v4201 = vrot.slane %v4185, 1
    %v4202 = vrot.slane %v4186, 1
    %v4205 = vxor.u32 %v4201, 2147483648
    %v4206 = vxor.u32 %v4202, 2147483648
    %v4207 = vmul.f32 %v4205, 1.442695
    %v4208 = vpow.pop %v4207
    %v4209 = vmul.f32 %v4206, 1.442695
    %v4210 = vpow.pop %v4209
    %v4211 = vadd.f32 %v4208, 1.0
    %v4212 = vadd.f32 %v4210, 1.0
    %v4213 = vrcp.pop %v4211
    %v4214 = vmul.f32 1.0, %v4213
    %v4215 = vrcp.pop %v4212
    %v4216 = vmul.f32 1.0, %v4215
    %v4217 = vrot.slane %v4185, 2
    %v4218 = vrot.slane %v4186, 2
    %v4221 = vtanh.pop %v4217
    %v4222 = vtanh.pop %v4218
    %v4223 = vrot.slane %v4185, 3
    %v4224 = vrot.slane %v4186, 3
    %v4227 = vxor.u32 %v4223, 2147483648
    %v4228 = vxor.u32 %v4224, 2147483648
    %v4229 = vmul.f32 %v4227, 1.442695
    %v4230 = vpow.pop %v4229
    %v4231 = vmul.f32 %v4228, 1.442695
    %v4232 = vpow.pop %v4231
    %v4233 = vadd.f32 %v4230, 1.0
    %v4234 = vadd.f32 %v4232, 1.0
    %v4235 = vrcp.pop %v4233
    %v4236 = vmul.f32 1.0, %v4235
    %v4237 = vrcp.pop %v4234
    %v4238 = vmul.f32 1.0, %v4237
    %v4239 = vmul.f32 %v4214, %v3659
    %v4240 = vmul.f32 %v4216, %v3660
    %v4241 = vmul.f32 %v4196, %v4221
    %v4242 = vmul.f32 %v4198, %v4222
    %v4243 = vadd.f32 %v4239, %v4241
    %v4244 = vadd.f32 %v4240, %v4242
    %v4245 = vtanh.pop %v4243
    %v4246 = vtanh.pop %v4244
    %v4247 = vmul.f32 %v4236, %v4245
    %v4248 = vmul.f32 %v4238, %v4246
    %v4249 = vpack.c.bf16 %v4247, %v4247
    %v4250 = vpack.c.bf16 %v4248, %v4248
    %4251 = vmatprep.subr.bf16.mxu0 %v2828
    %4252 = vmatpush1.bf16.msra.mxu0 %v2827
    %4253 = vmatprep.subr.bf16.mxu0 %v2832
    %4254 = vmatpush1.bf16.msra.mxu0 %v2831
    %4255 = vmatprep.subr.bf16.mxu0 %v2836
    %4256 = vmatpush1.bf16.msra.mxu0 %v2835
    %4257 = vmatprep.subr.bf16.mxu0 %v2840
    %4258 = vmatpush1.bf16.msra.mxu0 %v2839
    %4259 = vmatprep.subr.bf16.mxu0 %v2844
    %4260 = vmatpush1.bf16.msra.mxu0 %v2843
    %4261 = vmatprep.subr.bf16.mxu0 %v2848
    %4262 = vmatpush1.bf16.msra.mxu0 %v2847
    %4263 = vmatprep.subr.bf16.mxu0 %v2852
    %4264 = vmatpush1.bf16.msra.mxu0 %v2851
    %4265 = vmatprep.subr.bf16.mxu0 %v2856
    %4266 = vmatpush1.bf16.msra.mxu0 %v2855
    %4267 = vmatprep.subr.bf16.mxu0 0
    %4268 = vmatpush1.bf16.msra.mxu0 0
    %4269 = vmatprep.subr.bf16.mxu0 0
    %4270 = vmatpush1.bf16.msra.mxu0 0
    %4271 = vmatprep.subr.bf16.mxu0 0
    %4272 = vmatpush1.bf16.msra.mxu0 0
    %4273 = vmatprep.subr.bf16.mxu0 0
    %4274 = vmatpush1.bf16.msra.mxu0 0
    %4275 = vmatprep.subr.bf16.mxu0 0
    %4276 = vmatpush1.bf16.msra.mxu0 0
    %4277 = vmatprep.subr.bf16.mxu0 0
    %4278 = vmatpush1.bf16.msra.mxu0 0
    %4279 = vmatprep.subr.bf16.mxu0 0
    %4280 = vmatpush1.bf16.msra.mxu0 0
    %4281 = vmatprep.subr.bf16.mxu0 0
    %4282 = vmatpush1.bf16.msra.mxu0 0
    %4283 = vmatprep.mubr.bf16.mxu0 0
    %4284 = vmatmul.mubr.bf16.gmra.mrb[0].mxu0 %v3867
    %v4285 = vpop.f32.mrb[0].mxu0
    %v4286 = vadd.f32 0.0, %v4285
    %v4287 = vpop.f32.mrb[0].mxu0
    %v4288 = vadd.f32 0.0, %v4287
    %v4289 = vpop.f32.mrb[0].mxu0
    %v4290 = vpop.f32.mrb[0].mxu0
    %4291 = vdwg.mxu0
    %4292 = vmatprep.subr.bf16.mxu0 %v2830
    %4293 = vmatpush1.bf16.msra.mxu0 %v2829
    %4294 = vmatprep.subr.bf16.mxu0 %v2834
    %4295 = vmatpush1.bf16.msra.mxu0 %v2833
    %4296 = vmatprep.subr.bf16.mxu0 %v2838
    %4297 = vmatpush1.bf16.msra.mxu0 %v2837
    %4298 = vmatprep.subr.bf16.mxu0 %v2842
    %4299 = vmatpush1.bf16.msra.mxu0 %v2841
    %4300 = vmatprep.subr.bf16.mxu0 %v2846
    %4301 = vmatpush1.bf16.msra.mxu0 %v2845
    %4302 = vmatprep.subr.bf16.mxu0 %v2850
    %4303 = vmatpush1.bf16.msra.mxu0 %v2849
    %4304 = vmatprep.subr.bf16.mxu0 %v2854
    %4305 = vmatpush1.bf16.msra.mxu0 %v2853
    %4306 = vmatprep.subr.bf16.mxu0 %v2858
    %4307 = vmatpush1.bf16.msra.mxu0 %v2857
    %4308 = vmatprep.subr.bf16.mxu0 0
    %4309 = vmatpush1.bf16.msra.mxu0 0
    %4310 = vmatprep.subr.bf16.mxu0 0
    %4311 = vmatpush1.bf16.msra.mxu0 0
    %4312 = vmatprep.subr.bf16.mxu0 0
    %4313 = vmatpush1.bf16.msra.mxu0 0
    %4314 = vmatprep.subr.bf16.mxu0 0
    %4315 = vmatpush1.bf16.msra.mxu0 0
    %4316 = vmatprep.subr.bf16.mxu0 0
    %4317 = vmatpush1.bf16.msra.mxu0 0
    %4318 = vmatprep.subr.bf16.mxu0 0
    %4319 = vmatpush1.bf16.msra.mxu0 0
    %4320 = vmatprep.subr.bf16.mxu0 0
    %4321 = vmatpush1.bf16.msra.mxu0 0
    %4322 = vmatprep.subr.bf16.mxu0 0
    %4323 = vmatpush1.bf16.msra.mxu0 0
    %4324 = vmatprep.mubr.bf16.mxu0 0
    %4325 = vmatmul.mubr.bf16.gmra.mrb[0].mxu0 %v3867
    %v4326 = vpop.f32.mrb[0].mxu0
    %v4327 = vadd.f32 0.0, %v4326
    %v4328 = vpop.f32.mrb[0].mxu0
    %v4329 = vadd.f32 0.0, %v4328
    %v4330 = vpop.f32.mrb[0].mxu0
    %v4331 = vpop.f32.mrb[0].mxu0
    %4332 = vdwg.mxu0
    %v4335 = vunpack.c.l.b16 %v4249
    %v4336 = vunpack.c.l.b16 %v4250
    %v4337 = vrot.slane %v4336, 7
    %v4338 = vsel %vm1726, %v4337, %v4335
    %v4339 = vpack.c.b16 %v4338, %v4338
    %4341 = vmatprep.subr.bf16.mxu0 %v1827
    %4342 = vmatpush1.bf16.msra.mxu0 %v1826
    %4343 = vmatprep.subr.bf16.mxu0 %v1831
    %4344 = vmatpush1.bf16.msra.mxu0 %v1830
    %4345 = vmatprep.subr.bf16.mxu0 %v1835
    %4346 = vmatpush1.bf16.msra.mxu0 %v1834
    %4347 = vmatprep.subr.bf16.mxu0 %v1839
    %4348 = vmatpush1.bf16.msra.mxu0 %v1838
    %4349 = vmatprep.subr.bf16.mxu0 %v1843
    %4350 = vmatpush1.bf16.msra.mxu0 %v1842
    %4351 = vmatprep.subr.bf16.mxu0 %v1847
    %4352 = vmatpush1.bf16.msra.mxu0 %v1846
    %4353 = vmatprep.subr.bf16.mxu0 %v1851
    %4354 = vmatpush1.bf16.msra.mxu0 %v1850
    %4355 = vmatprep.subr.bf16.mxu0 %v1855
    %4356 = vmatpush1.bf16.msra.mxu0 %v1854
    %4357 = vmatprep.subr.bf16.mxu0 0
    %4358 = vmatpush1.bf16.msra.mxu0 0
    %4359 = vmatprep.subr.bf16.mxu0 0
    %4360 = vmatpush1.bf16.msra.mxu0 0
    %4361 = vmatprep.subr.bf16.mxu0 0
    %4362 = vmatpush1.bf16.msra.mxu0 0
    %4363 = vmatprep.subr.bf16.mxu0 0
    %4364 = vmatpush1.bf16.msra.mxu0 0
    %4365 = vmatprep.subr.bf16.mxu0 0
    %4366 = vmatpush1.bf16.msra.mxu0 0
    %4367 = vmatprep.subr.bf16.mxu0 0
    %4368 = vmatpush1.bf16.msra.mxu0 0
    %4369 = vmatprep.subr.bf16.mxu0 0
    %4370 = vmatpush1.bf16.msra.mxu0 0
    %4371 = vmatprep.subr.bf16.mxu0 0
    %4372 = vmatpush1.bf16.msra.mxu0 0
    %4373 = vmatprep.mubr.bf16.mxu0 0
    %4374 = vmatmul.mubr.bf16.gmra.mrb[0].mxu0 %v4339
    %v4375 = vpop.f32.mrb[0].mxu0
    %v4376 = vadd.f32 %v4286, %v4375
    %v4377 = vpop.f32.mrb[0].mxu0
    %v4378 = vadd.f32 %v4288, %v4377
    %v4379 = vpop.f32.mrb[0].mxu0
    %v4380 = vpop.f32.mrb[0].mxu0
    %4381 = vdwg.mxu0
    %4382 = vmatprep.subr.bf16.mxu0 %v1829
    %4383 = vmatpush1.bf16.msra.mxu0 %v1828
    %4384 = vmatprep.subr.bf16.mxu0 %v1833
    %4385 = vmatpush1.bf16.msra.mxu0 %v1832
    %4386 = vmatprep.subr.bf16.mxu0 %v1837
    %4387 = vmatpush1.bf16.msra.mxu0 %v1836
    %4388 = vmatprep.subr.bf16.mxu0 %v1841
    %4389 = vmatpush1.bf16.msra.mxu0 %v1840
    %4390 = vmatprep.subr.bf16.mxu0 %v1845
    %4391 = vmatpush1.bf16.msra.mxu0 %v1844
    %4392 = vmatprep.subr.bf16.mxu0 %v1849
    %4393 = vmatpush1.bf16.msra.mxu0 %v1848
    %4394 = vmatprep.subr.bf16.mxu0 %v1853
    %4395 = vmatpush1.bf16.msra.mxu0 %v1852
    %4396 = vmatprep.subr.bf16.mxu0 %v1857
    %4397 = vmatpush1.bf16.msra.mxu0 %v1856
    %4398 = vmatprep.subr.bf16.mxu0 0
    %4399 = vmatpush1.bf16.msra.mxu0 0
    %4400 = vmatprep.subr.bf16.mxu0 0
    %4401 = vmatpush1.bf16.msra.mxu0 0
    %4402 = vmatprep.subr.bf16.mxu0 0
    %4403 = vmatpush1.bf16.msra.mxu0 0
    %4404 = vmatprep.subr.bf16.mxu0 0
    %4405 = vmatpush1.bf16.msra.mxu0 0
    %4406 = vmatprep.subr.bf16.mxu0 0
    %4407 = vmatpush1.bf16.msra.mxu0 0
    %4408 = vmatprep.subr.bf16.mxu0 0
    %4409 = vmatpush1.bf16.msra.mxu0 0
    %4410 = vmatprep.subr.bf16.mxu0 0
    %4411 = vmatpush1.bf16.msra.mxu0 0
    %4412 = vmatprep.subr.bf16.mxu0 0
    %4413 = vmatpush1.bf16.msra.mxu0 0
    %4414 = vmatprep.mubr.bf16.mxu0 0
    %4415 = vmatmul.mubr.bf16.gmra.mrb[0].mxu0 %v4339
    %v4416 = vpop.f32.mrb[0].mxu0
    %v4417 = vadd.f32 %v4327, %v4416
    %v4418 = vpop.f32.mrb[0].mxu0
    %v4419 = vadd.f32 %v4329, %v4418
    %v4420 = vpop.f32.mrb[0].mxu0
    %v4421 = vpop.f32.mrb[0].mxu0
    %4422 = vdwg.mxu0
    %v4423 = vadd.f32 %v4376, %v1704
    %v4424 = vadd.f32 %v4378, %v1708
    %v4425 = vadd.f32 %v4417, %v1712
    %v4426 = vadd.f32 %v4419, %v1716
    %v4427 = vxor.u32 %v4423, 2147483648
    %v4428 = vmul.f32 %v4427, 1.442695
    %v4429 = vpow.pop %v4428
    %v4430 = vadd.f32 %v4429, 1.0
    %v4431 = vrcp.pop %v4430
    %v4432 = vmul.f32 1.0, %v4431
    %v4433 = vxor.u32 %v4424, 2147483648
    %v4434 = vmul.f32 %v4433, 1.442695
    %v4435 = vpow.pop %v4434
    %v4436 = vadd.f32 %v4435, 1.0
    %v4437 = vrcp.pop %v4436
    %v4438 = vmul.f32 1.0, %v4437
    %v4439 = vtanh.pop %v4425
    %v4440 = vxor.u32 %v4426, 2147483648
    %v4441 = vmul.f32 %v4440, 1.442695
    %v4442 = vpow.pop %v4441
    %v4443 = vadd.f32 %v4442, 1.0
    %v4444 = vrcp.pop %v4443
    %v4445 = vmul.f32 1.0, %v4444
    %v4446 = vmul.f32 %v4438, %v3864
    %v4447 = vmul.f32 %v4432, %v4439
    %v4448 = vadd.f32 %v4446, %v4447
    %v4449 = vtanh.pop %v4448
    %v4450 = vmul.f32 %v4445, %v4449
    %v4451 = vpack.c.bf16 %v4450, %v4450
    %v4452 = vpack.c.bf16 %v4060, %v4060
    %4453 = vmatprep.subr.bf16.mxu0 %v3222
    %4454 = vmatpush1.bf16.msra.mxu0 %v3221
    %4455 = vmatprep.subr.bf16.mxu0 %v3226
    %4456 = vmatpush1.bf16.msra.mxu0 %v3225
    %4457 = vmatprep.subr.bf16.mxu0 %v3230
    %4458 = vmatpush1.bf16.msra.mxu0 %v3229
    %4459 = vmatprep.subr.bf16.mxu0 %v3234
    %4460 = vmatpush1.bf16.msra.mxu0 %v3233
    %4461 = vmatprep.subr.bf16.mxu0 %v3238
    %4462 = vmatpush1.bf16.msra.mxu0 %v3237
    %4463 = vmatprep.subr.bf16.mxu0 %v3242
    %4464 = vmatpush1.bf16.msra.mxu0 %v3241
    %4465 = vmatprep.subr.bf16.mxu0 %v3246
    %4466 = vmatpush1.bf16.msra.mxu0 %v3245
    %4467 = vmatprep.subr.bf16.mxu0 %v3250
    %4468 = vmatpush1.bf16.msra.mxu0 %v3249
    %4469 = vmatprep.subr.bf16.mxu0 0
    %4470 = vmatpush1.bf16.msra.mxu0 0
    %4471 = vmatprep.subr.bf16.mxu0 0
    %4472 = vmatpush1.bf16.msra.mxu0 0
    %4473 = vmatprep.subr.bf16.mxu0 0
    %4474 = vmatpush1.bf16.msra.mxu0 0
    %4475 = vmatprep.subr.bf16.mxu0 0
    %4476 = vmatpush1.bf16.msra.mxu0 0
    %4477 = vmatprep.subr.bf16.mxu0 0
    %4478 = vmatpush1.bf16.msra.mxu0 0
    %4479 = vmatprep.subr.bf16.mxu0 0
    %4480 = vmatpush1.bf16.msra.mxu0 0
    %4481 = vmatprep.subr.bf16.mxu0 0
    %4482 = vmatpush1.bf16.msra.mxu0 0
    %4483 = vmatprep.subr.bf16.mxu0 0
    %4484 = vmatpush1.bf16.msra.mxu0 0
    %4485 = vmatprep.mubr.bf16.mxu0 0
    %4486 = vmatmul.mubr.bf16.gmra.mrb[0].mxu0 %v4452
    %v4487 = vpop.f32.mrb[0].mxu0
    %v4488 = vadd.f32 0.0, %v4487
    %v4489 = vpop.f32.mrb[0].mxu0
    %v4490 = vadd.f32 0.0, %v4489
    %v4491 = vpop.f32.mrb[0].mxu0
    %v4492 = vpop.f32.mrb[0].mxu0
    %4493 = vdwg.mxu0
    %4494 = vmatprep.subr.bf16.mxu0 %v3224
    %4495 = vmatpush1.bf16.msra.mxu0 %v3223
    %4496 = vmatprep.subr.bf16.mxu0 %v3228
    %4497 = vmatpush1.bf16.msra.mxu0 %v3227
    %4498 = vmatprep.subr.bf16.mxu0 %v3232
    %4499 = vmatpush1.bf16.msra.mxu0 %v3231
    %4500 = vmatprep.subr.bf16.mxu0 %v3236
    %4501 = vmatpush1.bf16.msra.mxu0 %v3235
    %4502 = vmatprep.subr.bf16.mxu0 %v3240
    %4503 = vmatpush1.bf16.msra.mxu0 %v3239
    %4504 = vmatprep.subr.bf16.mxu0 %v3244
    %4505 = vmatpush1.bf16.msra.mxu0 %v3243
    %4506 = vmatprep.subr.bf16.mxu0 %v3248
    %4507 = vmatpush1.bf16.msra.mxu0 %v3247
    %4508 = vmatprep.subr.bf16.mxu0 %v3252
    %4509 = vmatpush1.bf16.msra.mxu0 %v3251
    %4510 = vmatprep.subr.bf16.mxu0 0
    %4511 = vmatpush1.bf16.msra.mxu0 0
    %4512 = vmatprep.subr.bf16.mxu0 0
    %4513 = vmatpush1.bf16.msra.mxu0 0
    %4514 = vmatprep.subr.bf16.mxu0 0
    %4515 = vmatpush1.bf16.msra.mxu0 0
    %4516 = vmatprep.subr.bf16.mxu0 0
    %4517 = vmatpush1.bf16.msra.mxu0 0
    %4518 = vmatprep.subr.bf16.mxu0 0
    %4519 = vmatpush1.bf16.msra.mxu0 0
    %4520 = vmatprep.subr.bf16.mxu0 0
    %4521 = vmatpush1.bf16.msra.mxu0 0
    %4522 = vmatprep.subr.bf16.mxu0 0
    %4523 = vmatpush1.bf16.msra.mxu0 0
    %4524 = vmatprep.subr.bf16.mxu0 0
    %4525 = vmatpush1.bf16.msra.mxu0 0
    %4526 = vmatprep.mubr.bf16.mxu0 0
    %4527 = vmatmul.mubr.bf16.gmra.mrb[0].mxu0 %v4452
    %v4528 = vpop.f32.mrb[0].mxu0
    %v4529 = vadd.f32 0.0, %v4528
    %v4530 = vpop.f32.mrb[0].mxu0
    %v4531 = vadd.f32 0.0, %v4530
    %v4532 = vpop.f32.mrb[0].mxu0
    %v4533 = vpop.f32.mrb[0].mxu0
    %4534 = vdwg.mxu0
    %4535 = vmatprep.subr.bf16.mxu0 %v2148
    %4536 = vmatpush1.bf16.msra.mxu0 %v2147
    %4537 = vmatprep.subr.bf16.mxu0 %v2152
    %4538 = vmatpush1.bf16.msra.mxu0 %v2151
    %4539 = vmatprep.subr.bf16.mxu0 %v2156
    %4540 = vmatpush1.bf16.msra.mxu0 %v2155
    %4541 = vmatprep.subr.bf16.mxu0 %v2160
    %4542 = vmatpush1.bf16.msra.mxu0 %v2159
    %4543 = vmatprep.subr.bf16.mxu0 %v2164
    %4544 = vmatpush1.bf16.msra.mxu0 %v2163
    %4545 = vmatprep.subr.bf16.mxu0 %v2168
    %4546 = vmatpush1.bf16.msra.mxu0 %v2167
    %4547 = vmatprep.subr.bf16.mxu0 %v2172
    %4548 = vmatpush1.bf16.msra.mxu0 %v2171
    %4549 = vmatprep.subr.bf16.mxu0 %v2176
    %4550 = vmatpush1.bf16.msra.mxu0 %v2175
    %4551 = vmatprep.subr.bf16.mxu0 0
    %4552 = vmatpush1.bf16.msra.mxu0 0
    %4553 = vmatprep.subr.bf16.mxu0 0
    %4554 = vmatpush1.bf16.msra.mxu0 0
    %4555 = vmatprep.subr.bf16.mxu0 0
    %4556 = vmatpush1.bf16.msra.mxu0 0
    %4557 = vmatprep.subr.bf16.mxu0 0
    %4558 = vmatpush1.bf16.msra.mxu0 0
    %4559 = vmatprep.subr.bf16.mxu0 0
    %4560 = vmatpush1.bf16.msra.mxu0 0
    %4561 = vmatprep.subr.bf16.mxu0 0
    %4562 = vmatpush1.bf16.msra.mxu0 0
    %4563 = vmatprep.subr.bf16.mxu0 0
    %4564 = vmatpush1.bf16.msra.mxu0 0
    %4565 = vmatprep.subr.bf16.mxu0 0
    %4566 = vmatpush1.bf16.msra.mxu0 0
    %4567 = vmatprep.mubr.bf16.mxu0 0
    %4568 = vmatmul.mubr.bf16.gmra.mrb[0].mxu0 %v4451
    %v4569 = vpop.f32.mrb[0].mxu0
    %v4570 = vadd.f32 %v4488, %v4569
    %v4571 = vpop.f32.mrb[0].mxu0
    %v4572 = vadd.f32 %v4490, %v4571
    %v4573 = vpop.f32.mrb[0].mxu0
    %v4574 = vpop.f32.mrb[0].mxu0
    %4575 = vdwg.mxu0
    %4576 = vmatprep.subr.bf16.mxu0 %v2150
    %4577 = vmatpush1.bf16.msra.mxu0 %v2149
    %4578 = vmatprep.subr.bf16.mxu0 %v2154
    %4579 = vmatpush1.bf16.msra.mxu0 %v2153
    %4580 = vmatprep.subr.bf16.mxu0 %v2158
    %4581 = vmatpush1.bf16.msra.mxu0 %v2157
    %4582 = vmatprep.subr.bf16.mxu0 %v2162
    %4583 = vmatpush1.bf16.msra.mxu0 %v2161
    %4584 = vmatprep.subr.bf16.mxu0 %v2166
    %4585 = vmatpush1.bf16.msra.mxu0 %v2165
    %4586 = vmatprep.subr.bf16.mxu0 %v2170
    %4587 = vmatpush1.bf16.msra.mxu0 %v2169
    %4588 = vmatprep.subr.bf16.mxu0 %v2174
    %4589 = vmatpush1.bf16.msra.mxu0 %v2173
    %4590 = vmatprep.subr.bf16.mxu0 %v2178
    %4591 = vmatpush1.bf16.msra.mxu0 %v2177
    %4592 = vmatprep.subr.bf16.mxu0 0
    %4593 = vmatpush1.bf16.msra.mxu0 0
    %4594 = vmatprep.subr.bf16.mxu0 0
    %4595 = vmatpush1.bf16.msra.mxu0 0
    %4596 = vmatprep.subr.bf16.mxu0 0
    %4597 = vmatpush1.bf16.msra.mxu0 0
    %4598 = vmatprep.subr.bf16.mxu0 0
    %4599 = vmatpush1.bf16.msra.mxu0 0
    %4600 = vmatprep.subr.bf16.mxu0 0
    %4601 = vmatpush1.bf16.msra.mxu0 0
    %4602 = vmatprep.subr.bf16.mxu0 0
    %4603 = vmatpush1.bf16.msra.mxu0 0
    %4604 = vmatprep.subr.bf16.mxu0 0
    %4605 = vmatpush1.bf16.msra.mxu0 0
    %4606 = vmatprep.subr.bf16.mxu0 0
    %4607 = vmatpush1.bf16.msra.mxu0 0
    %4608 = vmatprep.mubr.bf16.mxu0 0
    %4609 = vmatmul.mubr.bf16.gmra.mrb[0].mxu0 %v4451
    %v4610 = vpop.f32.mrb[0].mxu0
    %v4611 = vadd.f32 %v4529, %v4610
    %v4612 = vpop.f32.mrb[0].mxu0
    %v4613 = vadd.f32 %v4531, %v4612
    %v4614 = vpop.f32.mrb[0].mxu0
    %v4615 = vpop.f32.mrb[0].mxu0
    %4616 = vdwg.mxu0
    %v4617 = vadd.f32 %v4570, %v2034
    %v4618 = vadd.f32 %v4572, %v2038
    %v4619 = vadd.f32 %v4611, %v2042
    %v4620 = vadd.f32 %v4613, %v2046
    %v4621 = vxor.u32 %v4617, 2147483648
    %v4622 = vmul.f32 %v4621, 1.442695
    %v4623 = vpow.pop %v4622
    %v4624 = vadd.f32 %v4623, 1.0
    %v4625 = vrcp.pop %v4624
    %v4626 = vmul.f32 1.0, %v4625
    %v4627 = vxor.u32 %v4618, 2147483648
    %v4628 = vmul.f32 %v4627, 1.442695
    %v4629 = vpow.pop %v4628
    %v4630 = vadd.f32 %v4629, 1.0
    %v4631 = vrcp.pop %v4630
    %v4632 = vmul.f32 1.0, %v4631
    %v4633 = vtanh.pop %v4619
    %v4634 = vxor.u32 %v4620, 2147483648
    %v4635 = vmul.f32 %v4634, 1.442695
    %v4636 = vpow.pop %v4635
    %v4637 = vadd.f32 %v4636, 1.0
    %v4638 = vrcp.pop %v4637
    %v4639 = vmul.f32 1.0, %v4638
    %v4640 = vmul.f32 %v4632, %v4058
    %v4641 = vmul.f32 %v4626, %v4633
    %v4642 = vadd.f32 %v4640, %v4641
    %v4643 = vtanh.pop %v4642
    %v4644 = vmul.f32 %v4639, %v4643
    %s4645 = scalar_lea.vmem [#allocation2], 4
    %v4646 = vld [vmem:[%s4645] ss:$8 sm:$0xf]
    %s4647 = scalar_lea.vmem [#allocation2], 36
    %v4648 = vld [vmem:[%s4647] ss:$8 sm:$0xf]
    %4649 = vmatprep.subr.bf16.mxu0 %v2450
    %4650 = vmatpush1.bf16.msra.mxu0 %v2449
    %4651 = vmatprep.subr.bf16.mxu0 %v2454
    %4652 = vmatpush1.bf16.msra.mxu0 %v2453
    %4653 = vmatprep.subr.bf16.mxu0 %v2458
    %4654 = vmatpush1.bf16.msra.mxu0 %v2457
    %4655 = vmatprep.subr.bf16.mxu0 %v2462
    %4656 = vmatpush1.bf16.msra.mxu0 %v2461
    %4657 = vmatprep.subr.bf16.mxu0 %v2466
    %4658 = vmatpush1.bf16.msra.mxu0 %v2465
    %4659 = vmatprep.subr.bf16.mxu0 %v2470
    %4660 = vmatpush1.bf16.msra.mxu0 %v2469
    %4661 = vmatprep.subr.bf16.mxu0 %v2474
    %4662 = vmatpush1.bf16.msra.mxu0 %v2473
    %4663 = vmatprep.subr.bf16.mxu0 %v2478
    %4664 = vmatpush1.bf16.msra.mxu0 %v2477
    %4665 = vmatprep.subr.bf16.mxu0 0
    %4666 = vmatpush1.bf16.msra.mxu0 0
    %4667 = vmatprep.subr.bf16.mxu0 0
    %4668 = vmatpush1.bf16.msra.mxu0 0
    %4669 = vmatprep.subr.bf16.mxu0 0
    %4670 = vmatpush1.bf16.msra.mxu0 0
    %4671 = vmatprep.subr.bf16.mxu0 0
    %4672 = vmatpush1.bf16.msra.mxu0 0
    %4673 = vmatprep.subr.bf16.mxu0 0
    %4674 = vmatpush1.bf16.msra.mxu0 0
    %4675 = vmatprep.subr.bf16.mxu0 0
    %4676 = vmatpush1.bf16.msra.mxu0 0
    %4677 = vmatprep.subr.bf16.mxu0 0
    %4678 = vmatpush1.bf16.msra.mxu0 0
    %4679 = vmatprep.subr.bf16.mxu0 0
    %4680 = vmatpush1.bf16.msra.mxu0 0
    %4681 = vmatprep.mubr.bf16.mxu0 0
    %4682 = vmatmul.mubr.bf16.gmra.mrb[0].mxu0 %v4339
    %v4683 = vpop.f32.mrb[0].mxu0
    %v4684 = vadd.f32 0.0, %v4683
    %v4685 = vpop.f32.mrb[0].mxu0
    %v4686 = vadd.f32 0.0, %v4685
    %v4687 = vpop.f32.mrb[0].mxu0
    %v4688 = vpop.f32.mrb[0].mxu0
    %4689 = vdwg.mxu0
    %4690 = vmatprep.subr.bf16.mxu0 %v2452
    %4691 = vmatpush1.bf16.msra.mxu0 %v2451
    %4692 = vmatprep.subr.bf16.mxu0 %v2456
    %4693 = vmatpush1.bf16.msra.mxu0 %v2455
    %4694 = vmatprep.subr.bf16.mxu0 %v2460
    %4695 = vmatpush1.bf16.msra.mxu0 %v2459
    %4696 = vmatprep.subr.bf16.mxu0 %v2464
    %4697 = vmatpush1.bf16.msra.mxu0 %v2463
    %4698 = vmatprep.subr.bf16.mxu0 %v2468
    %4699 = vmatpush1.bf16.msra.mxu0 %v2467
    %4700 = vmatprep.subr.bf16.mxu0 %v2472
    %4701 = vmatpush1.bf16.msra.mxu0 %v2471
    %4702 = vmatprep.subr.bf16.mxu0 %v2476
    %4703 = vmatpush1.bf16.msra.mxu0 %v2475
    %4704 = vmatprep.subr.bf16.mxu0 %v2480
    %4705 = vmatpush1.bf16.msra.mxu0 %v2479
    %4706 = vmatprep.subr.bf16.mxu0 0
    %4707 = vmatpush1.bf16.msra.mxu0 0
    %4708 = vmatprep.subr.bf16.mxu0 0
    %4709 = vmatpush1.bf16.msra.mxu0 0
    %4710 = vmatprep.subr.bf16.mxu0 0
    %4711 = vmatpush1.bf16.msra.mxu0 0
    %4712 = vmatprep.subr.bf16.mxu0 0
    %4713 = vmatpush1.bf16.msra.mxu0 0
    %4714 = vmatprep.subr.bf16.mxu0 0
    %4715 = vmatpush1.bf16.msra.mxu0 0
    %4716 = vmatprep.subr.bf16.mxu0 0
    %4717 = vmatpush1.bf16.msra.mxu0 0
    %4718 = vmatprep.subr.bf16.mxu0 0
    %4719 = vmatpush1.bf16.msra.mxu0 0
    %4720 = vmatprep.subr.bf16.mxu0 0
    %4721 = vmatpush1.bf16.msra.mxu0 0
    %4722 = vmatprep.mubr.bf16.mxu0 0
    %4723 = vmatmul.mubr.bf16.gmra.mrb[0].mxu0 %v4339
    %v4724 = vpop.f32.mrb[0].mxu0
    %v4725 = vadd.f32 0.0, %v4724
    %v4726 = vpop.f32.mrb[0].mxu0
    %v4727 = vadd.f32 0.0, %v4726
    %v4728 = vpop.f32.mrb[0].mxu0
    %v4729 = vpop.f32.mrb[0].mxu0
    %4730 = vdwg.mxu0
    %v4735 = vcombine.low %v4684, %v4686
    %v4736 = vcombine.low %v4725, %v4727
    %v4738 = vunpack.c.l.s4 1966171168
    %v4739 = vunpack.c.0.s8 %v4738
    %v4740 = vlaneseq
    %v4741 = vshrl.u32 %v4740, 7
    %v4742 = vsub.s32 %v4739, %v4741
    %v4743 = vrot.slane %v4735, %v4742
    %v4745 = vunpack.c.l.s4 1966171168
    %v4746 = vunpack.c.0.s8 %v4745
    %v4747 = vlaneseq
    %v4748 = vshrl.u32 %v4747, 7
    %v4749 = vsub.s32 %v4746, %v4748
    %v4750 = vrot.slane %v4736, %v4749
    %v4751 = vcombine.low %v4743, %v4750
    %v4752 = vcombine.high %v4743, %v4750
    %v4754 = vunpack.c.l.s4 1966171168
    %v4755 = vunpack.c.0.s8 %v4754
    %v4756 = vlaneseq
    %v4757 = vshrl.u32 %v4756, 7
    %v4758 = vsub.s32 %v4755, %v4757
    %v4759 = vrot.slane %v4751, %v4758
    %v4761 = vunpack.c.l.s4 1966171168
    %v4762 = vunpack.c.0.s8 %v4761
    %v4763 = vlaneseq
    %v4764 = vshrl.u32 %v4763, 7
    %v4765 = vsub.s32 %v4762, %v4764
    %v4766 = vrot.slane %v4752, %v4765
    %v4769 = vadd.f32 %v4646, %v4759
    %v4770 = vadd.f32 %v4648, %v4766
    %v4771 = vxor.u32 %v4769, 2147483648
    %v4772 = vxor.u32 %v4770, 2147483648
    %v4773 = vmul.f32 %v4771, 1.442695
    %v4774 = vpow.pop %v4773
    %v4775 = vmul.f32 %v4772, 1.442695
    %v4776 = vpow.pop %v4775
    %v4777 = vadd.f32 %v4774, 1.0
    %v4778 = vadd.f32 %v4776, 1.0
    %v4779 = vrcp.pop %v4777
    %v4780 = vmul.f32 1.0, %v4779
    %v4781 = vrcp.pop %v4778
    %v4782 = vmul.f32 1.0, %v4781
    %v4785 = vrot.slane %v4769, 1
    %v4786 = vrot.slane %v4770, 1
    %v4789 = vxor.u32 %v4785, 2147483648
    %v4790 = vxor.u32 %v4786, 2147483648
    %v4791 = vmul.f32 %v4789, 1.442695
    %v4792 = vpow.pop %v4791
    %v4793 = vmul.f32 %v4790, 1.442695
    %v4794 = vpow.pop %v4793
    %v4795 = vadd.f32 %v4792, 1.0
    %v4796 = vadd.f32 %v4794, 1.0
    %v4797 = vrcp.pop %v4795
    %v4798 = vmul.f32 1.0, %v4797
    %v4799 = vrcp.pop %v4796
    %v4800 = vmul.f32 1.0, %v4799
    %v4801 = vrot.slane %v4769, 2
    %v4802 = vrot.slane %v4770, 2
    %v4805 = vtanh.pop %v4801
    %v4806 = vtanh.pop %v4802
    %v4807 = vrot.slane %v4769, 3
    %v4808 = vrot.slane %v4770, 3
    %v4811 = vxor.u32 %v4807, 2147483648
    %v4812 = vxor.u32 %v4808, 2147483648
    %v4813 = vmul.f32 %v4811, 1.442695
    %v4814 = vpow.pop %v4813
    %v4815 = vmul.f32 %v4812, 1.442695
    %v4816 = vpow.pop %v4815
    %v4817 = vadd.f32 %v4814, 1.0
    %v4818 = vadd.f32 %v4816, 1.0
    %v4819 = vrcp.pop %v4817
    %v4820 = vmul.f32 1.0, %v4819
    %v4821 = vrcp.pop %v4818
    %v4822 = vmul.f32 1.0, %v4821
    %v4823 = vmul.f32 %v4798, %v4243
    %v4824 = vmul.f32 %v4800, %v4244
    %v4825 = vmul.f32 %v4780, %v4805
    %v4826 = vmul.f32 %v4782, %v4806
    %v4827 = vadd.f32 %v4823, %v4825
    %v4828 = vadd.f32 %v4824, %v4826
    %v4829 = vtanh.pop %v4827
    %v4830 = vtanh.pop %v4828
    %v4831 = vmul.f32 %v4820, %v4829
    %v4832 = vmul.f32 %v4822, %v4830
    %v4833 = vpack.c.bf16 %v4831, %v4831
    %v4834 = vpack.c.bf16 %v4832, %v4832
    %4835 = vmatprep.subr.bf16.mxu0 %v2828
    %4836 = vmatpush1.bf16.msra.mxu0 %v2827
    %4837 = vmatprep.subr.bf16.mxu0 %v2832
    %4838 = vmatpush1.bf16.msra.mxu0 %v2831
    %4839 = vmatprep.subr.bf16.mxu0 %v2836
    %4840 = vmatpush1.bf16.msra.mxu0 %v2835
    %4841 = vmatprep.subr.bf16.mxu0 %v2840
    %4842 = vmatpush1.bf16.msra.mxu0 %v2839
    %4843 = vmatprep.subr.bf16.mxu0 %v2844
    %4844 = vmatpush1.bf16.msra.mxu0 %v2843
    %4845 = vmatprep.subr.bf16.mxu0 %v2848
    %4846 = vmatpush1.bf16.msra.mxu0 %v2847
    %4847 = vmatprep.subr.bf16.mxu0 %v2852
    %4848 = vmatpush1.bf16.msra.mxu0 %v2851
    %4849 = vmatprep.subr.bf16.mxu0 %v2856
    %4850 = vmatpush1.bf16.msra.mxu0 %v2855
    %4851 = vmatprep.subr.bf16.mxu0 0
    %4852 = vmatpush1.bf16.msra.mxu0 0
    %4853 = vmatprep.subr.bf16.mxu0 0
    %4854 = vmatpush1.bf16.msra.mxu0 0
    %4855 = vmatprep.subr.bf16.mxu0 0
    %4856 = vmatpush1.bf16.msra.mxu0 0
    %4857 = vmatprep.subr.bf16.mxu0 0
    %4858 = vmatpush1.bf16.msra.mxu0 0
    %4859 = vmatprep.subr.bf16.mxu0 0
    %4860 = vmatpush1.bf16.msra.mxu0 0
    %4861 = vmatprep.subr.bf16.mxu0 0
    %4862 = vmatpush1.bf16.msra.mxu0 0
    %4863 = vmatprep.subr.bf16.mxu0 0
    %4864 = vmatpush1.bf16.msra.mxu0 0
    %4865 = vmatprep.subr.bf16.mxu0 0
    %4866 = vmatpush1.bf16.msra.mxu0 0
    %4867 = vmatprep.mubr.bf16.mxu0 0
    %4868 = vmatmul.mubr.bf16.gmra.mrb[0].mxu0 %v4451
    %v4869 = vpop.f32.mrb[0].mxu0
    %v4870 = vadd.f32 0.0, %v4869
    %v4871 = vpop.f32.mrb[0].mxu0
    %v4872 = vadd.f32 0.0, %v4871
    %v4873 = vpop.f32.mrb[0].mxu0
    %v4874 = vpop.f32.mrb[0].mxu0
    %4875 = vdwg.mxu0
    %4876 = vmatprep.subr.bf16.mxu0 %v2830
    %4877 = vmatpush1.bf16.msra.mxu0 %v2829
    %4878 = vmatprep.subr.bf16.mxu0 %v2834
    %4879 = vmatpush1.bf16.msra.mxu0 %v2833
    %4880 = vmatprep.subr.bf16.mxu0 %v2838
    %4881 = vmatpush1.bf16.msra.mxu0 %v2837
    %4882 = vmatprep.subr.bf16.mxu0 %v2842
    %4883 = vmatpush1.bf16.msra.mxu0 %v2841
    %4884 = vmatprep.subr.bf16.mxu0 %v2846
    %4885 = vmatpush1.bf16.msra.mxu0 %v2845
    %4886 = vmatprep.subr.bf16.mxu0 %v2850
    %4887 = vmatpush1.bf16.msra.mxu0 %v2849
    %4888 = vmatprep.subr.bf16.mxu0 %v2854
    %4889 = vmatpush1.bf16.msra.mxu0 %v2853
    %4890 = vmatprep.subr.bf16.mxu0 %v2858
    %4891 = vmatpush1.bf16.msra.mxu0 %v2857
    %4892 = vmatprep.subr.bf16.mxu0 0
    %4893 = vmatpush1.bf16.msra.mxu0 0
    %4894 = vmatprep.subr.bf16.mxu0 0
    %4895 = vmatpush1.bf16.msra.mxu0 0
    %4896 = vmatprep.subr.bf16.mxu0 0
    %4897 = vmatpush1.bf16.msra.mxu0 0
    %4898 = vmatprep.subr.bf16.mxu0 0
    %4899 = vmatpush1.bf16.msra.mxu0 0
    %4900 = vmatprep.subr.bf16.mxu0 0
    %4901 = vmatpush1.bf16.msra.mxu0 0
    %4902 = vmatprep.subr.bf16.mxu0 0
    %4903 = vmatpush1.bf16.msra.mxu0 0
    %4904 = vmatprep.subr.bf16.mxu0 0
    %4905 = vmatpush1.bf16.msra.mxu0 0
    %4906 = vmatprep.subr.bf16.mxu0 0
    %4907 = vmatpush1.bf16.msra.mxu0 0
    %4908 = vmatprep.mubr.bf16.mxu0 0
    %4909 = vmatmul.mubr.bf16.gmra.mrb[0].mxu0 %v4451
    %v4910 = vpop.f32.mrb[0].mxu0
    %v4911 = vadd.f32 0.0, %v4910
    %v4912 = vpop.f32.mrb[0].mxu0
    %v4913 = vadd.f32 0.0, %v4912
    %v4914 = vpop.f32.mrb[0].mxu0
    %v4915 = vpop.f32.mrb[0].mxu0
    %4916 = vdwg.mxu0
    %v4919 = vunpack.c.l.b16 %v4833
    %v4920 = vunpack.c.l.b16 %v4834
    %v4921 = vrot.slane %v4920, 7
    %v4922 = vsel %vm1726, %v4921, %v4919
    %v4923 = vpack.c.b16 %v4922, %v4922
    %4925 = vmatprep.subr.bf16.mxu0 %v1827
    %4926 = vmatpush1.bf16.msra.mxu0 %v1826
    %4927 = vmatprep.subr.bf16.mxu0 %v1831
    %4928 = vmatpush1.bf16.msra.mxu0 %v1830
    %4929 = vmatprep.subr.bf16.mxu0 %v1835
    %4930 = vmatpush1.bf16.msra.mxu0 %v1834
    %4931 = vmatprep.subr.bf16.mxu0 %v1839
    %4932 = vmatpush1.bf16.msra.mxu0 %v1838
    %4933 = vmatprep.subr.bf16.mxu0 %v1843
    %4934 = vmatpush1.bf16.msra.mxu0 %v1842
    %4935 = vmatprep.subr.bf16.mxu0 %v1847
    %4936 = vmatpush1.bf16.msra.mxu0 %v1846
    %4937 = vmatprep.subr.bf16.mxu0 %v1851
    %4938 = vmatpush1.bf16.msra.mxu0 %v1850
    %4939 = vmatprep.subr.bf16.mxu0 %v1855
    %4940 = vmatpush1.bf16.msra.mxu0 %v1854
    %4941 = vmatprep.subr.bf16.mxu0 0
    %4942 = vmatpush1.bf16.msra.mxu0 0
    %4943 = vmatprep.subr.bf16.mxu0 0
    %4944 = vmatpush1.bf16.msra.mxu0 0
    %4945 = vmatprep.subr.bf16.mxu0 0
    %4946 = vmatpush1.bf16.msra.mxu0 0
    %4947 = vmatprep.subr.bf16.mxu0 0
    %4948 = vmatpush1.bf16.msra.mxu0 0
    %4949 = vmatprep.subr.bf16.mxu0 0
    %4950 = vmatpush1.bf16.msra.mxu0 0
    %4951 = vmatprep.subr.bf16.mxu0 0
    %4952 = vmatpush1.bf16.msra.mxu0 0
    %4953 = vmatprep.subr.bf16.mxu0 0
    %4954 = vmatpush1.bf16.msra.mxu0 0
    %4955 = vmatprep.subr.bf16.mxu0 0
    %4956 = vmatpush1.bf16.msra.mxu0 0
    %4957 = vmatprep.mubr.bf16.mxu0 0
    %4958 = vmatmul.mubr.bf16.gmra.mrb[0].mxu0 %v4923
    %v4959 = vpop.f32.mrb[0].mxu0
    %v4960 = vadd.f32 %v4870, %v4959
    %v4961 = vpop.f32.mrb[0].mxu0
    %v4962 = vadd.f32 %v4872, %v4961
    %v4963 = vpop.f32.mrb[0].mxu0
    %v4964 = vpop.f32.mrb[0].mxu0
    %4965 = vdwg.mxu0
    %4966 = vmatprep.subr.bf16.mxu0 %v1829
    %4967 = vmatpush1.bf16.msra.mxu0 %v1828
    %4968 = vmatprep.subr.bf16.mxu0 %v1833
    %4969 = vmatpush1.bf16.msra.mxu0 %v1832
    %4970 = vmatprep.subr.bf16.mxu0 %v1837
    %4971 = vmatpush1.bf16.msra.mxu0 %v1836
    %4972 = vmatprep.subr.bf16.mxu0 %v1841
    %4973 = vmatpush1.bf16.msra.mxu0 %v1840
    %4974 = vmatprep.subr.bf16.mxu0 %v1845
    %4975 = vmatpush1.bf16.msra.mxu0 %v1844
    %4976 = vmatprep.subr.bf16.mxu0 %v1849
    %4977 = vmatpush1.bf16.msra.mxu0 %v1848
    %4978 = vmatprep.subr.bf16.mxu0 %v1853
    %4979 = vmatpush1.bf16.msra.mxu0 %v1852
    %4980 = vmatprep.subr.bf16.mxu0 %v1857
    %4981 = vmatpush1.bf16.msra.mxu0 %v1856
    %4982 = vmatprep.subr.bf16.mxu0 0
    %4983 = vmatpush1.bf16.msra.mxu0 0
    %4984 = vmatprep.subr.bf16.mxu0 0
    %4985 = vmatpush1.bf16.msra.mxu0 0
    %4986 = vmatprep.subr.bf16.mxu0 0
    %4987 = vmatpush1.bf16.msra.mxu0 0
    %4988 = vmatprep.subr.bf16.mxu0 0
    %4989 = vmatpush1.bf16.msra.mxu0 0
    %4990 = vmatprep.subr.bf16.mxu0 0
    %4991 = vmatpush1.bf16.msra.mxu0 0
    %4992 = vmatprep.subr.bf16.mxu0 0
    %4993 = vmatpush1.bf16.msra.mxu0 0
    %4994 = vmatprep.subr.bf16.mxu0 0
    %4995 = vmatpush1.bf16.msra.mxu0 0
    %4996 = vmatprep.subr.bf16.mxu0 0
    %4997 = vmatpush1.bf16.msra.mxu0 0
    %4998 = vmatprep.mubr.bf16.mxu0 0
    %4999 = vmatmul.mubr.bf16.gmra.mrb[0].mxu0 %v4923
    %v5000 = vpop.f32.mrb[0].mxu0
    %v5001 = vadd.f32 %v4911, %v5000
    %v5002 = vpop.f32.mrb[0].mxu0
    %v5003 = vadd.f32 %v4913, %v5002
    %v5004 = vpop.f32.mrb[0].mxu0
    %v5005 = vpop.f32.mrb[0].mxu0
    %5006 = vdwg.mxu0
    %v5007 = vadd.f32 %v4960, %v1704
    %v5008 = vadd.f32 %v4962, %v1708
    %v5009 = vadd.f32 %v5001, %v1712
    %v5010 = vadd.f32 %v5003, %v1716
    %v5011 = vxor.u32 %v5007, 2147483648
    %v5012 = vmul.f32 %v5011, 1.442695
    %v5013 = vpow.pop %v5012
    %v5014 = vadd.f32 %v5013, 1.0
    %v5015 = vrcp.pop %v5014
    %v5016 = vmul.f32 1.0, %v5015
    %v5017 = vxor.u32 %v5008, 2147483648
    %v5018 = vmul.f32 %v5017, 1.442695
    %v5019 = vpow.pop %v5018
    %v5020 = vadd.f32 %v5019, 1.0
    %v5021 = vrcp.pop %v5020
    %v5022 = vmul.f32 1.0, %v5021
    %v5023 = vtanh.pop %v5009
    %v5024 = vxor.u32 %v5010, 2147483648
    %v5025 = vmul.f32 %v5024, 1.442695
    %v5026 = vpow.pop %v5025
    %v5027 = vadd.f32 %v5026, 1.0
    %v5028 = vrcp.pop %v5027
    %v5029 = vmul.f32 1.0, %v5028
    %v5030 = vmul.f32 %v5022, %v4448
    %v5031 = vmul.f32 %v5016, %v5023
    %v5032 = vadd.f32 %v5030, %v5031
    %v5033 = vtanh.pop %v5032
    %v5034 = vmul.f32 %v5029, %v5033
    %v5035 = vpack.c.bf16 %v5034, %v5034
    %v5036 = vpack.c.bf16 %v4644, %v4644
    %5037 = vmatprep.subr.bf16.mxu0 %v3222
    %5038 = vmatpush1.bf16.msra.mxu0 %v3221
    %5039 = vmatprep.subr.bf16.mxu0 %v3226
    %5040 = vmatpush1.bf16.msra.mxu0 %v3225
    %5041 = vmatprep.subr.bf16.mxu0 %v3230
    %5042 = vmatpush1.bf16.msra.mxu0 %v3229
    %5043 = vmatprep.subr.bf16.mxu0 %v3234
    %5044 = vmatpush1.bf16.msra.mxu0 %v3233
    %5045 = vmatprep.subr.bf16.mxu0 %v3238
    %5046 = vmatpush1.bf16.msra.mxu0 %v3237
    %5047 = vmatprep.subr.bf16.mxu0 %v3242
    %5048 = vmatpush1.bf16.msra.mxu0 %v3241
    %5049 = vmatprep.subr.bf16.mxu0 %v3246
    %5050 = vmatpush1.bf16.msra.mxu0 %v3245
    %5051 = vmatprep.subr.bf16.mxu0 %v3250
    %5052 = vmatpush1.bf16.msra.mxu0 %v3249
    %5053 = vmatprep.subr.bf16.mxu0 0
    %5054 = vmatpush1.bf16.msra.mxu0 0
    %5055 = vmatprep.subr.bf16.mxu0 0
    %5056 = vmatpush1.bf16.msra.mxu0 0
    %5057 = vmatprep.subr.bf16.mxu0 0
    %5058 = vmatpush1.bf16.msra.mxu0 0
    %5059 = vmatprep.subr.bf16.mxu0 0
    %5060 = vmatpush1.bf16.msra.mxu0 0
    %5061 = vmatprep.subr.bf16.mxu0 0
    %5062 = vmatpush1.bf16.msra.mxu0 0
    %5063 = vmatprep.subr.bf16.mxu0 0
    %5064 = vmatpush1.bf16.msra.mxu0 0
    %5065 = vmatprep.subr.bf16.mxu0 0
    %5066 = vmatpush1.bf16.msra.mxu0 0
    %5067 = vmatprep.subr.bf16.mxu0 0
    %5068 = vmatpush1.bf16.msra.mxu0 0
    %5069 = vmatprep.mubr.bf16.mxu0 0
    %5070 = vmatmul.mubr.bf16.gmra.mrb[0].mxu0 %v5036
    %v5071 = vpop.f32.mrb[0].mxu0
    %v5072 = vadd.f32 0.0, %v5071
    %v5073 = vpop.f32.mrb[0].mxu0
    %v5074 = vadd.f32 0.0, %v5073
    %v5075 = vpop.f32.mrb[0].mxu0
    %v5076 = vpop.f32.mrb[0].mxu0
    %5077 = vdwg.mxu0
    %5078 = vmatprep.subr.bf16.mxu0 %v3224
    %5079 = vmatpush1.bf16.msra.mxu0 %v3223
    %5080 = vmatprep.subr.bf16.mxu0 %v3228
    %5081 = vmatpush1.bf16.msra.mxu0 %v3227
    %5082 = vmatprep.subr.bf16.mxu0 %v3232
    %5083 = vmatpush1.bf16.msra.mxu0 %v3231
    %5084 = vmatprep.subr.bf16.mxu0 %v3236
    %5085 = vmatpush1.bf16.msra.mxu0 %v3235
    %5086 = vmatprep.subr.bf16.mxu0 %v3240
    %5087 = vmatpush1.bf16.msra.mxu0 %v3239
    %5088 = vmatprep.subr.bf16.mxu0 %v3244
    %5089 = vmatpush1.bf16.msra.mxu0 %v3243
    %5090 = vmatprep.subr.bf16.mxu0 %v3248
    %5091 = vmatpush1.bf16.msra.mxu0 %v3247
    %5092 = vmatprep.subr.bf16.mxu0 %v3252
    %5093 = vmatpush1.bf16.msra.mxu0 %v3251
    %5094 = vmatprep.subr.bf16.mxu0 0
    %5095 = vmatpush1.bf16.msra.mxu0 0
    %5096 = vmatprep.subr.bf16.mxu0 0
    %5097 = vmatpush1.bf16.msra.mxu0 0
    %5098 = vmatprep.subr.bf16.mxu0 0
    %5099 = vmatpush1.bf16.msra.mxu0 0
    %5100 = vmatprep.subr.bf16.mxu0 0
    %5101 = vmatpush1.bf16.msra.mxu0 0
    %5102 = vmatprep.subr.bf16.mxu0 0
    %5103 = vmatpush1.bf16.msra.mxu0 0
    %5104 = vmatprep.subr.bf16.mxu0 0
    %5105 = vmatpush1.bf16.msra.mxu0 0
    %5106 = vmatprep.subr.bf16.mxu0 0
    %5107 = vmatpush1.bf16.msra.mxu0 0
    %5108 = vmatprep.subr.bf16.mxu0 0
    %5109 = vmatpush1.bf16.msra.mxu0 0
    %5110 = vmatprep.mubr.bf16.mxu0 0
    %5111 = vmatmul.mubr.bf16.gmra.mrb[0].mxu0 %v5036
    %v5112 = vpop.f32.mrb[0].mxu0
    %v5113 = vadd.f32 0.0, %v5112
    %v5114 = vpop.f32.mrb[0].mxu0
    %v5115 = vadd.f32 0.0, %v5114
    %v5116 = vpop.f32.mrb[0].mxu0
    %v5117 = vpop.f32.mrb[0].mxu0
    %5118 = vdwg.mxu0
    %5119 = vmatprep.subr.bf16.mxu0 %v2148
    %5120 = vmatpush1.bf16.msra.mxu0 %v2147
    %5121 = vmatprep.subr.bf16.mxu0 %v2152
    %5122 = vmatpush1.bf16.msra.mxu0 %v2151
    %5123 = vmatprep.subr.bf16.mxu0 %v2156
    %5124 = vmatpush1.bf16.msra.mxu0 %v2155
    %5125 = vmatprep.subr.bf16.mxu0 %v2160
    %5126 = vmatpush1.bf16.msra.mxu0 %v2159
    %5127 = vmatprep.subr.bf16.mxu0 %v2164
    %5128 = vmatpush1.bf16.msra.mxu0 %v2163
    %5129 = vmatprep.subr.bf16.mxu0 %v2168
    %5130 = vmatpush1.bf16.msra.mxu0 %v2167
    %5131 = vmatprep.subr.bf16.mxu0 %v2172
    %5132 = vmatpush1.bf16.msra.mxu0 %v2171
    %5133 = vmatprep.subr.bf16.mxu0 %v2176
    %5134 = vmatpush1.bf16.msra.mxu0 %v2175
    %5135 = vmatprep.subr.bf16.mxu0 0
    %5136 = vmatpush1.bf16.msra.mxu0 0
    %5137 = vmatprep.subr.bf16.mxu0 0
    %5138 = vmatpush1.bf16.msra.mxu0 0
    %5139 = vmatprep.subr.bf16.mxu0 0
    %5140 = vmatpush1.bf16.msra.mxu0 0
    %5141 = vmatprep.subr.bf16.mxu0 0
    %5142 = vmatpush1.bf16.msra.mxu0 0
    %5143 = vmatprep.subr.bf16.mxu0 0
    %5144 = vmatpush1.bf16.msra.mxu0 0
    %5145 = vmatprep.subr.bf16.mxu0 0
    %5146 = vmatpush1.bf16.msra.mxu0 0
    %5147 = vmatprep.subr.bf16.mxu0 0
    %5148 = vmatpush1.bf16.msra.mxu0 0
    %5149 = vmatprep.subr.bf16.mxu0 0
    %5150 = vmatpush1.bf16.msra.mxu0 0
    %5151 = vmatprep.mubr.bf16.mxu0 0
    %5152 = vmatmul.mubr.bf16.gmra.mrb[0].mxu0 %v5035
    %v5153 = vpop.f32.mrb[0].mxu0
    %v5154 = vadd.f32 %v5072, %v5153
    %v5155 = vpop.f32.mrb[0].mxu0
    %v5156 = vadd.f32 %v5074, %v5155
    %v5157 = vpop.f32.mrb[0].mxu0
    %v5158 = vpop.f32.mrb[0].mxu0
    %5159 = vdwg.mxu0
    %5160 = vmatprep.subr.bf16.mxu0 %v2150
    %5161 = vmatpush1.bf16.msra.mxu0 %v2149
    %5162 = vmatprep.subr.bf16.mxu0 %v2154
    %5163 = vmatpush1.bf16.msra.mxu0 %v2153
    %5164 = vmatprep.subr.bf16.mxu0 %v2158
    %5165 = vmatpush1.bf16.msra.mxu0 %v2157
    %5166 = vmatprep.subr.bf16.mxu0 %v2162
    %5167 = vmatpush1.bf16.msra.mxu0 %v2161
    %5168 = vmatprep.subr.bf16.mxu0 %v2166
    %5169 = vmatpush1.bf16.msra.mxu0 %v2165
    %5170 = vmatprep.subr.bf16.mxu0 %v2170
    %5171 = vmatpush1.bf16.msra.mxu0 %v2169
    %5172 = vmatprep.subr.bf16.mxu0 %v2174
    %5173 = vmatpush1.bf16.msra.mxu0 %v2173
    %5174 = vmatprep.subr.bf16.mxu0 %v2178
    %5175 = vmatpush1.bf16.msra.mxu0 %v2177
    %5176 = vmatprep.subr.bf16.mxu0 0
    %5177 = vmatpush1.bf16.msra.mxu0 0
    %5178 = vmatprep.subr.bf16.mxu0 0
    %5179 = vmatpush1.bf16.msra.mxu0 0
    %5180 = vmatprep.subr.bf16.mxu0 0
    %5181 = vmatpush1.bf16.msra.mxu0 0
    %5182 = vmatprep.subr.bf16.mxu0 0
    %5183 = vmatpush1.bf16.msra.mxu0 0
    %5184 = vmatprep.subr.bf16.mxu0 0
    %5185 = vmatpush1.bf16.msra.mxu0 0
    %5186 = vmatprep.subr.bf16.mxu0 0
    %5187 = vmatpush1.bf16.msra.mxu0 0
    %5188 = vmatprep.subr.bf16.mxu0 0
    %5189 = vmatpush1.bf16.msra.mxu0 0
    %5190 = vmatprep.subr.bf16.mxu0 0
    %5191 = vmatpush1.bf16.msra.mxu0 0
    %5192 = vmatprep.mubr.bf16.mxu0 0
    %5193 = vmatmul.mubr.bf16.gmra.mrb[0].mxu0 %v5035
    %v5194 = vpop.f32.mrb[0].mxu0
    %v5195 = vadd.f32 %v5113, %v5194
    %v5196 = vpop.f32.mrb[0].mxu0
    %v5197 = vadd.f32 %v5115, %v5196
    %v5198 = vpop.f32.mrb[0].mxu0
    %v5199 = vpop.f32.mrb[0].mxu0
    %5200 = vdwg.mxu0
    %v5201 = vadd.f32 %v5154, %v2034
    %v5202 = vadd.f32 %v5156, %v2038
    %v5203 = vadd.f32 %v5195, %v2042
    %v5204 = vadd.f32 %v5197, %v2046
    %v5205 = vxor.u32 %v5201, 2147483648
    %v5206 = vmul.f32 %v5205, 1.442695
    %v5207 = vpow.pop %v5206
    %v5208 = vadd.f32 %v5207, 1.0
    %v5209 = vrcp.pop %v5208
    %v5210 = vmul.f32 1.0, %v5209
    %v5211 = vxor.u32 %v5202, 2147483648
    %v5212 = vmul.f32 %v5211, 1.442695
    %v5213 = vpow.pop %v5212
    %v5214 = vadd.f32 %v5213, 1.0
    %v5215 = vrcp.pop %v5214
    %v5216 = vmul.f32 1.0, %v5215
    %v5217 = vtanh.pop %v5203
    %v5218 = vxor.u32 %v5204, 2147483648
    %v5219 = vmul.f32 %v5218, 1.442695
    %v5220 = vpow.pop %v5219
    %v5221 = vadd.f32 %v5220, 1.0
    %v5222 = vrcp.pop %v5221
    %v5223 = vmul.f32 1.0, %v5222
    %v5224 = vmul.f32 %v5216, %v4642
    %v5225 = vmul.f32 %v5210, %v5217
    %v5226 = vadd.f32 %v5224, %v5225
    %v5227 = vtanh.pop %v5226
    %v5228 = vmul.f32 %v5223, %v5227
    %s5229 = scalar_lea.vmem [#allocation2], 5
    %v5230 = vld [vmem:[%s5229] ss:$8 sm:$0xf]
    %s5231 = scalar_lea.vmem [#allocation2], 37
    %v5232 = vld [vmem:[%s5231] ss:$8 sm:$0xf]
    %5233 = vmatprep.subr.bf16.mxu0 %v2450
    %5234 = vmatpush1.bf16.msra.mxu0 %v2449
    %5235 = vmatprep.subr.bf16.mxu0 %v2454
    %5236 = vmatpush1.bf16.msra.mxu0 %v2453
    %5237 = vmatprep.subr.bf16.mxu0 %v2458
    %5238 = vmatpush1.bf16.msra.mxu0 %v2457
    %5239 = vmatprep.subr.bf16.mxu0 %v2462
    %5240 = vmatpush1.bf16.msra.mxu0 %v2461
    %5241 = vmatprep.subr.bf16.mxu0 %v2466
    %5242 = vmatpush1.bf16.msra.mxu0 %v2465
    %5243 = vmatprep.subr.bf16.mxu0 %v2470
    %5244 = vmatpush1.bf16.msra.mxu0 %v2469
    %5245 = vmatprep.subr.bf16.mxu0 %v2474
    %5246 = vmatpush1.bf16.msra.mxu0 %v2473
    %5247 = vmatprep.subr.bf16.mxu0 %v2478
    %5248 = vmatpush1.bf16.msra.mxu0 %v2477
    %5249 = vmatprep.subr.bf16.mxu0 0
    %5250 = vmatpush1.bf16.msra.mxu0 0
    %5251 = vmatprep.subr.bf16.mxu0 0
    %5252 = vmatpush1.bf16.msra.mxu0 0
    %5253 = vmatprep.subr.bf16.mxu0 0
    %5254 = vmatpush1.bf16.msra.mxu0 0
    %5255 = vmatprep.subr.bf16.mxu0 0
    %5256 = vmatpush1.bf16.msra.mxu0 0
    %5257 = vmatprep.subr.bf16.mxu0 0
    %5258 = vmatpush1.bf16.msra.mxu0 0
    %5259 = vmatprep.subr.bf16.mxu0 0
    %5260 = vmatpush1.bf16.msra.mxu0 0
    %5261 = vmatprep.subr.bf16.mxu0 0
    %5262 = vmatpush1.bf16.msra.mxu0 0
    %5263 = vmatprep.subr.bf16.mxu0 0
    %5264 = vmatpush1.bf16.msra.mxu0 0
    %5265 = vmatprep.mubr.bf16.mxu0 0
    %5266 = vmatmul.mubr.bf16.gmra.mrb[0].mxu0 %v4923
    %v5267 = vpop.f32.mrb[0].mxu0
    %v5268 = vadd.f32 0.0, %v5267
    %v5269 = vpop.f32.mrb[0].mxu0
    %v5270 = vadd.f32 0.0, %v5269
    %v5271 = vpop.f32.mrb[0].mxu0
    %v5272 = vpop.f32.mrb[0].mxu0
    %5273 = vdwg.mxu0
    %5274 = vmatprep.subr.bf16.mxu0 %v2452
    %5275 = vmatpush1.bf16.msra.mxu0 %v2451
    %5276 = vmatprep.subr.bf16.mxu0 %v2456
    %5277 = vmatpush1.bf16.msra.mxu0 %v2455
    %5278 = vmatprep.subr.bf16.mxu0 %v2460
    %5279 = vmatpush1.bf16.msra.mxu0 %v2459
    %5280 = vmatprep.subr.bf16.mxu0 %v2464
    %5281 = vmatpush1.bf16.msra.mxu0 %v2463
    %5282 = vmatprep.subr.bf16.mxu0 %v2468
    %5283 = vmatpush1.bf16.msra.mxu0 %v2467
    %5284 = vmatprep.subr.bf16.mxu0 %v2472
    %5285 = vmatpush1.bf16.msra.mxu0 %v2471
    %5286 = vmatprep.subr.bf16.mxu0 %v2476
    %5287 = vmatpush1.bf16.msra.mxu0 %v2475
    %5288 = vmatprep.subr.bf16.mxu0 %v2480
    %5289 = vmatpush1.bf16.msra.mxu0 %v2479
    %5290 = vmatprep.subr.bf16.mxu0 0
    %5291 = vmatpush1.bf16.msra.mxu0 0
    %5292 = vmatprep.subr.bf16.mxu0 0
    %5293 = vmatpush1.bf16.msra.mxu0 0
    %5294 = vmatprep.subr.bf16.mxu0 0
    %5295 = vmatpush1.bf16.msra.mxu0 0
    %5296 = vmatprep.subr.bf16.mxu0 0
    %5297 = vmatpush1.bf16.msra.mxu0 0
    %5298 = vmatprep.subr.bf16.mxu0 0
    %5299 = vmatpush1.bf16.msra.mxu0 0
    %5300 = vmatprep.subr.bf16.mxu0 0
    %5301 = vmatpush1.bf16.msra.mxu0 0
    %5302 = vmatprep.subr.bf16.mxu0 0
    %5303 = vmatpush1.bf16.msra.mxu0 0
    %5304 = vmatprep.subr.bf16.mxu0 0
    %5305 = vmatpush1.bf16.msra.mxu0 0
    %5306 = vmatprep.mubr.bf16.mxu0 0
    %5307 = vmatmul.mubr.bf16.gmra.mrb[0].mxu0 %v4923
    %v5308 = vpop.f32.mrb[0].mxu0
    %v5309 = vadd.f32 0.0, %v5308
    %v5310 = vpop.f32.mrb[0].mxu0
    %v5311 = vadd.f32 0.0, %v5310
    %v5312 = vpop.f32.mrb[0].mxu0
    %v5313 = vpop.f32.mrb[0].mxu0
    %5314 = vdwg.mxu0
    %v5319 = vcombine.low %v5268, %v5270
    %v5320 = vcombine.low %v5309, %v5311
    %v5322 = vunpack.c.l.s4 1966171168
    %v5323 = vunpack.c.0.s8 %v5322
    %v5324 = vlaneseq
    %v5325 = vshrl.u32 %v5324, 7
    %v5326 = vsub.s32 %v5323, %v5325
    %v5327 = vrot.slane %v5319, %v5326
    %v5329 = vunpack.c.l.s4 1966171168
    %v5330 = vunpack.c.0.s8 %v5329
    %v5331 = vlaneseq
    %v5332 = vshrl.u32 %v5331, 7
    %v5333 = vsub.s32 %v5330, %v5332
    %v5334 = vrot.slane %v5320, %v5333
    %v5335 = vcombine.low %v5327, %v5334
    %v5336 = vcombine.high %v5327, %v5334
    %v5338 = vunpack.c.l.s4 1966171168
    %v5339 = vunpack.c.0.s8 %v5338
    %v5340 = vlaneseq
    %v5341 = vshrl.u32 %v5340, 7
    %v5342 = vsub.s32 %v5339, %v5341
    %v5343 = vrot.slane %v5335, %v5342
    %v5345 = vunpack.c.l.s4 1966171168
    %v5346 = vunpack.c.0.s8 %v5345
    %v5347 = vlaneseq
    %v5348 = vshrl.u32 %v5347, 7
    %v5349 = vsub.s32 %v5346, %v5348
    %v5350 = vrot.slane %v5336, %v5349
    %v5353 = vadd.f32 %v5230, %v5343
    %v5354 = vadd.f32 %v5232, %v5350
    %v5355 = vxor.u32 %v5353, 2147483648
    %v5356 = vxor.u32 %v5354, 2147483648
    %v5357 = vmul.f32 %v5355, 1.442695
    %v5358 = vpow.pop %v5357
    %v5359 = vmul.f32 %v5356, 1.442695
    %v5360 = vpow.pop %v5359
    %v5361 = vadd.f32 %v5358, 1.0
    %v5362 = vadd.f32 %v5360, 1.0
    %v5363 = vrcp.pop %v5361
    %v5364 = vmul.f32 1.0, %v5363
    %v5365 = vrcp.pop %v5362
    %v5366 = vmul.f32 1.0, %v5365
    %v5369 = vrot.slane %v5353, 1
    %v5370 = vrot.slane %v5354, 1
    %v5373 = vxor.u32 %v5369, 2147483648
    %v5374 = vxor.u32 %v5370, 2147483648
    %v5375 = vmul.f32 %v5373, 1.442695
    %v5376 = vpow.pop %v5375
    %v5377 = vmul.f32 %v5374, 1.442695
    %v5378 = vpow.pop %v5377
    %v5379 = vadd.f32 %v5376, 1.0
    %v5380 = vadd.f32 %v5378, 1.0
    %v5381 = vrcp.pop %v5379
    %v5382 = vmul.f32 1.0, %v5381
    %v5383 = vrcp.pop %v5380
    %v5384 = vmul.f32 1.0, %v5383
    %v5385 = vrot.slane %v5353, 2
    %v5386 = vrot.slane %v5354, 2
    %v5389 = vtanh.pop %v5385
    %v5390 = vtanh.pop %v5386
    %v5391 = vrot.slane %v5353, 3
    %v5392 = vrot.slane %v5354, 3
    %v5395 = vxor.u32 %v5391, 2147483648
    %v5396 = vxor.u32 %v5392, 2147483648
    %v5397 = vmul.f32 %v5395, 1.442695
    %v5398 = vpow.pop %v5397
    %v5399 = vmul.f32 %v5396, 1.442695
    %v5400 = vpow.pop %v5399
    %v5401 = vadd.f32 %v5398, 1.0
    %v5402 = vadd.f32 %v5400, 1.0
    %v5403 = vrcp.pop %v5401
    %v5404 = vmul.f32 1.0, %v5403
    %v5405 = vrcp.pop %v5402
    %v5406 = vmul.f32 1.0, %v5405
    %v5407 = vmul.f32 %v5382, %v4827
    %v5408 = vmul.f32 %v5384, %v4828
    %v5409 = vmul.f32 %v5364, %v5389
    %v5410 = vmul.f32 %v5366, %v5390
    %v5411 = vadd.f32 %v5407, %v5409
    %v5412 = vadd.f32 %v5408, %v5410
    %v5413 = vtanh.pop %v5411
    %v5414 = vtanh.pop %v5412
    %v5415 = vmul.f32 %v5404, %v5413
    %v5416 = vmul.f32 %v5406, %v5414
    %v5417 = vpack.c.bf16 %v5415, %v5415
    %v5418 = vpack.c.bf16 %v5416, %v5416
    %5419 = vmatprep.subr.bf16.mxu0 %v2828
    %5420 = vmatpush1.bf16.msra.mxu0 %v2827
    %5421 = vmatprep.subr.bf16.mxu0 %v2832
    %5422 = vmatpush1.bf16.msra.mxu0 %v2831
    %5423 = vmatprep.subr.bf16.mxu0 %v2836
    %5424 = vmatpush1.bf16.msra.mxu0 %v2835
    %5425 = vmatprep.subr.bf16.mxu0 %v2840
    %5426 = vmatpush1.bf16.msra.mxu0 %v2839
    %5427 = vmatprep.subr.bf16.mxu0 %v2844
    %5428 = vmatpush1.bf16.msra.mxu0 %v2843
    %5429 = vmatprep.subr.bf16.mxu0 %v2848
    %5430 = vmatpush1.bf16.msra.mxu0 %v2847
    %5431 = vmatprep.subr.bf16.mxu0 %v2852
    %5432 = vmatpush1.bf16.msra.mxu0 %v2851
    %5433 = vmatprep.subr.bf16.mxu0 %v2856
    %5434 = vmatpush1.bf16.msra.mxu0 %v2855
    %5435 = vmatprep.subr.bf16.mxu0 0
    %5436 = vmatpush1.bf16.msra.mxu0 0
    %5437 = vmatprep.subr.bf16.mxu0 0
    %5438 = vmatpush1.bf16.msra.mxu0 0
    %5439 = vmatprep.subr.bf16.mxu0 0
    %5440 = vmatpush1.bf16.msra.mxu0 0
    %5441 = vmatprep.subr.bf16.mxu0 0
    %5442 = vmatpush1.bf16.msra.mxu0 0
    %5443 = vmatprep.subr.bf16.mxu0 0
    %5444 = vmatpush1.bf16.msra.mxu0 0
    %5445 = vmatprep.subr.bf16.mxu0 0
    %5446 = vmatpush1.bf16.msra.mxu0 0
    %5447 = vmatprep.subr.bf16.mxu0 0
    %5448 = vmatpush1.bf16.msra.mxu0 0
    %5449 = vmatprep.subr.bf16.mxu0 0
    %5450 = vmatpush1.bf16.msra.mxu0 0
    %5451 = vmatprep.mubr.bf16.mxu0 0
    %5452 = vmatmul.mubr.bf16.gmra.mrb[0].mxu0 %v5035
    %v5453 = vpop.f32.mrb[0].mxu0
    %v5454 = vadd.f32 0.0, %v5453
    %v5455 = vpop.f32.mrb[0].mxu0
    %v5456 = vadd.f32 0.0, %v5455
    %v5457 = vpop.f32.mrb[0].mxu0
    %v5458 = vpop.f32.mrb[0].mxu0
    %5459 = vdwg.mxu0
    %5460 = vmatprep.subr.bf16.mxu0 %v2830
    %5461 = vmatpush1.bf16.msra.mxu0 %v2829
    %5462 = vmatprep.subr.bf16.mxu0 %v2834
    %5463 = vmatpush1.bf16.msra.mxu0 %v2833
    %5464 = vmatprep.subr.bf16.mxu0 %v2838
    %5465 = vmatpush1.bf16.msra.mxu0 %v2837
    %5466 = vmatprep.subr.bf16.mxu0 %v2842
    %5467 = vmatpush1.bf16.msra.mxu0 %v2841
    %5468 = vmatprep.subr.bf16.mxu0 %v2846
    %5469 = vmatpush1.bf16.msra.mxu0 %v2845
    %5470 = vmatprep.subr.bf16.mxu0 %v2850
    %5471 = vmatpush1.bf16.msra.mxu0 %v2849
    %5472 = vmatprep.subr.bf16.mxu0 %v2854
    %5473 = vmatpush1.bf16.msra.mxu0 %v2853
    %5474 = vmatprep.subr.bf16.mxu0 %v2858
    %5475 = vmatpush1.bf16.msra.mxu0 %v2857
    %5476 = vmatprep.subr.bf16.mxu0 0
    %5477 = vmatpush1.bf16.msra.mxu0 0
    %5478 = vmatprep.subr.bf16.mxu0 0
    %5479 = vmatpush1.bf16.msra.mxu0 0
    %5480 = vmatprep.subr.bf16.mxu0 0
    %5481 = vmatpush1.bf16.msra.mxu0 0
    %5482 = vmatprep.subr.bf16.mxu0 0
    %5483 = vmatpush1.bf16.msra.mxu0 0
    %5484 = vmatprep.subr.bf16.mxu0 0
    %5485 = vmatpush1.bf16.msra.mxu0 0
    %5486 = vmatprep.subr.bf16.mxu0 0
    %5487 = vmatpush1.bf16.msra.mxu0 0
    %5488 = vmatprep.subr.bf16.mxu0 0
    %5489 = vmatpush1.bf16.msra.mxu0 0
    %5490 = vmatprep.subr.bf16.mxu0 0
    %5491 = vmatpush1.bf16.msra.mxu0 0
    %5492 = vmatprep.mubr.bf16.mxu0 0
    %5493 = vmatmul.mubr.bf16.gmra.mrb[0].mxu0 %v5035
    %v5494 = vpop.f32.mrb[0].mxu0
    %v5495 = vadd.f32 0.0, %v5494
    %v5496 = vpop.f32.mrb[0].mxu0
    %v5497 = vadd.f32 0.0, %v5496
    %v5498 = vpop.f32.mrb[0].mxu0
    %v5499 = vpop.f32.mrb[0].mxu0
    %5500 = vdwg.mxu0
    %v5503 = vunpack.c.l.b16 %v5417
    %v5504 = vunpack.c.l.b16 %v5418
    %v5505 = vrot.slane %v5504, 7
    %v5506 = vsel %vm1726, %v5505, %v5503
    %v5507 = vpack.c.b16 %v5506, %v5506
    %5509 = vmatprep.subr.bf16.mxu0 %v1827
    %5510 = vmatpush1.bf16.msra.mxu0 %v1826
    %5511 = vmatprep.subr.bf16.mxu0 %v1831
    %5512 = vmatpush1.bf16.msra.mxu0 %v1830
    %5513 = vmatprep.subr.bf16.mxu0 %v1835
    %5514 = vmatpush1.bf16.msra.mxu0 %v1834
    %5515 = vmatprep.subr.bf16.mxu0 %v1839
    %5516 = vmatpush1.bf16.msra.mxu0 %v1838
    %5517 = vmatprep.subr.bf16.mxu0 %v1843
    %5518 = vmatpush1.bf16.msra.mxu0 %v1842
    %5519 = vmatprep.subr.bf16.mxu0 %v1847
    %5520 = vmatpush1.bf16.msra.mxu0 %v1846
    %5521 = vmatprep.subr.bf16.mxu0 %v1851
    %5522 = vmatpush1.bf16.msra.mxu0 %v1850
    %5523 = vmatprep.subr.bf16.mxu0 %v1855
    %5524 = vmatpush1.bf16.msra.mxu0 %v1854
    %5525 = vmatprep.subr.bf16.mxu0 0
    %5526 = vmatpush1.bf16.msra.mxu0 0
    %5527 = vmatprep.subr.bf16.mxu0 0
    %5528 = vmatpush1.bf16.msra.mxu0 0
    %5529 = vmatprep.subr.bf16.mxu0 0
    %5530 = vmatpush1.bf16.msra.mxu0 0
    %5531 = vmatprep.subr.bf16.mxu0 0
    %5532 = vmatpush1.bf16.msra.mxu0 0
    %5533 = vmatprep.subr.bf16.mxu0 0
    %5534 = vmatpush1.bf16.msra.mxu0 0
    %5535 = vmatprep.subr.bf16.mxu0 0
    %5536 = vmatpush1.bf16.msra.mxu0 0
    %5537 = vmatprep.subr.bf16.mxu0 0
    %5538 = vmatpush1.bf16.msra.mxu0 0
    %5539 = vmatprep.subr.bf16.mxu0 0
    %5540 = vmatpush1.bf16.msra.mxu0 0
    %5541 = vmatprep.mubr.bf16.mxu0 0
    %5542 = vmatmul.mubr.bf16.gmra.mrb[0].mxu0 %v5507
    %v5543 = vpop.f32.mrb[0].mxu0
    %v5544 = vadd.f32 %v5454, %v5543
    %v5545 = vpop.f32.mrb[0].mxu0
    %v5546 = vadd.f32 %v5456, %v5545
    %v5547 = vpop.f32.mrb[0].mxu0
    %v5548 = vpop.f32.mrb[0].mxu0
    %5549 = vdwg.mxu0
    %5550 = vmatprep.subr.bf16.mxu0 %v1829
    %5551 = vmatpush1.bf16.msra.mxu0 %v1828
    %5552 = vmatprep.subr.bf16.mxu0 %v1833
    %5553 = vmatpush1.bf16.msra.mxu0 %v1832
    %5554 = vmatprep.subr.bf16.mxu0 %v1837
    %5555 = vmatpush1.bf16.msra.mxu0 %v1836
    %5556 = vmatprep.subr.bf16.mxu0 %v1841
    %5557 = vmatpush1.bf16.msra.mxu0 %v1840
    %5558 = vmatprep.subr.bf16.mxu0 %v1845
    %5559 = vmatpush1.bf16.msra.mxu0 %v1844
    %5560 = vmatprep.subr.bf16.mxu0 %v1849
    %5561 = vmatpush1.bf16.msra.mxu0 %v1848
    %5562 = vmatprep.subr.bf16.mxu0 %v1853
    %5563 = vmatpush1.bf16.msra.mxu0 %v1852
    %5564 = vmatprep.subr.bf16.mxu0 %v1857
    %5565 = vmatpush1.bf16.msra.mxu0 %v1856
    %5566 = vmatprep.subr.bf16.mxu0 0
    %5567 = vmatpush1.bf16.msra.mxu0 0
    %5568 = vmatprep.subr.bf16.mxu0 0
    %5569 = vmatpush1.bf16.msra.mxu0 0
    %5570 = vmatprep.subr.bf16.mxu0 0
    %5571 = vmatpush1.bf16.msra.mxu0 0
    %5572 = vmatprep.subr.bf16.mxu0 0
    %5573 = vmatpush1.bf16.msra.mxu0 0
    %5574 = vmatprep.subr.bf16.mxu0 0
    %5575 = vmatpush1.bf16.msra.mxu0 0
    %5576 = vmatprep.subr.bf16.mxu0 0
    %5577 = vmatpush1.bf16.msra.mxu0 0
    %5578 = vmatprep.subr.bf16.mxu0 0
    %5579 = vmatpush1.bf16.msra.mxu0 0
    %5580 = vmatprep.subr.bf16.mxu0 0
    %5581 = vmatpush1.bf16.msra.mxu0 0
    %5582 = vmatprep.mubr.bf16.mxu0 0
    %5583 = vmatmul.mubr.bf16.gmra.mrb[0].mxu0 %v5507
    %v5584 = vpop.f32.mrb[0].mxu0
    %v5585 = vadd.f32 %v5495, %v5584
    %v5586 = vpop.f32.mrb[0].mxu0
    %v5587 = vadd.f32 %v5497, %v5586
    %v5588 = vpop.f32.mrb[0].mxu0
    %v5589 = vpop.f32.mrb[0].mxu0
    %5590 = vdwg.mxu0
    %v5591 = vadd.f32 %v5544, %v1704
    %v5592 = vadd.f32 %v5546, %v1708
    %v5593 = vadd.f32 %v5585, %v1712
    %v5594 = vadd.f32 %v5587, %v1716
    %v5595 = vxor.u32 %v5591, 2147483648
    %v5596 = vmul.f32 %v5595, 1.442695
    %v5597 = vpow.pop %v5596
    %v5598 = vadd.f32 %v5597, 1.0
    %v5599 = vrcp.pop %v5598
    %v5600 = vmul.f32 1.0, %v5599
    %v5601 = vxor.u32 %v5592, 2147483648
    %v5602 = vmul.f32 %v5601, 1.442695
    %v5603 = vpow.pop %v5602
    %v5604 = vadd.f32 %v5603, 1.0
    %v5605 = vrcp.pop %v5604
    %v5606 = vmul.f32 1.0, %v5605
    %v5607 = vtanh.pop %v5593
    %v5608 = vxor.u32 %v5594, 2147483648
    %v5609 = vmul.f32 %v5608, 1.442695
    %v5610 = vpow.pop %v5609
    %v5611 = vadd.f32 %v5610, 1.0
    %v5612 = vrcp.pop %v5611
    %v5613 = vmul.f32 1.0, %v5612
    %v5614 = vmul.f32 %v5606, %v5032
    %v5615 = vmul.f32 %v5600, %v5607
    %v5616 = vadd.f32 %v5614, %v5615
    %v5617 = vtanh.pop %v5616
    %v5618 = vmul.f32 %v5613, %v5617
    %v5619 = vpack.c.bf16 %v5618, %v5618
    %v5620 = vpack.c.bf16 %v5228, %v5228
    %5621 = vmatprep.subr.bf16.mxu0 %v3222
    %5622 = vmatpush1.bf16.msra.mxu0 %v3221
    %5623 = vmatprep.subr.bf16.mxu0 %v3226
    %5624 = vmatpush1.bf16.msra.mxu0 %v3225
    %5625 = vmatprep.subr.bf16.mxu0 %v3230
    %5626 = vmatpush1.bf16.msra.mxu0 %v3229
    %5627 = vmatprep.subr.bf16.mxu0 %v3234
    %5628 = vmatpush1.bf16.msra.mxu0 %v3233
    %5629 = vmatprep.subr.bf16.mxu0 %v3238
    %5630 = vmatpush1.bf16.msra.mxu0 %v3237
    %5631 = vmatprep.subr.bf16.mxu0 %v3242
    %5632 = vmatpush1.bf16.msra.mxu0 %v3241
    %5633 = vmatprep.subr.bf16.mxu0 %v3246
    %5634 = vmatpush1.bf16.msra.mxu0 %v3245
    %5635 = vmatprep.subr.bf16.mxu0 %v3250
    %5636 = vmatpush1.bf16.msra.mxu0 %v3249
    %5637 = vmatprep.subr.bf16.mxu0 0
    %5638 = vmatpush1.bf16.msra.mxu0 0
    %5639 = vmatprep.subr.bf16.mxu0 0
    %5640 = vmatpush1.bf16.msra.mxu0 0
    %5641 = vmatprep.subr.bf16.mxu0 0
    %5642 = vmatpush1.bf16.msra.mxu0 0
    %5643 = vmatprep.subr.bf16.mxu0 0
    %5644 = vmatpush1.bf16.msra.mxu0 0
    %5645 = vmatprep.subr.bf16.mxu0 0
    %5646 = vmatpush1.bf16.msra.mxu0 0
    %5647 = vmatprep.subr.bf16.mxu0 0
    %5648 = vmatpush1.bf16.msra.mxu0 0
    %5649 = vmatprep.subr.bf16.mxu0 0
    %5650 = vmatpush1.bf16.msra.mxu0 0
    %5651 = vmatprep.subr.bf16.mxu0 0
    %5652 = vmatpush1.bf16.msra.mxu0 0
    %5653 = vmatprep.mubr.bf16.mxu0 0
    %5654 = vmatmul.mubr.bf16.gmra.mrb[0].mxu0 %v5620
    %v5655 = vpop.f32.mrb[0].mxu0
    %v5656 = vadd.f32 0.0, %v5655
    %v5657 = vpop.f32.mrb[0].mxu0
    %v5658 = vadd.f32 0.0, %v5657
    %v5659 = vpop.f32.mrb[0].mxu0
    %v5660 = vpop.f32.mrb[0].mxu0
    %5661 = vdwg.mxu0
    %5662 = vmatprep.subr.bf16.mxu0 %v3224
    %5663 = vmatpush1.bf16.msra.mxu0 %v3223
    %5664 = vmatprep.subr.bf16.mxu0 %v3228
    %5665 = vmatpush1.bf16.msra.mxu0 %v3227
    %5666 = vmatprep.subr.bf16.mxu0 %v3232
    %5667 = vmatpush1.bf16.msra.mxu0 %v3231
    %5668 = vmatprep.subr.bf16.mxu0 %v3236
    %5669 = vmatpush1.bf16.msra.mxu0 %v3235
    %5670 = vmatprep.subr.bf16.mxu0 %v3240
    %5671 = vmatpush1.bf16.msra.mxu0 %v3239
    %5672 = vmatprep.subr.bf16.mxu0 %v3244
    %5673 = vmatpush1.bf16.msra.mxu0 %v3243
    %5674 = vmatprep.subr.bf16.mxu0 %v3248
    %5675 = vmatpush1.bf16.msra.mxu0 %v3247
    %5676 = vmatprep.subr.bf16.mxu0 %v3252
    %5677 = vmatpush1.bf16.msra.mxu0 %v3251
    %5678 = vmatprep.subr.bf16.mxu0 0
    %5679 = vmatpush1.bf16.msra.mxu0 0
    %5680 = vmatprep.subr.bf16.mxu0 0
    %5681 = vmatpush1.bf16.msra.mxu0 0
    %5682 = vmatprep.subr.bf16.mxu0 0
    %5683 = vmatpush1.bf16.msra.mxu0 0
    %5684 = vmatprep.subr.bf16.mxu0 0
    %5685 = vmatpush1.bf16.msra.mxu0 0
    %5686 = vmatprep.subr.bf16.mxu0 0
    %5687 = vmatpush1.bf16.msra.mxu0 0
    %5688 = vmatprep.subr.bf16.mxu0 0
    %5689 = vmatpush1.bf16.msra.mxu0 0
    %5690 = vmatprep.subr.bf16.mxu0 0
    %5691 = vmatpush1.bf16.msra.mxu0 0
    %5692 = vmatprep.subr.bf16.mxu0 0
    %5693 = vmatpush1.bf16.msra.mxu0 0
    %5694 = vmatprep.mubr.bf16.mxu0 0
    %5695 = vmatmul.mubr.bf16.gmra.mrb[0].mxu0 %v5620
    %v5696 = vpop.f32.mrb[0].mxu0
    %v5697 = vadd.f32 0.0, %v5696
    %v5698 = vpop.f32.mrb[0].mxu0
    %v5699 = vadd.f32 0.0, %v5698
    %v5700 = vpop.f32.mrb[0].mxu0
    %v5701 = vpop.f32.mrb[0].mxu0
    %5702 = vdwg.mxu0
    %5703 = vmatprep.subr.bf16.mxu0 %v2148
    %5704 = vmatpush1.bf16.msra.mxu0 %v2147
    %5705 = vmatprep.subr.bf16.mxu0 %v2152
    %5706 = vmatpush1.bf16.msra.mxu0 %v2151
    %5707 = vmatprep.subr.bf16.mxu0 %v2156
    %5708 = vmatpush1.bf16.msra.mxu0 %v2155
    %5709 = vmatprep.subr.bf16.mxu0 %v2160
    %5710 = vmatpush1.bf16.msra.mxu0 %v2159
    %5711 = vmatprep.subr.bf16.mxu0 %v2164
    %5712 = vmatpush1.bf16.msra.mxu0 %v2163
    %5713 = vmatprep.subr.bf16.mxu0 %v2168
    %5714 = vmatpush1.bf16.msra.mxu0 %v2167
    %5715 = vmatprep.subr.bf16.mxu0 %v2172
    %5716 = vmatpush1.bf16.msra.mxu0 %v2171
    %5717 = vmatprep.subr.bf16.mxu0 %v2176
    %5718 = vmatpush1.bf16.msra.mxu0 %v2175
    %5719 = vmatprep.subr.bf16.mxu0 0
    %5720 = vmatpush1.bf16.msra.mxu0 0
    %5721 = vmatprep.subr.bf16.mxu0 0
    %5722 = vmatpush1.bf16.msra.mxu0 0
    %5723 = vmatprep.subr.bf16.mxu0 0
    %5724 = vmatpush1.bf16.msra.mxu0 0
    %5725 = vmatprep.subr.bf16.mxu0 0
    %5726 = vmatpush1.bf16.msra.mxu0 0
    %5727 = vmatprep.subr.bf16.mxu0 0
    %5728 = vmatpush1.bf16.msra.mxu0 0
    %5729 = vmatprep.subr.bf16.mxu0 0
    %5730 = vmatpush1.bf16.msra.mxu0 0
    %5731 = vmatprep.subr.bf16.mxu0 0
    %5732 = vmatpush1.bf16.msra.mxu0 0
    %5733 = vmatprep.subr.bf16.mxu0 0
    %5734 = vmatpush1.bf16.msra.mxu0 0
    %5735 = vmatprep.mubr.bf16.mxu0 0
    %5736 = vmatmul.mubr.bf16.gmra.mrb[0].mxu0 %v5619
    %v5737 = vpop.f32.mrb[0].mxu0
    %v5738 = vadd.f32 %v5656, %v5737
    %v5739 = vpop.f32.mrb[0].mxu0
    %v5740 = vadd.f32 %v5658, %v5739
    %v5741 = vpop.f32.mrb[0].mxu0
    %v5742 = vpop.f32.mrb[0].mxu0
    %5743 = vdwg.mxu0
    %5744 = vmatprep.subr.bf16.mxu0 %v2150
    %5745 = vmatpush1.bf16.msra.mxu0 %v2149
    %5746 = vmatprep.subr.bf16.mxu0 %v2154
    %5747 = vmatpush1.bf16.msra.mxu0 %v2153
    %5748 = vmatprep.subr.bf16.mxu0 %v2158
    %5749 = vmatpush1.bf16.msra.mxu0 %v2157
    %5750 = vmatprep.subr.bf16.mxu0 %v2162
    %5751 = vmatpush1.bf16.msra.mxu0 %v2161
    %5752 = vmatprep.subr.bf16.mxu0 %v2166
    %5753 = vmatpush1.bf16.msra.mxu0 %v2165
    %5754 = vmatprep.subr.bf16.mxu0 %v2170
    %5755 = vmatpush1.bf16.msra.mxu0 %v2169
    %5756 = vmatprep.subr.bf16.mxu0 %v2174
    %5757 = vmatpush1.bf16.msra.mxu0 %v2173
    %5758 = vmatprep.subr.bf16.mxu0 %v2178
    %5759 = vmatpush1.bf16.msra.mxu0 %v2177
    %5760 = vmatprep.subr.bf16.mxu0 0
    %5761 = vmatpush1.bf16.msra.mxu0 0
    %5762 = vmatprep.subr.bf16.mxu0 0
    %5763 = vmatpush1.bf16.msra.mxu0 0
    %5764 = vmatprep.subr.bf16.mxu0 0
    %5765 = vmatpush1.bf16.msra.mxu0 0
    %5766 = vmatprep.subr.bf16.mxu0 0
    %5767 = vmatpush1.bf16.msra.mxu0 0
    %5768 = vmatprep.subr.bf16.mxu0 0
    %5769 = vmatpush1.bf16.msra.mxu0 0
    %5770 = vmatprep.subr.bf16.mxu0 0
    %5771 = vmatpush1.bf16.msra.mxu0 0
    %5772 = vmatprep.subr.bf16.mxu0 0
    %5773 = vmatpush1.bf16.msra.mxu0 0
    %5774 = vmatprep.subr.bf16.mxu0 0
    %5775 = vmatpush1.bf16.msra.mxu0 0
    %5776 = vmatprep.mubr.bf16.mxu0 0
    %5777 = vmatmul.mubr.bf16.gmra.mrb[0].mxu0 %v5619
    %v5778 = vpop.f32.mrb[0].mxu0
    %v5779 = vadd.f32 %v5697, %v5778
    %v5780 = vpop.f32.mrb[0].mxu0
    %v5781 = vadd.f32 %v5699, %v5780
    %v5782 = vpop.f32.mrb[0].mxu0
    %v5783 = vpop.f32.mrb[0].mxu0
    %5784 = vdwg.mxu0
    %v5785 = vadd.f32 %v5738, %v2034
    %v5786 = vadd.f32 %v5740, %v2038
    %v5787 = vadd.f32 %v5779, %v2042
    %v5788 = vadd.f32 %v5781, %v2046
    %v5789 = vxor.u32 %v5785, 2147483648
    %v5790 = vmul.f32 %v5789, 1.442695
    %v5791 = vpow.pop %v5790
    %v5792 = vadd.f32 %v5791, 1.0
    %v5793 = vrcp.pop %v5792
    %v5794 = vmul.f32 1.0, %v5793
    %v5795 = vxor.u32 %v5786, 2147483648
    %v5796 = vmul.f32 %v5795, 1.442695
    %v5797 = vpow.pop %v5796
    %v5798 = vadd.f32 %v5797, 1.0
    %v5799 = vrcp.pop %v5798
    %v5800 = vmul.f32 1.0, %v5799
    %v5801 = vtanh.pop %v5787
    %v5802 = vxor.u32 %v5788, 2147483648
    %v5803 = vmul.f32 %v5802, 1.442695
    %v5804 = vpow.pop %v5803
    %v5805 = vadd.f32 %v5804, 1.0
    %v5806 = vrcp.pop %v5805
    %v5807 = vmul.f32 1.0, %v5806
    %v5808 = vmul.f32 %v5800, %v5226
    %v5809 = vmul.f32 %v5794, %v5801
    %v5810 = vadd.f32 %v5808, %v5809
    %v5811 = vtanh.pop %v5810
    %v5812 = vmul.f32 %v5807, %v5811
    %s5813 = scalar_lea.vmem [#allocation2], 6
    %v5814 = vld [vmem:[%s5813] ss:$8 sm:$0xf]
    %s5815 = scalar_lea.vmem [#allocation2], 38
    %v5816 = vld [vmem:[%s5815] ss:$8 sm:$0xf]
    %5817 = vmatprep.subr.bf16.mxu0 %v2450
    %5818 = vmatpush1.bf16.msra.mxu0 %v2449
    %5819 = vmatprep.subr.bf16.mxu0 %v2454
    %5820 = vmatpush1.bf16.msra.mxu0 %v2453
    %5821 = vmatprep.subr.bf16.mxu0 %v2458
    %5822 = vmatpush1.bf16.msra.mxu0 %v2457
    %5823 = vmatprep.subr.bf16.mxu0 %v2462
    %5824 = vmatpush1.bf16.msra.mxu0 %v2461
    %5825 = vmatprep.subr.bf16.mxu0 %v2466
    %5826 = vmatpush1.bf16.msra.mxu0 %v2465
    %5827 = vmatprep.subr.bf16.mxu0 %v2470
    %5828 = vmatpush1.bf16.msra.mxu0 %v2469
    %5829 = vmatprep.subr.bf16.mxu0 %v2474
    %5830 = vmatpush1.bf16.msra.mxu0 %v2473
    %5831 = vmatprep.subr.bf16.mxu0 %v2478
    %5832 = vmatpush1.bf16.msra.mxu0 %v2477
    %5833 = vmatprep.subr.bf16.mxu0 0
    %5834 = vmatpush1.bf16.msra.mxu0 0
    %5835 = vmatprep.subr.bf16.mxu0 0
    %5836 = vmatpush1.bf16.msra.mxu0 0
    %5837 = vmatprep.subr.bf16.mxu0 0
    %5838 = vmatpush1.bf16.msra.mxu0 0
    %5839 = vmatprep.subr.bf16.mxu0 0
    %5840 = vmatpush1.bf16.msra.mxu0 0
    %5841 = vmatprep.subr.bf16.mxu0 0
    %5842 = vmatpush1.bf16.msra.mxu0 0
    %5843 = vmatprep.subr.bf16.mxu0 0
    %5844 = vmatpush1.bf16.msra.mxu0 0
    %5845 = vmatprep.subr.bf16.mxu0 0
    %5846 = vmatpush1.bf16.msra.mxu0 0
    %5847 = vmatprep.subr.bf16.mxu0 0
    %5848 = vmatpush1.bf16.msra.mxu0 0
    %5849 = vmatprep.mubr.bf16.mxu0 0
    %5850 = vmatmul.mubr.bf16.gmra.mrb[0].mxu0 %v5507
    %v5851 = vpop.f32.mrb[0].mxu0
    %v5852 = vadd.f32 0.0, %v5851
    %v5853 = vpop.f32.mrb[0].mxu0
    %v5854 = vadd.f32 0.0, %v5853
    %v5855 = vpop.f32.mrb[0].mxu0
    %v5856 = vpop.f32.mrb[0].mxu0
    %5857 = vdwg.mxu0
    %5858 = vmatprep.subr.bf16.mxu0 %v2452
    %5859 = vmatpush1.bf16.msra.mxu0 %v2451
    %5860 = vmatprep.subr.bf16.mxu0 %v2456
    %5861 = vmatpush1.bf16.msra.mxu0 %v2455
    %5862 = vmatprep.subr.bf16.mxu0 %v2460
    %5863 = vmatpush1.bf16.msra.mxu0 %v2459
    %5864 = vmatprep.subr.bf16.mxu0 %v2464
    %5865 = vmatpush1.bf16.msra.mxu0 %v2463
    %5866 = vmatprep.subr.bf16.mxu0 %v2468
    %5867 = vmatpush1.bf16.msra.mxu0 %v2467
    %5868 = vmatprep.subr.bf16.mxu0 %v2472
    %5869 = vmatpush1.bf16.msra.mxu0 %v2471
    %5870 = vmatprep.subr.bf16.mxu0 %v2476
    %5871 = vmatpush1.bf16.msra.mxu0 %v2475
    %5872 = vmatprep.subr.bf16.mxu0 %v2480
    %5873 = vmatpush1.bf16.msra.mxu0 %v2479
    %5874 = vmatprep.subr.bf16.mxu0 0
    %5875 = vmatpush1.bf16.msra.mxu0 0
    %5876 = vmatprep.subr.bf16.mxu0 0
    %5877 = vmatpush1.bf16.msra.mxu0 0
    %5878 = vmatprep.subr.bf16.mxu0 0
    %5879 = vmatpush1.bf16.msra.mxu0 0
    %5880 = vmatprep.subr.bf16.mxu0 0
    %5881 = vmatpush1.bf16.msra.mxu0 0
    %5882 = vmatprep.subr.bf16.mxu0 0
    %5883 = vmatpush1.bf16.msra.mxu0 0
    %5884 = vmatprep.subr.bf16.mxu0 0
    %5885 = vmatpush1.bf16.msra.mxu0 0
    %5886 = vmatprep.subr.bf16.mxu0 0
    %5887 = vmatpush1.bf16.msra.mxu0 0
    %5888 = vmatprep.subr.bf16.mxu0 0
    %5889 = vmatpush1.bf16.msra.mxu0 0
    %5890 = vmatprep.mubr.bf16.mxu0 0
    %5891 = vmatmul.mubr.bf16.gmra.mrb[0].mxu0 %v5507
    %v5892 = vpop.f32.mrb[0].mxu0
    %v5893 = vadd.f32 0.0, %v5892
    %v5894 = vpop.f32.mrb[0].mxu0
    %v5895 = vadd.f32 0.0, %v5894
    %v5896 = vpop.f32.mrb[0].mxu0
    %v5897 = vpop.f32.mrb[0].mxu0
    %5898 = vdwg.mxu0
    %v5903 = vcombine.low %v5852, %v5854
    %v5904 = vcombine.low %v5893, %v5895
    %v5906 = vunpack.c.l.s4 1966171168
    %v5907 = vunpack.c.0.s8 %v5906
    %v5908 = vlaneseq
    %v5909 = vshrl.u32 %v5908, 7
    %v5910 = vsub.s32 %v5907, %v5909
    %v5911 = vrot.slane %v5903, %v5910
    %v5913 = vunpack.c.l.s4 1966171168
    %v5914 = vunpack.c.0.s8 %v5913
    %v5915 = vlaneseq
    %v5916 = vshrl.u32 %v5915, 7
    %v5917 = vsub.s32 %v5914, %v5916
    %v5918 = vrot.slane %v5904, %v5917
    %v5919 = vcombine.low %v5911, %v5918
    %v5920 = vcombine.high %v5911, %v5918
    %v5922 = vunpack.c.l.s4 1966171168
    %v5923 = vunpack.c.0.s8 %v5922
    %v5924 = vlaneseq
    %v5925 = vshrl.u32 %v5924, 7
    %v5926 = vsub.s32 %v5923, %v5925
    %v5927 = vrot.slane %v5919, %v5926
    %v5929 = vunpack.c.l.s4 1966171168
    %v5930 = vunpack.c.0.s8 %v5929
    %v5931 = vlaneseq
    %v5932 = vshrl.u32 %v5931, 7
    %v5933 = vsub.s32 %v5930, %v5932
    %v5934 = vrot.slane %v5920, %v5933
    %v5937 = vadd.f32 %v5814, %v5927
    %v5938 = vadd.f32 %v5816, %v5934
    %v5939 = vxor.u32 %v5937, 2147483648
    %v5940 = vxor.u32 %v5938, 2147483648
    %v5941 = vmul.f32 %v5939, 1.442695
    %v5942 = vpow.pop %v5941
    %v5943 = vmul.f32 %v5940, 1.442695
    %v5944 = vpow.pop %v5943
    %v5945 = vadd.f32 %v5942, 1.0
    %v5946 = vadd.f32 %v5944, 1.0
    %v5947 = vrcp.pop %v5945
    %v5948 = vmul.f32 1.0, %v5947
    %v5949 = vrcp.pop %v5946
    %v5950 = vmul.f32 1.0, %v5949
    %v5953 = vrot.slane %v5937, 1
    %v5954 = vrot.slane %v5938, 1
    %v5957 = vxor.u32 %v5953, 2147483648
    %v5958 = vxor.u32 %v5954, 2147483648
    %v5959 = vmul.f32 %v5957, 1.442695
    %v5960 = vpow.pop %v5959
    %v5961 = vmul.f32 %v5958, 1.442695
    %v5962 = vpow.pop %v5961
    %v5963 = vadd.f32 %v5960, 1.0
    %v5964 = vadd.f32 %v5962, 1.0
    %v5965 = vrcp.pop %v5963
    %v5966 = vmul.f32 1.0, %v5965
    %v5967 = vrcp.pop %v5964
    %v5968 = vmul.f32 1.0, %v5967
    %v5969 = vrot.slane %v5937, 2
    %v5970 = vrot.slane %v5938, 2
    %v5973 = vtanh.pop %v5969
    %v5974 = vtanh.pop %v5970
    %v5975 = vrot.slane %v5937, 3
    %v5976 = vrot.slane %v5938, 3
    %v5979 = vxor.u32 %v5975, 2147483648
    %v5980 = vxor.u32 %v5976, 2147483648
    %v5981 = vmul.f32 %v5979, 1.442695
    %v5982 = vpow.pop %v5981
    %v5983 = vmul.f32 %v5980, 1.442695
    %v5984 = vpow.pop %v5983
    %v5985 = vadd.f32 %v5982, 1.0
    %v5986 = vadd.f32 %v5984, 1.0
    %v5987 = vrcp.pop %v5985
    %v5988 = vmul.f32 1.0, %v5987
    %v5989 = vrcp.pop %v5986
    %v5990 = vmul.f32 1.0, %v5989
    %v5991 = vmul.f32 %v5966, %v5411
    %v5992 = vmul.f32 %v5968, %v5412
    %v5993 = vmul.f32 %v5948, %v5973
    %v5994 = vmul.f32 %v5950, %v5974
    %v5995 = vadd.f32 %v5991, %v5993
    %v5996 = vadd.f32 %v5992, %v5994
    %v5997 = vtanh.pop %v5995
    %v5998 = vtanh.pop %v5996
    %v5999 = vmul.f32 %v5988, %v5997
    %v6000 = vmul.f32 %v5990, %v5998
    %v6001 = vpack.c.bf16 %v5999, %v5999
    %v6002 = vpack.c.bf16 %v6000, %v6000
    %6003 = vmatprep.subr.bf16.mxu0 %v2828
    %6004 = vmatpush1.bf16.msra.mxu0 %v2827
    %6005 = vmatprep.subr.bf16.mxu0 %v2832
    %6006 = vmatpush1.bf16.msra.mxu0 %v2831
    %6007 = vmatprep.subr.bf16.mxu0 %v2836
    %6008 = vmatpush1.bf16.msra.mxu0 %v2835
    %6009 = vmatprep.subr.bf16.mxu0 %v2840
    %6010 = vmatpush1.bf16.msra.mxu0 %v2839
    %6011 = vmatprep.subr.bf16.mxu0 %v2844
    %6012 = vmatpush1.bf16.msra.mxu0 %v2843
    %6013 = vmatprep.subr.bf16.mxu0 %v2848
    %6014 = vmatpush1.bf16.msra.mxu0 %v2847
    %6015 = vmatprep.subr.bf16.mxu0 %v2852
    %6016 = vmatpush1.bf16.msra.mxu0 %v2851
    %6017 = vmatprep.subr.bf16.mxu0 %v2856
    %6018 = vmatpush1.bf16.msra.mxu0 %v2855
    %6019 = vmatprep.subr.bf16.mxu0 0
    %6020 = vmatpush1.bf16.msra.mxu0 0
    %6021 = vmatprep.subr.bf16.mxu0 0
    %6022 = vmatpush1.bf16.msra.mxu0 0
    %6023 = vmatprep.subr.bf16.mxu0 0
    %6024 = vmatpush1.bf16.msra.mxu0 0
    %6025 = vmatprep.subr.bf16.mxu0 0
    %6026 = vmatpush1.bf16.msra.mxu0 0
    %6027 = vmatprep.subr.bf16.mxu0 0
    %6028 = vmatpush1.bf16.msra.mxu0 0
    %6029 = vmatprep.subr.bf16.mxu0 0
    %6030 = vmatpush1.bf16.msra.mxu0 0
    %6031 = vmatprep.subr.bf16.mxu0 0
    %6032 = vmatpush1.bf16.msra.mxu0 0
    %6033 = vmatprep.subr.bf16.mxu0 0
    %6034 = vmatpush1.bf16.msra.mxu0 0
    %6035 = vmatprep.mubr.bf16.mxu0 0
    %6036 = vmatmul.mubr.bf16.gmra.mrb[0].mxu0 %v5619
    %v6037 = vpop.f32.mrb[0].mxu0
    %v6038 = vadd.f32 0.0, %v6037
    %v6039 = vpop.f32.mrb[0].mxu0
    %v6040 = vadd.f32 0.0, %v6039
    %v6041 = vpop.f32.mrb[0].mxu0
    %v6042 = vpop.f32.mrb[0].mxu0
    %6043 = vdwg.mxu0
    %6044 = vmatprep.subr.bf16.mxu0 %v2830
    %6045 = vmatpush1.bf16.msra.mxu0 %v2829
    %6046 = vmatprep.subr.bf16.mxu0 %v2834
    %6047 = vmatpush1.bf16.msra.mxu0 %v2833
    %6048 = vmatprep.subr.bf16.mxu0 %v2838
    %6049 = vmatpush1.bf16.msra.mxu0 %v2837
    %6050 = vmatprep.subr.bf16.mxu0 %v2842
    %6051 = vmatpush1.bf16.msra.mxu0 %v2841
    %6052 = vmatprep.subr.bf16.mxu0 %v2846
    %6053 = vmatpush1.bf16.msra.mxu0 %v2845
    %6054 = vmatprep.subr.bf16.mxu0 %v2850
    %6055 = vmatpush1.bf16.msra.mxu0 %v2849
    %6056 = vmatprep.subr.bf16.mxu0 %v2854
    %6057 = vmatpush1.bf16.msra.mxu0 %v2853
    %6058 = vmatprep.subr.bf16.mxu0 %v2858
    %6059 = vmatpush1.bf16.msra.mxu0 %v2857
    %6060 = vmatprep.subr.bf16.mxu0 0
    %6061 = vmatpush1.bf16.msra.mxu0 0
    %6062 = vmatprep.subr.bf16.mxu0 0
    %6063 = vmatpush1.bf16.msra.mxu0 0
    %6064 = vmatprep.subr.bf16.mxu0 0
    %6065 = vmatpush1.bf16.msra.mxu0 0
    %6066 = vmatprep.subr.bf16.mxu0 0
    %6067 = vmatpush1.bf16.msra.mxu0 0
    %6068 = vmatprep.subr.bf16.mxu0 0
    %6069 = vmatpush1.bf16.msra.mxu0 0
    %6070 = vmatprep.subr.bf16.mxu0 0
    %6071 = vmatpush1.bf16.msra.mxu0 0
    %6072 = vmatprep.subr.bf16.mxu0 0
    %6073 = vmatpush1.bf16.msra.mxu0 0
    %6074 = vmatprep.subr.bf16.mxu0 0
    %6075 = vmatpush1.bf16.msra.mxu0 0
    %6076 = vmatprep.mubr.bf16.mxu0 0
    %6077 = vmatmul.mubr.bf16.gmra.mrb[0].mxu0 %v5619
    %v6078 = vpop.f32.mrb[0].mxu0
    %v6079 = vadd.f32 0.0, %v6078
    %v6080 = vpop.f32.mrb[0].mxu0
    %v6081 = vadd.f32 0.0, %v6080
    %v6082 = vpop.f32.mrb[0].mxu0
    %v6083 = vpop.f32.mrb[0].mxu0
    %6084 = vdwg.mxu0
    %v6087 = vunpack.c.l.b16 %v6001
    %v6088 = vunpack.c.l.b16 %v6002
    %v6089 = vrot.slane %v6088, 7
    %v6090 = vsel %vm1726, %v6089, %v6087
    %v6091 = vpack.c.b16 %v6090, %v6090
    %6093 = vmatprep.subr.bf16.mxu0 %v1827
    %6094 = vmatpush1.bf16.msra.mxu0 %v1826
    %6095 = vmatprep.subr.bf16.mxu0 %v1831
    %6096 = vmatpush1.bf16.msra.mxu0 %v1830
    %6097 = vmatprep.subr.bf16.mxu0 %v1835
    %6098 = vmatpush1.bf16.msra.mxu0 %v1834
    %6099 = vmatprep.subr.bf16.mxu0 %v1839
    %6100 = vmatpush1.bf16.msra.mxu0 %v1838
    %6101 = vmatprep.subr.bf16.mxu0 %v1843
    %6102 = vmatpush1.bf16.msra.mxu0 %v1842
    %6103 = vmatprep.subr.bf16.mxu0 %v1847
    %6104 = vmatpush1.bf16.msra.mxu0 %v1846
    %6105 = vmatprep.subr.bf16.mxu0 %v1851
    %6106 = vmatpush1.bf16.msra.mxu0 %v1850
    %6107 = vmatprep.subr.bf16.mxu0 %v1855
    %6108 = vmatpush1.bf16.msra.mxu0 %v1854
    %6109 = vmatprep.subr.bf16.mxu0 0
    %6110 = vmatpush1.bf16.msra.mxu0 0
    %6111 = vmatprep.subr.bf16.mxu0 0
    %6112 = vmatpush1.bf16.msra.mxu0 0
    %6113 = vmatprep.subr.bf16.mxu0 0
    %6114 = vmatpush1.bf16.msra.mxu0 0
    %6115 = vmatprep.subr.bf16.mxu0 0
    %6116 = vmatpush1.bf16.msra.mxu0 0
    %6117 = vmatprep.subr.bf16.mxu0 0
    %6118 = vmatpush1.bf16.msra.mxu0 0
    %6119 = vmatprep.subr.bf16.mxu0 0
    %6120 = vmatpush1.bf16.msra.mxu0 0
    %6121 = vmatprep.subr.bf16.mxu0 0
    %6122 = vmatpush1.bf16.msra.mxu0 0
    %6123 = vmatprep.subr.bf16.mxu0 0
    %6124 = vmatpush1.bf16.msra.mxu0 0
    %6125 = vmatprep.mubr.bf16.mxu0 0
    %6126 = vmatmul.mubr.bf16.gmra.mrb[0].mxu0 %v6091
    %v6127 = vpop.f32.mrb[0].mxu0
    %v6128 = vadd.f32 %v6038, %v6127
    %v6129 = vpop.f32.mrb[0].mxu0
    %v6130 = vadd.f32 %v6040, %v6129
    %v6131 = vpop.f32.mrb[0].mxu0
    %v6132 = vpop.f32.mrb[0].mxu0
    %6133 = vdwg.mxu0
    %6134 = vmatprep.subr.bf16.mxu0 %v1829
    %6135 = vmatpush1.bf16.msra.mxu0 %v1828
    %6136 = vmatprep.subr.bf16.mxu0 %v1833
    %6137 = vmatpush1.bf16.msra.mxu0 %v1832
    %6138 = vmatprep.subr.bf16.mxu0 %v1837
    %6139 = vmatpush1.bf16.msra.mxu0 %v1836
    %6140 = vmatprep.subr.bf16.mxu0 %v1841
    %6141 = vmatpush1.bf16.msra.mxu0 %v1840
    %6142 = vmatprep.subr.bf16.mxu0 %v1845
    %6143 = vmatpush1.bf16.msra.mxu0 %v1844
    %6144 = vmatprep.subr.bf16.mxu0 %v1849
    %6145 = vmatpush1.bf16.msra.mxu0 %v1848
    %6146 = vmatprep.subr.bf16.mxu0 %v1853
    %6147 = vmatpush1.bf16.msra.mxu0 %v1852
    %6148 = vmatprep.subr.bf16.mxu0 %v1857
    %6149 = vmatpush1.bf16.msra.mxu0 %v1856
    %6150 = vmatprep.subr.bf16.mxu0 0
    %6151 = vmatpush1.bf16.msra.mxu0 0
    %6152 = vmatprep.subr.bf16.mxu0 0
    %6153 = vmatpush1.bf16.msra.mxu0 0
    %6154 = vmatprep.subr.bf16.mxu0 0
    %6155 = vmatpush1.bf16.msra.mxu0 0
    %6156 = vmatprep.subr.bf16.mxu0 0
    %6157 = vmatpush1.bf16.msra.mxu0 0
    %6158 = vmatprep.subr.bf16.mxu0 0
    %6159 = vmatpush1.bf16.msra.mxu0 0
    %6160 = vmatprep.subr.bf16.mxu0 0
    %6161 = vmatpush1.bf16.msra.mxu0 0
    %6162 = vmatprep.subr.bf16.mxu0 0
    %6163 = vmatpush1.bf16.msra.mxu0 0
    %6164 = vmatprep.subr.bf16.mxu0 0
    %6165 = vmatpush1.bf16.msra.mxu0 0
    %6166 = vmatprep.mubr.bf16.mxu0 0
    %6167 = vmatmul.mubr.bf16.gmra.mrb[0].mxu0 %v6091
    %v6168 = vpop.f32.mrb[0].mxu0
    %v6169 = vadd.f32 %v6079, %v6168
    %v6170 = vpop.f32.mrb[0].mxu0
    %v6171 = vadd.f32 %v6081, %v6170
    %v6172 = vpop.f32.mrb[0].mxu0
    %v6173 = vpop.f32.mrb[0].mxu0
    %6174 = vdwg.mxu0
    %v6175 = vadd.f32 %v6128, %v1704
    %v6176 = vadd.f32 %v6130, %v1708
    %v6177 = vadd.f32 %v6169, %v1712
    %v6178 = vadd.f32 %v6171, %v1716
    %v6179 = vxor.u32 %v6175, 2147483648
    %v6180 = vmul.f32 %v6179, 1.442695
    %v6181 = vpow.pop %v6180
    %v6182 = vadd.f32 %v6181, 1.0
    %v6183 = vrcp.pop %v6182
    %v6184 = vmul.f32 1.0, %v6183
    %v6185 = vxor.u32 %v6176, 2147483648
    %v6186 = vmul.f32 %v6185, 1.442695
    %v6187 = vpow.pop %v6186
    %v6188 = vadd.f32 %v6187, 1.0
    %v6189 = vrcp.pop %v6188
    %v6190 = vmul.f32 1.0, %v6189
    %v6191 = vtanh.pop %v6177
    %v6192 = vxor.u32 %v6178, 2147483648
    %v6193 = vmul.f32 %v6192, 1.442695
    %v6194 = vpow.pop %v6193
    %v6195 = vadd.f32 %v6194, 1.0
    %v6196 = vrcp.pop %v6195
    %v6197 = vmul.f32 1.0, %v6196
    %v6198 = vmul.f32 %v6190, %v5616
    %v6199 = vmul.f32 %v6184, %v6191
    %v6200 = vadd.f32 %v6198, %v6199
    %v6201 = vtanh.pop %v6200
    %v6202 = vmul.f32 %v6197, %v6201
    %v6203 = vpack.c.bf16 %v6202, %v6202
    %v6204 = vpack.c.bf16 %v5812, %v5812
    %6205 = vmatprep.subr.bf16.mxu0 %v3222
    %6206 = vmatpush1.bf16.msra.mxu0 %v3221
    %6207 = vmatprep.subr.bf16.mxu0 %v3226
    %6208 = vmatpush1.bf16.msra.mxu0 %v3225
    %6209 = vmatprep.subr.bf16.mxu0 %v3230
    %6210 = vmatpush1.bf16.msra.mxu0 %v3229
    %6211 = vmatprep.subr.bf16.mxu0 %v3234
    %6212 = vmatpush1.bf16.msra.mxu0 %v3233
    %6213 = vmatprep.subr.bf16.mxu0 %v3238
    %6214 = vmatpush1.bf16.msra.mxu0 %v3237
    %6215 = vmatprep.subr.bf16.mxu0 %v3242
    %6216 = vmatpush1.bf16.msra.mxu0 %v3241
    %6217 = vmatprep.subr.bf16.mxu0 %v3246
    %6218 = vmatpush1.bf16.msra.mxu0 %v3245
    %6219 = vmatprep.subr.bf16.mxu0 %v3250
    %6220 = vmatpush1.bf16.msra.mxu0 %v3249
    %6221 = vmatprep.subr.bf16.mxu0 0
    %6222 = vmatpush1.bf16.msra.mxu0 0
    %6223 = vmatprep.subr.bf16.mxu0 0
    %6224 = vmatpush1.bf16.msra.mxu0 0
    %6225 = vmatprep.subr.bf16.mxu0 0
    %6226 = vmatpush1.bf16.msra.mxu0 0
    %6227 = vmatprep.subr.bf16.mxu0 0
    %6228 = vmatpush1.bf16.msra.mxu0 0
    %6229 = vmatprep.subr.bf16.mxu0 0
    %6230 = vmatpush1.bf16.msra.mxu0 0
    %6231 = vmatprep.subr.bf16.mxu0 0
    %6232 = vmatpush1.bf16.msra.mxu0 0
    %6233 = vmatprep.subr.bf16.mxu0 0
    %6234 = vmatpush1.bf16.msra.mxu0 0
    %6235 = vmatprep.subr.bf16.mxu0 0
    %6236 = vmatpush1.bf16.msra.mxu0 0
    %6237 = vmatprep.mubr.bf16.mxu0 0
    %6238 = vmatmul.mubr.bf16.gmra.mrb[0].mxu0 %v6204
    %v6239 = vpop.f32.mrb[0].mxu0
    %v6240 = vadd.f32 0.0, %v6239
    %v6241 = vpop.f32.mrb[0].mxu0
    %v6242 = vadd.f32 0.0, %v6241
    %v6243 = vpop.f32.mrb[0].mxu0
    %v6244 = vpop.f32.mrb[0].mxu0
    %6245 = vdwg.mxu0
    %6246 = vmatprep.subr.bf16.mxu0 %v3224
    %6247 = vmatpush1.bf16.msra.mxu0 %v3223
    %6248 = vmatprep.subr.bf16.mxu0 %v3228
    %6249 = vmatpush1.bf16.msra.mxu0 %v3227
    %6250 = vmatprep.subr.bf16.mxu0 %v3232
    %6251 = vmatpush1.bf16.msra.mxu0 %v3231
    %6252 = vmatprep.subr.bf16.mxu0 %v3236
    %6253 = vmatpush1.bf16.msra.mxu0 %v3235
    %6254 = vmatprep.subr.bf16.mxu0 %v3240
    %6255 = vmatpush1.bf16.msra.mxu0 %v3239
    %6256 = vmatprep.subr.bf16.mxu0 %v3244
    %6257 = vmatpush1.bf16.msra.mxu0 %v3243
    %6258 = vmatprep.subr.bf16.mxu0 %v3248
    %6259 = vmatpush1.bf16.msra.mxu0 %v3247
    %6260 = vmatprep.subr.bf16.mxu0 %v3252
    %6261 = vmatpush1.bf16.msra.mxu0 %v3251
    %6262 = vmatprep.subr.bf16.mxu0 0
    %6263 = vmatpush1.bf16.msra.mxu0 0
    %6264 = vmatprep.subr.bf16.mxu0 0
    %6265 = vmatpush1.bf16.msra.mxu0 0
    %6266 = vmatprep.subr.bf16.mxu0 0
    %6267 = vmatpush1.bf16.msra.mxu0 0
    %6268 = vmatprep.subr.bf16.mxu0 0
    %6269 = vmatpush1.bf16.msra.mxu0 0
    %6270 = vmatprep.subr.bf16.mxu0 0
    %6271 = vmatpush1.bf16.msra.mxu0 0
    %6272 = vmatprep.subr.bf16.mxu0 0
    %6273 = vmatpush1.bf16.msra.mxu0 0
    %6274 = vmatprep.subr.bf16.mxu0 0
    %6275 = vmatpush1.bf16.msra.mxu0 0
    %6276 = vmatprep.subr.bf16.mxu0 0
    %6277 = vmatpush1.bf16.msra.mxu0 0
    %6278 = vmatprep.mubr.bf16.mxu0 0
    %6279 = vmatmul.mubr.bf16.gmra.mrb[0].mxu0 %v6204
    %v6280 = vpop.f32.mrb[0].mxu0
    %v6281 = vadd.f32 0.0, %v6280
    %v6282 = vpop.f32.mrb[0].mxu0
    %v6283 = vadd.f32 0.0, %v6282
    %v6284 = vpop.f32.mrb[0].mxu0
    %v6285 = vpop.f32.mrb[0].mxu0
    %6286 = vdwg.mxu0
    %6287 = vmatprep.subr.bf16.mxu0 %v2148
    %6288 = vmatpush1.bf16.msra.mxu0 %v2147
    %6289 = vmatprep.subr.bf16.mxu0 %v2152
    %6290 = vmatpush1.bf16.msra.mxu0 %v2151
    %6291 = vmatprep.subr.bf16.mxu0 %v2156
    %6292 = vmatpush1.bf16.msra.mxu0 %v2155
    %6293 = vmatprep.subr.bf16.mxu0 %v2160
    %6294 = vmatpush1.bf16.msra.mxu0 %v2159
    %6295 = vmatprep.subr.bf16.mxu0 %v2164
    %6296 = vmatpush1.bf16.msra.mxu0 %v2163
    %6297 = vmatprep.subr.bf16.mxu0 %v2168
    %6298 = vmatpush1.bf16.msra.mxu0 %v2167
    %6299 = vmatprep.subr.bf16.mxu0 %v2172
    %6300 = vmatpush1.bf16.msra.mxu0 %v2171
    %6301 = vmatprep.subr.bf16.mxu0 %v2176
    %6302 = vmatpush1.bf16.msra.mxu0 %v2175
    %6303 = vmatprep.subr.bf16.mxu0 0
    %6304 = vmatpush1.bf16.msra.mxu0 0
    %6305 = vmatprep.subr.bf16.mxu0 0
    %6306 = vmatpush1.bf16.msra.mxu0 0
    %6307 = vmatprep.subr.bf16.mxu0 0
    %6308 = vmatpush1.bf16.msra.mxu0 0
    %6309 = vmatprep.subr.bf16.mxu0 0
    %6310 = vmatpush1.bf16.msra.mxu0 0
    %6311 = vmatprep.subr.bf16.mxu0 0
    %6312 = vmatpush1.bf16.msra.mxu0 0
    %6313 = vmatprep.subr.bf16.mxu0 0
    %6314 = vmatpush1.bf16.msra.mxu0 0
    %6315 = vmatprep.subr.bf16.mxu0 0
    %6316 = vmatpush1.bf16.msra.mxu0 0
    %6317 = vmatprep.subr.bf16.mxu0 0
    %6318 = vmatpush1.bf16.msra.mxu0 0
    %6319 = vmatprep.mubr.bf16.mxu0 0
    %6320 = vmatmul.mubr.bf16.gmra.mrb[0].mxu0 %v6203
    %v6321 = vpop.f32.mrb[0].mxu0
    %v6322 = vadd.f32 %v6240, %v6321
    %v6323 = vpop.f32.mrb[0].mxu0
    %v6324 = vadd.f32 %v6242, %v6323
    %v6325 = vpop.f32.mrb[0].mxu0
    %v6326 = vpop.f32.mrb[0].mxu0
    %6327 = vdwg.mxu0
    %6328 = vmatprep.subr.bf16.mxu0 %v2150
    %6329 = vmatpush1.bf16.msra.mxu0 %v2149
    %6330 = vmatprep.subr.bf16.mxu0 %v2154
    %6331 = vmatpush1.bf16.msra.mxu0 %v2153
    %6332 = vmatprep.subr.bf16.mxu0 %v2158
    %6333 = vmatpush1.bf16.msra.mxu0 %v2157
    %6334 = vmatprep.subr.bf16.mxu0 %v2162
    %6335 = vmatpush1.bf16.msra.mxu0 %v2161
    %6336 = vmatprep.subr.bf16.mxu0 %v2166
    %6337 = vmatpush1.bf16.msra.mxu0 %v2165
    %6338 = vmatprep.subr.bf16.mxu0 %v2170
    %6339 = vmatpush1.bf16.msra.mxu0 %v2169
    %6340 = vmatprep.subr.bf16.mxu0 %v2174
    %6341 = vmatpush1.bf16.msra.mxu0 %v2173
    %6342 = vmatprep.subr.bf16.mxu0 %v2178
    %6343 = vmatpush1.bf16.msra.mxu0 %v2177
    %6344 = vmatprep.subr.bf16.mxu0 0
    %6345 = vmatpush1.bf16.msra.mxu0 0
    %6346 = vmatprep.subr.bf16.mxu0 0
    %6347 = vmatpush1.bf16.msra.mxu0 0
    %6348 = vmatprep.subr.bf16.mxu0 0
    %6349 = vmatpush1.bf16.msra.mxu0 0
    %6350 = vmatprep.subr.bf16.mxu0 0
    %6351 = vmatpush1.bf16.msra.mxu0 0
    %6352 = vmatprep.subr.bf16.mxu0 0
    %6353 = vmatpush1.bf16.msra.mxu0 0
    %6354 = vmatprep.subr.bf16.mxu0 0
    %6355 = vmatpush1.bf16.msra.mxu0 0
    %6356 = vmatprep.subr.bf16.mxu0 0
    %6357 = vmatpush1.bf16.msra.mxu0 0
    %6358 = vmatprep.subr.bf16.mxu0 0
    %6359 = vmatpush1.bf16.msra.mxu0 0
    %6360 = vmatprep.mubr.bf16.mxu0 0
    %6361 = vmatmul.mubr.bf16.gmra.mrb[0].mxu0 %v6203
    %v6362 = vpop.f32.mrb[0].mxu0
    %v6363 = vadd.f32 %v6281, %v6362
    %v6364 = vpop.f32.mrb[0].mxu0
    %v6365 = vadd.f32 %v6283, %v6364
    %v6366 = vpop.f32.mrb[0].mxu0
    %v6367 = vpop.f32.mrb[0].mxu0
    %6368 = vdwg.mxu0
    %v6369 = vadd.f32 %v6322, %v2034
    %v6370 = vadd.f32 %v6324, %v2038
    %v6371 = vadd.f32 %v6363, %v2042
    %v6372 = vadd.f32 %v6365, %v2046
    %v6373 = vxor.u32 %v6369, 2147483648
    %v6374 = vmul.f32 %v6373, 1.442695
    %v6375 = vpow.pop %v6374
    %v6376 = vadd.f32 %v6375, 1.0
    %v6377 = vrcp.pop %v6376
    %v6378 = vmul.f32 1.0, %v6377
    %v6379 = vxor.u32 %v6370, 2147483648
    %v6380 = vmul.f32 %v6379, 1.442695
    %v6381 = vpow.pop %v6380
    %v6382 = vadd.f32 %v6381, 1.0
    %v6383 = vrcp.pop %v6382
    %v6384 = vmul.f32 1.0, %v6383
    %v6385 = vtanh.pop %v6371
    %v6386 = vxor.u32 %v6372, 2147483648
    %v6387 = vmul.f32 %v6386, 1.442695
    %v6388 = vpow.pop %v6387
    %v6389 = vadd.f32 %v6388, 1.0
    %v6390 = vrcp.pop %v6389
    %v6391 = vmul.f32 1.0, %v6390
    %v6392 = vmul.f32 %v6384, %v5810
    %v6393 = vmul.f32 %v6378, %v6385
    %v6394 = vadd.f32 %v6392, %v6393
    %v6395 = vtanh.pop %v6394
    %v6396 = vmul.f32 %v6391, %v6395
    %s6397 = scalar_lea.vmem [#allocation2], 7
    %v6398 = vld [vmem:[%s6397] ss:$8 sm:$0xf]
    %s6399 = scalar_lea.vmem [#allocation2], 39
    %v6400 = vld [vmem:[%s6399] ss:$8 sm:$0xf]
    %6401 = vmatprep.subr.bf16.mxu0 %v2450
    %6402 = vmatpush1.bf16.msra.mxu0 %v2449
    %6403 = vmatprep.subr.bf16.mxu0 %v2454
    %6404 = vmatpush1.bf16.msra.mxu0 %v2453
    %6405 = vmatprep.subr.bf16.mxu0 %v2458
    %6406 = vmatpush1.bf16.msra.mxu0 %v2457
    %6407 = vmatprep.subr.bf16.mxu0 %v2462
    %6408 = vmatpush1.bf16.msra.mxu0 %v2461
    %6409 = vmatprep.subr.bf16.mxu0 %v2466
    %6410 = vmatpush1.bf16.msra.mxu0 %v2465
    %6411 = vmatprep.subr.bf16.mxu0 %v2470
    %6412 = vmatpush1.bf16.msra.mxu0 %v2469
    %6413 = vmatprep.subr.bf16.mxu0 %v2474
    %6414 = vmatpush1.bf16.msra.mxu0 %v2473
    %6415 = vmatprep.subr.bf16.mxu0 %v2478
    %6416 = vmatpush1.bf16.msra.mxu0 %v2477
    %6417 = vmatprep.subr.bf16.mxu0 0
    %6418 = vmatpush1.bf16.msra.mxu0 0
    %6419 = vmatprep.subr.bf16.mxu0 0
    %6420 = vmatpush1.bf16.msra.mxu0 0
    %6421 = vmatprep.subr.bf16.mxu0 0
    %6422 = vmatpush1.bf16.msra.mxu0 0
    %6423 = vmatprep.subr.bf16.mxu0 0
    %6424 = vmatpush1.bf16.msra.mxu0 0
    %6425 = vmatprep.subr.bf16.mxu0 0
    %6426 = vmatpush1.bf16.msra.mxu0 0
    %6427 = vmatprep.subr.bf16.mxu0 0
    %6428 = vmatpush1.bf16.msra.mxu0 0
    %6429 = vmatprep.subr.bf16.mxu0 0
    %6430 = vmatpush1.bf16.msra.mxu0 0
    %6431 = vmatprep.subr.bf16.mxu0 0
    %6432 = vmatpush1.bf16.msra.mxu0 0
    %6433 = vmatprep.mubr.bf16.mxu0 0
    %6434 = vmatmul.mubr.bf16.gmra.mrb[0].mxu0 %v6091
    %v6435 = vpop.f32.mrb[0].mxu0
    %v6436 = vadd.f32 0.0, %v6435
    %v6437 = vpop.f32.mrb[0].mxu0
    %v6438 = vadd.f32 0.0, %v6437
    %v6439 = vpop.f32.mrb[0].mxu0
    %v6440 = vpop.f32.mrb[0].mxu0
    %6441 = vdwg.mxu0
    %6442 = vmatprep.subr.bf16.mxu0 %v2452
    %6443 = vmatpush1.bf16.msra.mxu0 %v2451
    %6444 = vmatprep.subr.bf16.mxu0 %v2456
    %6445 = vmatpush1.bf16.msra.mxu0 %v2455
    %6446 = vmatprep.subr.bf16.mxu0 %v2460
    %6447 = vmatpush1.bf16.msra.mxu0 %v2459
    %6448 = vmatprep.subr.bf16.mxu0 %v2464
    %6449 = vmatpush1.bf16.msra.mxu0 %v2463
    %6450 = vmatprep.subr.bf16.mxu0 %v2468
    %6451 = vmatpush1.bf16.msra.mxu0 %v2467
    %6452 = vmatprep.subr.bf16.mxu0 %v2472
    %6453 = vmatpush1.bf16.msra.mxu0 %v2471
    %6454 = vmatprep.subr.bf16.mxu0 %v2476
    %6455 = vmatpush1.bf16.msra.mxu0 %v2475
    %6456 = vmatprep.subr.bf16.mxu0 %v2480
    %6457 = vmatpush1.bf16.msra.mxu0 %v2479
    %6458 = vmatprep.subr.bf16.mxu0 0
    %6459 = vmatpush1.bf16.msra.mxu0 0
    %6460 = vmatprep.subr.bf16.mxu0 0
    %6461 = vmatpush1.bf16.msra.mxu0 0
    %6462 = vmatprep.subr.bf16.mxu0 0
    %6463 = vmatpush1.bf16.msra.mxu0 0
    %6464 = vmatprep.subr.bf16.mxu0 0
    %6465 = vmatpush1.bf16.msra.mxu0 0
    %6466 = vmatprep.subr.bf16.mxu0 0
    %6467 = vmatpush1.bf16.msra.mxu0 0
    %6468 = vmatprep.subr.bf16.mxu0 0
    %6469 = vmatpush1.bf16.msra.mxu0 0
    %6470 = vmatprep.subr.bf16.mxu0 0
    %6471 = vmatpush1.bf16.msra.mxu0 0
    %6472 = vmatprep.subr.bf16.mxu0 0
    %6473 = vmatpush1.bf16.msra.mxu0 0
    %6474 = vmatprep.mubr.bf16.mxu0 0
    %6475 = vmatmul.mubr.bf16.gmra.mrb[0].mxu0 %v6091
    %v6476 = vpop.f32.mrb[0].mxu0
    %v6477 = vadd.f32 0.0, %v6476
    %v6478 = vpop.f32.mrb[0].mxu0
    %v6479 = vadd.f32 0.0, %v6478
    %v6480 = vpop.f32.mrb[0].mxu0
    %v6481 = vpop.f32.mrb[0].mxu0
    %6482 = vdwg.mxu0
    %v6487 = vcombine.low %v6436, %v6438
    %v6488 = vcombine.low %v6477, %v6479
    %v6490 = vunpack.c.l.s4 1966171168
    %v6491 = vunpack.c.0.s8 %v6490
    %v6492 = vlaneseq
    %v6493 = vshrl.u32 %v6492, 7
    %v6494 = vsub.s32 %v6491, %v6493
    %v6495 = vrot.slane %v6487, %v6494
    %v6497 = vunpack.c.l.s4 1966171168
    %v6498 = vunpack.c.0.s8 %v6497
    %v6499 = vlaneseq
    %v6500 = vshrl.u32 %v6499, 7
    %v6501 = vsub.s32 %v6498, %v6500
    %v6502 = vrot.slane %v6488, %v6501
    %v6503 = vcombine.low %v6495, %v6502
    %v6504 = vcombine.high %v6495, %v6502
    %v6506 = vunpack.c.l.s4 1966171168
    %v6507 = vunpack.c.0.s8 %v6506
    %v6508 = vlaneseq
    %v6509 = vshrl.u32 %v6508, 7
    %v6510 = vsub.s32 %v6507, %v6509
    %v6511 = vrot.slane %v6503, %v6510
    %v6513 = vunpack.c.l.s4 1966171168
    %v6514 = vunpack.c.0.s8 %v6513
    %v6515 = vlaneseq
    %v6516 = vshrl.u32 %v6515, 7
    %v6517 = vsub.s32 %v6514, %v6516
    %v6518 = vrot.slane %v6504, %v6517
    %v6521 = vadd.f32 %v6398, %v6511
    %v6522 = vadd.f32 %v6400, %v6518
    %v6523 = vxor.u32 %v6521, 2147483648
    %v6524 = vxor.u32 %v6522, 2147483648
    %v6525 = vmul.f32 %v6523, 1.442695
    %v6526 = vpow.pop %v6525
    %v6527 = vmul.f32 %v6524, 1.442695
    %v6528 = vpow.pop %v6527
    %v6529 = vadd.f32 %v6526, 1.0
    %v6530 = vadd.f32 %v6528, 1.0
    %v6531 = vrcp.pop %v6529
    %v6532 = vmul.f32 1.0, %v6531
    %v6533 = vrcp.pop %v6530
    %v6534 = vmul.f32 1.0, %v6533
    %v6537 = vrot.slane %v6521, 1
    %v6538 = vrot.slane %v6522, 1
    %v6541 = vxor.u32 %v6537, 2147483648
    %v6542 = vxor.u32 %v6538, 2147483648
    %v6543 = vmul.f32 %v6541, 1.442695
    %v6544 = vpow.pop %v6543
    %v6545 = vmul.f32 %v6542, 1.442695
    %v6546 = vpow.pop %v6545
    %v6547 = vadd.f32 %v6544, 1.0
    %v6548 = vadd.f32 %v6546, 1.0
    %v6549 = vrcp.pop %v6547
    %v6550 = vmul.f32 1.0, %v6549
    %v6551 = vrcp.pop %v6548
    %v6552 = vmul.f32 1.0, %v6551
    %v6553 = vrot.slane %v6521, 2
    %v6554 = vrot.slane %v6522, 2
    %v6557 = vtanh.pop %v6553
    %v6558 = vtanh.pop %v6554
    %v6559 = vrot.slane %v6521, 3
    %v6560 = vrot.slane %v6522, 3
    %v6563 = vxor.u32 %v6559, 2147483648
    %v6564 = vxor.u32 %v6560, 2147483648
    %v6565 = vmul.f32 %v6563, 1.442695
    %v6566 = vpow.pop %v6565
    %v6567 = vmul.f32 %v6564, 1.442695
    %v6568 = vpow.pop %v6567
    %v6569 = vadd.f32 %v6566, 1.0
    %v6570 = vadd.f32 %v6568, 1.0
    %v6571 = vrcp.pop %v6569
    %v6572 = vmul.f32 1.0, %v6571
    %v6573 = vrcp.pop %v6570
    %v6574 = vmul.f32 1.0, %v6573
    %v6575 = vmul.f32 %v6550, %v5995
    %v6576 = vmul.f32 %v6552, %v5996
    %v6577 = vmul.f32 %v6532, %v6557
    %v6578 = vmul.f32 %v6534, %v6558
    %v6579 = vadd.f32 %v6575, %v6577
    %v6580 = vadd.f32 %v6576, %v6578
    %v6581 = vtanh.pop %v6579
    %v6582 = vtanh.pop %v6580
    %v6583 = vmul.f32 %v6572, %v6581
    %v6584 = vmul.f32 %v6574, %v6582
    %v6585 = vpack.c.bf16 %v6583, %v6583
    %v6586 = vpack.c.bf16 %v6584, %v6584
    %6587 = vmatprep.subr.bf16.mxu0 %v2828
    %6588 = vmatpush1.bf16.msra.mxu0 %v2827
    %6589 = vmatprep.subr.bf16.mxu0 %v2832
    %6590 = vmatpush1.bf16.msra.mxu0 %v2831
    %6591 = vmatprep.subr.bf16.mxu0 %v2836
    %6592 = vmatpush1.bf16.msra.mxu0 %v2835
    %6593 = vmatprep.subr.bf16.mxu0 %v2840
    %6594 = vmatpush1.bf16.msra.mxu0 %v2839
    %6595 = vmatprep.subr.bf16.mxu0 %v2844
    %6596 = vmatpush1.bf16.msra.mxu0 %v2843
    %6597 = vmatprep.subr.bf16.mxu0 %v2848
    %6598 = vmatpush1.bf16.msra.mxu0 %v2847
    %6599 = vmatprep.subr.bf16.mxu0 %v2852
    %6600 = vmatpush1.bf16.msra.mxu0 %v2851
    %6601 = vmatprep.subr.bf16.mxu0 %v2856
    %6602 = vmatpush1.bf16.msra.mxu0 %v2855
    %6603 = vmatprep.subr.bf16.mxu0 0
    %6604 = vmatpush1.bf16.msra.mxu0 0
    %6605 = vmatprep.subr.bf16.mxu0 0
    %6606 = vmatpush1.bf16.msra.mxu0 0
    %6607 = vmatprep.subr.bf16.mxu0 0
    %6608 = vmatpush1.bf16.msra.mxu0 0
    %6609 = vmatprep.subr.bf16.mxu0 0
    %6610 = vmatpush1.bf16.msra.mxu0 0
    %6611 = vmatprep.subr.bf16.mxu0 0
    %6612 = vmatpush1.bf16.msra.mxu0 0
    %6613 = vmatprep.subr.bf16.mxu0 0
    %6614 = vmatpush1.bf16.msra.mxu0 0
    %6615 = vmatprep.subr.bf16.mxu0 0
    %6616 = vmatpush1.bf16.msra.mxu0 0
    %6617 = vmatprep.subr.bf16.mxu0 0
    %6618 = vmatpush1.bf16.msra.mxu0 0
    %6619 = vmatprep.mubr.bf16.mxu0 0
    %6620 = vmatmul.mubr.bf16.gmra.mrb[0].mxu0 %v6203
    %v6621 = vpop.f32.mrb[0].mxu0
    %v6622 = vadd.f32 0.0, %v6621
    %v6623 = vpop.f32.mrb[0].mxu0
    %v6624 = vadd.f32 0.0, %v6623
    %v6625 = vpop.f32.mrb[0].mxu0
    %v6626 = vpop.f32.mrb[0].mxu0
    %6627 = vdwg.mxu0
    %6628 = vmatprep.subr.bf16.mxu0 %v2830
    %6629 = vmatpush1.bf16.msra.mxu0 %v2829
    %6630 = vmatprep.subr.bf16.mxu0 %v2834
    %6631 = vmatpush1.bf16.msra.mxu0 %v2833
    %6632 = vmatprep.subr.bf16.mxu0 %v2838
    %6633 = vmatpush1.bf16.msra.mxu0 %v2837
    %6634 = vmatprep.subr.bf16.mxu0 %v2842
    %6635 = vmatpush1.bf16.msra.mxu0 %v2841
    %6636 = vmatprep.subr.bf16.mxu0 %v2846
    %6637 = vmatpush1.bf16.msra.mxu0 %v2845
    %6638 = vmatprep.subr.bf16.mxu0 %v2850
    %6639 = vmatpush1.bf16.msra.mxu0 %v2849
    %6640 = vmatprep.subr.bf16.mxu0 %v2854
    %6641 = vmatpush1.bf16.msra.mxu0 %v2853
    %6642 = vmatprep.subr.bf16.mxu0 %v2858
    %6643 = vmatpush1.bf16.msra.mxu0 %v2857
    %6644 = vmatprep.subr.bf16.mxu0 0
    %6645 = vmatpush1.bf16.msra.mxu0 0
    %6646 = vmatprep.subr.bf16.mxu0 0
    %6647 = vmatpush1.bf16.msra.mxu0 0
    %6648 = vmatprep.subr.bf16.mxu0 0
    %6649 = vmatpush1.bf16.msra.mxu0 0
    %6650 = vmatprep.subr.bf16.mxu0 0
    %6651 = vmatpush1.bf16.msra.mxu0 0
    %6652 = vmatprep.subr.bf16.mxu0 0
    %6653 = vmatpush1.bf16.msra.mxu0 0
    %6654 = vmatprep.subr.bf16.mxu0 0
    %6655 = vmatpush1.bf16.msra.mxu0 0
    %6656 = vmatprep.subr.bf16.mxu0 0
    %6657 = vmatpush1.bf16.msra.mxu0 0
    %6658 = vmatprep.subr.bf16.mxu0 0
    %6659 = vmatpush1.bf16.msra.mxu0 0
    %6660 = vmatprep.mubr.bf16.mxu0 0
    %6661 = vmatmul.mubr.bf16.gmra.mrb[0].mxu0 %v6203
    %v6662 = vpop.f32.mrb[0].mxu0
    %v6663 = vadd.f32 0.0, %v6662
    %v6664 = vpop.f32.mrb[0].mxu0
    %v6665 = vadd.f32 0.0, %v6664
    %v6666 = vpop.f32.mrb[0].mxu0
    %v6667 = vpop.f32.mrb[0].mxu0
    %6668 = vdwg.mxu0
    %v6671 = vunpack.c.l.b16 %v6585
    %v6672 = vunpack.c.l.b16 %v6586
    %v6673 = vrot.slane %v6672, 7
    %v6674 = vsel %vm1726, %v6673, %v6671
    %v6675 = vpack.c.b16 %v6674, %v6674
    %6677 = vmatprep.subr.bf16.mxu0 %v1827
    %6678 = vmatpush1.bf16.msra.mxu0 %v1826
    %6679 = vmatprep.subr.bf16.mxu0 %v1831
    %6680 = vmatpush1.bf16.msra.mxu0 %v1830
    %6681 = vmatprep.subr.bf16.mxu0 %v1835
    %6682 = vmatpush1.bf16.msra.mxu0 %v1834
    %6683 = vmatprep.subr.bf16.mxu0 %v1839
    %6684 = vmatpush1.bf16.msra.mxu0 %v1838
    %6685 = vmatprep.subr.bf16.mxu0 %v1843
    %6686 = vmatpush1.bf16.msra.mxu0 %v1842
    %6687 = vmatprep.subr.bf16.mxu0 %v1847
    %6688 = vmatpush1.bf16.msra.mxu0 %v1846
    %6689 = vmatprep.subr.bf16.mxu0 %v1851
    %6690 = vmatpush1.bf16.msra.mxu0 %v1850
    %6691 = vmatprep.subr.bf16.mxu0 %v1855
    %6692 = vmatpush1.bf16.msra.mxu0 %v1854
    %6693 = vmatprep.subr.bf16.mxu0 0
    %6694 = vmatpush1.bf16.msra.mxu0 0
    %6695 = vmatprep.subr.bf16.mxu0 0
    %6696 = vmatpush1.bf16.msra.mxu0 0
    %6697 = vmatprep.subr.bf16.mxu0 0
    %6698 = vmatpush1.bf16.msra.mxu0 0
    %6699 = vmatprep.subr.bf16.mxu0 0
    %6700 = vmatpush1.bf16.msra.mxu0 0
    %6701 = vmatprep.subr.bf16.mxu0 0
    %6702 = vmatpush1.bf16.msra.mxu0 0
    %6703 = vmatprep.subr.bf16.mxu0 0
    %6704 = vmatpush1.bf16.msra.mxu0 0
    %6705 = vmatprep.subr.bf16.mxu0 0
    %6706 = vmatpush1.bf16.msra.mxu0 0
    %6707 = vmatprep.subr.bf16.mxu0 0
    %6708 = vmatpush1.bf16.msra.mxu0 0
    %6709 = vmatprep.mubr.bf16.mxu0 0
    %6710 = vmatmul.mubr.bf16.gmra.mrb[0].mxu0 %v6675
    %v6711 = vpop.f32.mrb[0].mxu0
    %v6712 = vadd.f32 %v6622, %v6711
    %v6713 = vpop.f32.mrb[0].mxu0
    %v6714 = vadd.f32 %v6624, %v6713
    %v6715 = vpop.f32.mrb[0].mxu0
    %v6716 = vpop.f32.mrb[0].mxu0
    %6717 = vdwg.mxu0
    %6718 = vmatprep.subr.bf16.mxu0 %v1829
    %6719 = vmatpush1.bf16.msra.mxu0 %v1828
    %6720 = vmatprep.subr.bf16.mxu0 %v1833
    %6721 = vmatpush1.bf16.msra.mxu0 %v1832
    %6722 = vmatprep.subr.bf16.mxu0 %v1837
    %6723 = vmatpush1.bf16.msra.mxu0 %v1836
    %6724 = vmatprep.subr.bf16.mxu0 %v1841
    %6725 = vmatpush1.bf16.msra.mxu0 %v1840
    %6726 = vmatprep.subr.bf16.mxu0 %v1845
    %6727 = vmatpush1.bf16.msra.mxu0 %v1844
    %6728 = vmatprep.subr.bf16.mxu0 %v1849
    %6729 = vmatpush1.bf16.msra.mxu0 %v1848
    %6730 = vmatprep.subr.bf16.mxu0 %v1853
    %6731 = vmatpush1.bf16.msra.mxu0 %v1852
    %6732 = vmatprep.subr.bf16.mxu0 %v1857
    %6733 = vmatpush1.bf16.msra.mxu0 %v1856
    %6734 = vmatprep.subr.bf16.mxu0 0
    %6735 = vmatpush1.bf16.msra.mxu0 0
    %6736 = vmatprep.subr.bf16.mxu0 0
    %6737 = vmatpush1.bf16.msra.mxu0 0
    %6738 = vmatprep.subr.bf16.mxu0 0
    %6739 = vmatpush1.bf16.msra.mxu0 0
    %6740 = vmatprep.subr.bf16.mxu0 0
    %6741 = vmatpush1.bf16.msra.mxu0 0
    %6742 = vmatprep.subr.bf16.mxu0 0
    %6743 = vmatpush1.bf16.msra.mxu0 0
    %6744 = vmatprep.subr.bf16.mxu0 0
    %6745 = vmatpush1.bf16.msra.mxu0 0
    %6746 = vmatprep.subr.bf16.mxu0 0
    %6747 = vmatpush1.bf16.msra.mxu0 0
    %6748 = vmatprep.subr.bf16.mxu0 0
    %6749 = vmatpush1.bf16.msra.mxu0 0
    %6750 = vmatprep.mubr.bf16.mxu0 0
    %6751 = vmatmul.mubr.bf16.gmra.mrb[0].mxu0 %v6675
    %v6752 = vpop.f32.mrb[0].mxu0
    %v6753 = vadd.f32 %v6663, %v6752
    %v6754 = vpop.f32.mrb[0].mxu0
    %v6755 = vadd.f32 %v6665, %v6754
    %v6756 = vpop.f32.mrb[0].mxu0
    %v6757 = vpop.f32.mrb[0].mxu0
    %6758 = vdwg.mxu0
    %v6759 = vadd.f32 %v6712, %v1704
    %v6760 = vadd.f32 %v6714, %v1708
    %v6761 = vadd.f32 %v6753, %v1712
    %v6762 = vadd.f32 %v6755, %v1716
    %v6763 = vxor.u32 %v6759, 2147483648
    %v6764 = vmul.f32 %v6763, 1.442695
    %v6765 = vpow.pop %v6764
    %v6766 = vadd.f32 %v6765, 1.0
    %v6767 = vrcp.pop %v6766
    %v6768 = vmul.f32 1.0, %v6767
    %v6769 = vxor.u32 %v6760, 2147483648
    %v6770 = vmul.f32 %v6769, 1.442695
    %v6771 = vpow.pop %v6770
    %v6772 = vadd.f32 %v6771, 1.0
    %v6773 = vrcp.pop %v6772
    %v6774 = vmul.f32 1.0, %v6773
    %v6775 = vtanh.pop %v6761
    %v6776 = vxor.u32 %v6762, 2147483648
    %v6777 = vmul.f32 %v6776, 1.442695
    %v6778 = vpow.pop %v6777
    %v6779 = vadd.f32 %v6778, 1.0
    %v6780 = vrcp.pop %v6779
    %v6781 = vmul.f32 1.0, %v6780
    %v6782 = vmul.f32 %v6774, %v6200
    %v6783 = vmul.f32 %v6768, %v6775
    %v6784 = vadd.f32 %v6782, %v6783
    %v6785 = vtanh.pop %v6784
    %v6786 = vmul.f32 %v6781, %v6785
    %v6787 = vpack.c.bf16 %v6786, %v6786
    %v6788 = vpack.c.bf16 %v6396, %v6396
    %6789 = vmatprep.subr.bf16.mxu0 %v3222
    %6790 = vmatpush1.bf16.msra.mxu0 %v3221
    %6791 = vmatprep.subr.bf16.mxu0 %v3226
    %6792 = vmatpush1.bf16.msra.mxu0 %v3225
    %6793 = vmatprep.subr.bf16.mxu0 %v3230
    %6794 = vmatpush1.bf16.msra.mxu0 %v3229
    %6795 = vmatprep.subr.bf16.mxu0 %v3234
    %6796 = vmatpush1.bf16.msra.mxu0 %v3233
    %6797 = vmatprep.subr.bf16.mxu0 %v3238
    %6798 = vmatpush1.bf16.msra.mxu0 %v3237
    %6799 = vmatprep.subr.bf16.mxu0 %v3242
    %6800 = vmatpush1.bf16.msra.mxu0 %v3241
    %6801 = vmatprep.subr.bf16.mxu0 %v3246
    %6802 = vmatpush1.bf16.msra.mxu0 %v3245
    %6803 = vmatprep.subr.bf16.mxu0 %v3250
    %6804 = vmatpush1.bf16.msra.mxu0 %v3249
    %6805 = vmatprep.subr.bf16.mxu0 0
    %6806 = vmatpush1.bf16.msra.mxu0 0
    %6807 = vmatprep.subr.bf16.mxu0 0
    %6808 = vmatpush1.bf16.msra.mxu0 0
    %6809 = vmatprep.subr.bf16.mxu0 0
    %6810 = vmatpush1.bf16.msra.mxu0 0
    %6811 = vmatprep.subr.bf16.mxu0 0
    %6812 = vmatpush1.bf16.msra.mxu0 0
    %6813 = vmatprep.subr.bf16.mxu0 0
    %6814 = vmatpush1.bf16.msra.mxu0 0
    %6815 = vmatprep.subr.bf16.mxu0 0
    %6816 = vmatpush1.bf16.msra.mxu0 0
    %6817 = vmatprep.subr.bf16.mxu0 0
    %6818 = vmatpush1.bf16.msra.mxu0 0
    %6819 = vmatprep.subr.bf16.mxu0 0
    %6820 = vmatpush1.bf16.msra.mxu0 0
    %6821 = vmatprep.mubr.bf16.mxu0 0
    %6822 = vmatmul.mubr.bf16.gmra.mrb[0].mxu0 %v6788
    %v6823 = vpop.f32.mrb[0].mxu0
    %v6824 = vadd.f32 0.0, %v6823
    %v6825 = vpop.f32.mrb[0].mxu0
    %v6826 = vadd.f32 0.0, %v6825
    %v6827 = vpop.f32.mrb[0].mxu0
    %v6828 = vpop.f32.mrb[0].mxu0
    %6829 = vdwg.mxu0
    %6830 = vmatprep.subr.bf16.mxu0 %v3224
    %6831 = vmatpush1.bf16.msra.mxu0 %v3223
    %6832 = vmatprep.subr.bf16.mxu0 %v3228
    %6833 = vmatpush1.bf16.msra.mxu0 %v3227
    %6834 = vmatprep.subr.bf16.mxu0 %v3232
    %6835 = vmatpush1.bf16.msra.mxu0 %v3231
    %6836 = vmatprep.subr.bf16.mxu0 %v3236
    %6837 = vmatpush1.bf16.msra.mxu0 %v3235
    %6838 = vmatprep.subr.bf16.mxu0 %v3240
    %6839 = vmatpush1.bf16.msra.mxu0 %v3239
    %6840 = vmatprep.subr.bf16.mxu0 %v3244
    %6841 = vmatpush1.bf16.msra.mxu0 %v3243
    %6842 = vmatprep.subr.bf16.mxu0 %v3248
    %6843 = vmatpush1.bf16.msra.mxu0 %v3247
    %6844 = vmatprep.subr.bf16.mxu0 %v3252
    %6845 = vmatpush1.bf16.msra.mxu0 %v3251
    %6846 = vmatprep.subr.bf16.mxu0 0
    %6847 = vmatpush1.bf16.msra.mxu0 0
    %6848 = vmatprep.subr.bf16.mxu0 0
    %6849 = vmatpush1.bf16.msra.mxu0 0
    %6850 = vmatprep.subr.bf16.mxu0 0
    %6851 = vmatpush1.bf16.msra.mxu0 0
    %6852 = vmatprep.subr.bf16.mxu0 0
    %6853 = vmatpush1.bf16.msra.mxu0 0
    %6854 = vmatprep.subr.bf16.mxu0 0
    %6855 = vmatpush1.bf16.msra.mxu0 0
    %6856 = vmatprep.subr.bf16.mxu0 0
    %6857 = vmatpush1.bf16.msra.mxu0 0
    %6858 = vmatprep.subr.bf16.mxu0 0
    %6859 = vmatpush1.bf16.msra.mxu0 0
    %6860 = vmatprep.subr.bf16.mxu0 0
    %6861 = vmatpush1.bf16.msra.mxu0 0
    %6862 = vmatprep.mubr.bf16.mxu0 0
    %6863 = vmatmul.mubr.bf16.gmra.mrb[0].mxu0 %v6788
    %v6864 = vpop.f32.mrb[0].mxu0
    %v6865 = vadd.f32 0.0, %v6864
    %v6866 = vpop.f32.mrb[0].mxu0
    %v6867 = vadd.f32 0.0, %v6866
    %v6868 = vpop.f32.mrb[0].mxu0
    %v6869 = vpop.f32.mrb[0].mxu0
    %6870 = vdwg.mxu0
    %6871 = vmatprep.subr.bf16.mxu0 %v2148
    %6872 = vmatpush1.bf16.msra.mxu0 %v2147
    %6873 = vmatprep.subr.bf16.mxu0 %v2152
    %6874 = vmatpush1.bf16.msra.mxu0 %v2151
    %6875 = vmatprep.subr.bf16.mxu0 %v2156
    %6876 = vmatpush1.bf16.msra.mxu0 %v2155
    %6877 = vmatprep.subr.bf16.mxu0 %v2160
    %6878 = vmatpush1.bf16.msra.mxu0 %v2159
    %6879 = vmatprep.subr.bf16.mxu0 %v2164
    %6880 = vmatpush1.bf16.msra.mxu0 %v2163
    %6881 = vmatprep.subr.bf16.mxu0 %v2168
    %6882 = vmatpush1.bf16.msra.mxu0 %v2167
    %6883 = vmatprep.subr.bf16.mxu0 %v2172
    %6884 = vmatpush1.bf16.msra.mxu0 %v2171
    %6885 = vmatprep.subr.bf16.mxu0 %v2176
    %6886 = vmatpush1.bf16.msra.mxu0 %v2175
    %6887 = vmatprep.subr.bf16.mxu0 0
    %6888 = vmatpush1.bf16.msra.mxu0 0
    %6889 = vmatprep.subr.bf16.mxu0 0
    %6890 = vmatpush1.bf16.msra.mxu0 0
    %6891 = vmatprep.subr.bf16.mxu0 0
    %6892 = vmatpush1.bf16.msra.mxu0 0
    %6893 = vmatprep.subr.bf16.mxu0 0
    %6894 = vmatpush1.bf16.msra.mxu0 0
    %6895 = vmatprep.subr.bf16.mxu0 0
    %6896 = vmatpush1.bf16.msra.mxu0 0
    %6897 = vmatprep.subr.bf16.mxu0 0
    %6898 = vmatpush1.bf16.msra.mxu0 0
    %6899 = vmatprep.subr.bf16.mxu0 0
    %6900 = vmatpush1.bf16.msra.mxu0 0
    %6901 = vmatprep.subr.bf16.mxu0 0
    %6902 = vmatpush1.bf16.msra.mxu0 0
    %6903 = vmatprep.mubr.bf16.mxu0 0
    %6904 = vmatmul.mubr.bf16.gmra.mrb[0].mxu0 %v6787
    %v6905 = vpop.f32.mrb[0].mxu0
    %v6906 = vadd.f32 %v6824, %v6905
    %v6907 = vpop.f32.mrb[0].mxu0
    %v6908 = vadd.f32 %v6826, %v6907
    %v6909 = vpop.f32.mrb[0].mxu0
    %v6910 = vpop.f32.mrb[0].mxu0
    %6911 = vdwg.mxu0
    %6912 = vmatprep.subr.bf16.mxu0 %v2150
    %6913 = vmatpush1.bf16.msra.mxu0 %v2149
    %6914 = vmatprep.subr.bf16.mxu0 %v2154
    %6915 = vmatpush1.bf16.msra.mxu0 %v2153
    %6916 = vmatprep.subr.bf16.mxu0 %v2158
    %6917 = vmatpush1.bf16.msra.mxu0 %v2157
    %6918 = vmatprep.subr.bf16.mxu0 %v2162
    %6919 = vmatpush1.bf16.msra.mxu0 %v2161
    %6920 = vmatprep.subr.bf16.mxu0 %v2166
    %6921 = vmatpush1.bf16.msra.mxu0 %v2165
    %6922 = vmatprep.subr.bf16.mxu0 %v2170
    %6923 = vmatpush1.bf16.msra.mxu0 %v2169
    %6924 = vmatprep.subr.bf16.mxu0 %v2174
    %6925 = vmatpush1.bf16.msra.mxu0 %v2173
    %6926 = vmatprep.subr.bf16.mxu0 %v2178
    %6927 = vmatpush1.bf16.msra.mxu0 %v2177
    %6928 = vmatprep.subr.bf16.mxu0 0
    %6929 = vmatpush1.bf16.msra.mxu0 0
    %6930 = vmatprep.subr.bf16.mxu0 0
    %6931 = vmatpush1.bf16.msra.mxu0 0
    %6932 = vmatprep.subr.bf16.mxu0 0
    %6933 = vmatpush1.bf16.msra.mxu0 0
    %6934 = vmatprep.subr.bf16.mxu0 0
    %6935 = vmatpush1.bf16.msra.mxu0 0
    %6936 = vmatprep.subr.bf16.mxu0 0
    %6937 = vmatpush1.bf16.msra.mxu0 0
    %6938 = vmatprep.subr.bf16.mxu0 0
    %6939 = vmatpush1.bf16.msra.mxu0 0
    %6940 = vmatprep.subr.bf16.mxu0 0
    %6941 = vmatpush1.bf16.msra.mxu0 0
    %6942 = vmatprep.subr.bf16.mxu0 0
    %6943 = vmatpush1.bf16.msra.mxu0 0
    %6944 = vmatprep.mubr.bf16.mxu0 0
    %6945 = vmatmul.mubr.bf16.gmra.mrb[0].mxu0 %v6787
    %v6946 = vpop.f32.mrb[0].mxu0
    %v6947 = vadd.f32 %v6865, %v6946
    %v6948 = vpop.f32.mrb[0].mxu0
    %v6949 = vadd.f32 %v6867, %v6948
    %v6950 = vpop.f32.mrb[0].mxu0
    %v6951 = vpop.f32.mrb[0].mxu0
    %6952 = vdwg.mxu0
    %v6953 = vadd.f32 %v6906, %v2034
    %v6954 = vadd.f32 %v6908, %v2038
    %v6955 = vadd.f32 %v6947, %v2042
    %v6956 = vadd.f32 %v6949, %v2046
    %v6957 = vxor.u32 %v6953, 2147483648
    %v6958 = vmul.f32 %v6957, 1.442695
    %v6959 = vpow.pop %v6958
    %v6960 = vadd.f32 %v6959, 1.0
    %v6961 = vrcp.pop %v6960
    %v6962 = vmul.f32 1.0, %v6961
    %v6963 = vxor.u32 %v6954, 2147483648
    %v6964 = vmul.f32 %v6963, 1.442695
    %v6965 = vpow.pop %v6964
    %v6966 = vadd.f32 %v6965, 1.0
    %v6967 = vrcp.pop %v6966
    %v6968 = vmul.f32 1.0, %v6967
    %v6969 = vtanh.pop %v6955
    %v6970 = vxor.u32 %v6956, 2147483648
    %v6971 = vmul.f32 %v6970, 1.442695
    %v6972 = vpow.pop %v6971
    %v6973 = vadd.f32 %v6972, 1.0
    %v6974 = vrcp.pop %v6973
    %v6975 = vmul.f32 1.0, %v6974
    %v6976 = vmul.f32 %v6968, %v6394
    %v6977 = vmul.f32 %v6962, %v6969
    %v6978 = vadd.f32 %v6976, %v6977
    %v6979 = vtanh.pop %v6978
    %v6980 = vmul.f32 %v6975, %v6979
    %v6981 = vpack.c.bf16 %v6980, %v6980
    %v6982 = vld [vmem:[#allocation11] sm:$0xff]
    %v6983 = vld [vmem:[#allocation11 + $0x8] sm:$0xff]
    %v6984 = vld [vmem:[#allocation11 + $0x10] sm:$0xff]
    %v6985 = vld [vmem:[#allocation11 + $0x18] sm:$0xff]
    %v6986 = vld [vmem:[#allocation11 + $0x20] sm:$0xff]
    %v6987 = vld [vmem:[#allocation11 + $0x28] sm:$0xff]
    %v6988 = vld [vmem:[#allocation11 + $0x30] sm:$0xff]
    %v6989 = vld [vmem:[#allocation11 + $0x38] sm:$0xff]
    %v6990 = vld [vmem:[#allocation11 + $0x40] sm:$0xff]
    %v6991 = vld [vmem:[#allocation11 + $0x48] sm:$0xff]
    %v6992 = vld [vmem:[#allocation11 + $0x50] sm:$0xff]
    %v6993 = vld [vmem:[#allocation11 + $0x58] sm:$0xff]
    %v6994 = vld [vmem:[#allocation11 + $0x60] sm:$0xff]
    %v6995 = vld [vmem:[#allocation11 + $0x68] sm:$0xff]
    %v6996 = vld [vmem:[#allocation11 + $0x70] sm:$0xff]
    %v6997 = vld [vmem:[#allocation11 + $0x78] sm:$0xff]
    %v6998 = vld [vmem:[%s11] sm:$0x3]
    %v7000 = vlaneseq
    %v7001 = vshrl.u32 %v7000, 7
    %v7002 = vsub.s32 0, %v7001
    %v7003 = vrot.slane %v6998, %v7002
    %v7004 = vlaneseq
    %v7005 = vshrl.u32 %v7004, 7
    %v7006 = vsub.s32 1, %v7005
    %v7007 = vrot.slane %v6998, %v7006
    %v7026 = vunpack.c.l.b16 %v6982
    %v7027 = vunpack.c.h.b16 %v6982
    %v7028 = vunpack.c.l.b16 %v6983
    %v7029 = vunpack.c.h.b16 %v6983
    %v7030 = vunpack.c.l.b16 %v6984
    %v7031 = vunpack.c.h.b16 %v6984
    %v7032 = vunpack.c.l.b16 %v6985
    %v7033 = vunpack.c.h.b16 %v6985
    %v7034 = vunpack.c.l.b16 %v6986
    %v7035 = vunpack.c.h.b16 %v6986
    %v7036 = vunpack.c.l.b16 %v6987
    %v7037 = vunpack.c.h.b16 %v6987
    %v7038 = vunpack.c.l.b16 %v6988
    %v7039 = vunpack.c.h.b16 %v6988
    %v7040 = vunpack.c.l.b16 %v6989
    %v7041 = vunpack.c.h.b16 %v6989
    %v7042 = vunpack.c.l.b16 %v6990
    %v7043 = vunpack.c.h.b16 %v6990
    %v7044 = vunpack.c.l.b16 %v6991
    %v7045 = vunpack.c.h.b16 %v6991
    %v7046 = vunpack.c.l.b16 %v6992
    %v7047 = vunpack.c.h.b16 %v6992
    %v7048 = vunpack.c.l.b16 %v6993
    %v7049 = vunpack.c.h.b16 %v6993
    %v7050 = vunpack.c.l.b16 %v6994
    %v7051 = vunpack.c.h.b16 %v6994
    %v7052 = vunpack.c.l.b16 %v6995
    %v7053 = vunpack.c.h.b16 %v6995
    %v7054 = vunpack.c.l.b16 %v6996
    %v7055 = vunpack.c.h.b16 %v6996
    %v7056 = vunpack.c.l.b16 %v6997
    %v7057 = vunpack.c.h.b16 %v6997
    %v7058 = vpack.c.b16 %v7028, %v7026
    %v7059 = vpack.c.b16 %v7029, %v7027
    %v7060 = vpack.c.b16 %v7032, %v7030
    %v7061 = vpack.c.b16 %v7033, %v7031
    %v7062 = vpack.c.b16 %v7036, %v7034
    %v7063 = vpack.c.b16 %v7037, %v7035
    %v7064 = vpack.c.b16 %v7040, %v7038
    %v7065 = vpack.c.b16 %v7041, %v7039
    %v7066 = vpack.c.b16 %v7044, %v7042
    %v7067 = vpack.c.b16 %v7045, %v7043
    %v7068 = vpack.c.b16 %v7048, %v7046
    %v7069 = vpack.c.b16 %v7049, %v7047
    %v7070 = vpack.c.b16 %v7052, %v7050
    %v7071 = vpack.c.b16 %v7053, %v7051
    %v7072 = vpack.c.b16 %v7056, %v7054
    %v7073 = vpack.c.b16 %v7057, %v7055
    %7090 = vmatprep.subr.bf16.mxu0 %v7059
    %7091 = vmatpush1.bf16.msra.mxu0 %v7058
    %7092 = vmatprep.subr.bf16.mxu0 %v7061
    %7093 = vmatpush1.bf16.msra.mxu0 %v7060
    %7094 = vmatprep.subr.bf16.mxu0 %v7063
    %7095 = vmatpush1.bf16.msra.mxu0 %v7062
    %7096 = vmatprep.subr.bf16.mxu0 %v7065
    %7097 = vmatpush1.bf16.msra.mxu0 %v7064
    %7098 = vmatprep.subr.bf16.mxu0 %v7067
    %7099 = vmatpush1.bf16.msra.mxu0 %v7066
    %7100 = vmatprep.subr.bf16.mxu0 %v7069
    %7101 = vmatpush1.bf16.msra.mxu0 %v7068
    %7102 = vmatprep.subr.bf16.mxu0 %v7071
    %7103 = vmatpush1.bf16.msra.mxu0 %v7070
    %7104 = vmatprep.subr.bf16.mxu0 %v7073
    %7105 = vmatpush1.bf16.msra.mxu0 %v7072
    %7106 = vmatprep.subr.bf16.mxu0 0
    %7107 = vmatpush1.bf16.msra.mxu0 0
    %7108 = vmatprep.subr.bf16.mxu0 0
    %7109 = vmatpush1.bf16.msra.mxu0 0
    %7110 = vmatprep.subr.bf16.mxu0 0
    %7111 = vmatpush1.bf16.msra.mxu0 0
    %7112 = vmatprep.subr.bf16.mxu0 0
    %7113 = vmatpush1.bf16.msra.mxu0 0
    %7114 = vmatprep.subr.bf16.mxu0 0
    %7115 = vmatpush1.bf16.msra.mxu0 0
    %7116 = vmatprep.subr.bf16.mxu0 0
    %7117 = vmatpush1.bf16.msra.mxu0 0
    %7118 = vmatprep.subr.bf16.mxu0 0
    %7119 = vmatpush1.bf16.msra.mxu0 0
    %7120 = vmatprep.subr.bf16.mxu0 0
    %7121 = vmatpush1.bf16.msra.mxu0 0
    %7122 = vmatprep.mubr.bf16.mxu0 0
    %7123 = vmatmul.mubr.bf16.gmra.mrb[0].mxu0 %v6981
    %v7124 = vpop.f32.mrb[0].mxu0
    %v7125 = vadd.f32 %v7003, %v7124
    %v7126 = vpop.f32.mrb[0].mxu0
    %v7127 = vadd.f32 %v7007, %v7126
    %v7128 = vpop.f32.mrb[0].mxu0
    %v7129 = vpop.f32.mrb[0].mxu0
    %7130 = vdwg.mxu0
    %v7133 = vcombine.low %v7125, %v7127
    %v7135 = vunpack.c.l.s4 1983009808
    %v7136 = vunpack.c.0.s8 %v7135
    %v7137 = vlaneseq
    %v7138 = vshrl.u32 %v7137, 7
    %v7139 = vsub.s32 %v7136, %v7138
    %v7140 = vrot.slane %v7133, %v7139
    %7142 = vst [vmem:[%s12] sm:$0xf] %v7140
    // Predicated region
    $region74: #{deepar_lstm_forward.1} parent=1 // pred_check
      _
    $region75: #{deepar_lstm_forward.1} parent=1 // pred_check_branch
      %7144 = sbr.rel (0) target = $region77
    $region76: #{deepar_lstm_forward.1} parent=1 // pred_region
      _
    $region77: #{deepar_lstm_forward.1} parent=1 // pred_fallthru
      _
    // Predicated region
    $region78: #{deepar_lstm_forward.1} parent=1 // pred_check
      _
    $region79: #{deepar_lstm_forward.1} parent=1 // pred_check_branch
      %7146 = sbr.rel (0) target = $region81
    $region80: #{deepar_lstm_forward.1} parent=1 // pred_region
      _
    $region81: #{deepar_lstm_forward.1} parent=1 // pred_fallthru
      _
    %7147 = vsyncpa [#allocation4], 1
    %7148 = vsyncpa [#allocation6], 1
    %7149 = vsyncpa [#allocation9], 1
    %7150 = vsyncpa [#allocation12], 1

</llo_original>
